<compile_context>
chip_gen: v6e
topology: v6e:2x2x1
jax: 0.10.0
libtpu: 0.0.40
codegen_flags: <defaults>
</compile_context>

<pallas_src>
import jax
import jax.numpy as jnp
from jax import lax
from jax.experimental import pallas as pl
from jax.experimental.pallas import tpu as pltpu

BATCH_TILE = 8   # sublane-dense batch tile; grid axis marked "parallel"


# --------------------------- fused Pallas kernel -----------------------------

def bilstm_crf_kernel(x_ref, mask_ref,
                      wih_f_ref, b_f_ref, wih_b_ref, b_b_ref,
                      whh_f_ref, whh_b_ref,
                      wtag_f_ref, wtag_b_ref, btag_ref,
                      trans_t_ref, start_ref, stop_ref,
                      tags_ref,
                      xg_f_ref, xg_b_ref, fwd_ref, bwd_ref, emis_ref, bp_ref):
    T, Bt, E = x_ref.shape
    H = whh_f_ref.shape[0]
    K = trans_t_ref.shape[0]
    TB = T * Bt
    f32 = jnp.float32

    # ---- stage 1: hoisted input projections (one MXU matmul per direction) --
    x_flat = x_ref[...].reshape(TB, E)
    xg_f_ref[...] = (jnp.dot(x_flat, wih_f_ref[...], preferred_element_type=f32)
                     + b_f_ref[...]).reshape(T, Bt, 4 * H)
    xg_b_ref[...] = (jnp.dot(x_flat, wih_b_ref[...], preferred_element_type=f32)
                     + b_b_ref[...]).reshape(T, Bt, 4 * H)

    whh_f = whh_f_ref[...]          # hoisted loop-invariant weight reads
    whh_b = whh_b_ref[...]

    def lstm_gates(pre, c_prev):
        i = jax.nn.sigmoid(pre[:, 0 * H:1 * H])
        f = jax.nn.sigmoid(pre[:, 1 * H:2 * H])
        g = jnp.tanh(pre[:, 2 * H:3 * H])
        o = jax.nn.sigmoid(pre[:, 3 * H:4 * H])
        c_new = f * c_prev + i * g
        h_new = o * jnp.tanh(c_new)
        return h_new, c_new

    zeros_bh = jnp.zeros((Bt, H), f32)

    # ---- stage 2: fused bidirectional recurrence ----------------------------
    # forward direction at step t, backward direction at step T-1-t; the two
    # independent chains interleave their h@Whh MXU pushes and VPU/EUP gates.
    def rnn_step(t, carry):
        h_f, c_f, h_b, c_b = carry
        tb = T - 1 - t
        pre_f = xg_f_ref[t] + jnp.dot(h_f, whh_f, preferred_element_type=f32)
        pre_b = xg_b_ref[tb] + jnp.dot(h_b, whh_b, preferred_element_type=f32)
        hf_new, cf_new = lstm_gates(pre_f, c_f)
        hb_new, cb_new = lstm_gates(pre_b, c_b)
        live_f = mask_ref[t] > 0.0          # [Bt, 1]
        live_b = mask_ref[tb] > 0.0
        h_f = jnp.where(live_f, hf_new, h_f)
        c_f = jnp.where(live_f, cf_new, c_f)
        h_b = jnp.where(live_b, hb_new, h_b)
        c_b = jnp.where(live_b, cb_new, c_b)
        # pad_packed_sequence semantics: padded positions -> 0
        fwd_ref[t] = jnp.where(live_f, hf_new, 0.0)
        bwd_ref[tb] = jnp.where(live_b, hb_new, 0.0)
        return h_f, c_f, h_b, c_b

    lax.fori_loop(0, T, rnn_step, (zeros_bh, zeros_bh, zeros_bh, zeros_bh),
                  unroll=True)

    # ---- stage 3: hidden2tag without concat (split weight) ------------------
    fwd_flat = fwd_ref[...].reshape(TB, H)
    bwd_flat = bwd_ref[...].reshape(TB, H)
    emis = (jnp.dot(fwd_flat, wtag_f_ref[...], preferred_element_type=f32)
            + jnp.dot(bwd_flat, wtag_b_ref[...], preferred_element_type=f32)
            + btag_ref[...])
    emis_ref[...] = emis.reshape(T, Bt, K)

    # ---- stage 4: CRF Viterbi forward DP -------------------------------------
    trans_b = trans_t_ref[...][None, :, :]                  # [1,K,K] hoisted
    idx_bk = lax.broadcasted_iota(jnp.int32, (Bt, K), 1)    # hoisted iotas
    idx_bkk = lax.broadcasted_iota(jnp.int32, (Bt, K, K), 2)

    bp_ref[0] = jnp.zeros((Bt, K), jnp.int32)
    v0 = start_ref[...] + emis_ref[0]                       # [Bt, K]

    def dp_step(t, v):
        # scores[b, j, i] = v[b, i] + trans[i -> j]  (trans_t[j, i] = trans[i, j])
        scores = v[:, None, :] + trans_b                    # [Bt, K, K]
        best = jnp.max(scores, axis=-1, keepdims=True)      # [Bt, K, 1]
        best_prev = jnp.min(jnp.where(scores >= best, idx_bkk, K),
                            axis=-1).astype(jnp.int32)      # [Bt, K]
        v_new = jnp.max(scores, axis=-1) + emis_ref[t]      # [Bt, K]
        live = mask_ref[t] > 0.0                            # [Bt, 1]
        # padded step: carry viterbi scores, identity backpointer
        bp_ref[t] = jnp.where(live, best_prev, idx_bk)
        return jnp.where(live, v_new, v)

    v = lax.fori_loop(1, T, dp_step, v0, unroll=True)

    final = v + stop_ref[...]                               # [Bt, K]
    fbest = jnp.max(final, axis=-1, keepdims=True)
    best_last = jnp.min(jnp.where(final >= fbest, idx_bk, K),
                        axis=-1, keepdims=True).astype(jnp.int32)   # [Bt, 1]

    # ---- stage 5: in-kernel backtrack (backpointers never leave VMEM) --------
    def bt_step(i, cur):
        t = T - 1 - i
        live = mask_ref[t] > 0.0
        tags_ref[t] = jnp.where(live, cur, 0)               # padded -> 0
        hit = idx_bk == cur                                 # one-hot select over K
        prev = jnp.max(jnp.where(hit, bp_ref[t], 0), axis=-1, keepdims=True)
        return prev

    lax.fori_loop(0, T, bt_step, best_last, unroll=True)


def run_bilstm_crf(x_tbe, mask_tb1, p, batch_tile):
    T, Bp, E = x_tbe.shape
    H = p['whh_f'].shape[0]
    G = 4 * H
    K = p['btag'].shape[-1]

    trans = p['trans']
    start_idx, stop_idx = K - 2, K - 1
    trans_t = jnp.transpose(trans)                  # trans_t[j, i] = trans[i, j]
    start_scores = trans[start_idx][None, :]        # [1, K]
    stop_scores = trans[:, stop_idx][None, :]       # [1, K]
    wtag_f = p['wtag'][:H]                          # [H, K]
    wtag_b = p['wtag'][H:]                          # [H, K]

    def full2(shape):
        return pl.BlockSpec(shape, lambda b: (0, 0))

    def tile3(last):
        return pl.BlockSpec((T, batch_tile, last), lambda b: (0, b, 0))

    return pl.pallas_call(
        bilstm_crf_kernel,
        out_shape=jax.ShapeDtypeStruct((T, Bp, 1), jnp.int32),
        grid=(Bp // batch_tile,),
        in_specs=[
            tile3(E),                       # x
            tile3(1),                       # mask
            full2(p['wih_f'].shape), full2(p['b_f'].shape),
            full2(p['wih_b'].shape), full2(p['b_b'].shape),
            full2(p['whh_f'].shape), full2(p['whh_b'].shape),
            full2((H, K)), full2((H, K)), full2(p['btag'].shape),
            full2((K, K)), full2((1, K)), full2((1, K)),
        ],
        out_specs=tile3(1),
        scratch_shapes=[
            pltpu.VMEM((T, batch_tile, G), jnp.float32),   # hoisted x@Wih (fwd)
            pltpu.VMEM((T, batch_tile, G), jnp.float32),   # hoisted x@Wih (bwd)
            pltpu.VMEM((T, batch_tile, H), jnp.float32),   # fwd hidden states
            pltpu.VMEM((T, batch_tile, H), jnp.float32),   # bwd hidden states
            pltpu.VMEM((T, batch_tile, K), jnp.float32),   # emissions
            pltpu.VMEM((T, batch_tile, K), jnp.int32),     # backpointers
        ],
        compiler_params=pltpu.CompilerParams(
            dimension_semantics=("parallel",)),
    )(x_tbe, mask_tb1,
      p['wih_f'], p['b_f'], p['wih_b'], p['b_b'],
      p['whh_f'], p['whh_b'],
      wtag_f, wtag_b, p['btag'],
      trans_t, start_scores, stop_scores)


# ------------------------------- JAX glue ------------------------------------

def bilstm_crf_forward(params, batch_input, batch_feature, batch_len,
                       batch_recover, mask):
    """Inference path (batch_label=None): returns tag_seq [B, T] int32."""
    del batch_len, batch_recover           # lengths are encoded in `mask`
    B, T = batch_input.shape

    # embeddings / repeat_interleave / concat (dropouts are identity in eval)
    char_embeds = params['char_emb'][batch_input]                 # [B, T, Dc]
    feat_embeds = params['feat_emb'][batch_feature[:, 0]]         # [B, Df]
    feat_embeds = jnp.broadcast_to(
        feat_embeds[:, None, :], (B, T, feat_embeds.shape[-1]))
    x = jnp.concatenate([char_embeds, feat_embeds], axis=-1)      # [B, T, E]

    # pad batch to a sublane-dense multiple of BATCH_TILE; padded rows have
    # mask == 0 so they contribute nothing and decode to tag 0
    b_pad = ((B + BATCH_TILE - 1) // BATCH_TILE) * BATCH_TILE
    pad = b_pad - B
    x = jnp.pad(x.astype(jnp.float32), ((0, pad), (0, 0), (0, 0)))
    mask_f = jnp.pad(mask.astype(jnp.float32), ((0, pad), (0, 0)))

    x_tbe = jnp.transpose(x, (1, 0, 2))                           # [T, Bp, E]
    mask_tb1 = jnp.transpose(mask_f)[:, :, None]                  # [T, Bp, 1]

    tags_tb1 = run_bilstm_crf(x_tbe, mask_tb1, params, BATCH_TILE)  # [T,Bp,1]
    return jnp.transpose(tags_tb1[:, :B, 0])                        # [B, T]


# --------------------------------- main ---------------------------------------

if __name__ == "__main__":
    key = jax.random.PRNGKey(0)
    B, T = 2, 8
    V_char, Dc = 20, 16          # char_alphabet_size, char_emb_dim
    V_feat, Df = 5, 8            # feat_alphabet_size, feature_emb_dim
    hidden_dim = 32
    H = hidden_dim // 2          # per-direction hidden
    label_size = 6
    K = label_size + 2           # tag dim incl. START/STOP
    E = Dc + Df

    ks = jax.random.split(key, 16)
    scale_c = float(jnp.sqrt(3.0 / Dc))

    def u(k, shape, s=0.1):
        return jax.random.uniform(k, shape, jnp.float32, -1.0, 1.0) * s

    # NCRF++-style transition constraints: nothing transitions INTO START,
    # nothing transitions OUT of STOP (prevents decoding START/STOP mid-path).
    trans = u(ks[10], (K, K))
    trans = trans.at[:, K - 2].set(-10000.0)
    trans = trans.at[K - 1, :].set(-10000.0)

    params = {
        'char_emb': jax.random.uniform(ks[0], (V_char, Dc), jnp.float32,
                                       -scale_c, scale_c),
        'feat_emb': u(ks[1], (V_feat, Df)),
        'wih_f': u(ks[2], (E, 4 * H)), 'whh_f': u(ks[3], (H, 4 * H)),
        'b_f': u(ks[4], (1, 4 * H)),
        'wih_b': u(ks[5], (E, 4 * H)), 'whh_b': u(ks[6], (H, 4 * H)),
        'b_b': u(ks[7], (1, 4 * H)),
        'wtag': u(ks[8], (2 * H, K)), 'btag': u(ks[9], (1, K)),
        'trans': trans,
    }

    batch_input = jax.random.randint(ks[11], (B, T), 0, V_char).astype(jnp.int32)
    batch_feature = jax.random.randint(ks[12], (B, 1), 0, V_feat).astype(jnp.int32)
    batch_len = jnp.array([T, T - 2], dtype=jnp.int32)       # sorted descending
    batch_recover = jnp.arange(B, dtype=jnp.int32)
    mask = (jnp.arange(T)[None, :] < batch_len[:, None])     # [B, T] bool

    tag_seq = bilstm_crf_forward(params, batch_input, batch_feature,
                                 batch_len, batch_recover, mask)
    jax.block_until_ready(tag_seq)
    assert tag_seq.shape == (B, T) and tag_seq.dtype == jnp.int32
    print("KERNEL_OK")
</pallas_src>

<mosaic_0001>
module attributes {stable_mosaic.version = 11 : i64} {
  func.func @bilstm_crf_kernel(%arg0: i32, %arg1: memref<8x8x24xf32, #tpu.memory_space<vmem>>, %arg2: memref<8x8x1xf32, #tpu.memory_space<vmem>>, %arg3: memref<24x64xf32, #tpu.memory_space<vmem>>, %arg4: memref<1x64xf32, #tpu.memory_space<vmem>>, %arg5: memref<24x64xf32, #tpu.memory_space<vmem>>, %arg6: memref<1x64xf32, #tpu.memory_space<vmem>>, %arg7: memref<16x64xf32, #tpu.memory_space<vmem>>, %arg8: memref<16x64xf32, #tpu.memory_space<vmem>>, %arg9: memref<16x8xf32, #tpu.memory_space<vmem>>, %arg10: memref<16x8xf32, #tpu.memory_space<vmem>>, %arg11: memref<1x8xf32, #tpu.memory_space<vmem>>, %arg12: memref<8x8xf32, #tpu.memory_space<vmem>>, %arg13: memref<1x8xf32, #tpu.memory_space<vmem>>, %arg14: memref<1x8xf32, #tpu.memory_space<vmem>>, %arg15: memref<8x8x1xi32, #tpu.memory_space<vmem>>, %arg16: memref<8x8x64xf32, #tpu.memory_space<vmem>>, %arg17: memref<8x8x64xf32, #tpu.memory_space<vmem>>, %arg18: memref<8x8x16xf32, #tpu.memory_space<vmem>>, %arg19: memref<8x8x16xf32, #tpu.memory_space<vmem>>, %arg20: memref<8x8x8xf32, #tpu.memory_space<vmem>>, %arg21: memref<8x8x8xi32, #tpu.memory_space<vmem>>) attributes {dimension_semantics = [#tpu.dimension_semantics<parallel>], iteration_bounds = array<i64: 1>, scalar_prefetch = 0 : i64, scratch_operands = 6 : i64, tpu.core_type = #tpu.core_type<tc>, window_params = [{transform_indices = @transform_0, window_bounds = array<i64: 8, 8, 24>}, {transform_indices = @transform_1, window_bounds = array<i64: 8, 8, 1>}, {pipeline_mode = #tpu.pipeline_mode<synchronous>, transform_indices = @transform_2, window_bounds = array<i64: 24, 64>}, {pipeline_mode = #tpu.pipeline_mode<synchronous>, transform_indices = @transform_3, window_bounds = array<i64: 1, 64>}, {pipeline_mode = #tpu.pipeline_mode<synchronous>, transform_indices = @transform_4, window_bounds = array<i64: 24, 64>}, {pipeline_mode = #tpu.pipeline_mode<synchronous>, transform_indices = @transform_5, window_bounds = array<i64: 1, 64>}, {pipeline_mode = #tpu.pipeline_mode<synchronous>, transform_indices = @transform_6, window_bounds = array<i64: 16, 64>}, {pipeline_mode = #tpu.pipeline_mode<synchronous>, transform_indices = @transform_7, window_bounds = array<i64: 16, 64>}, {pipeline_mode = #tpu.pipeline_mode<synchronous>, transform_indices = @transform_8, window_bounds = array<i64: 16, 8>}, {pipeline_mode = #tpu.pipeline_mode<synchronous>, transform_indices = @transform_9, window_bounds = array<i64: 16, 8>}, {pipeline_mode = #tpu.pipeline_mode<synchronous>, transform_indices = @transform_10, window_bounds = array<i64: 1, 8>}, {pipeline_mode = #tpu.pipeline_mode<synchronous>, transform_indices = @transform_11, window_bounds = array<i64: 8, 8>}, {pipeline_mode = #tpu.pipeline_mode<synchronous>, transform_indices = @transform_12, window_bounds = array<i64: 1, 8>}, {pipeline_mode = #tpu.pipeline_mode<synchronous>, transform_indices = @transform_13, window_bounds = array<i64: 1, 8>}, {transform_indices = @transform_14, window_bounds = array<i64: 8, 8, 1>}]} {
    %c0 = arith.constant 0 : index
    %c0_0 = arith.constant 0 : index
    %c0_1 = arith.constant 0 : index
    %0 = vector.load %arg1[%c0, %c0_0, %c0_1] : memref<8x8x24xf32, #tpu.memory_space<vmem>>, vector<8x8x24xf32>
    %1 = vector.shape_cast %0 : vector<8x8x24xf32> to vector<64x24xf32>
    %c0_2 = arith.constant 0 : index
    %c0_3 = arith.constant 0 : index
    %2 = vector.load %arg3[%c0_2, %c0_3] : memref<24x64xf32, #tpu.memory_space<vmem>>, vector<24x64xf32>
    %cst = arith.constant dense<0.000000e+00> : vector<64x64xf32>
    %3 = tpu.matmul %1, %2, %cst {dimension_numbers = #tpu.dot_dimension_numbers<[1], [0], [0], [1], [0, 0, 1, 1], [], []>} : vector<64x24xf32>, vector<24x64xf32>, vector<64x64xf32> -> vector<64x64xf32>
    %c0_4 = arith.constant 0 : index
    %c0_5 = arith.constant 0 : index
    %4 = vector.load %arg4[%c0_4, %c0_5] : memref<1x64xf32, #tpu.memory_space<vmem>>, vector<1x64xf32>
    %5 = vector.broadcast %4 : vector<1x64xf32> to vector<64x64xf32>
    %6 = arith.addf %3, %5 : vector<64x64xf32>
    %7 = vector.shape_cast %6 : vector<64x64xf32> to vector<8x8x64xf32>
    %c0_6 = arith.constant 0 : index
    %c0_7 = arith.constant 0 : index
    %c0_8 = arith.constant 0 : index
    %8 = vector.load %arg16[%c0_6, %c0_7, %c0_8] : memref<8x8x64xf32, #tpu.memory_space<vmem>>, vector<8x8x64xf32>
    tpu.vector_store %arg16[%c0_6, %c0_7, %c0_8], %7 {strides = array<i32>} : memref<8x8x64xf32, #tpu.memory_space<vmem>>, vector<8x8x64xf32>,
    %c0_9 = arith.constant 0 : index
    %c0_10 = arith.constant 0 : index
    %9 = vector.load %arg5[%c0_9, %c0_10] : memref<24x64xf32, #tpu.memory_space<vmem>>, vector<24x64xf32>
    %cst_11 = arith.constant dense<0.000000e+00> : vector<64x64xf32>
    %10 = tpu.matmul %1, %9, %cst_11 {dimension_numbers = #tpu.dot_dimension_numbers<[1], [0], [0], [1], [0, 0, 1, 1], [], []>} : vector<64x24xf32>, vector<24x64xf32>, vector<64x64xf32> -> vector<64x64xf32>
    %c0_12 = arith.constant 0 : index
    %c0_13 = arith.constant 0 : index
    %11 = vector.load %arg6[%c0_12, %c0_13] : memref<1x64xf32, #tpu.memory_space<vmem>>, vector<1x64xf32>
    %12 = vector.broadcast %11 : vector<1x64xf32> to vector<64x64xf32>
    %13 = arith.addf %10, %12 : vector<64x64xf32>
    %14 = vector.shape_cast %13 : vector<64x64xf32> to vector<8x8x64xf32>
    %c0_14 = arith.constant 0 : index
    %c0_15 = arith.constant 0 : index
    %c0_16 = arith.constant 0 : index
    %15 = vector.load %arg17[%c0_14, %c0_15, %c0_16] : memref<8x8x64xf32, #tpu.memory_space<vmem>>, vector<8x8x64xf32>
    tpu.vector_store %arg17[%c0_14, %c0_15, %c0_16], %14 {strides = array<i32>} : memref<8x8x64xf32, #tpu.memory_space<vmem>>, vector<8x8x64xf32>,
    %c0_17 = arith.constant 0 : index
    %c0_18 = arith.constant 0 : index
    %16 = vector.load %arg7[%c0_17, %c0_18] : memref<16x64xf32, #tpu.memory_space<vmem>>, vector<16x64xf32>
    %c0_19 = arith.constant 0 : index
    %c0_20 = arith.constant 0 : index
    %17 = vector.load %arg8[%c0_19, %c0_20] : memref<16x64xf32, #tpu.memory_space<vmem>>, vector<16x64xf32>
    %cst_21 = arith.constant 0.000000e+00 : f32
    %18 = vector.broadcast %cst_21 : f32 to vector<8x16xf32>
    %c0_i32 = arith.constant 0 : i32
    %c7_i32 = arith.constant 7 : i32
    %19 = arith.subi %c7_i32, %c0_i32 : i32
    %20 = arith.index_cast %c0_i32 : i32 to index
    %c0_22 = arith.constant 0 : index
    %c0_23 = arith.constant 0 : index
    %21 = vector.load %arg16[%20, %c0_22, %c0_23] : memref<8x8x64xf32, #tpu.memory_space<vmem>>, vector<1x8x64xf32>
    %22 = vector.shape_cast %21 : vector<1x8x64xf32> to vector<8x64xf32>
    %cst_24 = arith.constant dense<0.000000e+00> : vector<8x64xf32>
    %23 = tpu.matmul %18, %16, %cst_24 {dimension_numbers = #tpu.dot_dimension_numbers<[1], [0], [0], [1], [0, 0, 1, 1], [], []>} : vector<8x16xf32>, vector<16x64xf32>, vector<8x64xf32> -> vector<8x64xf32>
    %24 = arith.addf %22, %23 : vector<8x64xf32>
    %25 = arith.index_cast %19 : i32 to index
    %c0_25 = arith.constant 0 : index
    %c0_26 = arith.constant 0 : index
    %26 = vector.load %arg17[%25, %c0_25, %c0_26] : memref<8x8x64xf32, #tpu.memory_space<vmem>>, vector<1x8x64xf32>
    %27 = vector.shape_cast %26 : vector<1x8x64xf32> to vector<8x64xf32>
    %cst_27 = arith.constant dense<0.000000e+00> : vector<8x64xf32>
    %28 = tpu.matmul %18, %17, %cst_27 {dimension_numbers = #tpu.dot_dimension_numbers<[1], [0], [0], [1], [0, 0, 1, 1], [], []>} : vector<8x16xf32>, vector<16x64xf32>, vector<8x64xf32> -> vector<8x64xf32>
    %29 = arith.addf %27, %28 : vector<8x64xf32>
    %30 = vector.extract_strided_slice %24 {offsets = [0, 0], sizes = [8, 16], strides = [1, 1]} : vector<8x64xf32> to vector<8x16xf32>
    %31 = arith.negf %30 : vector<8x16xf32>
    %32 = math.exp %31 : vector<8x16xf32>
    %cst_28 = arith.constant 1.000000e+00 : f32
    %33 = vector.broadcast %cst_28 : f32 to vector<8x16xf32>
    %34 = arith.addf %33, %32 : vector<8x16xf32>
    %35 = arith.divf %33, %34 : vector<8x16xf32>
    %36 = vector.extract_strided_slice %24 {offsets = [0, 16], sizes = [8, 16], strides = [1, 1]} : vector<8x64xf32> to vector<8x16xf32>
    %37 = arith.negf %36 : vector<8x16xf32>
    %38 = math.exp %37 : vector<8x16xf32>
    %cst_29 = arith.constant 1.000000e+00 : f32
    %39 = vector.broadcast %cst_29 : f32 to vector<8x16xf32>
    %40 = arith.addf %39, %38 : vector<8x16xf32>
    %41 = arith.divf %39, %40 : vector<8x16xf32>
    %42 = vector.extract_strided_slice %24 {offsets = [0, 32], sizes = [8, 16], strides = [1, 1]} : vector<8x64xf32> to vector<8x16xf32>
    %43 = math.tanh %42 : vector<8x16xf32>
    %44 = vector.extract_strided_slice %24 {offsets = [0, 48], sizes = [8, 16], strides = [1, 1]} : vector<8x64xf32> to vector<8x16xf32>
    %45 = arith.negf %44 : vector<8x16xf32>
    %46 = math.exp %45 : vector<8x16xf32>
    %cst_30 = arith.constant 1.000000e+00 : f32
    %47 = vector.broadcast %cst_30 : f32 to vector<8x16xf32>
    %48 = arith.addf %47, %46 : vector<8x16xf32>
    %49 = arith.divf %47, %48 : vector<8x16xf32>
    %50 = arith.mulf %41, %18 : vector<8x16xf32>
    %51 = arith.mulf %35, %43 : vector<8x16xf32>
    %52 = arith.addf %50, %51 : vector<8x16xf32>
    %53 = math.tanh %52 : vector<8x16xf32>
    %54 = arith.mulf %49, %53 : vector<8x16xf32>
    %55 = vector.extract_strided_slice %29 {offsets = [0, 0], sizes = [8, 16], strides = [1, 1]} : vector<8x64xf32> to vector<8x16xf32>
    %56 = arith.negf %55 : vector<8x16xf32>
    %57 = math.exp %56 : vector<8x16xf32>
    %cst_31 = arith.constant 1.000000e+00 : f32
    %58 = vector.broadcast %cst_31 : f32 to vector<8x16xf32>
    %59 = arith.addf %58, %57 : vector<8x16xf32>
    %60 = arith.divf %58, %59 : vector<8x16xf32>
    %61 = vector.extract_strided_slice %29 {offsets = [0, 16], sizes = [8, 16], strides = [1, 1]} : vector<8x64xf32> to vector<8x16xf32>
    %62 = arith.negf %61 : vector<8x16xf32>
    %63 = math.exp %62 : vector<8x16xf32>
    %cst_32 = arith.constant 1.000000e+00 : f32
    %64 = vector.broadcast %cst_32 : f32 to vector<8x16xf32>
    %65 = arith.addf %64, %63 : vector<8x16xf32>
    %66 = arith.divf %64, %65 : vector<8x16xf32>
    %67 = vector.extract_strided_slice %29 {offsets = [0, 32], sizes = [8, 16], strides = [1, 1]} : vector<8x64xf32> to vector<8x16xf32>
    %68 = math.tanh %67 : vector<8x16xf32>
    %69 = vector.extract_strided_slice %29 {offsets = [0, 48], sizes = [8, 16], strides = [1, 1]} : vector<8x64xf32> to vector<8x16xf32>
    %70 = arith.negf %69 : vector<8x16xf32>
    %71 = math.exp %70 : vector<8x16xf32>
    %cst_33 = arith.constant 1.000000e+00 : f32
    %72 = vector.broadcast %cst_33 : f32 to vector<8x16xf32>
    %73 = arith.addf %72, %71 : vector<8x16xf32>
    %74 = arith.divf %72, %73 : vector<8x16xf32>
    %75 = arith.mulf %66, %18 : vector<8x16xf32>
    %76 = arith.mulf %60, %68 : vector<8x16xf32>
    %77 = arith.addf %75, %76 : vector<8x16xf32>
    %78 = math.tanh %77 : vector<8x16xf32>
    %79 = arith.mulf %74, %78 : vector<8x16xf32>
    %80 = arith.index_cast %c0_i32 : i32 to index
    %c0_34 = arith.constant 0 : index
    %c0_35 = arith.constant 0 : index
    %81 = vector.load %arg2[%80, %c0_34, %c0_35] : memref<8x8x1xf32, #tpu.memory_space<vmem>>, vector<1x8x1xf32>
    %82 = vector.shape_cast %81 : vector<1x8x1xf32> to vector<8x1xf32>
    %cst_36 = arith.constant 0.000000e+00 : f32
    %83 = vector.broadcast %cst_36 : f32 to vector<8x1xf32>
    %84 = arith.cmpf ogt, %82, %83 : vector<8x1xf32>
    %85 = arith.index_cast %19 : i32 to index
    %c0_37 = arith.constant 0 : index
    %c0_38 = arith.constant 0 : index
    %86 = vector.load %arg2[%85, %c0_37, %c0_38] : memref<8x8x1xf32, #tpu.memory_space<vmem>>, vector<1x8x1xf32>
    %87 = vector.shape_cast %86 : vector<1x8x1xf32> to vector<8x1xf32>
    %cst_39 = arith.constant 0.000000e+00 : f32
    %88 = vector.broadcast %cst_39 : f32 to vector<8x1xf32>
    %89 = arith.cmpf ogt, %87, %88 : vector<8x1xf32>
    %90 = vector.shape_cast %84 : vector<8x1xi1> to vector<8x1xi1>
    %91 = vector.broadcast %90 : vector<8x1xi1> to vector<8x16xi1>
    %92 = arith.select %91, %54, %18 : vector<8x16xi1>, vector<8x16xf32>
    %93 = vector.shape_cast %84 : vector<8x1xi1> to vector<8x1xi1>
    %94 = vector.broadcast %93 : vector<8x1xi1> to vector<8x16xi1>
    %95 = arith.select %94, %52, %18 : vector<8x16xi1>, vector<8x16xf32>
    %96 = vector.shape_cast %89 : vector<8x1xi1> to vector<8x1xi1>
    %97 = vector.broadcast %96 : vector<8x1xi1> to vector<8x16xi1>
    %98 = arith.select %97, %79, %18 : vector<8x16xi1>, vector<8x16xf32>
    %99 = vector.shape_cast %89 : vector<8x1xi1> to vector<8x1xi1>
    %100 = vector.broadcast %99 : vector<8x1xi1> to vector<8x16xi1>
    %101 = arith.select %100, %77, %18 : vector<8x16xi1>, vector<8x16xf32>
    %cst_40 = arith.constant 0.000000e+00 : f32
    %102 = vector.shape_cast %84 : vector<8x1xi1> to vector<8x1xi1>
    %103 = vector.broadcast %102 : vector<8x1xi1> to vector<8x16xi1>
    %104 = vector.broadcast %cst_40 : f32 to vector<8x16xf32>
    %105 = arith.select %103, %54, %104 : vector<8x16xi1>, vector<8x16xf32>
    %106 = arith.index_cast %c0_i32 : i32 to index
    %c0_41 = arith.constant 0 : index
    %c0_42 = arith.constant 0 : index
    %107 = vector.load %arg18[%106, %c0_41, %c0_42] : memref<8x8x16xf32, #tpu.memory_space<vmem>>, vector<1x8x16xf32>
    %108 = vector.shape_cast %107 : vector<1x8x16xf32> to vector<8x16xf32>
    %109 = vector.shape_cast %105 : vector<8x16xf32> to vector<1x8x16xf32>
    tpu.vector_store %arg18[%106, %c0_41, %c0_42], %109 {strides = array<i32>} : memref<8x8x16xf32, #tpu.memory_space<vmem>>, vector<1x8x16xf32>,
    %cst_43 = arith.constant 0.000000e+00 : f32
    %110 = vector.shape_cast %89 : vector<8x1xi1> to vector<8x1xi1>
    %111 = vector.broadcast %110 : vector<8x1xi1> to vector<8x16xi1>
    %112 = vector.broadcast %cst_43 : f32 to vector<8x16xf32>
    %113 = arith.select %111, %79, %112 : vector<8x16xi1>, vector<8x16xf32>
    %114 = arith.index_cast %19 : i32 to index
    %c0_44 = arith.constant 0 : index
    %c0_45 = arith.constant 0 : index
    %115 = vector.load %arg19[%114, %c0_44, %c0_45] : memref<8x8x16xf32, #tpu.memory_space<vmem>>, vector<1x8x16xf32>
    %116 = vector.shape_cast %115 : vector<1x8x16xf32> to vector<8x16xf32>
    %117 = vector.shape_cast %113 : vector<8x16xf32> to vector<1x8x16xf32>
    tpu.vector_store %arg19[%114, %c0_44, %c0_45], %117 {strides = array<i32>} : memref<8x8x16xf32, #tpu.memory_space<vmem>>, vector<1x8x16xf32>,
    %c1_i32 = arith.constant 1 : i32
    %c7_i32_46 = arith.constant 7 : i32
    %118 = arith.subi %c7_i32_46, %c1_i32 : i32
    %119 = arith.index_cast %c1_i32 : i32 to index
    %c0_47 = arith.constant 0 : index
    %c0_48 = arith.constant 0 : index
    %120 = vector.load %arg16[%119, %c0_47, %c0_48] : memref<8x8x64xf32, #tpu.memory_space<vmem>>, vector<1x8x64xf32>
    %121 = vector.shape_cast %120 : vector<1x8x64xf32> to vector<8x64xf32>
    %cst_49 = arith.constant dense<0.000000e+00> : vector<8x64xf32>
    %122 = tpu.matmul %92, %16, %cst_49 {dimension_numbers = #tpu.dot_dimension_numbers<[1], [0], [0], [1], [0, 0, 1, 1], [], []>} : vector<8x16xf32>, vector<16x64xf32>, vector<8x64xf32> -> vector<8x64xf32>
    %123 = arith.addf %121, %122 : vector<8x64xf32>
    %124 = arith.index_cast %118 : i32 to index
    %c0_50 = arith.constant 0 : index
    %c0_51 = arith.constant 0 : index
    %125 = vector.load %arg17[%124, %c0_50, %c0_51] : memref<8x8x64xf32, #tpu.memory_space<vmem>>, vector<1x8x64xf32>
    %126 = vector.shape_cast %125 : vector<1x8x64xf32> to vector<8x64xf32>
    %cst_52 = arith.constant dense<0.000000e+00> : vector<8x64xf32>
    %127 = tpu.matmul %98, %17, %cst_52 {dimension_numbers = #tpu.dot_dimension_numbers<[1], [0], [0], [1], [0, 0, 1, 1], [], []>} : vector<8x16xf32>, vector<16x64xf32>, vector<8x64xf32> -> vector<8x64xf32>
    %128 = arith.addf %126, %127 : vector<8x64xf32>
    %129 = vector.extract_strided_slice %123 {offsets = [0, 0], sizes = [8, 16], strides = [1, 1]} : vector<8x64xf32> to vector<8x16xf32>
    %130 = arith.negf %129 : vector<8x16xf32>
    %131 = math.exp %130 : vector<8x16xf32>
    %cst_53 = arith.constant 1.000000e+00 : f32
    %132 = vector.broadcast %cst_53 : f32 to vector<8x16xf32>
    %133 = arith.addf %132, %131 : vector<8x16xf32>
    %134 = arith.divf %132, %133 : vector<8x16xf32>
    %135 = vector.extract_strided_slice %123 {offsets = [0, 16], sizes = [8, 16], strides = [1, 1]} : vector<8x64xf32> to vector<8x16xf32>
    %136 = arith.negf %135 : vector<8x16xf32>
    %137 = math.exp %136 : vector<8x16xf32>
    %cst_54 = arith.constant 1.000000e+00 : f32
    %138 = vector.broadcast %cst_54 : f32 to vector<8x16xf32>
    %139 = arith.addf %138, %137 : vector<8x16xf32>
    %140 = arith.divf %138, %139 : vector<8x16xf32>
    %141 = vector.extract_strided_slice %123 {offsets = [0, 32], sizes = [8, 16], strides = [1, 1]} : vector<8x64xf32> to vector<8x16xf32>
    %142 = math.tanh %141 : vector<8x16xf32>
    %143 = vector.extract_strided_slice %123 {offsets = [0, 48], sizes = [8, 16], strides = [1, 1]} : vector<8x64xf32> to vector<8x16xf32>
    %144 = arith.negf %143 : vector<8x16xf32>
    %145 = math.exp %144 : vector<8x16xf32>
    %cst_55 = arith.constant 1.000000e+00 : f32
    %146 = vector.broadcast %cst_55 : f32 to vector<8x16xf32>
    %147 = arith.addf %146, %145 : vector<8x16xf32>
    %148 = arith.divf %146, %147 : vector<8x16xf32>
    %149 = arith.mulf %140, %95 : vector<8x16xf32>
    %150 = arith.mulf %134, %142 : vector<8x16xf32>
    %151 = arith.addf %149, %150 : vector<8x16xf32>
    %152 = math.tanh %151 : vector<8x16xf32>
    %153 = arith.mulf %148, %152 : vector<8x16xf32>
    %154 = vector.extract_strided_slice %128 {offsets = [0, 0], sizes = [8, 16], strides = [1, 1]} : vector<8x64xf32> to vector<8x16xf32>
    %155 = arith.negf %154 : vector<8x16xf32>
    %156 = math.exp %155 : vector<8x16xf32>
    %cst_56 = arith.constant 1.000000e+00 : f32
    %157 = vector.broadcast %cst_56 : f32 to vector<8x16xf32>
    %158 = arith.addf %157, %156 : vector<8x16xf32>
    %159 = arith.divf %157, %158 : vector<8x16xf32>
    %160 = vector.extract_strided_slice %128 {offsets = [0, 16], sizes = [8, 16], strides = [1, 1]} : vector<8x64xf32> to vector<8x16xf32>
    %161 = arith.negf %160 : vector<8x16xf32>
    %162 = math.exp %161 : vector<8x16xf32>
    %cst_57 = arith.constant 1.000000e+00 : f32
    %163 = vector.broadcast %cst_57 : f32 to vector<8x16xf32>
    %164 = arith.addf %163, %162 : vector<8x16xf32>
    %165 = arith.divf %163, %164 : vector<8x16xf32>
    %166 = vector.extract_strided_slice %128 {offsets = [0, 32], sizes = [8, 16], strides = [1, 1]} : vector<8x64xf32> to vector<8x16xf32>
    %167 = math.tanh %166 : vector<8x16xf32>
    %168 = vector.extract_strided_slice %128 {offsets = [0, 48], sizes = [8, 16], strides = [1, 1]} : vector<8x64xf32> to vector<8x16xf32>
    %169 = arith.negf %168 : vector<8x16xf32>
    %170 = math.exp %169 : vector<8x16xf32>
    %cst_58 = arith.constant 1.000000e+00 : f32
    %171 = vector.broadcast %cst_58 : f32 to vector<8x16xf32>
    %172 = arith.addf %171, %170 : vector<8x16xf32>
    %173 = arith.divf %171, %172 : vector<8x16xf32>
    %174 = arith.mulf %165, %101 : vector<8x16xf32>
    %175 = arith.mulf %159, %167 : vector<8x16xf32>
    %176 = arith.addf %174, %175 : vector<8x16xf32>
    %177 = math.tanh %176 : vector<8x16xf32>
    %178 = arith.mulf %173, %177 : vector<8x16xf32>
    %179 = arith.index_cast %c1_i32 : i32 to index
    %c0_59 = arith.constant 0 : index
    %c0_60 = arith.constant 0 : index
    %180 = vector.load %arg2[%179, %c0_59, %c0_60] : memref<8x8x1xf32, #tpu.memory_space<vmem>>, vector<1x8x1xf32>
    %181 = vector.shape_cast %180 : vector<1x8x1xf32> to vector<8x1xf32>
    %cst_61 = arith.constant 0.000000e+00 : f32
    %182 = vector.broadcast %cst_61 : f32 to vector<8x1xf32>
    %183 = arith.cmpf ogt, %181, %182 : vector<8x1xf32>
    %184 = arith.index_cast %118 : i32 to index
    %c0_62 = arith.constant 0 : index
    %c0_63 = arith.constant 0 : index
    %185 = vector.load %arg2[%184, %c0_62, %c0_63] : memref<8x8x1xf32, #tpu.memory_space<vmem>>, vector<1x8x1xf32>
    %186 = vector.shape_cast %185 : vector<1x8x1xf32> to vector<8x1xf32>
    %cst_64 = arith.constant 0.000000e+00 : f32
    %187 = vector.broadcast %cst_64 : f32 to vector<8x1xf32>
    %188 = arith.cmpf ogt, %186, %187 : vector<8x1xf32>
    %189 = vector.shape_cast %183 : vector<8x1xi1> to vector<8x1xi1>
    %190 = vector.broadcast %189 : vector<8x1xi1> to vector<8x16xi1>
    %191 = arith.select %190, %153, %92 : vector<8x16xi1>, vector<8x16xf32>
    %192 = vector.shape_cast %183 : vector<8x1xi1> to vector<8x1xi1>
    %193 = vector.broadcast %192 : vector<8x1xi1> to vector<8x16xi1>
    %194 = arith.select %193, %151, %95 : vector<8x16xi1>, vector<8x16xf32>
    %195 = vector.shape_cast %188 : vector<8x1xi1> to vector<8x1xi1>
    %196 = vector.broadcast %195 : vector<8x1xi1> to vector<8x16xi1>
    %197 = arith.select %196, %178, %98 : vector<8x16xi1>, vector<8x16xf32>
    %198 = vector.shape_cast %188 : vector<8x1xi1> to vector<8x1xi1>
    %199 = vector.broadcast %198 : vector<8x1xi1> to vector<8x16xi1>
    %200 = arith.select %199, %176, %101 : vector<8x16xi1>, vector<8x16xf32>
    %cst_65 = arith.constant 0.000000e+00 : f32
    %201 = vector.shape_cast %183 : vector<8x1xi1> to vector<8x1xi1>
    %202 = vector.broadcast %201 : vector<8x1xi1> to vector<8x16xi1>
    %203 = vector.broadcast %cst_65 : f32 to vector<8x16xf32>
    %204 = arith.select %202, %153, %203 : vector<8x16xi1>, vector<8x16xf32>
    %205 = arith.index_cast %c1_i32 : i32 to index
    %c0_66 = arith.constant 0 : index
    %c0_67 = arith.constant 0 : index
    %206 = vector.load %arg18[%205, %c0_66, %c0_67] : memref<8x8x16xf32, #tpu.memory_space<vmem>>, vector<1x8x16xf32>
    %207 = vector.shape_cast %206 : vector<1x8x16xf32> to vector<8x16xf32>
    %208 = vector.shape_cast %204 : vector<8x16xf32> to vector<1x8x16xf32>
    tpu.vector_store %arg18[%205, %c0_66, %c0_67], %208 {strides = array<i32>} : memref<8x8x16xf32, #tpu.memory_space<vmem>>, vector<1x8x16xf32>,
    %cst_68 = arith.constant 0.000000e+00 : f32
    %209 = vector.shape_cast %188 : vector<8x1xi1> to vector<8x1xi1>
    %210 = vector.broadcast %209 : vector<8x1xi1> to vector<8x16xi1>
    %211 = vector.broadcast %cst_68 : f32 to vector<8x16xf32>
    %212 = arith.select %210, %178, %211 : vector<8x16xi1>, vector<8x16xf32>
    %213 = arith.index_cast %118 : i32 to index
    %c0_69 = arith.constant 0 : index
    %c0_70 = arith.constant 0 : index
    %214 = vector.load %arg19[%213, %c0_69, %c0_70] : memref<8x8x16xf32, #tpu.memory_space<vmem>>, vector<1x8x16xf32>
    %215 = vector.shape_cast %214 : vector<1x8x16xf32> to vector<8x16xf32>
    %216 = vector.shape_cast %212 : vector<8x16xf32> to vector<1x8x16xf32>
    tpu.vector_store %arg19[%213, %c0_69, %c0_70], %216 {strides = array<i32>} : memref<8x8x16xf32, #tpu.memory_space<vmem>>, vector<1x8x16xf32>,
    %c2_i32 = arith.constant 2 : i32
    %c7_i32_71 = arith.constant 7 : i32
    %217 = arith.subi %c7_i32_71, %c2_i32 : i32
    %218 = arith.index_cast %c2_i32 : i32 to index
    %c0_72 = arith.constant 0 : index
    %c0_73 = arith.constant 0 : index
    %219 = vector.load %arg16[%218, %c0_72, %c0_73] : memref<8x8x64xf32, #tpu.memory_space<vmem>>, vector<1x8x64xf32>
    %220 = vector.shape_cast %219 : vector<1x8x64xf32> to vector<8x64xf32>
    %cst_74 = arith.constant dense<0.000000e+00> : vector<8x64xf32>
    %221 = tpu.matmul %191, %16, %cst_74 {dimension_numbers = #tpu.dot_dimension_numbers<[1], [0], [0], [1], [0, 0, 1, 1], [], []>} : vector<8x16xf32>, vector<16x64xf32>, vector<8x64xf32> -> vector<8x64xf32>
    %222 = arith.addf %220, %221 : vector<8x64xf32>
    %223 = arith.index_cast %217 : i32 to index
    %c0_75 = arith.constant 0 : index
    %c0_76 = arith.constant 0 : index
    %224 = vector.load %arg17[%223, %c0_75, %c0_76] : memref<8x8x64xf32, #tpu.memory_space<vmem>>, vector<1x8x64xf32>
    %225 = vector.shape_cast %224 : vector<1x8x64xf32> to vector<8x64xf32>
    %cst_77 = arith.constant dense<0.000000e+00> : vector<8x64xf32>
    %226 = tpu.matmul %197, %17, %cst_77 {dimension_numbers = #tpu.dot_dimension_numbers<[1], [0], [0], [1], [0, 0, 1, 1], [], []>} : vector<8x16xf32>, vector<16x64xf32>, vector<8x64xf32> -> vector<8x64xf32>
    %227 = arith.addf %225, %226 : vector<8x64xf32>
    %228 = vector.extract_strided_slice %222 {offsets = [0, 0], sizes = [8, 16], strides = [1, 1]} : vector<8x64xf32> to vector<8x16xf32>
    %229 = arith.negf %228 : vector<8x16xf32>
    %230 = math.exp %229 : vector<8x16xf32>
    %cst_78 = arith.constant 1.000000e+00 : f32
    %231 = vector.broadcast %cst_78 : f32 to vector<8x16xf32>
    %232 = arith.addf %231, %230 : vector<8x16xf32>
    %233 = arith.divf %231, %232 : vector<8x16xf32>
    %234 = vector.extract_strided_slice %222 {offsets = [0, 16], sizes = [8, 16], strides = [1, 1]} : vector<8x64xf32> to vector<8x16xf32>
    %235 = arith.negf %234 : vector<8x16xf32>
    %236 = math.exp %235 : vector<8x16xf32>
    %cst_79 = arith.constant 1.000000e+00 : f32
    %237 = vector.broadcast %cst_79 : f32 to vector<8x16xf32>
    %238 = arith.addf %237, %236 : vector<8x16xf32>
    %239 = arith.divf %237, %238 : vector<8x16xf32>
    %240 = vector.extract_strided_slice %222 {offsets = [0, 32], sizes = [8, 16], strides = [1, 1]} : vector<8x64xf32> to vector<8x16xf32>
    %241 = math.tanh %240 : vector<8x16xf32>
    %242 = vector.extract_strided_slice %222 {offsets = [0, 48], sizes = [8, 16], strides = [1, 1]} : vector<8x64xf32> to vector<8x16xf32>
    %243 = arith.negf %242 : vector<8x16xf32>
    %244 = math.exp %243 : vector<8x16xf32>
    %cst_80 = arith.constant 1.000000e+00 : f32
    %245 = vector.broadcast %cst_80 : f32 to vector<8x16xf32>
    %246 = arith.addf %245, %244 : vector<8x16xf32>
    %247 = arith.divf %245, %246 : vector<8x16xf32>
    %248 = arith.mulf %239, %194 : vector<8x16xf32>
    %249 = arith.mulf %233, %241 : vector<8x16xf32>
    %250 = arith.addf %248, %249 : vector<8x16xf32>
    %251 = math.tanh %250 : vector<8x16xf32>
    %252 = arith.mulf %247, %251 : vector<8x16xf32>
    %253 = vector.extract_strided_slice %227 {offsets = [0, 0], sizes = [8, 16], strides = [1, 1]} : vector<8x64xf32> to vector<8x16xf32>
    %254 = arith.negf %253 : vector<8x16xf32>
    %255 = math.exp %254 : vector<8x16xf32>
    %cst_81 = arith.constant 1.000000e+00 : f32
    %256 = vector.broadcast %cst_81 : f32 to vector<8x16xf32>
    %257 = arith.addf %256, %255 : vector<8x16xf32>
    %258 = arith.divf %256, %257 : vector<8x16xf32>
    %259 = vector.extract_strided_slice %227 {offsets = [0, 16], sizes = [8, 16], strides = [1, 1]} : vector<8x64xf32> to vector<8x16xf32>
    %260 = arith.negf %259 : vector<8x16xf32>
    %261 = math.exp %260 : vector<8x16xf32>
    %cst_82 = arith.constant 1.000000e+00 : f32
    %262 = vector.broadcast %cst_82 : f32 to vector<8x16xf32>
    %263 = arith.addf %262, %261 : vector<8x16xf32>
    %264 = arith.divf %262, %263 : vector<8x16xf32>
    %265 = vector.extract_strided_slice %227 {offsets = [0, 32], sizes = [8, 16], strides = [1, 1]} : vector<8x64xf32> to vector<8x16xf32>
    %266 = math.tanh %265 : vector<8x16xf32>
    %267 = vector.extract_strided_slice %227 {offsets = [0, 48], sizes = [8, 16], strides = [1, 1]} : vector<8x64xf32> to vector<8x16xf32>
    %268 = arith.negf %267 : vector<8x16xf32>
    %269 = math.exp %268 : vector<8x16xf32>
    %cst_83 = arith.constant 1.000000e+00 : f32
    %270 = vector.broadcast %cst_83 : f32 to vector<8x16xf32>
    %271 = arith.addf %270, %269 : vector<8x16xf32>
    %272 = arith.divf %270, %271 : vector<8x16xf32>
    %273 = arith.mulf %264, %200 : vector<8x16xf32>
    %274 = arith.mulf %258, %266 : vector<8x16xf32>
    %275 = arith.addf %273, %274 : vector<8x16xf32>
    %276 = math.tanh %275 : vector<8x16xf32>
    %277 = arith.mulf %272, %276 : vector<8x16xf32>
    %278 = arith.index_cast %c2_i32 : i32 to index
    %c0_84 = arith.constant 0 : index
    %c0_85 = arith.constant 0 : index
    %279 = vector.load %arg2[%278, %c0_84, %c0_85] : memref<8x8x1xf32, #tpu.memory_space<vmem>>, vector<1x8x1xf32>
    %280 = vector.shape_cast %279 : vector<1x8x1xf32> to vector<8x1xf32>
    %cst_86 = arith.constant 0.000000e+00 : f32
    %281 = vector.broadcast %cst_86 : f32 to vector<8x1xf32>
    %282 = arith.cmpf ogt, %280, %281 : vector<8x1xf32>
    %283 = arith.index_cast %217 : i32 to index
    %c0_87 = arith.constant 0 : index
    %c0_88 = arith.constant 0 : index
    %284 = vector.load %arg2[%283, %c0_87, %c0_88] : memref<8x8x1xf32, #tpu.memory_space<vmem>>, vector<1x8x1xf32>
    %285 = vector.shape_cast %284 : vector<1x8x1xf32> to vector<8x1xf32>
    %cst_89 = arith.constant 0.000000e+00 : f32
    %286 = vector.broadcast %cst_89 : f32 to vector<8x1xf32>
    %287 = arith.cmpf ogt, %285, %286 : vector<8x1xf32>
    %288 = vector.shape_cast %282 : vector<8x1xi1> to vector<8x1xi1>
    %289 = vector.broadcast %288 : vector<8x1xi1> to vector<8x16xi1>
    %290 = arith.select %289, %252, %191 : vector<8x16xi1>, vector<8x16xf32>
    %291 = vector.shape_cast %282 : vector<8x1xi1> to vector<8x1xi1>
    %292 = vector.broadcast %291 : vector<8x1xi1> to vector<8x16xi1>
    %293 = arith.select %292, %250, %194 : vector<8x16xi1>, vector<8x16xf32>
    %294 = vector.shape_cast %287 : vector<8x1xi1> to vector<8x1xi1>
    %295 = vector.broadcast %294 : vector<8x1xi1> to vector<8x16xi1>
    %296 = arith.select %295, %277, %197 : vector<8x16xi1>, vector<8x16xf32>
    %297 = vector.shape_cast %287 : vector<8x1xi1> to vector<8x1xi1>
    %298 = vector.broadcast %297 : vector<8x1xi1> to vector<8x16xi1>
    %299 = arith.select %298, %275, %200 : vector<8x16xi1>, vector<8x16xf32>
    %cst_90 = arith.constant 0.000000e+00 : f32
    %300 = vector.shape_cast %282 : vector<8x1xi1> to vector<8x1xi1>
    %301 = vector.broadcast %300 : vector<8x1xi1> to vector<8x16xi1>
    %302 = vector.broadcast %cst_90 : f32 to vector<8x16xf32>
    %303 = arith.select %301, %252, %302 : vector<8x16xi1>, vector<8x16xf32>
    %304 = arith.index_cast %c2_i32 : i32 to index
    %c0_91 = arith.constant 0 : index
    %c0_92 = arith.constant 0 : index
    %305 = vector.load %arg18[%304, %c0_91, %c0_92] : memref<8x8x16xf32, #tpu.memory_space<vmem>>, vector<1x8x16xf32>
    %306 = vector.shape_cast %305 : vector<1x8x16xf32> to vector<8x16xf32>
    %307 = vector.shape_cast %303 : vector<8x16xf32> to vector<1x8x16xf32>
    tpu.vector_store %arg18[%304, %c0_91, %c0_92], %307 {strides = array<i32>} : memref<8x8x16xf32, #tpu.memory_space<vmem>>, vector<1x8x16xf32>,
    %cst_93 = arith.constant 0.000000e+00 : f32
    %308 = vector.shape_cast %287 : vector<8x1xi1> to vector<8x1xi1>
    %309 = vector.broadcast %308 : vector<8x1xi1> to vector<8x16xi1>
    %310 = vector.broadcast %cst_93 : f32 to vector<8x16xf32>
    %311 = arith.select %309, %277, %310 : vector<8x16xi1>, vector<8x16xf32>
    %312 = arith.index_cast %217 : i32 to index
    %c0_94 = arith.constant 0 : index
    %c0_95 = arith.constant 0 : index
    %313 = vector.load %arg19[%312, %c0_94, %c0_95] : memref<8x8x16xf32, #tpu.memory_space<vmem>>, vector<1x8x16xf32>
    %314 = vector.shape_cast %313 : vector<1x8x16xf32> to vector<8x16xf32>
    %315 = vector.shape_cast %311 : vector<8x16xf32> to vector<1x8x16xf32>
    tpu.vector_store %arg19[%312, %c0_94, %c0_95], %315 {strides = array<i32>} : memref<8x8x16xf32, #tpu.memory_space<vmem>>, vector<1x8x16xf32>,
    %c3_i32 = arith.constant 3 : i32
    %c7_i32_96 = arith.constant 7 : i32
    %316 = arith.subi %c7_i32_96, %c3_i32 : i32
    %317 = arith.index_cast %c3_i32 : i32 to index
    %c0_97 = arith.constant 0 : index
    %c0_98 = arith.constant 0 : index
    %318 = vector.load %arg16[%317, %c0_97, %c0_98] : memref<8x8x64xf32, #tpu.memory_space<vmem>>, vector<1x8x64xf32>
    %319 = vector.shape_cast %318 : vector<1x8x64xf32> to vector<8x64xf32>
    %cst_99 = arith.constant dense<0.000000e+00> : vector<8x64xf32>
    %320 = tpu.matmul %290, %16, %cst_99 {dimension_numbers = #tpu.dot_dimension_numbers<[1], [0], [0], [1], [0, 0, 1, 1], [], []>} : vector<8x16xf32>, vector<16x64xf32>, vector<8x64xf32> -> vector<8x64xf32>
    %321 = arith.addf %319, %320 : vector<8x64xf32>
    %322 = arith.index_cast %316 : i32 to index
    %c0_100 = arith.constant 0 : index
    %c0_101 = arith.constant 0 : index
    %323 = vector.load %arg17[%322, %c0_100, %c0_101] : memref<8x8x64xf32, #tpu.memory_space<vmem>>, vector<1x8x64xf32>
    %324 = vector.shape_cast %323 : vector<1x8x64xf32> to vector<8x64xf32>
    %cst_102 = arith.constant dense<0.000000e+00> : vector<8x64xf32>
    %325 = tpu.matmul %296, %17, %cst_102 {dimension_numbers = #tpu.dot_dimension_numbers<[1], [0], [0], [1], [0, 0, 1, 1], [], []>} : vector<8x16xf32>, vector<16x64xf32>, vector<8x64xf32> -> vector<8x64xf32>
    %326 = arith.addf %324, %325 : vector<8x64xf32>
    %327 = vector.extract_strided_slice %321 {offsets = [0, 0], sizes = [8, 16], strides = [1, 1]} : vector<8x64xf32> to vector<8x16xf32>
    %328 = arith.negf %327 : vector<8x16xf32>
    %329 = math.exp %328 : vector<8x16xf32>
    %cst_103 = arith.constant 1.000000e+00 : f32
    %330 = vector.broadcast %cst_103 : f32 to vector<8x16xf32>
    %331 = arith.addf %330, %329 : vector<8x16xf32>
    %332 = arith.divf %330, %331 : vector<8x16xf32>
    %333 = vector.extract_strided_slice %321 {offsets = [0, 16], sizes = [8, 16], strides = [1, 1]} : vector<8x64xf32> to vector<8x16xf32>
    %334 = arith.negf %333 : vector<8x16xf32>
    %335 = math.exp %334 : vector<8x16xf32>
    %cst_104 = arith.constant 1.000000e+00 : f32
    %336 = vector.broadcast %cst_104 : f32 to vector<8x16xf32>
    %337 = arith.addf %336, %335 : vector<8x16xf32>
    %338 = arith.divf %336, %337 : vector<8x16xf32>
    %339 = vector.extract_strided_slice %321 {offsets = [0, 32], sizes = [8, 16], strides = [1, 1]} : vector<8x64xf32> to vector<8x16xf32>
    %340 = math.tanh %339 : vector<8x16xf32>
    %341 = vector.extract_strided_slice %321 {offsets = [0, 48], sizes = [8, 16], strides = [1, 1]} : vector<8x64xf32> to vector<8x16xf32>
    %342 = arith.negf %341 : vector<8x16xf32>
    %343 = math.exp %342 : vector<8x16xf32>
    %cst_105 = arith.constant 1.000000e+00 : f32
    %344 = vector.broadcast %cst_105 : f32 to vector<8x16xf32>
    %345 = arith.addf %344, %343 : vector<8x16xf32>
    %346 = arith.divf %344, %345 : vector<8x16xf32>
    %347 = arith.mulf %338, %293 : vector<8x16xf32>
    %348 = arith.mulf %332, %340 : vector<8x16xf32>
    %349 = arith.addf %347, %348 : vector<8x16xf32>
    %350 = math.tanh %349 : vector<8x16xf32>
    %351 = arith.mulf %346, %350 : vector<8x16xf32>
    %352 = vector.extract_strided_slice %326 {offsets = [0, 0], sizes = [8, 16], strides = [1, 1]} : vector<8x64xf32> to vector<8x16xf32>
    %353 = arith.negf %352 : vector<8x16xf32>
    %354 = math.exp %353 : vector<8x16xf32>
    %cst_106 = arith.constant 1.000000e+00 : f32
    %355 = vector.broadcast %cst_106 : f32 to vector<8x16xf32>
    %356 = arith.addf %355, %354 : vector<8x16xf32>
    %357 = arith.divf %355, %356 : vector<8x16xf32>
    %358 = vector.extract_strided_slice %326 {offsets = [0, 16], sizes = [8, 16], strides = [1, 1]} : vector<8x64xf32> to vector<8x16xf32>
    %359 = arith.negf %358 : vector<8x16xf32>
    %360 = math.exp %359 : vector<8x16xf32>
    %cst_107 = arith.constant 1.000000e+00 : f32
    %361 = vector.broadcast %cst_107 : f32 to vector<8x16xf32>
    %362 = arith.addf %361, %360 : vector<8x16xf32>
    %363 = arith.divf %361, %362 : vector<8x16xf32>
    %364 = vector.extract_strided_slice %326 {offsets = [0, 32], sizes = [8, 16], strides = [1, 1]} : vector<8x64xf32> to vector<8x16xf32>
    %365 = math.tanh %364 : vector<8x16xf32>
    %366 = vector.extract_strided_slice %326 {offsets = [0, 48], sizes = [8, 16], strides = [1, 1]} : vector<8x64xf32> to vector<8x16xf32>
    %367 = arith.negf %366 : vector<8x16xf32>
    %368 = math.exp %367 : vector<8x16xf32>
    %cst_108 = arith.constant 1.000000e+00 : f32
    %369 = vector.broadcast %cst_108 : f32 to vector<8x16xf32>
    %370 = arith.addf %369, %368 : vector<8x16xf32>
    %371 = arith.divf %369, %370 : vector<8x16xf32>
    %372 = arith.mulf %363, %299 : vector<8x16xf32>
    %373 = arith.mulf %357, %365 : vector<8x16xf32>
    %374 = arith.addf %372, %373 : vector<8x16xf32>
    %375 = math.tanh %374 : vector<8x16xf32>
    %376 = arith.mulf %371, %375 : vector<8x16xf32>
    %377 = arith.index_cast %c3_i32 : i32 to index
    %c0_109 = arith.constant 0 : index
    %c0_110 = arith.constant 0 : index
    %378 = vector.load %arg2[%377, %c0_109, %c0_110] : memref<8x8x1xf32, #tpu.memory_space<vmem>>, vector<1x8x1xf32>
    %379 = vector.shape_cast %378 : vector<1x8x1xf32> to vector<8x1xf32>
    %cst_111 = arith.constant 0.000000e+00 : f32
    %380 = vector.broadcast %cst_111 : f32 to vector<8x1xf32>
    %381 = arith.cmpf ogt, %379, %380 : vector<8x1xf32>
    %382 = arith.index_cast %316 : i32 to index
    %c0_112 = arith.constant 0 : index
    %c0_113 = arith.constant 0 : index
    %383 = vector.load %arg2[%382, %c0_112, %c0_113] : memref<8x8x1xf32, #tpu.memory_space<vmem>>, vector<1x8x1xf32>
    %384 = vector.shape_cast %383 : vector<1x8x1xf32> to vector<8x1xf32>
    %cst_114 = arith.constant 0.000000e+00 : f32
    %385 = vector.broadcast %cst_114 : f32 to vector<8x1xf32>
    %386 = arith.cmpf ogt, %384, %385 : vector<8x1xf32>
    %387 = vector.shape_cast %381 : vector<8x1xi1> to vector<8x1xi1>
    %388 = vector.broadcast %387 : vector<8x1xi1> to vector<8x16xi1>
    %389 = arith.select %388, %351, %290 : vector<8x16xi1>, vector<8x16xf32>
    %390 = vector.shape_cast %381 : vector<8x1xi1> to vector<8x1xi1>
    %391 = vector.broadcast %390 : vector<8x1xi1> to vector<8x16xi1>
    %392 = arith.select %391, %349, %293 : vector<8x16xi1>, vector<8x16xf32>
    %393 = vector.shape_cast %386 : vector<8x1xi1> to vector<8x1xi1>
    %394 = vector.broadcast %393 : vector<8x1xi1> to vector<8x16xi1>
    %395 = arith.select %394, %376, %296 : vector<8x16xi1>, vector<8x16xf32>
    %396 = vector.shape_cast %386 : vector<8x1xi1> to vector<8x1xi1>
    %397 = vector.broadcast %396 : vector<8x1xi1> to vector<8x16xi1>
    %398 = arith.select %397, %374, %299 : vector<8x16xi1>, vector<8x16xf32>
    %cst_115 = arith.constant 0.000000e+00 : f32
    %399 = vector.shape_cast %381 : vector<8x1xi1> to vector<8x1xi1>
    %400 = vector.broadcast %399 : vector<8x1xi1> to vector<8x16xi1>
    %401 = vector.broadcast %cst_115 : f32 to vector<8x16xf32>
    %402 = arith.select %400, %351, %401 : vector<8x16xi1>, vector<8x16xf32>
    %403 = arith.index_cast %c3_i32 : i32 to index
    %c0_116 = arith.constant 0 : index
    %c0_117 = arith.constant 0 : index
    %404 = vector.load %arg18[%403, %c0_116, %c0_117] : memref<8x8x16xf32, #tpu.memory_space<vmem>>, vector<1x8x16xf32>
    %405 = vector.shape_cast %404 : vector<1x8x16xf32> to vector<8x16xf32>
    %406 = vector.shape_cast %402 : vector<8x16xf32> to vector<1x8x16xf32>
    tpu.vector_store %arg18[%403, %c0_116, %c0_117], %406 {strides = array<i32>} : memref<8x8x16xf32, #tpu.memory_space<vmem>>, vector<1x8x16xf32>,
    %cst_118 = arith.constant 0.000000e+00 : f32
    %407 = vector.shape_cast %386 : vector<8x1xi1> to vector<8x1xi1>
    %408 = vector.broadcast %407 : vector<8x1xi1> to vector<8x16xi1>
    %409 = vector.broadcast %cst_118 : f32 to vector<8x16xf32>
    %410 = arith.select %408, %376, %409 : vector<8x16xi1>, vector<8x16xf32>
    %411 = arith.index_cast %316 : i32 to index
    %c0_119 = arith.constant 0 : index
    %c0_120 = arith.constant 0 : index
    %412 = vector.load %arg19[%411, %c0_119, %c0_120] : memref<8x8x16xf32, #tpu.memory_space<vmem>>, vector<1x8x16xf32>
    %413 = vector.shape_cast %412 : vector<1x8x16xf32> to vector<8x16xf32>
    %414 = vector.shape_cast %410 : vector<8x16xf32> to vector<1x8x16xf32>
    tpu.vector_store %arg19[%411, %c0_119, %c0_120], %414 {strides = array<i32>} : memref<8x8x16xf32, #tpu.memory_space<vmem>>, vector<1x8x16xf32>,
    %c4_i32 = arith.constant 4 : i32
    %c7_i32_121 = arith.constant 7 : i32
    %415 = arith.subi %c7_i32_121, %c4_i32 : i32
    %416 = arith.index_cast %c4_i32 : i32 to index
    %c0_122 = arith.constant 0 : index
    %c0_123 = arith.constant 0 : index
    %417 = vector.load %arg16[%416, %c0_122, %c0_123] : memref<8x8x64xf32, #tpu.memory_space<vmem>>, vector<1x8x64xf32>
    %418 = vector.shape_cast %417 : vector<1x8x64xf32> to vector<8x64xf32>
    %cst_124 = arith.constant dense<0.000000e+00> : vector<8x64xf32>
    %419 = tpu.matmul %389, %16, %cst_124 {dimension_numbers = #tpu.dot_dimension_numbers<[1], [0], [0], [1], [0, 0, 1, 1], [], []>} : vector<8x16xf32>, vector<16x64xf32>, vector<8x64xf32> -> vector<8x64xf32>
    %420 = arith.addf %418, %419 : vector<8x64xf32>
    %421 = arith.index_cast %415 : i32 to index
    %c0_125 = arith.constant 0 : index
    %c0_126 = arith.constant 0 : index
    %422 = vector.load %arg17[%421, %c0_125, %c0_126] : memref<8x8x64xf32, #tpu.memory_space<vmem>>, vector<1x8x64xf32>
    %423 = vector.shape_cast %422 : vector<1x8x64xf32> to vector<8x64xf32>
    %cst_127 = arith.constant dense<0.000000e+00> : vector<8x64xf32>
    %424 = tpu.matmul %395, %17, %cst_127 {dimension_numbers = #tpu.dot_dimension_numbers<[1], [0], [0], [1], [0, 0, 1, 1], [], []>} : vector<8x16xf32>, vector<16x64xf32>, vector<8x64xf32> -> vector<8x64xf32>
    %425 = arith.addf %423, %424 : vector<8x64xf32>
    %426 = vector.extract_strided_slice %420 {offsets = [0, 0], sizes = [8, 16], strides = [1, 1]} : vector<8x64xf32> to vector<8x16xf32>
    %427 = arith.negf %426 : vector<8x16xf32>
    %428 = math.exp %427 : vector<8x16xf32>
    %cst_128 = arith.constant 1.000000e+00 : f32
    %429 = vector.broadcast %cst_128 : f32 to vector<8x16xf32>
    %430 = arith.addf %429, %428 : vector<8x16xf32>
    %431 = arith.divf %429, %430 : vector<8x16xf32>
    %432 = vector.extract_strided_slice %420 {offsets = [0, 16], sizes = [8, 16], strides = [1, 1]} : vector<8x64xf32> to vector<8x16xf32>
    %433 = arith.negf %432 : vector<8x16xf32>
    %434 = math.exp %433 : vector<8x16xf32>
    %cst_129 = arith.constant 1.000000e+00 : f32
    %435 = vector.broadcast %cst_129 : f32 to vector<8x16xf32>
    %436 = arith.addf %435, %434 : vector<8x16xf32>
    %437 = arith.divf %435, %436 : vector<8x16xf32>
    %438 = vector.extract_strided_slice %420 {offsets = [0, 32], sizes = [8, 16], strides = [1, 1]} : vector<8x64xf32> to vector<8x16xf32>
    %439 = math.tanh %438 : vector<8x16xf32>
    %440 = vector.extract_strided_slice %420 {offsets = [0, 48], sizes = [8, 16], strides = [1, 1]} : vector<8x64xf32> to vector<8x16xf32>
    %441 = arith.negf %440 : vector<8x16xf32>
    %442 = math.exp %441 : vector<8x16xf32>
    %cst_130 = arith.constant 1.000000e+00 : f32
    %443 = vector.broadcast %cst_130 : f32 to vector<8x16xf32>
    %444 = arith.addf %443, %442 : vector<8x16xf32>
    %445 = arith.divf %443, %444 : vector<8x16xf32>
    %446 = arith.mulf %437, %392 : vector<8x16xf32>
    %447 = arith.mulf %431, %439 : vector<8x16xf32>
    %448 = arith.addf %446, %447 : vector<8x16xf32>
    %449 = math.tanh %448 : vector<8x16xf32>
    %450 = arith.mulf %445, %449 : vector<8x16xf32>
    %451 = vector.extract_strided_slice %425 {offsets = [0, 0], sizes = [8, 16], strides = [1, 1]} : vector<8x64xf32> to vector<8x16xf32>
    %452 = arith.negf %451 : vector<8x16xf32>
    %453 = math.exp %452 : vector<8x16xf32>
    %cst_131 = arith.constant 1.000000e+00 : f32
    %454 = vector.broadcast %cst_131 : f32 to vector<8x16xf32>
    %455 = arith.addf %454, %453 : vector<8x16xf32>
    %456 = arith.divf %454, %455 : vector<8x16xf32>
    %457 = vector.extract_strided_slice %425 {offsets = [0, 16], sizes = [8, 16], strides = [1, 1]} : vector<8x64xf32> to vector<8x16xf32>
    %458 = arith.negf %457 : vector<8x16xf32>
    %459 = math.exp %458 : vector<8x16xf32>
    %cst_132 = arith.constant 1.000000e+00 : f32
    %460 = vector.broadcast %cst_132 : f32 to vector<8x16xf32>
    %461 = arith.addf %460, %459 : vector<8x16xf32>
    %462 = arith.divf %460, %461 : vector<8x16xf32>
    %463 = vector.extract_strided_slice %425 {offsets = [0, 32], sizes = [8, 16], strides = [1, 1]} : vector<8x64xf32> to vector<8x16xf32>
    %464 = math.tanh %463 : vector<8x16xf32>
    %465 = vector.extract_strided_slice %425 {offsets = [0, 48], sizes = [8, 16], strides = [1, 1]} : vector<8x64xf32> to vector<8x16xf32>
    %466 = arith.negf %465 : vector<8x16xf32>
    %467 = math.exp %466 : vector<8x16xf32>
    %cst_133 = arith.constant 1.000000e+00 : f32
    %468 = vector.broadcast %cst_133 : f32 to vector<8x16xf32>
    %469 = arith.addf %468, %467 : vector<8x16xf32>
    %470 = arith.divf %468, %469 : vector<8x16xf32>
    %471 = arith.mulf %462, %398 : vector<8x16xf32>
    %472 = arith.mulf %456, %464 : vector<8x16xf32>
    %473 = arith.addf %471, %472 : vector<8x16xf32>
    %474 = math.tanh %473 : vector<8x16xf32>
    %475 = arith.mulf %470, %474 : vector<8x16xf32>
    %476 = arith.index_cast %c4_i32 : i32 to index
    %c0_134 = arith.constant 0 : index
    %c0_135 = arith.constant 0 : index
    %477 = vector.load %arg2[%476, %c0_134, %c0_135] : memref<8x8x1xf32, #tpu.memory_space<vmem>>, vector<1x8x1xf32>
    %478 = vector.shape_cast %477 : vector<1x8x1xf32> to vector<8x1xf32>
    %cst_136 = arith.constant 0.000000e+00 : f32
    %479 = vector.broadcast %cst_136 : f32 to vector<8x1xf32>
    %480 = arith.cmpf ogt, %478, %479 : vector<8x1xf32>
    %481 = arith.index_cast %415 : i32 to index
    %c0_137 = arith.constant 0 : index
    %c0_138 = arith.constant 0 : index
    %482 = vector.load %arg2[%481, %c0_137, %c0_138] : memref<8x8x1xf32, #tpu.memory_space<vmem>>, vector<1x8x1xf32>
    %483 = vector.shape_cast %482 : vector<1x8x1xf32> to vector<8x1xf32>
    %cst_139 = arith.constant 0.000000e+00 : f32
    %484 = vector.broadcast %cst_139 : f32 to vector<8x1xf32>
    %485 = arith.cmpf ogt, %483, %484 : vector<8x1xf32>
    %486 = vector.shape_cast %480 : vector<8x1xi1> to vector<8x1xi1>
    %487 = vector.broadcast %486 : vector<8x1xi1> to vector<8x16xi1>
    %488 = arith.select %487, %450, %389 : vector<8x16xi1>, vector<8x16xf32>
    %489 = vector.shape_cast %480 : vector<8x1xi1> to vector<8x1xi1>
    %490 = vector.broadcast %489 : vector<8x1xi1> to vector<8x16xi1>
    %491 = arith.select %490, %448, %392 : vector<8x16xi1>, vector<8x16xf32>
    %492 = vector.shape_cast %485 : vector<8x1xi1> to vector<8x1xi1>
    %493 = vector.broadcast %492 : vector<8x1xi1> to vector<8x16xi1>
    %494 = arith.select %493, %475, %395 : vector<8x16xi1>, vector<8x16xf32>
    %495 = vector.shape_cast %485 : vector<8x1xi1> to vector<8x1xi1>
    %496 = vector.broadcast %495 : vector<8x1xi1> to vector<8x16xi1>
    %497 = arith.select %496, %473, %398 : vector<8x16xi1>, vector<8x16xf32>
    %cst_140 = arith.constant 0.000000e+00 : f32
    %498 = vector.shape_cast %480 : vector<8x1xi1> to vector<8x1xi1>
    %499 = vector.broadcast %498 : vector<8x1xi1> to vector<8x16xi1>
    %500 = vector.broadcast %cst_140 : f32 to vector<8x16xf32>
    %501 = arith.select %499, %450, %500 : vector<8x16xi1>, vector<8x16xf32>
    %502 = arith.index_cast %c4_i32 : i32 to index
    %c0_141 = arith.constant 0 : index
    %c0_142 = arith.constant 0 : index
    %503 = vector.load %arg18[%502, %c0_141, %c0_142] : memref<8x8x16xf32, #tpu.memory_space<vmem>>, vector<1x8x16xf32>
    %504 = vector.shape_cast %503 : vector<1x8x16xf32> to vector<8x16xf32>
    %505 = vector.shape_cast %501 : vector<8x16xf32> to vector<1x8x16xf32>
    tpu.vector_store %arg18[%502, %c0_141, %c0_142], %505 {strides = array<i32>} : memref<8x8x16xf32, #tpu.memory_space<vmem>>, vector<1x8x16xf32>,
    %cst_143 = arith.constant 0.000000e+00 : f32
    %506 = vector.shape_cast %485 : vector<8x1xi1> to vector<8x1xi1>
    %507 = vector.broadcast %506 : vector<8x1xi1> to vector<8x16xi1>
    %508 = vector.broadcast %cst_143 : f32 to vector<8x16xf32>
    %509 = arith.select %507, %475, %508 : vector<8x16xi1>, vector<8x16xf32>
    %510 = arith.index_cast %415 : i32 to index
    %c0_144 = arith.constant 0 : index
    %c0_145 = arith.constant 0 : index
    %511 = vector.load %arg19[%510, %c0_144, %c0_145] : memref<8x8x16xf32, #tpu.memory_space<vmem>>, vector<1x8x16xf32>
    %512 = vector.shape_cast %511 : vector<1x8x16xf32> to vector<8x16xf32>
    %513 = vector.shape_cast %509 : vector<8x16xf32> to vector<1x8x16xf32>
    tpu.vector_store %arg19[%510, %c0_144, %c0_145], %513 {strides = array<i32>} : memref<8x8x16xf32, #tpu.memory_space<vmem>>, vector<1x8x16xf32>,
    %c5_i32 = arith.constant 5 : i32
    %c7_i32_146 = arith.constant 7 : i32
    %514 = arith.subi %c7_i32_146, %c5_i32 : i32
    %515 = arith.index_cast %c5_i32 : i32 to index
    %c0_147 = arith.constant 0 : index
    %c0_148 = arith.constant 0 : index
    %516 = vector.load %arg16[%515, %c0_147, %c0_148] : memref<8x8x64xf32, #tpu.memory_space<vmem>>, vector<1x8x64xf32>
    %517 = vector.shape_cast %516 : vector<1x8x64xf32> to vector<8x64xf32>
    %cst_149 = arith.constant dense<0.000000e+00> : vector<8x64xf32>
    %518 = tpu.matmul %488, %16, %cst_149 {dimension_numbers = #tpu.dot_dimension_numbers<[1], [0], [0], [1], [0, 0, 1, 1], [], []>} : vector<8x16xf32>, vector<16x64xf32>, vector<8x64xf32> -> vector<8x64xf32>
    %519 = arith.addf %517, %518 : vector<8x64xf32>
    %520 = arith.index_cast %514 : i32 to index
    %c0_150 = arith.constant 0 : index
    %c0_151 = arith.constant 0 : index
    %521 = vector.load %arg17[%520, %c0_150, %c0_151] : memref<8x8x64xf32, #tpu.memory_space<vmem>>, vector<1x8x64xf32>
    %522 = vector.shape_cast %521 : vector<1x8x64xf32> to vector<8x64xf32>
    %cst_152 = arith.constant dense<0.000000e+00> : vector<8x64xf32>
    %523 = tpu.matmul %494, %17, %cst_152 {dimension_numbers = #tpu.dot_dimension_numbers<[1], [0], [0], [1], [0, 0, 1, 1], [], []>} : vector<8x16xf32>, vector<16x64xf32>, vector<8x64xf32> -> vector<8x64xf32>
    %524 = arith.addf %522, %523 : vector<8x64xf32>
    %525 = vector.extract_strided_slice %519 {offsets = [0, 0], sizes = [8, 16], strides = [1, 1]} : vector<8x64xf32> to vector<8x16xf32>
    %526 = arith.negf %525 : vector<8x16xf32>
    %527 = math.exp %526 : vector<8x16xf32>
    %cst_153 = arith.constant 1.000000e+00 : f32
    %528 = vector.broadcast %cst_153 : f32 to vector<8x16xf32>
    %529 = arith.addf %528, %527 : vector<8x16xf32>
    %530 = arith.divf %528, %529 : vector<8x16xf32>
    %531 = vector.extract_strided_slice %519 {offsets = [0, 16], sizes = [8, 16], strides = [1, 1]} : vector<8x64xf32> to vector<8x16xf32>
    %532 = arith.negf %531 : vector<8x16xf32>
    %533 = math.exp %532 : vector<8x16xf32>
    %cst_154 = arith.constant 1.000000e+00 : f32
    %534 = vector.broadcast %cst_154 : f32 to vector<8x16xf32>
    %535 = arith.addf %534, %533 : vector<8x16xf32>
    %536 = arith.divf %534, %535 : vector<8x16xf32>
    %537 = vector.extract_strided_slice %519 {offsets = [0, 32], sizes = [8, 16], strides = [1, 1]} : vector<8x64xf32> to vector<8x16xf32>
    %538 = math.tanh %537 : vector<8x16xf32>
    %539 = vector.extract_strided_slice %519 {offsets = [0, 48], sizes = [8, 16], strides = [1, 1]} : vector<8x64xf32> to vector<8x16xf32>
    %540 = arith.negf %539 : vector<8x16xf32>
    %541 = math.exp %540 : vector<8x16xf32>
    %cst_155 = arith.constant 1.000000e+00 : f32
    %542 = vector.broadcast %cst_155 : f32 to vector<8x16xf32>
    %543 = arith.addf %542, %541 : vector<8x16xf32>
    %544 = arith.divf %542, %543 : vector<8x16xf32>
    %545 = arith.mulf %536, %491 : vector<8x16xf32>
    %546 = arith.mulf %530, %538 : vector<8x16xf32>
    %547 = arith.addf %545, %546 : vector<8x16xf32>
    %548 = math.tanh %547 : vector<8x16xf32>
    %549 = arith.mulf %544, %548 : vector<8x16xf32>
    %550 = vector.extract_strided_slice %524 {offsets = [0, 0], sizes = [8, 16], strides = [1, 1]} : vector<8x64xf32> to vector<8x16xf32>
    %551 = arith.negf %550 : vector<8x16xf32>
    %552 = math.exp %551 : vector<8x16xf32>
    %cst_156 = arith.constant 1.000000e+00 : f32
    %553 = vector.broadcast %cst_156 : f32 to vector<8x16xf32>
    %554 = arith.addf %553, %552 : vector<8x16xf32>
    %555 = arith.divf %553, %554 : vector<8x16xf32>
    %556 = vector.extract_strided_slice %524 {offsets = [0, 16], sizes = [8, 16], strides = [1, 1]} : vector<8x64xf32> to vector<8x16xf32>
    %557 = arith.negf %556 : vector<8x16xf32>
    %558 = math.exp %557 : vector<8x16xf32>
    %cst_157 = arith.constant 1.000000e+00 : f32
    %559 = vector.broadcast %cst_157 : f32 to vector<8x16xf32>
    %560 = arith.addf %559, %558 : vector<8x16xf32>
    %561 = arith.divf %559, %560 : vector<8x16xf32>
    %562 = vector.extract_strided_slice %524 {offsets = [0, 32], sizes = [8, 16], strides = [1, 1]} : vector<8x64xf32> to vector<8x16xf32>
    %563 = math.tanh %562 : vector<8x16xf32>
    %564 = vector.extract_strided_slice %524 {offsets = [0, 48], sizes = [8, 16], strides = [1, 1]} : vector<8x64xf32> to vector<8x16xf32>
    %565 = arith.negf %564 : vector<8x16xf32>
    %566 = math.exp %565 : vector<8x16xf32>
    %cst_158 = arith.constant 1.000000e+00 : f32
    %567 = vector.broadcast %cst_158 : f32 to vector<8x16xf32>
    %568 = arith.addf %567, %566 : vector<8x16xf32>
    %569 = arith.divf %567, %568 : vector<8x16xf32>
    %570 = arith.mulf %561, %497 : vector<8x16xf32>
    %571 = arith.mulf %555, %563 : vector<8x16xf32>
    %572 = arith.addf %570, %571 : vector<8x16xf32>
    %573 = math.tanh %572 : vector<8x16xf32>
    %574 = arith.mulf %569, %573 : vector<8x16xf32>
    %575 = arith.index_cast %c5_i32 : i32 to index
    %c0_159 = arith.constant 0 : index
    %c0_160 = arith.constant 0 : index
    %576 = vector.load %arg2[%575, %c0_159, %c0_160] : memref<8x8x1xf32, #tpu.memory_space<vmem>>, vector<1x8x1xf32>
    %577 = vector.shape_cast %576 : vector<1x8x1xf32> to vector<8x1xf32>
    %cst_161 = arith.constant 0.000000e+00 : f32
    %578 = vector.broadcast %cst_161 : f32 to vector<8x1xf32>
    %579 = arith.cmpf ogt, %577, %578 : vector<8x1xf32>
    %580 = arith.index_cast %514 : i32 to index
    %c0_162 = arith.constant 0 : index
    %c0_163 = arith.constant 0 : index
    %581 = vector.load %arg2[%580, %c0_162, %c0_163] : memref<8x8x1xf32, #tpu.memory_space<vmem>>, vector<1x8x1xf32>
    %582 = vector.shape_cast %581 : vector<1x8x1xf32> to vector<8x1xf32>
    %cst_164 = arith.constant 0.000000e+00 : f32
    %583 = vector.broadcast %cst_164 : f32 to vector<8x1xf32>
    %584 = arith.cmpf ogt, %582, %583 : vector<8x1xf32>
    %585 = vector.shape_cast %579 : vector<8x1xi1> to vector<8x1xi1>
    %586 = vector.broadcast %585 : vector<8x1xi1> to vector<8x16xi1>
    %587 = arith.select %586, %549, %488 : vector<8x16xi1>, vector<8x16xf32>
    %588 = vector.shape_cast %579 : vector<8x1xi1> to vector<8x1xi1>
    %589 = vector.broadcast %588 : vector<8x1xi1> to vector<8x16xi1>
    %590 = arith.select %589, %547, %491 : vector<8x16xi1>, vector<8x16xf32>
    %591 = vector.shape_cast %584 : vector<8x1xi1> to vector<8x1xi1>
    %592 = vector.broadcast %591 : vector<8x1xi1> to vector<8x16xi1>
    %593 = arith.select %592, %574, %494 : vector<8x16xi1>, vector<8x16xf32>
    %594 = vector.shape_cast %584 : vector<8x1xi1> to vector<8x1xi1>
    %595 = vector.broadcast %594 : vector<8x1xi1> to vector<8x16xi1>
    %596 = arith.select %595, %572, %497 : vector<8x16xi1>, vector<8x16xf32>
    %cst_165 = arith.constant 0.000000e+00 : f32
    %597 = vector.shape_cast %579 : vector<8x1xi1> to vector<8x1xi1>
    %598 = vector.broadcast %597 : vector<8x1xi1> to vector<8x16xi1>
    %599 = vector.broadcast %cst_165 : f32 to vector<8x16xf32>
    %600 = arith.select %598, %549, %599 : vector<8x16xi1>, vector<8x16xf32>
    %601 = arith.index_cast %c5_i32 : i32 to index
    %c0_166 = arith.constant 0 : index
    %c0_167 = arith.constant 0 : index
    %602 = vector.load %arg18[%601, %c0_166, %c0_167] : memref<8x8x16xf32, #tpu.memory_space<vmem>>, vector<1x8x16xf32>
    %603 = vector.shape_cast %602 : vector<1x8x16xf32> to vector<8x16xf32>
    %604 = vector.shape_cast %600 : vector<8x16xf32> to vector<1x8x16xf32>
    tpu.vector_store %arg18[%601, %c0_166, %c0_167], %604 {strides = array<i32>} : memref<8x8x16xf32, #tpu.memory_space<vmem>>, vector<1x8x16xf32>,
    %cst_168 = arith.constant 0.000000e+00 : f32
    %605 = vector.shape_cast %584 : vector<8x1xi1> to vector<8x1xi1>
    %606 = vector.broadcast %605 : vector<8x1xi1> to vector<8x16xi1>
    %607 = vector.broadcast %cst_168 : f32 to vector<8x16xf32>
    %608 = arith.select %606, %574, %607 : vector<8x16xi1>, vector<8x16xf32>
    %609 = arith.index_cast %514 : i32 to index
    %c0_169 = arith.constant 0 : index
    %c0_170 = arith.constant 0 : index
    %610 = vector.load %arg19[%609, %c0_169, %c0_170] : memref<8x8x16xf32, #tpu.memory_space<vmem>>, vector<1x8x16xf32>
    %611 = vector.shape_cast %610 : vector<1x8x16xf32> to vector<8x16xf32>
    %612 = vector.shape_cast %608 : vector<8x16xf32> to vector<1x8x16xf32>
    tpu.vector_store %arg19[%609, %c0_169, %c0_170], %612 {strides = array<i32>} : memref<8x8x16xf32, #tpu.memory_space<vmem>>, vector<1x8x16xf32>,
    %c6_i32 = arith.constant 6 : i32
    %c7_i32_171 = arith.constant 7 : i32
    %613 = arith.subi %c7_i32_171, %c6_i32 : i32
    %614 = arith.index_cast %c6_i32 : i32 to index
    %c0_172 = arith.constant 0 : index
    %c0_173 = arith.constant 0 : index
    %615 = vector.load %arg16[%614, %c0_172, %c0_173] : memref<8x8x64xf32, #tpu.memory_space<vmem>>, vector<1x8x64xf32>
    %616 = vector.shape_cast %615 : vector<1x8x64xf32> to vector<8x64xf32>
    %cst_174 = arith.constant dense<0.000000e+00> : vector<8x64xf32>
    %617 = tpu.matmul %587, %16, %cst_174 {dimension_numbers = #tpu.dot_dimension_numbers<[1], [0], [0], [1], [0, 0, 1, 1], [], []>} : vector<8x16xf32>, vector<16x64xf32>, vector<8x64xf32> -> vector<8x64xf32>
    %618 = arith.addf %616, %617 : vector<8x64xf32>
    %619 = arith.index_cast %613 : i32 to index
    %c0_175 = arith.constant 0 : index
    %c0_176 = arith.constant 0 : index
    %620 = vector.load %arg17[%619, %c0_175, %c0_176] : memref<8x8x64xf32, #tpu.memory_space<vmem>>, vector<1x8x64xf32>
    %621 = vector.shape_cast %620 : vector<1x8x64xf32> to vector<8x64xf32>
    %cst_177 = arith.constant dense<0.000000e+00> : vector<8x64xf32>
    %622 = tpu.matmul %593, %17, %cst_177 {dimension_numbers = #tpu.dot_dimension_numbers<[1], [0], [0], [1], [0, 0, 1, 1], [], []>} : vector<8x16xf32>, vector<16x64xf32>, vector<8x64xf32> -> vector<8x64xf32>
    %623 = arith.addf %621, %622 : vector<8x64xf32>
    %624 = vector.extract_strided_slice %618 {offsets = [0, 0], sizes = [8, 16], strides = [1, 1]} : vector<8x64xf32> to vector<8x16xf32>
    %625 = arith.negf %624 : vector<8x16xf32>
    %626 = math.exp %625 : vector<8x16xf32>
    %cst_178 = arith.constant 1.000000e+00 : f32
    %627 = vector.broadcast %cst_178 : f32 to vector<8x16xf32>
    %628 = arith.addf %627, %626 : vector<8x16xf32>
    %629 = arith.divf %627, %628 : vector<8x16xf32>
    %630 = vector.extract_strided_slice %618 {offsets = [0, 16], sizes = [8, 16], strides = [1, 1]} : vector<8x64xf32> to vector<8x16xf32>
    %631 = arith.negf %630 : vector<8x16xf32>
    %632 = math.exp %631 : vector<8x16xf32>
    %cst_179 = arith.constant 1.000000e+00 : f32
    %633 = vector.broadcast %cst_179 : f32 to vector<8x16xf32>
    %634 = arith.addf %633, %632 : vector<8x16xf32>
    %635 = arith.divf %633, %634 : vector<8x16xf32>
    %636 = vector.extract_strided_slice %618 {offsets = [0, 32], sizes = [8, 16], strides = [1, 1]} : vector<8x64xf32> to vector<8x16xf32>
    %637 = math.tanh %636 : vector<8x16xf32>
    %638 = vector.extract_strided_slice %618 {offsets = [0, 48], sizes = [8, 16], strides = [1, 1]} : vector<8x64xf32> to vector<8x16xf32>
    %639 = arith.negf %638 : vector<8x16xf32>
    %640 = math.exp %639 : vector<8x16xf32>
    %cst_180 = arith.constant 1.000000e+00 : f32
    %641 = vector.broadcast %cst_180 : f32 to vector<8x16xf32>
    %642 = arith.addf %641, %640 : vector<8x16xf32>
    %643 = arith.divf %641, %642 : vector<8x16xf32>
    %644 = arith.mulf %635, %590 : vector<8x16xf32>
    %645 = arith.mulf %629, %637 : vector<8x16xf32>
    %646 = arith.addf %644, %645 : vector<8x16xf32>
    %647 = math.tanh %646 : vector<8x16xf32>
    %648 = arith.mulf %643, %647 : vector<8x16xf32>
    %649 = vector.extract_strided_slice %623 {offsets = [0, 0], sizes = [8, 16], strides = [1, 1]} : vector<8x64xf32> to vector<8x16xf32>
    %650 = arith.negf %649 : vector<8x16xf32>
    %651 = math.exp %650 : vector<8x16xf32>
    %cst_181 = arith.constant 1.000000e+00 : f32
    %652 = vector.broadcast %cst_181 : f32 to vector<8x16xf32>
    %653 = arith.addf %652, %651 : vector<8x16xf32>
    %654 = arith.divf %652, %653 : vector<8x16xf32>
    %655 = vector.extract_strided_slice %623 {offsets = [0, 16], sizes = [8, 16], strides = [1, 1]} : vector<8x64xf32> to vector<8x16xf32>
    %656 = arith.negf %655 : vector<8x16xf32>
    %657 = math.exp %656 : vector<8x16xf32>
    %cst_182 = arith.constant 1.000000e+00 : f32
    %658 = vector.broadcast %cst_182 : f32 to vector<8x16xf32>
    %659 = arith.addf %658, %657 : vector<8x16xf32>
    %660 = arith.divf %658, %659 : vector<8x16xf32>
    %661 = vector.extract_strided_slice %623 {offsets = [0, 32], sizes = [8, 16], strides = [1, 1]} : vector<8x64xf32> to vector<8x16xf32>
    %662 = math.tanh %661 : vector<8x16xf32>
    %663 = vector.extract_strided_slice %623 {offsets = [0, 48], sizes = [8, 16], strides = [1, 1]} : vector<8x64xf32> to vector<8x16xf32>
    %664 = arith.negf %663 : vector<8x16xf32>
    %665 = math.exp %664 : vector<8x16xf32>
    %cst_183 = arith.constant 1.000000e+00 : f32
    %666 = vector.broadcast %cst_183 : f32 to vector<8x16xf32>
    %667 = arith.addf %666, %665 : vector<8x16xf32>
    %668 = arith.divf %666, %667 : vector<8x16xf32>
    %669 = arith.mulf %660, %596 : vector<8x16xf32>
    %670 = arith.mulf %654, %662 : vector<8x16xf32>
    %671 = arith.addf %669, %670 : vector<8x16xf32>
    %672 = math.tanh %671 : vector<8x16xf32>
    %673 = arith.mulf %668, %672 : vector<8x16xf32>
    %674 = arith.index_cast %c6_i32 : i32 to index
    %c0_184 = arith.constant 0 : index
    %c0_185 = arith.constant 0 : index
    %675 = vector.load %arg2[%674, %c0_184, %c0_185] : memref<8x8x1xf32, #tpu.memory_space<vmem>>, vector<1x8x1xf32>
    %676 = vector.shape_cast %675 : vector<1x8x1xf32> to vector<8x1xf32>
    %cst_186 = arith.constant 0.000000e+00 : f32
    %677 = vector.broadcast %cst_186 : f32 to vector<8x1xf32>
    %678 = arith.cmpf ogt, %676, %677 : vector<8x1xf32>
    %679 = arith.index_cast %613 : i32 to index
    %c0_187 = arith.constant 0 : index
    %c0_188 = arith.constant 0 : index
    %680 = vector.load %arg2[%679, %c0_187, %c0_188] : memref<8x8x1xf32, #tpu.memory_space<vmem>>, vector<1x8x1xf32>
    %681 = vector.shape_cast %680 : vector<1x8x1xf32> to vector<8x1xf32>
    %cst_189 = arith.constant 0.000000e+00 : f32
    %682 = vector.broadcast %cst_189 : f32 to vector<8x1xf32>
    %683 = arith.cmpf ogt, %681, %682 : vector<8x1xf32>
    %684 = vector.shape_cast %678 : vector<8x1xi1> to vector<8x1xi1>
    %685 = vector.broadcast %684 : vector<8x1xi1> to vector<8x16xi1>
    %686 = arith.select %685, %648, %587 : vector<8x16xi1>, vector<8x16xf32>
    %687 = vector.shape_cast %678 : vector<8x1xi1> to vector<8x1xi1>
    %688 = vector.broadcast %687 : vector<8x1xi1> to vector<8x16xi1>
    %689 = arith.select %688, %646, %590 : vector<8x16xi1>, vector<8x16xf32>
    %690 = vector.shape_cast %683 : vector<8x1xi1> to vector<8x1xi1>
    %691 = vector.broadcast %690 : vector<8x1xi1> to vector<8x16xi1>
    %692 = arith.select %691, %673, %593 : vector<8x16xi1>, vector<8x16xf32>
    %693 = vector.shape_cast %683 : vector<8x1xi1> to vector<8x1xi1>
    %694 = vector.broadcast %693 : vector<8x1xi1> to vector<8x16xi1>
    %695 = arith.select %694, %671, %596 : vector<8x16xi1>, vector<8x16xf32>
    %cst_190 = arith.constant 0.000000e+00 : f32
    %696 = vector.shape_cast %678 : vector<8x1xi1> to vector<8x1xi1>
    %697 = vector.broadcast %696 : vector<8x1xi1> to vector<8x16xi1>
    %698 = vector.broadcast %cst_190 : f32 to vector<8x16xf32>
    %699 = arith.select %697, %648, %698 : vector<8x16xi1>, vector<8x16xf32>
    %700 = arith.index_cast %c6_i32 : i32 to index
    %c0_191 = arith.constant 0 : index
    %c0_192 = arith.constant 0 : index
    %701 = vector.load %arg18[%700, %c0_191, %c0_192] : memref<8x8x16xf32, #tpu.memory_space<vmem>>, vector<1x8x16xf32>
    %702 = vector.shape_cast %701 : vector<1x8x16xf32> to vector<8x16xf32>
    %703 = vector.shape_cast %699 : vector<8x16xf32> to vector<1x8x16xf32>
    tpu.vector_store %arg18[%700, %c0_191, %c0_192], %703 {strides = array<i32>} : memref<8x8x16xf32, #tpu.memory_space<vmem>>, vector<1x8x16xf32>,
    %cst_193 = arith.constant 0.000000e+00 : f32
    %704 = vector.shape_cast %683 : vector<8x1xi1> to vector<8x1xi1>
    %705 = vector.broadcast %704 : vector<8x1xi1> to vector<8x16xi1>
    %706 = vector.broadcast %cst_193 : f32 to vector<8x16xf32>
    %707 = arith.select %705, %673, %706 : vector<8x16xi1>, vector<8x16xf32>
    %708 = arith.index_cast %613 : i32 to index
    %c0_194 = arith.constant 0 : index
    %c0_195 = arith.constant 0 : index
    %709 = vector.load %arg19[%708, %c0_194, %c0_195] : memref<8x8x16xf32, #tpu.memory_space<vmem>>, vector<1x8x16xf32>
    %710 = vector.shape_cast %709 : vector<1x8x16xf32> to vector<8x16xf32>
    %711 = vector.shape_cast %707 : vector<8x16xf32> to vector<1x8x16xf32>
    tpu.vector_store %arg19[%708, %c0_194, %c0_195], %711 {strides = array<i32>} : memref<8x8x16xf32, #tpu.memory_space<vmem>>, vector<1x8x16xf32>,
    %c7_i32_196 = arith.constant 7 : i32
    %c7_i32_197 = arith.constant 7 : i32
    %712 = arith.subi %c7_i32_197, %c7_i32_196 : i32
    %713 = arith.index_cast %c7_i32_196 : i32 to index
    %c0_198 = arith.constant 0 : index
    %c0_199 = arith.constant 0 : index
    %714 = vector.load %arg16[%713, %c0_198, %c0_199] : memref<8x8x64xf32, #tpu.memory_space<vmem>>, vector<1x8x64xf32>
    %715 = vector.shape_cast %714 : vector<1x8x64xf32> to vector<8x64xf32>
    %cst_200 = arith.constant dense<0.000000e+00> : vector<8x64xf32>
    %716 = tpu.matmul %686, %16, %cst_200 {dimension_numbers = #tpu.dot_dimension_numbers<[1], [0], [0], [1], [0, 0, 1, 1], [], []>} : vector<8x16xf32>, vector<16x64xf32>, vector<8x64xf32> -> vector<8x64xf32>
    %717 = arith.addf %715, %716 : vector<8x64xf32>
    %718 = arith.index_cast %712 : i32 to index
    %c0_201 = arith.constant 0 : index
    %c0_202 = arith.constant 0 : index
    %719 = vector.load %arg17[%718, %c0_201, %c0_202] : memref<8x8x64xf32, #tpu.memory_space<vmem>>, vector<1x8x64xf32>
    %720 = vector.shape_cast %719 : vector<1x8x64xf32> to vector<8x64xf32>
    %cst_203 = arith.constant dense<0.000000e+00> : vector<8x64xf32>
    %721 = tpu.matmul %692, %17, %cst_203 {dimension_numbers = #tpu.dot_dimension_numbers<[1], [0], [0], [1], [0, 0, 1, 1], [], []>} : vector<8x16xf32>, vector<16x64xf32>, vector<8x64xf32> -> vector<8x64xf32>
    %722 = arith.addf %720, %721 : vector<8x64xf32>
    %723 = vector.extract_strided_slice %717 {offsets = [0, 0], sizes = [8, 16], strides = [1, 1]} : vector<8x64xf32> to vector<8x16xf32>
    %724 = arith.negf %723 : vector<8x16xf32>
    %725 = math.exp %724 : vector<8x16xf32>
    %cst_204 = arith.constant 1.000000e+00 : f32
    %726 = vector.broadcast %cst_204 : f32 to vector<8x16xf32>
    %727 = arith.addf %726, %725 : vector<8x16xf32>
    %728 = arith.divf %726, %727 : vector<8x16xf32>
    %729 = vector.extract_strided_slice %717 {offsets = [0, 16], sizes = [8, 16], strides = [1, 1]} : vector<8x64xf32> to vector<8x16xf32>
    %730 = arith.negf %729 : vector<8x16xf32>
    %731 = math.exp %730 : vector<8x16xf32>
    %cst_205 = arith.constant 1.000000e+00 : f32
    %732 = vector.broadcast %cst_205 : f32 to vector<8x16xf32>
    %733 = arith.addf %732, %731 : vector<8x16xf32>
    %734 = arith.divf %732, %733 : vector<8x16xf32>
    %735 = vector.extract_strided_slice %717 {offsets = [0, 32], sizes = [8, 16], strides = [1, 1]} : vector<8x64xf32> to vector<8x16xf32>
    %736 = math.tanh %735 : vector<8x16xf32>
    %737 = vector.extract_strided_slice %717 {offsets = [0, 48], sizes = [8, 16], strides = [1, 1]} : vector<8x64xf32> to vector<8x16xf32>
    %738 = arith.negf %737 : vector<8x16xf32>
    %739 = math.exp %738 : vector<8x16xf32>
    %cst_206 = arith.constant 1.000000e+00 : f32
    %740 = vector.broadcast %cst_206 : f32 to vector<8x16xf32>
    %741 = arith.addf %740, %739 : vector<8x16xf32>
    %742 = arith.divf %740, %741 : vector<8x16xf32>
    %743 = arith.mulf %734, %689 : vector<8x16xf32>
    %744 = arith.mulf %728, %736 : vector<8x16xf32>
    %745 = arith.addf %743, %744 : vector<8x16xf32>
    %746 = math.tanh %745 : vector<8x16xf32>
    %747 = arith.mulf %742, %746 : vector<8x16xf32>
    %748 = vector.extract_strided_slice %722 {offsets = [0, 0], sizes = [8, 16], strides = [1, 1]} : vector<8x64xf32> to vector<8x16xf32>
    %749 = arith.negf %748 : vector<8x16xf32>
    %750 = math.exp %749 : vector<8x16xf32>
    %cst_207 = arith.constant 1.000000e+00 : f32
    %751 = vector.broadcast %cst_207 : f32 to vector<8x16xf32>
    %752 = arith.addf %751, %750 : vector<8x16xf32>
    %753 = arith.divf %751, %752 : vector<8x16xf32>
    %754 = vector.extract_strided_slice %722 {offsets = [0, 16], sizes = [8, 16], strides = [1, 1]} : vector<8x64xf32> to vector<8x16xf32>
    %755 = arith.negf %754 : vector<8x16xf32>
    %756 = math.exp %755 : vector<8x16xf32>
    %cst_208 = arith.constant 1.000000e+00 : f32
    %757 = vector.broadcast %cst_208 : f32 to vector<8x16xf32>
    %758 = arith.addf %757, %756 : vector<8x16xf32>
    %759 = arith.divf %757, %758 : vector<8x16xf32>
    %760 = vector.extract_strided_slice %722 {offsets = [0, 32], sizes = [8, 16], strides = [1, 1]} : vector<8x64xf32> to vector<8x16xf32>
    %761 = math.tanh %760 : vector<8x16xf32>
    %762 = vector.extract_strided_slice %722 {offsets = [0, 48], sizes = [8, 16], strides = [1, 1]} : vector<8x64xf32> to vector<8x16xf32>
    %763 = arith.negf %762 : vector<8x16xf32>
    %764 = math.exp %763 : vector<8x16xf32>
    %cst_209 = arith.constant 1.000000e+00 : f32
    %765 = vector.broadcast %cst_209 : f32 to vector<8x16xf32>
    %766 = arith.addf %765, %764 : vector<8x16xf32>
    %767 = arith.divf %765, %766 : vector<8x16xf32>
    %768 = arith.mulf %759, %695 : vector<8x16xf32>
    %769 = arith.mulf %753, %761 : vector<8x16xf32>
    %770 = arith.addf %768, %769 : vector<8x16xf32>
    %771 = math.tanh %770 : vector<8x16xf32>
    %772 = arith.mulf %767, %771 : vector<8x16xf32>
    %773 = arith.index_cast %c7_i32_196 : i32 to index
    %c0_210 = arith.constant 0 : index
    %c0_211 = arith.constant 0 : index
    %774 = vector.load %arg2[%773, %c0_210, %c0_211] : memref<8x8x1xf32, #tpu.memory_space<vmem>>, vector<1x8x1xf32>
    %775 = vector.shape_cast %774 : vector<1x8x1xf32> to vector<8x1xf32>
    %cst_212 = arith.constant 0.000000e+00 : f32
    %776 = vector.broadcast %cst_212 : f32 to vector<8x1xf32>
    %777 = arith.cmpf ogt, %775, %776 : vector<8x1xf32>
    %778 = arith.index_cast %712 : i32 to index
    %c0_213 = arith.constant 0 : index
    %c0_214 = arith.constant 0 : index
    %779 = vector.load %arg2[%778, %c0_213, %c0_214] : memref<8x8x1xf32, #tpu.memory_space<vmem>>, vector<1x8x1xf32>
    %780 = vector.shape_cast %779 : vector<1x8x1xf32> to vector<8x1xf32>
    %cst_215 = arith.constant 0.000000e+00 : f32
    %781 = vector.broadcast %cst_215 : f32 to vector<8x1xf32>
    %782 = arith.cmpf ogt, %780, %781 : vector<8x1xf32>
    %783 = vector.shape_cast %777 : vector<8x1xi1> to vector<8x1xi1>
    %784 = vector.broadcast %783 : vector<8x1xi1> to vector<8x16xi1>
    %785 = arith.select %784, %747, %686 : vector<8x16xi1>, vector<8x16xf32>
    %786 = vector.shape_cast %777 : vector<8x1xi1> to vector<8x1xi1>
    %787 = vector.broadcast %786 : vector<8x1xi1> to vector<8x16xi1>
    %788 = arith.select %787, %745, %689 : vector<8x16xi1>, vector<8x16xf32>
    %789 = vector.shape_cast %782 : vector<8x1xi1> to vector<8x1xi1>
    %790 = vector.broadcast %789 : vector<8x1xi1> to vector<8x16xi1>
    %791 = arith.select %790, %772, %692 : vector<8x16xi1>, vector<8x16xf32>
    %792 = vector.shape_cast %782 : vector<8x1xi1> to vector<8x1xi1>
    %793 = vector.broadcast %792 : vector<8x1xi1> to vector<8x16xi1>
    %794 = arith.select %793, %770, %695 : vector<8x16xi1>, vector<8x16xf32>
    %cst_216 = arith.constant 0.000000e+00 : f32
    %795 = vector.shape_cast %777 : vector<8x1xi1> to vector<8x1xi1>
    %796 = vector.broadcast %795 : vector<8x1xi1> to vector<8x16xi1>
    %797 = vector.broadcast %cst_216 : f32 to vector<8x16xf32>
    %798 = arith.select %796, %747, %797 : vector<8x16xi1>, vector<8x16xf32>
    %799 = arith.index_cast %c7_i32_196 : i32 to index
    %c0_217 = arith.constant 0 : index
    %c0_218 = arith.constant 0 : index
    %800 = vector.load %arg18[%799, %c0_217, %c0_218] : memref<8x8x16xf32, #tpu.memory_space<vmem>>, vector<1x8x16xf32>
    %801 = vector.shape_cast %800 : vector<1x8x16xf32> to vector<8x16xf32>
    %802 = vector.shape_cast %798 : vector<8x16xf32> to vector<1x8x16xf32>
    tpu.vector_store %arg18[%799, %c0_217, %c0_218], %802 {strides = array<i32>} : memref<8x8x16xf32, #tpu.memory_space<vmem>>, vector<1x8x16xf32>,
    %cst_219 = arith.constant 0.000000e+00 : f32
    %803 = vector.shape_cast %782 : vector<8x1xi1> to vector<8x1xi1>
    %804 = vector.broadcast %803 : vector<8x1xi1> to vector<8x16xi1>
    %805 = vector.broadcast %cst_219 : f32 to vector<8x16xf32>
    %806 = arith.select %804, %772, %805 : vector<8x16xi1>, vector<8x16xf32>
    %807 = arith.index_cast %712 : i32 to index
    %c0_220 = arith.constant 0 : index
    %c0_221 = arith.constant 0 : index
    %808 = vector.load %arg19[%807, %c0_220, %c0_221] : memref<8x8x16xf32, #tpu.memory_space<vmem>>, vector<1x8x16xf32>
    %809 = vector.shape_cast %808 : vector<1x8x16xf32> to vector<8x16xf32>
    %810 = vector.shape_cast %806 : vector<8x16xf32> to vector<1x8x16xf32>
    tpu.vector_store %arg19[%807, %c0_220, %c0_221], %810 {strides = array<i32>} : memref<8x8x16xf32, #tpu.memory_space<vmem>>, vector<1x8x16xf32>,
    %c8_i32 = arith.constant 8 : i32
    %c0_222 = arith.constant 0 : index
    %c0_223 = arith.constant 0 : index
    %c0_224 = arith.constant 0 : index
    %811 = vector.load %arg18[%c0_222, %c0_223, %c0_224] : memref<8x8x16xf32, #tpu.memory_space<vmem>>, vector<8x8x16xf32>
    %812 = vector.shape_cast %811 : vector<8x8x16xf32> to vector<64x16xf32>
    %c0_225 = arith.constant 0 : index
    %c0_226 = arith.constant 0 : index
    %c0_227 = arith.constant 0 : index
    %813 = vector.load %arg19[%c0_225, %c0_226, %c0_227] : memref<8x8x16xf32, #tpu.memory_space<vmem>>, vector<8x8x16xf32>
    %814 = vector.shape_cast %813 : vector<8x8x16xf32> to vector<64x16xf32>
    %c0_228 = arith.constant 0 : index
    %c0_229 = arith.constant 0 : index
    %815 = vector.load %arg9[%c0_228, %c0_229] : memref<16x8xf32, #tpu.memory_space<vmem>>, vector<16x8xf32>
    %cst_230 = arith.constant dense<0.000000e+00> : vector<64x8xf32>
    %816 = tpu.matmul %812, %815, %cst_230 {dimension_numbers = #tpu.dot_dimension_numbers<[1], [0], [0], [1], [0, 0, 1, 1], [], []>} : vector<64x16xf32>, vector<16x8xf32>, vector<64x8xf32> -> vector<64x8xf32>
    %c0_231 = arith.constant 0 : index
    %c0_232 = arith.constant 0 : index
    %817 = vector.load %arg10[%c0_231, %c0_232] : memref<16x8xf32, #tpu.memory_space<vmem>>, vector<16x8xf32>
    %cst_233 = arith.constant dense<0.000000e+00> : vector<64x8xf32>
    %818 = tpu.matmul %814, %817, %cst_233 {dimension_numbers = #tpu.dot_dimension_numbers<[1], [0], [0], [1], [0, 0, 1, 1], [], []>} : vector<64x16xf32>, vector<16x8xf32>, vector<64x8xf32> -> vector<64x8xf32>
    %819 = arith.addf %816, %818 : vector<64x8xf32>
    %c0_234 = arith.constant 0 : index
    %c0_235 = arith.constant 0 : index
    %820 = vector.load %arg11[%c0_234, %c0_235] : memref<1x8xf32, #tpu.memory_space<vmem>>, vector<1x8xf32>
    %821 = vector.broadcast %820 : vector<1x8xf32> to vector<64x8xf32>
    %822 = arith.addf %819, %821 : vector<64x8xf32>
    %823 = vector.shape_cast %822 : vector<64x8xf32> to vector<8x8x8xf32>
    %c0_236 = arith.constant 0 : index
    %c0_237 = arith.constant 0 : index
    %c0_238 = arith.constant 0 : index
    %824 = vector.load %arg20[%c0_236, %c0_237, %c0_238] : memref<8x8x8xf32, #tpu.memory_space<vmem>>, vector<8x8x8xf32>
    tpu.vector_store %arg20[%c0_236, %c0_237, %c0_238], %823 {strides = array<i32>} : memref<8x8x8xf32, #tpu.memory_space<vmem>>, vector<8x8x8xf32>,
    %c0_239 = arith.constant 0 : index
    %c0_240 = arith.constant 0 : index
    %825 = vector.load %arg12[%c0_239, %c0_240] : memref<8x8xf32, #tpu.memory_space<vmem>>, vector<8x8xf32>
    %826 = vector.shape_cast %825 : vector<8x8xf32> to vector<1x8x8xf32>
    %827 = tpu.iota {dimensions = array<i32: 1>} : vector<8x8xi32>
    %828 = tpu.iota {dimensions = array<i32: 2>} : vector<8x8x8xi32>
    %c0_i32_241 = arith.constant 0 : i32
    %829 = vector.broadcast %c0_i32_241 : i32 to vector<8x8xi32>
    %c0_242 = arith.constant 0 : index
    %c0_243 = arith.constant 0 : index
    %c0_244 = arith.constant 0 : index
    %830 = vector.load %arg21[%c0_242, %c0_243, %c0_244] : memref<8x8x8xi32, #tpu.memory_space<vmem>>, vector<1x8x8xi32>
    %831 = vector.shape_cast %830 : vector<1x8x8xi32> to vector<8x8xi32>
    %832 = vector.shape_cast %829 : vector<8x8xi32> to vector<1x8x8xi32>
    tpu.vector_store %arg21[%c0_242, %c0_243, %c0_244], %832 {strides = array<i32>} : memref<8x8x8xi32, #tpu.memory_space<vmem>>, vector<1x8x8xi32>,
    %c0_245 = arith.constant 0 : index
    %c0_246 = arith.constant 0 : index
    %833 = vector.load %arg13[%c0_245, %c0_246] : memref<1x8xf32, #tpu.memory_space<vmem>>, vector<1x8xf32>
    %c0_247 = arith.constant 0 : index
    %c0_248 = arith.constant 0 : index
    %c0_249 = arith.constant 0 : index
    %834 = vector.load %arg20[%c0_247, %c0_248, %c0_249] : memref<8x8x8xf32, #tpu.memory_space<vmem>>, vector<1x8x8xf32>
    %835 = vector.shape_cast %834 : vector<1x8x8xf32> to vector<8x8xf32>
    %836 = vector.broadcast %833 : vector<1x8xf32> to vector<8x8xf32>
    %837 = arith.addf %836, %835 : vector<8x8xf32>
    %c1_i32_250 = arith.constant 1 : i32
    %838 = vector.shape_cast %837 : vector<8x8xf32> to vector<8x1x8xf32>
    %839 = vector.broadcast %838 : vector<8x1x8xf32> to vector<8x8x8xf32>
    %840 = vector.broadcast %826 : vector<1x8x8xf32> to vector<8x8x8xf32>
    %841 = arith.addf %839, %840 : vector<8x8x8xf32>
    %cst_251 = arith.constant dense<0xFF800000> : vector<8x8xf32>
    %842 = vector.multi_reduction <maximumf>, %841, %cst_251 [2] : vector<8x8x8xf32> to vector<8x8xf32>
    %843 = vector.shape_cast %842 : vector<8x8xf32> to vector<8x8x1xf32>
    %844 = vector.broadcast %843 : vector<8x8x1xf32> to vector<8x8x8xf32>
    %845 = arith.cmpf oge, %841, %844 : vector<8x8x8xf32>
    %c8_i32_252 = arith.constant 8 : i32
    %846 = vector.broadcast %c8_i32_252 : i32 to vector<8x8x8xi32>
    %847 = arith.select %845, %828, %846 : vector<8x8x8xi1>, vector<8x8x8xi32>
    %cst_253 = arith.constant dense<2147483647> : vector<8x8xi32>
    %848 = vector.multi_reduction <minsi>, %847, %cst_253 [2] : vector<8x8x8xi32> to vector<8x8xi32>
    %cst_254 = arith.constant dense<0xFF800000> : vector<8x8xf32>
    %849 = vector.multi_reduction <maximumf>, %841, %cst_254 [2] : vector<8x8x8xf32> to vector<8x8xf32>
    %850 = arith.index_cast %c1_i32_250 : i32 to index
    %c0_255 = arith.constant 0 : index
    %c0_256 = arith.constant 0 : index
    %851 = vector.load %arg20[%850, %c0_255, %c0_256] : memref<8x8x8xf32, #tpu.memory_space<vmem>>, vector<1x8x8xf32>
    %852 = vector.shape_cast %851 : vector<1x8x8xf32> to vector<8x8xf32>
    %853 = arith.addf %849, %852 : vector<8x8xf32>
    %854 = arith.index_cast %c1_i32_250 : i32 to index
    %c0_257 = arith.constant 0 : index
    %c0_258 = arith.constant 0 : index
    %855 = vector.load %arg2[%854, %c0_257, %c0_258] : memref<8x8x1xf32, #tpu.memory_space<vmem>>, vector<1x8x1xf32>
    %856 = vector.shape_cast %855 : vector<1x8x1xf32> to vector<8x1xf32>
    %cst_259 = arith.constant 0.000000e+00 : f32
    %857 = vector.broadcast %cst_259 : f32 to vector<8x1xf32>
    %858 = arith.cmpf ogt, %856, %857 : vector<8x1xf32>
    %859 = vector.shape_cast %858 : vector<8x1xi1> to vector<8x1xi1>
    %860 = vector.broadcast %859 : vector<8x1xi1> to vector<8x8xi1>
    %861 = arith.select %860, %848, %827 : vector<8x8xi1>, vector<8x8xi32>
    %862 = arith.index_cast %c1_i32_250 : i32 to index
    %c0_260 = arith.constant 0 : index
    %c0_261 = arith.constant 0 : index
    %863 = vector.load %arg21[%862, %c0_260, %c0_261] : memref<8x8x8xi32, #tpu.memory_space<vmem>>, vector<1x8x8xi32>
    %864 = vector.shape_cast %863 : vector<1x8x8xi32> to vector<8x8xi32>
    %865 = vector.shape_cast %861 : vector<8x8xi32> to vector<1x8x8xi32>
    tpu.vector_store %arg21[%862, %c0_260, %c0_261], %865 {strides = array<i32>} : memref<8x8x8xi32, #tpu.memory_space<vmem>>, vector<1x8x8xi32>,
    %866 = vector.shape_cast %858 : vector<8x1xi1> to vector<8x1xi1>
    %867 = vector.broadcast %866 : vector<8x1xi1> to vector<8x8xi1>
    %868 = arith.select %867, %853, %837 : vector<8x8xi1>, vector<8x8xf32>
    %c2_i32_262 = arith.constant 2 : i32
    %869 = vector.shape_cast %868 : vector<8x8xf32> to vector<8x1x8xf32>
    %870 = vector.broadcast %869 : vector<8x1x8xf32> to vector<8x8x8xf32>
    %871 = vector.broadcast %826 : vector<1x8x8xf32> to vector<8x8x8xf32>
    %872 = arith.addf %870, %871 : vector<8x8x8xf32>
    %cst_263 = arith.constant dense<0xFF800000> : vector<8x8xf32>
    %873 = vector.multi_reduction <maximumf>, %872, %cst_263 [2] : vector<8x8x8xf32> to vector<8x8xf32>
    %874 = vector.shape_cast %873 : vector<8x8xf32> to vector<8x8x1xf32>
    %875 = vector.broadcast %874 : vector<8x8x1xf32> to vector<8x8x8xf32>
    %876 = arith.cmpf oge, %872, %875 : vector<8x8x8xf32>
    %c8_i32_264 = arith.constant 8 : i32
    %877 = vector.broadcast %c8_i32_264 : i32 to vector<8x8x8xi32>
    %878 = arith.select %876, %828, %877 : vector<8x8x8xi1>, vector<8x8x8xi32>
    %cst_265 = arith.constant dense<2147483647> : vector<8x8xi32>
    %879 = vector.multi_reduction <minsi>, %878, %cst_265 [2] : vector<8x8x8xi32> to vector<8x8xi32>
    %cst_266 = arith.constant dense<0xFF800000> : vector<8x8xf32>
    %880 = vector.multi_reduction <maximumf>, %872, %cst_266 [2] : vector<8x8x8xf32> to vector<8x8xf32>
    %881 = arith.index_cast %c2_i32_262 : i32 to index
    %c0_267 = arith.constant 0 : index
    %c0_268 = arith.constant 0 : index
    %882 = vector.load %arg20[%881, %c0_267, %c0_268] : memref<8x8x8xf32, #tpu.memory_space<vmem>>, vector<1x8x8xf32>
    %883 = vector.shape_cast %882 : vector<1x8x8xf32> to vector<8x8xf32>
    %884 = arith.addf %880, %883 : vector<8x8xf32>
    %885 = arith.index_cast %c2_i32_262 : i32 to index
    %c0_269 = arith.constant 0 : index
    %c0_270 = arith.constant 0 : index
    %886 = vector.load %arg2[%885, %c0_269, %c0_270] : memref<8x8x1xf32, #tpu.memory_space<vmem>>, vector<1x8x1xf32>
    %887 = vector.shape_cast %886 : vector<1x8x1xf32> to vector<8x1xf32>
    %cst_271 = arith.constant 0.000000e+00 : f32
    %888 = vector.broadcast %cst_271 : f32 to vector<8x1xf32>
    %889 = arith.cmpf ogt, %887, %888 : vector<8x1xf32>
    %890 = vector.shape_cast %889 : vector<8x1xi1> to vector<8x1xi1>
    %891 = vector.broadcast %890 : vector<8x1xi1> to vector<8x8xi1>
    %892 = arith.select %891, %879, %827 : vector<8x8xi1>, vector<8x8xi32>
    %893 = arith.index_cast %c2_i32_262 : i32 to index
    %c0_272 = arith.constant 0 : index
    %c0_273 = arith.constant 0 : index
    %894 = vector.load %arg21[%893, %c0_272, %c0_273] : memref<8x8x8xi32, #tpu.memory_space<vmem>>, vector<1x8x8xi32>
    %895 = vector.shape_cast %894 : vector<1x8x8xi32> to vector<8x8xi32>
    %896 = vector.shape_cast %892 : vector<8x8xi32> to vector<1x8x8xi32>
    tpu.vector_store %arg21[%893, %c0_272, %c0_273], %896 {strides = array<i32>} : memref<8x8x8xi32, #tpu.memory_space<vmem>>, vector<1x8x8xi32>,
    %897 = vector.shape_cast %889 : vector<8x1xi1> to vector<8x1xi1>
    %898 = vector.broadcast %897 : vector<8x1xi1> to vector<8x8xi1>
    %899 = arith.select %898, %884, %868 : vector<8x8xi1>, vector<8x8xf32>
    %c3_i32_274 = arith.constant 3 : i32
    %900 = vector.shape_cast %899 : vector<8x8xf32> to vector<8x1x8xf32>
    %901 = vector.broadcast %900 : vector<8x1x8xf32> to vector<8x8x8xf32>
    %902 = vector.broadcast %826 : vector<1x8x8xf32> to vector<8x8x8xf32>
    %903 = arith.addf %901, %902 : vector<8x8x8xf32>
    %cst_275 = arith.constant dense<0xFF800000> : vector<8x8xf32>
    %904 = vector.multi_reduction <maximumf>, %903, %cst_275 [2] : vector<8x8x8xf32> to vector<8x8xf32>
    %905 = vector.shape_cast %904 : vector<8x8xf32> to vector<8x8x1xf32>
    %906 = vector.broadcast %905 : vector<8x8x1xf32> to vector<8x8x8xf32>
    %907 = arith.cmpf oge, %903, %906 : vector<8x8x8xf32>
    %c8_i32_276 = arith.constant 8 : i32
    %908 = vector.broadcast %c8_i32_276 : i32 to vector<8x8x8xi32>
    %909 = arith.select %907, %828, %908 : vector<8x8x8xi1>, vector<8x8x8xi32>
    %cst_277 = arith.constant dense<2147483647> : vector<8x8xi32>
    %910 = vector.multi_reduction <minsi>, %909, %cst_277 [2] : vector<8x8x8xi32> to vector<8x8xi32>
    %cst_278 = arith.constant dense<0xFF800000> : vector<8x8xf32>
    %911 = vector.multi_reduction <maximumf>, %903, %cst_278 [2] : vector<8x8x8xf32> to vector<8x8xf32>
    %912 = arith.index_cast %c3_i32_274 : i32 to index
    %c0_279 = arith.constant 0 : index
    %c0_280 = arith.constant 0 : index
    %913 = vector.load %arg20[%912, %c0_279, %c0_280] : memref<8x8x8xf32, #tpu.memory_space<vmem>>, vector<1x8x8xf32>
    %914 = vector.shape_cast %913 : vector<1x8x8xf32> to vector<8x8xf32>
    %915 = arith.addf %911, %914 : vector<8x8xf32>
    %916 = arith.index_cast %c3_i32_274 : i32 to index
    %c0_281 = arith.constant 0 : index
    %c0_282 = arith.constant 0 : index
    %917 = vector.load %arg2[%916, %c0_281, %c0_282] : memref<8x8x1xf32, #tpu.memory_space<vmem>>, vector<1x8x1xf32>
    %918 = vector.shape_cast %917 : vector<1x8x1xf32> to vector<8x1xf32>
    %cst_283 = arith.constant 0.000000e+00 : f32
    %919 = vector.broadcast %cst_283 : f32 to vector<8x1xf32>
    %920 = arith.cmpf ogt, %918, %919 : vector<8x1xf32>
    %921 = vector.shape_cast %920 : vector<8x1xi1> to vector<8x1xi1>
    %922 = vector.broadcast %921 : vector<8x1xi1> to vector<8x8xi1>
    %923 = arith.select %922, %910, %827 : vector<8x8xi1>, vector<8x8xi32>
    %924 = arith.index_cast %c3_i32_274 : i32 to index
    %c0_284 = arith.constant 0 : index
    %c0_285 = arith.constant 0 : index
    %925 = vector.load %arg21[%924, %c0_284, %c0_285] : memref<8x8x8xi32, #tpu.memory_space<vmem>>, vector<1x8x8xi32>
    %926 = vector.shape_cast %925 : vector<1x8x8xi32> to vector<8x8xi32>
    %927 = vector.shape_cast %923 : vector<8x8xi32> to vector<1x8x8xi32>
    tpu.vector_store %arg21[%924, %c0_284, %c0_285], %927 {strides = array<i32>} : memref<8x8x8xi32, #tpu.memory_space<vmem>>, vector<1x8x8xi32>,
    %928 = vector.shape_cast %920 : vector<8x1xi1> to vector<8x1xi1>
    %929 = vector.broadcast %928 : vector<8x1xi1> to vector<8x8xi1>
    %930 = arith.select %929, %915, %899 : vector<8x8xi1>, vector<8x8xf32>
    %c4_i32_286 = arith.constant 4 : i32
    %931 = vector.shape_cast %930 : vector<8x8xf32> to vector<8x1x8xf32>
    %932 = vector.broadcast %931 : vector<8x1x8xf32> to vector<8x8x8xf32>
    %933 = vector.broadcast %826 : vector<1x8x8xf32> to vector<8x8x8xf32>
    %934 = arith.addf %932, %933 : vector<8x8x8xf32>
    %cst_287 = arith.constant dense<0xFF800000> : vector<8x8xf32>
    %935 = vector.multi_reduction <maximumf>, %934, %cst_287 [2] : vector<8x8x8xf32> to vector<8x8xf32>
    %936 = vector.shape_cast %935 : vector<8x8xf32> to vector<8x8x1xf32>
    %937 = vector.broadcast %936 : vector<8x8x1xf32> to vector<8x8x8xf32>
    %938 = arith.cmpf oge, %934, %937 : vector<8x8x8xf32>
    %c8_i32_288 = arith.constant 8 : i32
    %939 = vector.broadcast %c8_i32_288 : i32 to vector<8x8x8xi32>
    %940 = arith.select %938, %828, %939 : vector<8x8x8xi1>, vector<8x8x8xi32>
    %cst_289 = arith.constant dense<2147483647> : vector<8x8xi32>
    %941 = vector.multi_reduction <minsi>, %940, %cst_289 [2] : vector<8x8x8xi32> to vector<8x8xi32>
    %cst_290 = arith.constant dense<0xFF800000> : vector<8x8xf32>
    %942 = vector.multi_reduction <maximumf>, %934, %cst_290 [2] : vector<8x8x8xf32> to vector<8x8xf32>
    %943 = arith.index_cast %c4_i32_286 : i32 to index
    %c0_291 = arith.constant 0 : index
    %c0_292 = arith.constant 0 : index
    %944 = vector.load %arg20[%943, %c0_291, %c0_292] : memref<8x8x8xf32, #tpu.memory_space<vmem>>, vector<1x8x8xf32>
    %945 = vector.shape_cast %944 : vector<1x8x8xf32> to vector<8x8xf32>
    %946 = arith.addf %942, %945 : vector<8x8xf32>
    %947 = arith.index_cast %c4_i32_286 : i32 to index
    %c0_293 = arith.constant 0 : index
    %c0_294 = arith.constant 0 : index
    %948 = vector.load %arg2[%947, %c0_293, %c0_294] : memref<8x8x1xf32, #tpu.memory_space<vmem>>, vector<1x8x1xf32>
    %949 = vector.shape_cast %948 : vector<1x8x1xf32> to vector<8x1xf32>
    %cst_295 = arith.constant 0.000000e+00 : f32
    %950 = vector.broadcast %cst_295 : f32 to vector<8x1xf32>
    %951 = arith.cmpf ogt, %949, %950 : vector<8x1xf32>
    %952 = vector.shape_cast %951 : vector<8x1xi1> to vector<8x1xi1>
    %953 = vector.broadcast %952 : vector<8x1xi1> to vector<8x8xi1>
    %954 = arith.select %953, %941, %827 : vector<8x8xi1>, vector<8x8xi32>
    %955 = arith.index_cast %c4_i32_286 : i32 to index
    %c0_296 = arith.constant 0 : index
    %c0_297 = arith.constant 0 : index
    %956 = vector.load %arg21[%955, %c0_296, %c0_297] : memref<8x8x8xi32, #tpu.memory_space<vmem>>, vector<1x8x8xi32>
    %957 = vector.shape_cast %956 : vector<1x8x8xi32> to vector<8x8xi32>
    %958 = vector.shape_cast %954 : vector<8x8xi32> to vector<1x8x8xi32>
    tpu.vector_store %arg21[%955, %c0_296, %c0_297], %958 {strides = array<i32>} : memref<8x8x8xi32, #tpu.memory_space<vmem>>, vector<1x8x8xi32>,
    %959 = vector.shape_cast %951 : vector<8x1xi1> to vector<8x1xi1>
    %960 = vector.broadcast %959 : vector<8x1xi1> to vector<8x8xi1>
    %961 = arith.select %960, %946, %930 : vector<8x8xi1>, vector<8x8xf32>
    %c5_i32_298 = arith.constant 5 : i32
    %962 = vector.shape_cast %961 : vector<8x8xf32> to vector<8x1x8xf32>
    %963 = vector.broadcast %962 : vector<8x1x8xf32> to vector<8x8x8xf32>
    %964 = vector.broadcast %826 : vector<1x8x8xf32> to vector<8x8x8xf32>
    %965 = arith.addf %963, %964 : vector<8x8x8xf32>
    %cst_299 = arith.constant dense<0xFF800000> : vector<8x8xf32>
    %966 = vector.multi_reduction <maximumf>, %965, %cst_299 [2] : vector<8x8x8xf32> to vector<8x8xf32>
    %967 = vector.shape_cast %966 : vector<8x8xf32> to vector<8x8x1xf32>
    %968 = vector.broadcast %967 : vector<8x8x1xf32> to vector<8x8x8xf32>
    %969 = arith.cmpf oge, %965, %968 : vector<8x8x8xf32>
    %c8_i32_300 = arith.constant 8 : i32
    %970 = vector.broadcast %c8_i32_300 : i32 to vector<8x8x8xi32>
    %971 = arith.select %969, %828, %970 : vector<8x8x8xi1>, vector<8x8x8xi32>
    %cst_301 = arith.constant dense<2147483647> : vector<8x8xi32>
    %972 = vector.multi_reduction <minsi>, %971, %cst_301 [2] : vector<8x8x8xi32> to vector<8x8xi32>
    %cst_302 = arith.constant dense<0xFF800000> : vector<8x8xf32>
    %973 = vector.multi_reduction <maximumf>, %965, %cst_302 [2] : vector<8x8x8xf32> to vector<8x8xf32>
    %974 = arith.index_cast %c5_i32_298 : i32 to index
    %c0_303 = arith.constant 0 : index
    %c0_304 = arith.constant 0 : index
    %975 = vector.load %arg20[%974, %c0_303, %c0_304] : memref<8x8x8xf32, #tpu.memory_space<vmem>>, vector<1x8x8xf32>
    %976 = vector.shape_cast %975 : vector<1x8x8xf32> to vector<8x8xf32>
    %977 = arith.addf %973, %976 : vector<8x8xf32>
    %978 = arith.index_cast %c5_i32_298 : i32 to index
    %c0_305 = arith.constant 0 : index
    %c0_306 = arith.constant 0 : index
    %979 = vector.load %arg2[%978, %c0_305, %c0_306] : memref<8x8x1xf32, #tpu.memory_space<vmem>>, vector<1x8x1xf32>
    %980 = vector.shape_cast %979 : vector<1x8x1xf32> to vector<8x1xf32>
    %cst_307 = arith.constant 0.000000e+00 : f32
    %981 = vector.broadcast %cst_307 : f32 to vector<8x1xf32>
    %982 = arith.cmpf ogt, %980, %981 : vector<8x1xf32>
    %983 = vector.shape_cast %982 : vector<8x1xi1> to vector<8x1xi1>
    %984 = vector.broadcast %983 : vector<8x1xi1> to vector<8x8xi1>
    %985 = arith.select %984, %972, %827 : vector<8x8xi1>, vector<8x8xi32>
    %986 = arith.index_cast %c5_i32_298 : i32 to index
    %c0_308 = arith.constant 0 : index
    %c0_309 = arith.constant 0 : index
    %987 = vector.load %arg21[%986, %c0_308, %c0_309] : memref<8x8x8xi32, #tpu.memory_space<vmem>>, vector<1x8x8xi32>
    %988 = vector.shape_cast %987 : vector<1x8x8xi32> to vector<8x8xi32>
    %989 = vector.shape_cast %985 : vector<8x8xi32> to vector<1x8x8xi32>
    tpu.vector_store %arg21[%986, %c0_308, %c0_309], %989 {strides = array<i32>} : memref<8x8x8xi32, #tpu.memory_space<vmem>>, vector<1x8x8xi32>,
    %990 = vector.shape_cast %982 : vector<8x1xi1> to vector<8x1xi1>
    %991 = vector.broadcast %990 : vector<8x1xi1> to vector<8x8xi1>
    %992 = arith.select %991, %977, %961 : vector<8x8xi1>, vector<8x8xf32>
    %c6_i32_310 = arith.constant 6 : i32
    %993 = vector.shape_cast %992 : vector<8x8xf32> to vector<8x1x8xf32>
    %994 = vector.broadcast %993 : vector<8x1x8xf32> to vector<8x8x8xf32>
    %995 = vector.broadcast %826 : vector<1x8x8xf32> to vector<8x8x8xf32>
    %996 = arith.addf %994, %995 : vector<8x8x8xf32>
    %cst_311 = arith.constant dense<0xFF800000> : vector<8x8xf32>
    %997 = vector.multi_reduction <maximumf>, %996, %cst_311 [2] : vector<8x8x8xf32> to vector<8x8xf32>
    %998 = vector.shape_cast %997 : vector<8x8xf32> to vector<8x8x1xf32>
    %999 = vector.broadcast %998 : vector<8x8x1xf32> to vector<8x8x8xf32>
    %1000 = arith.cmpf oge, %996, %999 : vector<8x8x8xf32>
    %c8_i32_312 = arith.constant 8 : i32
    %1001 = vector.broadcast %c8_i32_312 : i32 to vector<8x8x8xi32>
    %1002 = arith.select %1000, %828, %1001 : vector<8x8x8xi1>, vector<8x8x8xi32>
    %cst_313 = arith.constant dense<2147483647> : vector<8x8xi32>
    %1003 = vector.multi_reduction <minsi>, %1002, %cst_313 [2] : vector<8x8x8xi32> to vector<8x8xi32>
    %cst_314 = arith.constant dense<0xFF800000> : vector<8x8xf32>
    %1004 = vector.multi_reduction <maximumf>, %996, %cst_314 [2] : vector<8x8x8xf32> to vector<8x8xf32>
    %1005 = arith.index_cast %c6_i32_310 : i32 to index
    %c0_315 = arith.constant 0 : index
    %c0_316 = arith.constant 0 : index
    %1006 = vector.load %arg20[%1005, %c0_315, %c0_316] : memref<8x8x8xf32, #tpu.memory_space<vmem>>, vector<1x8x8xf32>
    %1007 = vector.shape_cast %1006 : vector<1x8x8xf32> to vector<8x8xf32>
    %1008 = arith.addf %1004, %1007 : vector<8x8xf32>
    %1009 = arith.index_cast %c6_i32_310 : i32 to index
    %c0_317 = arith.constant 0 : index
    %c0_318 = arith.constant 0 : index
    %1010 = vector.load %arg2[%1009, %c0_317, %c0_318] : memref<8x8x1xf32, #tpu.memory_space<vmem>>, vector<1x8x1xf32>
    %1011 = vector.shape_cast %1010 : vector<1x8x1xf32> to vector<8x1xf32>
    %cst_319 = arith.constant 0.000000e+00 : f32
    %1012 = vector.broadcast %cst_319 : f32 to vector<8x1xf32>
    %1013 = arith.cmpf ogt, %1011, %1012 : vector<8x1xf32>
    %1014 = vector.shape_cast %1013 : vector<8x1xi1> to vector<8x1xi1>
    %1015 = vector.broadcast %1014 : vector<8x1xi1> to vector<8x8xi1>
    %1016 = arith.select %1015, %1003, %827 : vector<8x8xi1>, vector<8x8xi32>
    %1017 = arith.index_cast %c6_i32_310 : i32 to index
    %c0_320 = arith.constant 0 : index
    %c0_321 = arith.constant 0 : index
    %1018 = vector.load %arg21[%1017, %c0_320, %c0_321] : memref<8x8x8xi32, #tpu.memory_space<vmem>>, vector<1x8x8xi32>
    %1019 = vector.shape_cast %1018 : vector<1x8x8xi32> to vector<8x8xi32>
    %1020 = vector.shape_cast %1016 : vector<8x8xi32> to vector<1x8x8xi32>
    tpu.vector_store %arg21[%1017, %c0_320, %c0_321], %1020 {strides = array<i32>} : memref<8x8x8xi32, #tpu.memory_space<vmem>>, vector<1x8x8xi32>,
    %1021 = vector.shape_cast %1013 : vector<8x1xi1> to vector<8x1xi1>
    %1022 = vector.broadcast %1021 : vector<8x1xi1> to vector<8x8xi1>
    %1023 = arith.select %1022, %1008, %992 : vector<8x8xi1>, vector<8x8xf32>
    %c7_i32_322 = arith.constant 7 : i32
    %1024 = vector.shape_cast %1023 : vector<8x8xf32> to vector<8x1x8xf32>
    %1025 = vector.broadcast %1024 : vector<8x1x8xf32> to vector<8x8x8xf32>
    %1026 = vector.broadcast %826 : vector<1x8x8xf32> to vector<8x8x8xf32>
    %1027 = arith.addf %1025, %1026 : vector<8x8x8xf32>
    %cst_323 = arith.constant dense<0xFF800000> : vector<8x8xf32>
    %1028 = vector.multi_reduction <maximumf>, %1027, %cst_323 [2] : vector<8x8x8xf32> to vector<8x8xf32>
    %1029 = vector.shape_cast %1028 : vector<8x8xf32> to vector<8x8x1xf32>
    %1030 = vector.broadcast %1029 : vector<8x8x1xf32> to vector<8x8x8xf32>
    %1031 = arith.cmpf oge, %1027, %1030 : vector<8x8x8xf32>
    %c8_i32_324 = arith.constant 8 : i32
    %1032 = vector.broadcast %c8_i32_324 : i32 to vector<8x8x8xi32>
    %1033 = arith.select %1031, %828, %1032 : vector<8x8x8xi1>, vector<8x8x8xi32>
    %cst_325 = arith.constant dense<2147483647> : vector<8x8xi32>
    %1034 = vector.multi_reduction <minsi>, %1033, %cst_325 [2] : vector<8x8x8xi32> to vector<8x8xi32>
    %cst_326 = arith.constant dense<0xFF800000> : vector<8x8xf32>
    %1035 = vector.multi_reduction <maximumf>, %1027, %cst_326 [2] : vector<8x8x8xf32> to vector<8x8xf32>
    %1036 = arith.index_cast %c7_i32_322 : i32 to index
    %c0_327 = arith.constant 0 : index
    %c0_328 = arith.constant 0 : index
    %1037 = vector.load %arg20[%1036, %c0_327, %c0_328] : memref<8x8x8xf32, #tpu.memory_space<vmem>>, vector<1x8x8xf32>
    %1038 = vector.shape_cast %1037 : vector<1x8x8xf32> to vector<8x8xf32>
    %1039 = arith.addf %1035, %1038 : vector<8x8xf32>
    %1040 = arith.index_cast %c7_i32_322 : i32 to index
    %c0_329 = arith.constant 0 : index
    %c0_330 = arith.constant 0 : index
    %1041 = vector.load %arg2[%1040, %c0_329, %c0_330] : memref<8x8x1xf32, #tpu.memory_space<vmem>>, vector<1x8x1xf32>
    %1042 = vector.shape_cast %1041 : vector<1x8x1xf32> to vector<8x1xf32>
    %cst_331 = arith.constant 0.000000e+00 : f32
    %1043 = vector.broadcast %cst_331 : f32 to vector<8x1xf32>
    %1044 = arith.cmpf ogt, %1042, %1043 : vector<8x1xf32>
    %1045 = vector.shape_cast %1044 : vector<8x1xi1> to vector<8x1xi1>
    %1046 = vector.broadcast %1045 : vector<8x1xi1> to vector<8x8xi1>
    %1047 = arith.select %1046, %1034, %827 : vector<8x8xi1>, vector<8x8xi32>
    %1048 = arith.index_cast %c7_i32_322 : i32 to index
    %c0_332 = arith.constant 0 : index
    %c0_333 = arith.constant 0 : index
    %1049 = vector.load %arg21[%1048, %c0_332, %c0_333] : memref<8x8x8xi32, #tpu.memory_space<vmem>>, vector<1x8x8xi32>
    %1050 = vector.shape_cast %1049 : vector<1x8x8xi32> to vector<8x8xi32>
    %1051 = vector.shape_cast %1047 : vector<8x8xi32> to vector<1x8x8xi32>
    tpu.vector_store %arg21[%1048, %c0_332, %c0_333], %1051 {strides = array<i32>} : memref<8x8x8xi32, #tpu.memory_space<vmem>>, vector<1x8x8xi32>,
    %1052 = vector.shape_cast %1044 : vector<8x1xi1> to vector<8x1xi1>
    %1053 = vector.broadcast %1052 : vector<8x1xi1> to vector<8x8xi1>
    %1054 = arith.select %1053, %1039, %1023 : vector<8x8xi1>, vector<8x8xf32>
    %c7_i32_334 = arith.constant 7 : i32
    %c0_335 = arith.constant 0 : index
    %c0_336 = arith.constant 0 : index
    %1055 = vector.load %arg14[%c0_335, %c0_336] : memref<1x8xf32, #tpu.memory_space<vmem>>, vector<1x8xf32>
    %1056 = vector.broadcast %1055 : vector<1x8xf32> to vector<8x8xf32>
    %1057 = arith.addf %1054, %1056 : vector<8x8xf32>
    %cst_337 = arith.constant dense<0xFF800000> : vector<8xf32>
    %1058 = vector.multi_reduction <maximumf>, %1057, %cst_337 [1] : vector<8x8xf32> to vector<8xf32>
    %1059 = vector.shape_cast %1058 : vector<8xf32> to vector<8x1xf32>
    %1060 = vector.broadcast %1059 : vector<8x1xf32> to vector<8x8xf32>
    %1061 = arith.cmpf oge, %1057, %1060 : vector<8x8xf32>
    %c8_i32_338 = arith.constant 8 : i32
    %1062 = vector.broadcast %c8_i32_338 : i32 to vector<8x8xi32>
    %1063 = arith.select %1061, %827, %1062 : vector<8x8xi1>, vector<8x8xi32>
    %cst_339 = arith.constant dense<2147483647> : vector<8xi32>
    %1064 = vector.multi_reduction <minsi>, %1063, %cst_339 [1] : vector<8x8xi32> to vector<8xi32>
    %1065 = vector.shape_cast %1064 : vector<8xi32> to vector<8x1xi32>
    %c0_i32_340 = arith.constant 0 : i32
    %c7_i32_341 = arith.constant 7 : i32
    %1066 = arith.subi %c7_i32_341, %c0_i32_340 : i32
    %1067 = arith.index_cast %1066 : i32 to index
    %c0_342 = arith.constant 0 : index
    %c0_343 = arith.constant 0 : index
    %1068 = vector.load %arg2[%1067, %c0_342, %c0_343] : memref<8x8x1xf32, #tpu.memory_space<vmem>>, vector<1x8x1xf32>
    %1069 = vector.shape_cast %1068 : vector<1x8x1xf32> to vector<8x1xf32>
    %cst_344 = arith.constant 0.000000e+00 : f32
    %1070 = vector.broadcast %cst_344 : f32 to vector<8x1xf32>
    %1071 = arith.cmpf ogt, %1069, %1070 : vector<8x1xf32>
    %c0_i32_345 = arith.constant 0 : i32
    %1072 = vector.broadcast %c0_i32_345 : i32 to vector<8x1xi32>
    %1073 = arith.select %1071, %1065, %1072 : vector<8x1xi1>, vector<8x1xi32>
    %1074 = arith.index_cast %1066 : i32 to index
    %c0_346 = arith.constant 0 : index
    %c0_347 = arith.constant 0 : index
    %1075 = vector.load %arg15[%1074, %c0_346, %c0_347] : memref<8x8x1xi32, #tpu.memory_space<vmem>>, vector<1x8x1xi32>
    %1076 = vector.shape_cast %1075 : vector<1x8x1xi32> to vector<8x1xi32>
    %1077 = vector.shape_cast %1073 : vector<8x1xi32> to vector<1x8x1xi32>
    tpu.vector_store %arg15[%1074, %c0_346, %c0_347], %1077 {strides = array<i32>} : memref<8x8x1xi32, #tpu.memory_space<vmem>>, vector<1x8x1xi32>,
    %1078 = vector.broadcast %1065 : vector<8x1xi32> to vector<8x8xi32>
    %1079 = arith.cmpi eq, %827, %1078 : vector<8x8xi32>
    %1080 = arith.index_cast %1066 : i32 to index
    %c0_348 = arith.constant 0 : index
    %c0_349 = arith.constant 0 : index
    %1081 = vector.load %arg21[%1080, %c0_348, %c0_349] : memref<8x8x8xi32, #tpu.memory_space<vmem>>, vector<1x8x8xi32>
    %1082 = vector.shape_cast %1081 : vector<1x8x8xi32> to vector<8x8xi32>
    %c0_i32_350 = arith.constant 0 : i32
    %1083 = vector.broadcast %c0_i32_350 : i32 to vector<8x8xi32>
    %1084 = arith.select %1079, %1082, %1083 : vector<8x8xi1>, vector<8x8xi32>
    %cst_351 = arith.constant dense<-2147483648> : vector<8xi32>
    %1085 = vector.multi_reduction <maxsi>, %1084, %cst_351 [1] : vector<8x8xi32> to vector<8xi32>
    %1086 = vector.shape_cast %1085 : vector<8xi32> to vector<8x1xi32>
    %c1_i32_352 = arith.constant 1 : i32
    %c7_i32_353 = arith.constant 7 : i32
    %1087 = arith.subi %c7_i32_353, %c1_i32_352 : i32
    %1088 = arith.index_cast %1087 : i32 to index
    %c0_354 = arith.constant 0 : index
    %c0_355 = arith.constant 0 : index
    %1089 = vector.load %arg2[%1088, %c0_354, %c0_355] : memref<8x8x1xf32, #tpu.memory_space<vmem>>, vector<1x8x1xf32>
    %1090 = vector.shape_cast %1089 : vector<1x8x1xf32> to vector<8x1xf32>
    %cst_356 = arith.constant 0.000000e+00 : f32
    %1091 = vector.broadcast %cst_356 : f32 to vector<8x1xf32>
    %1092 = arith.cmpf ogt, %1090, %1091 : vector<8x1xf32>
    %c0_i32_357 = arith.constant 0 : i32
    %1093 = vector.broadcast %c0_i32_357 : i32 to vector<8x1xi32>
    %1094 = arith.select %1092, %1086, %1093 : vector<8x1xi1>, vector<8x1xi32>
    %1095 = arith.index_cast %1087 : i32 to index
    %c0_358 = arith.constant 0 : index
    %c0_359 = arith.constant 0 : index
    %1096 = vector.load %arg15[%1095, %c0_358, %c0_359] : memref<8x8x1xi32, #tpu.memory_space<vmem>>, vector<1x8x1xi32>
    %1097 = vector.shape_cast %1096 : vector<1x8x1xi32> to vector<8x1xi32>
    %1098 = vector.shape_cast %1094 : vector<8x1xi32> to vector<1x8x1xi32>
    tpu.vector_store %arg15[%1095, %c0_358, %c0_359], %1098 {strides = array<i32>} : memref<8x8x1xi32, #tpu.memory_space<vmem>>, vector<1x8x1xi32>,
    %1099 = vector.broadcast %1086 : vector<8x1xi32> to vector<8x8xi32>
    %1100 = arith.cmpi eq, %827, %1099 : vector<8x8xi32>
    %1101 = arith.index_cast %1087 : i32 to index
    %c0_360 = arith.constant 0 : index
    %c0_361 = arith.constant 0 : index
    %1102 = vector.load %arg21[%1101, %c0_360, %c0_361] : memref<8x8x8xi32, #tpu.memory_space<vmem>>, vector<1x8x8xi32>
    %1103 = vector.shape_cast %1102 : vector<1x8x8xi32> to vector<8x8xi32>
    %c0_i32_362 = arith.constant 0 : i32
    %1104 = vector.broadcast %c0_i32_362 : i32 to vector<8x8xi32>
    %1105 = arith.select %1100, %1103, %1104 : vector<8x8xi1>, vector<8x8xi32>
    %cst_363 = arith.constant dense<-2147483648> : vector<8xi32>
    %1106 = vector.multi_reduction <maxsi>, %1105, %cst_363 [1] : vector<8x8xi32> to vector<8xi32>
    %1107 = vector.shape_cast %1106 : vector<8xi32> to vector<8x1xi32>
    %c2_i32_364 = arith.constant 2 : i32
    %c7_i32_365 = arith.constant 7 : i32
    %1108 = arith.subi %c7_i32_365, %c2_i32_364 : i32
    %1109 = arith.index_cast %1108 : i32 to index
    %c0_366 = arith.constant 0 : index
    %c0_367 = arith.constant 0 : index
    %1110 = vector.load %arg2[%1109, %c0_366, %c0_367] : memref<8x8x1xf32, #tpu.memory_space<vmem>>, vector<1x8x1xf32>
    %1111 = vector.shape_cast %1110 : vector<1x8x1xf32> to vector<8x1xf32>
    %cst_368 = arith.constant 0.000000e+00 : f32
    %1112 = vector.broadcast %cst_368 : f32 to vector<8x1xf32>
    %1113 = arith.cmpf ogt, %1111, %1112 : vector<8x1xf32>
    %c0_i32_369 = arith.constant 0 : i32
    %1114 = vector.broadcast %c0_i32_369 : i32 to vector<8x1xi32>
    %1115 = arith.select %1113, %1107, %1114 : vector<8x1xi1>, vector<8x1xi32>
    %1116 = arith.index_cast %1108 : i32 to index
    %c0_370 = arith.constant 0 : index
    %c0_371 = arith.constant 0 : index
    %1117 = vector.load %arg15[%1116, %c0_370, %c0_371] : memref<8x8x1xi32, #tpu.memory_space<vmem>>, vector<1x8x1xi32>
    %1118 = vector.shape_cast %1117 : vector<1x8x1xi32> to vector<8x1xi32>
    %1119 = vector.shape_cast %1115 : vector<8x1xi32> to vector<1x8x1xi32>
    tpu.vector_store %arg15[%1116, %c0_370, %c0_371], %1119 {strides = array<i32>} : memref<8x8x1xi32, #tpu.memory_space<vmem>>, vector<1x8x1xi32>,
    %1120 = vector.broadcast %1107 : vector<8x1xi32> to vector<8x8xi32>
    %1121 = arith.cmpi eq, %827, %1120 : vector<8x8xi32>
    %1122 = arith.index_cast %1108 : i32 to index
    %c0_372 = arith.constant 0 : index
    %c0_373 = arith.constant 0 : index
    %1123 = vector.load %arg21[%1122, %c0_372, %c0_373] : memref<8x8x8xi32, #tpu.memory_space<vmem>>, vector<1x8x8xi32>
    %1124 = vector.shape_cast %1123 : vector<1x8x8xi32> to vector<8x8xi32>
    %c0_i32_374 = arith.constant 0 : i32
    %1125 = vector.broadcast %c0_i32_374 : i32 to vector<8x8xi32>
    %1126 = arith.select %1121, %1124, %1125 : vector<8x8xi1>, vector<8x8xi32>
    %cst_375 = arith.constant dense<-2147483648> : vector<8xi32>
    %1127 = vector.multi_reduction <maxsi>, %1126, %cst_375 [1] : vector<8x8xi32> to vector<8xi32>
    %1128 = vector.shape_cast %1127 : vector<8xi32> to vector<8x1xi32>
    %c3_i32_376 = arith.constant 3 : i32
    %c7_i32_377 = arith.constant 7 : i32
    %1129 = arith.subi %c7_i32_377, %c3_i32_376 : i32
    %1130 = arith.index_cast %1129 : i32 to index
    %c0_378 = arith.constant 0 : index
    %c0_379 = arith.constant 0 : index
    %1131 = vector.load %arg2[%1130, %c0_378, %c0_379] : memref<8x8x1xf32, #tpu.memory_space<vmem>>, vector<1x8x1xf32>
    %1132 = vector.shape_cast %1131 : vector<1x8x1xf32> to vector<8x1xf32>
    %cst_380 = arith.constant 0.000000e+00 : f32
    %1133 = vector.broadcast %cst_380 : f32 to vector<8x1xf32>
    %1134 = arith.cmpf ogt, %1132, %1133 : vector<8x1xf32>
    %c0_i32_381 = arith.constant 0 : i32
    %1135 = vector.broadcast %c0_i32_381 : i32 to vector<8x1xi32>
    %1136 = arith.select %1134, %1128, %1135 : vector<8x1xi1>, vector<8x1xi32>
    %1137 = arith.index_cast %1129 : i32 to index
    %c0_382 = arith.constant 0 : index
    %c0_383 = arith.constant 0 : index
    %1138 = vector.load %arg15[%1137, %c0_382, %c0_383] : memref<8x8x1xi32, #tpu.memory_space<vmem>>, vector<1x8x1xi32>
    %1139 = vector.shape_cast %1138 : vector<1x8x1xi32> to vector<8x1xi32>
    %1140 = vector.shape_cast %1136 : vector<8x1xi32> to vector<1x8x1xi32>
    tpu.vector_store %arg15[%1137, %c0_382, %c0_383], %1140 {strides = array<i32>} : memref<8x8x1xi32, #tpu.memory_space<vmem>>, vector<1x8x1xi32>,
    %1141 = vector.broadcast %1128 : vector<8x1xi32> to vector<8x8xi32>
    %1142 = arith.cmpi eq, %827, %1141 : vector<8x8xi32>
    %1143 = arith.index_cast %1129 : i32 to index
    %c0_384 = arith.constant 0 : index
    %c0_385 = arith.constant 0 : index
    %1144 = vector.load %arg21[%1143, %c0_384, %c0_385] : memref<8x8x8xi32, #tpu.memory_space<vmem>>, vector<1x8x8xi32>
    %1145 = vector.shape_cast %1144 : vector<1x8x8xi32> to vector<8x8xi32>
    %c0_i32_386 = arith.constant 0 : i32
    %1146 = vector.broadcast %c0_i32_386 : i32 to vector<8x8xi32>
    %1147 = arith.select %1142, %1145, %1146 : vector<8x8xi1>, vector<8x8xi32>
    %cst_387 = arith.constant dense<-2147483648> : vector<8xi32>
    %1148 = vector.multi_reduction <maxsi>, %1147, %cst_387 [1] : vector<8x8xi32> to vector<8xi32>
    %1149 = vector.shape_cast %1148 : vector<8xi32> to vector<8x1xi32>
    %c4_i32_388 = arith.constant 4 : i32
    %c7_i32_389 = arith.constant 7 : i32
    %1150 = arith.subi %c7_i32_389, %c4_i32_388 : i32
    %1151 = arith.index_cast %1150 : i32 to index
    %c0_390 = arith.constant 0 : index
    %c0_391 = arith.constant 0 : index
    %1152 = vector.load %arg2[%1151, %c0_390, %c0_391] : memref<8x8x1xf32, #tpu.memory_space<vmem>>, vector<1x8x1xf32>
    %1153 = vector.shape_cast %1152 : vector<1x8x1xf32> to vector<8x1xf32>
    %cst_392 = arith.constant 0.000000e+00 : f32
    %1154 = vector.broadcast %cst_392 : f32 to vector<8x1xf32>
    %1155 = arith.cmpf ogt, %1153, %1154 : vector<8x1xf32>
    %c0_i32_393 = arith.constant 0 : i32
    %1156 = vector.broadcast %c0_i32_393 : i32 to vector<8x1xi32>
    %1157 = arith.select %1155, %1149, %1156 : vector<8x1xi1>, vector<8x1xi32>
    %1158 = arith.index_cast %1150 : i32 to index
    %c0_394 = arith.constant 0 : index
    %c0_395 = arith.constant 0 : index
    %1159 = vector.load %arg15[%1158, %c0_394, %c0_395] : memref<8x8x1xi32, #tpu.memory_space<vmem>>, vector<1x8x1xi32>
    %1160 = vector.shape_cast %1159 : vector<1x8x1xi32> to vector<8x1xi32>
    %1161 = vector.shape_cast %1157 : vector<8x1xi32> to vector<1x8x1xi32>
    tpu.vector_store %arg15[%1158, %c0_394, %c0_395], %1161 {strides = array<i32>} : memref<8x8x1xi32, #tpu.memory_space<vmem>>, vector<1x8x1xi32>,
    %1162 = vector.broadcast %1149 : vector<8x1xi32> to vector<8x8xi32>
    %1163 = arith.cmpi eq, %827, %1162 : vector<8x8xi32>
    %1164 = arith.index_cast %1150 : i32 to index
    %c0_396 = arith.constant 0 : index
    %c0_397 = arith.constant 0 : index
    %1165 = vector.load %arg21[%1164, %c0_396, %c0_397] : memref<8x8x8xi32, #tpu.memory_space<vmem>>, vector<1x8x8xi32>
    %1166 = vector.shape_cast %1165 : vector<1x8x8xi32> to vector<8x8xi32>
    %c0_i32_398 = arith.constant 0 : i32
    %1167 = vector.broadcast %c0_i32_398 : i32 to vector<8x8xi32>
    %1168 = arith.select %1163, %1166, %1167 : vector<8x8xi1>, vector<8x8xi32>
    %cst_399 = arith.constant dense<-2147483648> : vector<8xi32>
    %1169 = vector.multi_reduction <maxsi>, %1168, %cst_399 [1] : vector<8x8xi32> to vector<8xi32>
    %1170 = vector.shape_cast %1169 : vector<8xi32> to vector<8x1xi32>
    %c5_i32_400 = arith.constant 5 : i32
    %c7_i32_401 = arith.constant 7 : i32
    %1171 = arith.subi %c7_i32_401, %c5_i32_400 : i32
    %1172 = arith.index_cast %1171 : i32 to index
    %c0_402 = arith.constant 0 : index
    %c0_403 = arith.constant 0 : index
    %1173 = vector.load %arg2[%1172, %c0_402, %c0_403] : memref<8x8x1xf32, #tpu.memory_space<vmem>>, vector<1x8x1xf32>
    %1174 = vector.shape_cast %1173 : vector<1x8x1xf32> to vector<8x1xf32>
    %cst_404 = arith.constant 0.000000e+00 : f32
    %1175 = vector.broadcast %cst_404 : f32 to vector<8x1xf32>
    %1176 = arith.cmpf ogt, %1174, %1175 : vector<8x1xf32>
    %c0_i32_405 = arith.constant 0 : i32
    %1177 = vector.broadcast %c0_i32_405 : i32 to vector<8x1xi32>
    %1178 = arith.select %1176, %1170, %1177 : vector<8x1xi1>, vector<8x1xi32>
    %1179 = arith.index_cast %1171 : i32 to index
    %c0_406 = arith.constant 0 : index
    %c0_407 = arith.constant 0 : index
    %1180 = vector.load %arg15[%1179, %c0_406, %c0_407] : memref<8x8x1xi32, #tpu.memory_space<vmem>>, vector<1x8x1xi32>
    %1181 = vector.shape_cast %1180 : vector<1x8x1xi32> to vector<8x1xi32>
    %1182 = vector.shape_cast %1178 : vector<8x1xi32> to vector<1x8x1xi32>
    tpu.vector_store %arg15[%1179, %c0_406, %c0_407], %1182 {strides = array<i32>} : memref<8x8x1xi32, #tpu.memory_space<vmem>>, vector<1x8x1xi32>,
    %1183 = vector.broadcast %1170 : vector<8x1xi32> to vector<8x8xi32>
    %1184 = arith.cmpi eq, %827, %1183 : vector<8x8xi32>
    %1185 = arith.index_cast %1171 : i32 to index
    %c0_408 = arith.constant 0 : index
    %c0_409 = arith.constant 0 : index
    %1186 = vector.load %arg21[%1185, %c0_408, %c0_409] : memref<8x8x8xi32, #tpu.memory_space<vmem>>, vector<1x8x8xi32>
    %1187 = vector.shape_cast %1186 : vector<1x8x8xi32> to vector<8x8xi32>
    %c0_i32_410 = arith.constant 0 : i32
    %1188 = vector.broadcast %c0_i32_410 : i32 to vector<8x8xi32>
    %1189 = arith.select %1184, %1187, %1188 : vector<8x8xi1>, vector<8x8xi32>
    %cst_411 = arith.constant dense<-2147483648> : vector<8xi32>
    %1190 = vector.multi_reduction <maxsi>, %1189, %cst_411 [1] : vector<8x8xi32> to vector<8xi32>
    %1191 = vector.shape_cast %1190 : vector<8xi32> to vector<8x1xi32>
    %c6_i32_412 = arith.constant 6 : i32
    %c7_i32_413 = arith.constant 7 : i32
    %1192 = arith.subi %c7_i32_413, %c6_i32_412 : i32
    %1193 = arith.index_cast %1192 : i32 to index
    %c0_414 = arith.constant 0 : index
    %c0_415 = arith.constant 0 : index
    %1194 = vector.load %arg2[%1193, %c0_414, %c0_415] : memref<8x8x1xf32, #tpu.memory_space<vmem>>, vector<1x8x1xf32>
    %1195 = vector.shape_cast %1194 : vector<1x8x1xf32> to vector<8x1xf32>
    %cst_416 = arith.constant 0.000000e+00 : f32
    %1196 = vector.broadcast %cst_416 : f32 to vector<8x1xf32>
    %1197 = arith.cmpf ogt, %1195, %1196 : vector<8x1xf32>
    %c0_i32_417 = arith.constant 0 : i32
    %1198 = vector.broadcast %c0_i32_417 : i32 to vector<8x1xi32>
    %1199 = arith.select %1197, %1191, %1198 : vector<8x1xi1>, vector<8x1xi32>
    %1200 = arith.index_cast %1192 : i32 to index
    %c0_418 = arith.constant 0 : index
    %c0_419 = arith.constant 0 : index
    %1201 = vector.load %arg15[%1200, %c0_418, %c0_419] : memref<8x8x1xi32, #tpu.memory_space<vmem>>, vector<1x8x1xi32>
    %1202 = vector.shape_cast %1201 : vector<1x8x1xi32> to vector<8x1xi32>
    %1203 = vector.shape_cast %1199 : vector<8x1xi32> to vector<1x8x1xi32>
    tpu.vector_store %arg15[%1200, %c0_418, %c0_419], %1203 {strides = array<i32>} : memref<8x8x1xi32, #tpu.memory_space<vmem>>, vector<1x8x1xi32>,
    %1204 = vector.broadcast %1191 : vector<8x1xi32> to vector<8x8xi32>
    %1205 = arith.cmpi eq, %827, %1204 : vector<8x8xi32>
    %1206 = arith.index_cast %1192 : i32 to index
    %c0_420 = arith.constant 0 : index
    %c0_421 = arith.constant 0 : index
    %1207 = vector.load %arg21[%1206, %c0_420, %c0_421] : memref<8x8x8xi32, #tpu.memory_space<vmem>>, vector<1x8x8xi32>
    %1208 = vector.shape_cast %1207 : vector<1x8x8xi32> to vector<8x8xi32>
    %c0_i32_422 = arith.constant 0 : i32
    %1209 = vector.broadcast %c0_i32_422 : i32 to vector<8x8xi32>
    %1210 = arith.select %1205, %1208, %1209 : vector<8x8xi1>, vector<8x8xi32>
    %cst_423 = arith.constant dense<-2147483648> : vector<8xi32>
    %1211 = vector.multi_reduction <maxsi>, %1210, %cst_423 [1] : vector<8x8xi32> to vector<8xi32>
    %1212 = vector.shape_cast %1211 : vector<8xi32> to vector<8x1xi32>
    %c7_i32_424 = arith.constant 7 : i32
    %c7_i32_425 = arith.constant 7 : i32
    %1213 = arith.subi %c7_i32_425, %c7_i32_424 : i32
    %1214 = arith.index_cast %1213 : i32 to index
    %c0_426 = arith.constant 0 : index
    %c0_427 = arith.constant 0 : index
    %1215 = vector.load %arg2[%1214, %c0_426, %c0_427] : memref<8x8x1xf32, #tpu.memory_space<vmem>>, vector<1x8x1xf32>
    %1216 = vector.shape_cast %1215 : vector<1x8x1xf32> to vector<8x1xf32>
    %cst_428 = arith.constant 0.000000e+00 : f32
    %1217 = vector.broadcast %cst_428 : f32 to vector<8x1xf32>
    %1218 = arith.cmpf ogt, %1216, %1217 : vector<8x1xf32>
    %c0_i32_429 = arith.constant 0 : i32
    %1219 = vector.broadcast %c0_i32_429 : i32 to vector<8x1xi32>
    %1220 = arith.select %1218, %1212, %1219 : vector<8x1xi1>, vector<8x1xi32>
    %1221 = arith.index_cast %1213 : i32 to index
    %c0_430 = arith.constant 0 : index
    %c0_431 = arith.constant 0 : index
    %1222 = vector.load %arg15[%1221, %c0_430, %c0_431] : memref<8x8x1xi32, #tpu.memory_space<vmem>>, vector<1x8x1xi32>
    %1223 = vector.shape_cast %1222 : vector<1x8x1xi32> to vector<8x1xi32>
    %1224 = vector.shape_cast %1220 : vector<8x1xi32> to vector<1x8x1xi32>
    tpu.vector_store %arg15[%1221, %c0_430, %c0_431], %1224 {strides = array<i32>} : memref<8x8x1xi32, #tpu.memory_space<vmem>>, vector<1x8x1xi32>,
    %1225 = vector.broadcast %1212 : vector<8x1xi32> to vector<8x8xi32>
    %1226 = arith.cmpi eq, %827, %1225 : vector<8x8xi32>
    %1227 = arith.index_cast %1213 : i32 to index
    %c0_432 = arith.constant 0 : index
    %c0_433 = arith.constant 0 : index
    %1228 = vector.load %arg21[%1227, %c0_432, %c0_433] : memref<8x8x8xi32, #tpu.memory_space<vmem>>, vector<1x8x8xi32>
    %1229 = vector.shape_cast %1228 : vector<1x8x8xi32> to vector<8x8xi32>
    %c0_i32_434 = arith.constant 0 : i32
    %1230 = vector.broadcast %c0_i32_434 : i32 to vector<8x8xi32>
    %1231 = arith.select %1226, %1229, %1230 : vector<8x8xi1>, vector<8x8xi32>
    %cst_435 = arith.constant dense<-2147483648> : vector<8xi32>
    %1232 = vector.multi_reduction <maxsi>, %1231, %cst_435 [1] : vector<8x8xi32> to vector<8xi32>
    %1233 = vector.shape_cast %1232 : vector<8xi32> to vector<8x1xi32>
    %c8_i32_436 = arith.constant 8 : i32
    return
  }
  func.func @transform_0(%arg0: i32) -> (i32, i32, i32) {
    %c0_i32 = arith.constant 0 : i32
    %c0_i32_0 = arith.constant 0 : i32
    %c0_i32_1 = arith.constant 0 : i32
    return %c0_i32, %arg0, %c0_i32_0 : i32, i32, i32
  }
  func.func @transform_1(%arg0: i32) -> (i32, i32, i32) {
    %c0_i32 = arith.constant 0 : i32
    %c0_i32_0 = arith.constant 0 : i32
    %c0_i32_1 = arith.constant 0 : i32
    return %c0_i32, %arg0, %c0_i32_0 : i32, i32, i32
  }
  func.func @transform_2(%arg0: i32) -> (i32, i32) {
    %c0_i32 = arith.constant 0 : i32
    %c0_i32_0 = arith.constant 0 : i32
    %c0_i32_1 = arith.constant 0 : i32
    return %c0_i32, %c0_i32_0 : i32, i32
  }
  func.func @transform_3(%arg0: i32) -> (i32, i32) {
    %c0_i32 = arith.constant 0 : i32
    %c0_i32_0 = arith.constant 0 : i32
    %c0_i32_1 = arith.constant 0 : i32
    return %c0_i32, %c0_i32_0 : i32, i32
  }
  func.func @transform_4(%arg0: i32) -> (i32, i32) {
    %c0_i32 = arith.constant 0 : i32
    %c0_i32_0 = arith.constant 0 : i32
    %c0_i32_1 = arith.constant 0 : i32
    return %c0_i32, %c0_i32_0 : i32, i32
  }
  func.func @transform_5(%arg0: i32) -> (i32, i32) {
    %c0_i32 = arith.constant 0 : i32
    %c0_i32_0 = arith.constant 0 : i32
    %c0_i32_1 = arith.constant 0 : i32
    return %c0_i32, %c0_i32_0 : i32, i32
  }
  func.func @transform_6(%arg0: i32) -> (i32, i32) {
    %c0_i32 = arith.constant 0 : i32
    %c0_i32_0 = arith.constant 0 : i32
    %c0_i32_1 = arith.constant 0 : i32
    return %c0_i32, %c0_i32_0 : i32, i32
  }
  func.func @transform_7(%arg0: i32) -> (i32, i32) {
    %c0_i32 = arith.constant 0 : i32
    %c0_i32_0 = arith.constant 0 : i32
    %c0_i32_1 = arith.constant 0 : i32
    return %c0_i32, %c0_i32_0 : i32, i32
  }
  func.func @transform_8(%arg0: i32) -> (i32, i32) {
    %c0_i32 = arith.constant 0 : i32
    %c0_i32_0 = arith.constant 0 : i32
    %c0_i32_1 = arith.constant 0 : i32
    return %c0_i32, %c0_i32_0 : i32, i32
  }
  func.func @transform_9(%arg0: i32) -> (i32, i32) {
    %c0_i32 = arith.constant 0 : i32
    %c0_i32_0 = arith.constant 0 : i32
    %c0_i32_1 = arith.constant 0 : i32
    return %c0_i32, %c0_i32_0 : i32, i32
  }
  func.func @transform_10(%arg0: i32) -> (i32, i32) {
    %c0_i32 = arith.constant 0 : i32
    %c0_i32_0 = arith.constant 0 : i32
    %c0_i32_1 = arith.constant 0 : i32
    return %c0_i32, %c0_i32_0 : i32, i32
  }
  func.func @transform_11(%arg0: i32) -> (i32, i32) {
    %c0_i32 = arith.constant 0 : i32
    %c0_i32_0 = arith.constant 0 : i32
    %c0_i32_1 = arith.constant 0 : i32
    return %c0_i32, %c0_i32_0 : i32, i32
  }
  func.func @transform_12(%arg0: i32) -> (i32, i32) {
    %c0_i32 = arith.constant 0 : i32
    %c0_i32_0 = arith.constant 0 : i32
    %c0_i32_1 = arith.constant 0 : i32
    return %c0_i32, %c0_i32_0 : i32, i32
  }
  func.func @transform_13(%arg0: i32) -> (i32, i32) {
    %c0_i32 = arith.constant 0 : i32
    %c0_i32_0 = arith.constant 0 : i32
    %c0_i32_1 = arith.constant 0 : i32
    return %c0_i32, %c0_i32_0 : i32, i32
  }
  func.func @transform_14(%arg0: i32) -> (i32, i32, i32) {
    %c0_i32 = arith.constant 0 : i32
    %c0_i32_0 = arith.constant 0 : i32
    %c0_i32_1 = arith.constant 0 : i32
    return %c0_i32, %arg0, %c0_i32_0 : i32, i32, i32
  }
}

</mosaic_0001>

<llo_original>
// kernel: tpu_custom_call.1
$region0: #{tpu_custom_call.1}
  #allocation0 [shape = 'u32[]', space=smem, size = 0x4, offset = 0x4, fixed_abs, tag = 'smem constant byte address 0x4 - core index']
  #allocation1 [shape = 'u32[144,128]{1,0:T(1,128)}', space=vmem, size = 0x12000, scoped, tag = 'internal scratch']
  #allocation2 [shape = 'f32[8,8,64]{2,1,0:T(8,128)}', space=vmem, size = 0x8000, scoped, tag = 'scratch operand']
  #allocation3 [shape = 'f32[8,8,64]{2,1,0:T(8,128)}', space=vmem, size = 0x8000, scoped, tag = 'scratch operand']
  #allocation4 [shape = 'f32[8,8,16]{2,1,0:T(8,128)}', space=vmem, size = 0x8000, scoped, tag = 'scratch operand']
  #allocation5 [shape = 'f32[8,8,16]{2,1,0:T(8,128)}', space=vmem, size = 0x8000, scoped, tag = 'scratch operand']
  #allocation6 [shape = 'f32[8,8,8]{2,1,0:T(8,128)}', space=vmem, size = 0x8000, scoped, tag = 'scratch operand']
  #allocation7 [shape = 's32[8,8,8]{2,1,0:T(8,128)}', space=vmem, size = 0x8000, scoped, tag = 'scratch operand']
  %s0 = inlined_call_operand.vmem [shape: f32[8,8,24], index: 0, kind: input, shape index: {}]
  %s1 = inlined_call_operand.vmem [shape: f32[8,8,1], index: 1, kind: input, shape index: {}]
  %s2 = inlined_call_operand.vmem [shape: f32[24,64], index: 2, kind: input, shape index: {}]
  %s3 = inlined_call_operand.hbm [shape: f32[1,64], index: 3, kind: input, shape index: {}]
  %s4 = inlined_call_operand.vmem [shape: f32[24,64], index: 4, kind: input, shape index: {}]
  %s5 = inlined_call_operand.hbm [shape: f32[1,64], index: 5, kind: input, shape index: {}]
  %s6 = inlined_call_operand.vmem [shape: f32[16,64], index: 6, kind: input, shape index: {}]
  %s7 = inlined_call_operand.hbm [shape: f32[16,64], index: 7, kind: input, shape index: {}]
  %s8 = inlined_call_operand.vmem [shape: f32[16,8], index: 8, kind: input, shape index: {}]
  %s9 = inlined_call_operand.vmem [shape: f32[16,8], index: 9, kind: input, shape index: {}]
  %s10 = inlined_call_operand.vmem [shape: f32[1,8], index: 10, kind: input, shape index: {}]
  %s11 = inlined_call_operand.hbm [shape: f32[8,8], index: 11, kind: input, shape index: {}]
  %s12 = inlined_call_operand.vmem [shape: f32[1,8], index: 12, kind: input, shape index: {}]
  %s13 = inlined_call_operand.vmem [shape: f32[1,8], index: 13, kind: input, shape index: {}]
  %s14 = inlined_call_operand.vmem [shape: s32[8,8,1], index: 14, kind: output, shape index: {}]
  %s15 = sld [smem:[#allocation0]]
  $region82: #{tpu_custom_call.1} parent=0
    _
  %s17 = ssub.s32 1, %s15
  %s18 = scalar_select 0, %s17, %s15
  $region1: #{tpu_custom_call.1} parent=0
    #allocation8 [shape = 'u8[512]{0}', space=vmem, size = 0x400, scoped, tag = 'input window, operand 3, single buffered']
    #allocation9 [shape = 's32[1]{0}', space=sflag, size = 0x4, scoped, tag = 'scoped memory for tpu_custom_call.1']
    #allocation10 [shape = 'u8[512]{0}', space=vmem, size = 0x400, scoped, tag = 'input window, operand 5, single buffered']
    #allocation11 [shape = 's32[1]{0}', space=sflag, size = 0x4, scoped, tag = 'scoped memory for tpu_custom_call.1']
    #allocation12 [shape = 'u8[8192]{0}', space=vmem, size = 0x2000, scoped, tag = 'input window, operand 7, single buffered']
    #allocation13 [shape = 'u8[4096]{0}', space=vmem, size = 0x1000, scoped, tag = 'input window, operand 11, single buffered']
    #allocation14 [shape = 's32[1]{0}', space=sflag, size = 0x4, scoped, tag = 'scoped memory for tpu_custom_call.1']
    %19 = vsyncpa [#allocation9], 0
    %20 = vsyncpa [#allocation11], 0
    %21 = vsyncpa [#allocation14], 0
    // Predicated region
    $region2: #{tpu_custom_call.1} parent=1 // pred_check
      _
    $region3: #{tpu_custom_call.1} parent=1 // pred_check_branch
      %23 = sbr.rel (0) target = $region5
    $region4: #{tpu_custom_call.1} parent=1 // pred_region
      _
    $region5: #{tpu_custom_call.1} parent=1 // pred_fallthru
      _
    // Predicated region
    $region6: #{tpu_custom_call.1} parent=1 // pred_check
      _
    $region7: #{tpu_custom_call.1} parent=1 // pred_check_branch
      %25 = sbr.rel (0) target = $region9
    $region8: #{tpu_custom_call.1} parent=1 // pred_region
      _
    $region9: #{tpu_custom_call.1} parent=1 // pred_fallthru
      _
    // Predicated region
    $region10: #{tpu_custom_call.1} parent=1 // pred_check
      _
    $region11: #{tpu_custom_call.1} parent=1 // pred_check_branch
      %27 = sbr.rel (0) target = $region13
    $region12: #{tpu_custom_call.1} parent=1 // pred_region
      _
    $region13: #{tpu_custom_call.1} parent=1 // pred_fallthru
      _
    // Predicated region
    $region14: #{tpu_custom_call.1} parent=1 // pred_check
      _
    $region15: #{tpu_custom_call.1} parent=1 // pred_check_branch
      %29 = sbr.rel (0) target = $region17
    $region16: #{tpu_custom_call.1} parent=1 // pred_region
      %s31 = ssub.s32 16, 16
      %32 = vsyncadd [#allocation9], %s31
      %s34 = sshll.u32 [#allocation8], 4
      %s35 = int_to_ptr.vmem [resolvable:$true] %s34
      %37 = dma.hbm_to_vmem [thread:$0]  %s3, 16, %s35, [#allocation9]
    $region17: #{tpu_custom_call.1} parent=1 // pred_fallthru
      _
    // Predicated region
    $region18: #{tpu_custom_call.1} parent=1 // pred_check
      _
    $region19: #{tpu_custom_call.1} parent=1 // pred_check_branch
      %39 = sbr.rel (0) target = $region21
    $region20: #{tpu_custom_call.1} parent=1 // pred_region
      _
    $region21: #{tpu_custom_call.1} parent=1 // pred_fallthru
      _
    // Predicated region
    $region22: #{tpu_custom_call.1} parent=1 // pred_check
      _
    $region23: #{tpu_custom_call.1} parent=1 // pred_check_branch
      %41 = sbr.rel (0) target = $region25
    $region24: #{tpu_custom_call.1} parent=1 // pred_region
      %s43 = ssub.s32 16, 16
      %44 = vsyncadd [#allocation11], %s43
      %s46 = sshll.u32 [#allocation10], 4
      %s47 = int_to_ptr.vmem [resolvable:$true] %s46
      %49 = dma.hbm_to_vmem [thread:$0]  %s5, 16, %s47, [#allocation11]
    $region25: #{tpu_custom_call.1} parent=1 // pred_fallthru
      _
    // Predicated region
    $region26: #{tpu_custom_call.1} parent=1 // pred_check
      _
    $region27: #{tpu_custom_call.1} parent=1 // pred_check_branch
      %51 = sbr.rel (0) target = $region29
    $region28: #{tpu_custom_call.1} parent=1 // pred_region
      _
    $region29: #{tpu_custom_call.1} parent=1 // pred_fallthru
      _
    // Predicated region
    $region30: #{tpu_custom_call.1} parent=1 // pred_check
      _
    $region31: #{tpu_custom_call.1} parent=1 // pred_check_branch
      %53 = sbr.rel (0) target = $region33
    $region32: #{tpu_custom_call.1} parent=1 // pred_region
      %s55 = ssub.s32 256, 256
      %56 = vsyncadd [#allocation11], %s55
      %s57 = sshll.u32 [#allocation12], 4
      %s58 = int_to_ptr.vmem [resolvable:$true] %s57
      %63 = dma.hbm_to_vmem [thread:$0]  %s7, 256, %s58, [#allocation11], 128, 128, 8
    $region33: #{tpu_custom_call.1} parent=1 // pred_fallthru
      _
    // Predicated region
    $region34: #{tpu_custom_call.1} parent=1 // pred_check
      _
    $region35: #{tpu_custom_call.1} parent=1 // pred_check_branch
      %65 = sbr.rel (0) target = $region37
    $region36: #{tpu_custom_call.1} parent=1 // pred_region
      _
    $region37: #{tpu_custom_call.1} parent=1 // pred_fallthru
      _
    // Predicated region
    $region38: #{tpu_custom_call.1} parent=1 // pred_check
      _
    $region39: #{tpu_custom_call.1} parent=1 // pred_check_branch
      %67 = sbr.rel (0) target = $region41
    $region40: #{tpu_custom_call.1} parent=1 // pred_region
      _
    $region41: #{tpu_custom_call.1} parent=1 // pred_fallthru
      _
    // Predicated region
    $region42: #{tpu_custom_call.1} parent=1 // pred_check
      _
    $region43: #{tpu_custom_call.1} parent=1 // pred_check_branch
      %69 = sbr.rel (0) target = $region45
    $region44: #{tpu_custom_call.1} parent=1 // pred_region
      _
    $region45: #{tpu_custom_call.1} parent=1 // pred_fallthru
      _
    // Predicated region
    $region46: #{tpu_custom_call.1} parent=1 // pred_check
      _
    $region47: #{tpu_custom_call.1} parent=1 // pred_check_branch
      %71 = sbr.rel (0) target = $region49
    $region48: #{tpu_custom_call.1} parent=1 // pred_region
      %s73 = ssub.s32 128, 128
      %74 = vsyncadd [#allocation14], %s73
      %s76 = sshll.u32 [#allocation13], 4
      %s77 = int_to_ptr.vmem [resolvable:$true] %s76
      %79 = dma.hbm_to_vmem [thread:$0]  %s11, 128, %s77, [#allocation14]
    $region49: #{tpu_custom_call.1} parent=1 // pred_fallthru
      _
    // Predicated region
    $region50: #{tpu_custom_call.1} parent=1 // pred_check
      _
    $region51: #{tpu_custom_call.1} parent=1 // pred_check_branch
      %81 = sbr.rel (0) target = $region53
    $region52: #{tpu_custom_call.1} parent=1 // pred_region
      _
    $region53: #{tpu_custom_call.1} parent=1 // pred_fallthru
      _
    // Predicated region
    $region54: #{tpu_custom_call.1} parent=1 // pred_check
      _
    $region55: #{tpu_custom_call.1} parent=1 // pred_check_branch
      %83 = sbr.rel (0) target = $region57
    $region56: #{tpu_custom_call.1} parent=1 // pred_region
      _
    $region57: #{tpu_custom_call.1} parent=1 // pred_fallthru
      _
    // Predicated region
    $region58: #{tpu_custom_call.1} parent=1 // pred_check
      _
    $region59: #{tpu_custom_call.1} parent=1 // pred_check_branch
      %85 = sbr.rel (0) target = $region61
    $region60: #{tpu_custom_call.1} parent=1 // pred_region
      %86 = dma.done [#allocation9], 16
    $region61: #{tpu_custom_call.1} parent=1 // pred_fallthru
      _
    // Predicated region
    $region62: #{tpu_custom_call.1} parent=1 // pred_check
      _
    $region63: #{tpu_custom_call.1} parent=1 // pred_check_branch
      %88 = sbr.rel (0) target = $region65
    $region64: #{tpu_custom_call.1} parent=1 // pred_region
      %89 = dma.done [#allocation11], 16
    $region65: #{tpu_custom_call.1} parent=1 // pred_fallthru
      _
    // Predicated region
    $region66: #{tpu_custom_call.1} parent=1 // pred_check
      _
    $region67: #{tpu_custom_call.1} parent=1 // pred_check_branch
      %91 = sbr.rel (0) target = $region69
    $region68: #{tpu_custom_call.1} parent=1 // pred_region
      %92 = dma.done [#allocation11], 256
    $region69: #{tpu_custom_call.1} parent=1 // pred_fallthru
      _
    // Predicated region
    $region70: #{tpu_custom_call.1} parent=1 // pred_check
      _
    $region71: #{tpu_custom_call.1} parent=1 // pred_check_branch
      %94 = sbr.rel (0) target = $region73
    $region72: #{tpu_custom_call.1} parent=1 // pred_region
      %95 = dma.done [#allocation14], 128
    $region73: #{tpu_custom_call.1} parent=1 // pred_fallthru
      _
    %v96 = vld [vmem:[%s0] sm:$0xff]
    %v97 = vld [vmem:[%s0 + $0x8] sm:$0xff]
    %v98 = vld [vmem:[%s0 + $0x10] sm:$0xff]
    %v99 = vld [vmem:[%s0 + $0x18] sm:$0xff]
    %v100 = vld [vmem:[%s0 + $0x20] sm:$0xff]
    %v101 = vld [vmem:[%s0 + $0x28] sm:$0xff]
    %v102 = vld [vmem:[%s0 + $0x30] sm:$0xff]
    %v103 = vld [vmem:[%s0 + $0x38] sm:$0xff]
    %v104 = vld [vmem:[%s2] sm:$0xff]
    %v105 = vld [vmem:[%s2 + $0x8] sm:$0xff]
    %v106 = vld [vmem:[%s2 + $0x10] sm:$0xff]
    %v107 = vld [vmem:[#allocation8] sm:$0x1]
    %v109 = vlaneseq
    %v110 = vshrl.u32 %v109, 7
    %v111 = vsub.s32 0, %v110
    %v112 = vrot.slane %v107, %v111
    %vm114 = vcmask 195584
    %v116 = vsel %vm114, %v96, 0
    %v119 = vsel %vm114, %v97, 0
    %v122 = vsel %vm114, %v98, 0
    %v125 = vsel %vm114, %v99, 0
    %v128 = vsel %vm114, %v100, 0
    %v131 = vsel %vm114, %v101, 0
    %v134 = vsel %vm114, %v102, 0
    %v137 = vsel %vm114, %v103, 0
    %139 = vmatprep.subr.mxu0 0.0
    %140 = vmatpush1.msra.mxu0 0.0
    %141 = vmatprep.subr.mxu0 0.0
    %142 = vmatpush1.msra.mxu0 0.0
    %143 = vmatprep.subr.mxu0 0.0
    %144 = vmatpush1.msra.mxu0 0.0
    %145 = vmatprep.subr.mxu0 0.0
    %146 = vmatpush1.msra.mxu0 0.0
    %147 = vmatprep.subr.mxu0 0.0
    %148 = vmatpush1.msra.mxu0 0.0
    %149 = vmatprep.subr.mxu0 0.0
    %150 = vmatpush1.msra.mxu0 0.0
    %151 = vmatprep.subr.mxu0 0.0
    %152 = vmatpush1.msra.mxu0 0.0
    %153 = vmatprep.subr.mxu0 0.0
    %154 = vmatpush1.msra.mxu0 0.0
    %155 = vmatprep.subr.mxu0 0.0
    %156 = vmatpush1.msra.mxu0 0.0
    %157 = vmatprep.subr.mxu0 0.0
    %158 = vmatpush1.msra.mxu0 0.0
    %159 = vmatprep.subr.mxu0 0.0
    %160 = vmatpush1.msra.mxu0 0.0
    %161 = vmatprep.subr.mxu0 0.0
    %162 = vmatpush1.msra.mxu0 0.0
    %163 = vmatprep.subr.mxu0 0.0
    %164 = vmatpush1.msra.mxu0 0.0
    %165 = vmatprep.subr.mxu0 0.0
    %166 = vmatpush1.msra.mxu0 %v106
    %167 = vmatprep.subr.mxu0 0.0
    %168 = vmatpush1.msra.mxu0 %v105
    %169 = vmatprep.subr.mxu0 0.0
    %170 = vmatpush1.msra.mxu0 %v104
    %171 = vmatprep.subr.mxu0 0.0
    %172 = vmatpush2.msra.mxu0 0.0
    %173 = vmatprep.subr.mxu0 0.0
    %174 = vmatpush2.msra.mxu0 0.0
    %175 = vmatprep.subr.mxu0 0.0
    %176 = vmatpush2.msra.mxu0 0.0
    %177 = vmatprep.subr.mxu0 0.0
    %178 = vmatpush2.msra.mxu0 0.0
    %179 = vmatprep.subr.mxu0 0.0
    %180 = vmatpush2.msra.mxu0 0.0
    %181 = vmatprep.subr.mxu0 0.0
    %182 = vmatpush2.msra.mxu0 0.0
    %183 = vmatprep.subr.mxu0 0.0
    %184 = vmatpush2.msra.mxu0 0.0
    %185 = vmatprep.subr.mxu0 0.0
    %186 = vmatpush2.msra.mxu0 0.0
    %187 = vmatprep.subr.mxu0 0.0
    %188 = vmatpush2.msra.mxu0 0.0
    %189 = vmatprep.subr.mxu0 0.0
    %190 = vmatpush2.msra.mxu0 0.0
    %191 = vmatprep.subr.mxu0 0.0
    %192 = vmatpush2.msra.mxu0 0.0
    %193 = vmatprep.subr.mxu0 0.0
    %194 = vmatpush2.msra.mxu0 0.0
    %195 = vmatprep.subr.mxu0 0.0
    %196 = vmatpush2.msra.mxu0 0.0
    %197 = vmatprep.subr.mxu0 0.0
    %198 = vmatpush2.msra.mxu0 0.0
    %199 = vmatprep.subr.mxu0 0.0
    %200 = vmatpush2.msra.mxu0 0.0
    %201 = vmatprep.subr.mxu0 0.0
    %202 = vmatpush2.msra.mxu0 0.0
    %203 = vmatprep.mubr.f32.mxu0 0.0
    %204 = vmatmul.mubr.f32.gmra.mxu0 %v116
    %v205 = vpop.f32.mrf.mxu0
    %v206 = vadd.f32 %v112, %v205
    %v207 = vpop.f32.mrf.mxu0
    %208 = vmatprep.mubr.f32.mxu0 0.0
    %209 = vmatmul.mubr.f32.gmra.mxu0 %v119
    %v210 = vpop.f32.mrf.mxu0
    %v211 = vadd.f32 %v112, %v210
    %v212 = vpop.f32.mrf.mxu0
    %213 = vmatprep.mubr.f32.mxu0 0.0
    %214 = vmatmul.mubr.f32.gmra.mxu0 %v122
    %v215 = vpop.f32.mrf.mxu0
    %v216 = vadd.f32 %v112, %v215
    %v217 = vpop.f32.mrf.mxu0
    %218 = vmatprep.mubr.f32.mxu0 0.0
    %219 = vmatmul.mubr.f32.gmra.mxu0 %v125
    %v220 = vpop.f32.mrf.mxu0
    %v221 = vadd.f32 %v112, %v220
    %v222 = vpop.f32.mrf.mxu0
    %223 = vmatprep.mubr.f32.mxu0 0.0
    %224 = vmatmul.mubr.f32.gmra.mxu0 %v128
    %v225 = vpop.f32.mrf.mxu0
    %v226 = vadd.f32 %v112, %v225
    %v227 = vpop.f32.mrf.mxu0
    %228 = vmatprep.mubr.f32.mxu0 0.0
    %229 = vmatmul.mubr.f32.gmra.mxu0 %v131
    %v230 = vpop.f32.mrf.mxu0
    %v231 = vadd.f32 %v112, %v230
    %v232 = vpop.f32.mrf.mxu0
    %233 = vmatprep.mubr.f32.mxu0 0.0
    %234 = vmatmul.mubr.f32.gmra.mxu0 %v134
    %v235 = vpop.f32.mrf.mxu0
    %v236 = vadd.f32 %v112, %v235
    %v237 = vpop.f32.mrf.mxu0
    %238 = vmatprep.mubr.f32.mxu0 0.0
    %239 = vmatmul.mubr.f32.gmra.mxu0 %v137
    %v240 = vpop.f32.mrf.mxu0
    %v241 = vadd.f32 %v112, %v240
    %v242 = vpop.f32.mrf.mxu0
    %243 = vdwg.mxu0
    %vm244 = vcmask 523264
    %245 = vst.msk [vmem:[#allocation2] sm:$0xff] %vm244, %v206
    %246 = vst.msk [vmem:[#allocation2 + $0x8] sm:$0xff] %vm244, %v211
    %247 = vst.msk [vmem:[#allocation2 + $0x10] sm:$0xff] %vm244, %v216
    %248 = vst.msk [vmem:[#allocation2 + $0x18] sm:$0xff] %vm244, %v221
    %249 = vst.msk [vmem:[#allocation2 + $0x20] sm:$0xff] %vm244, %v226
    %250 = vst.msk [vmem:[#allocation2 + $0x28] sm:$0xff] %vm244, %v231
    %251 = vst.msk [vmem:[#allocation2 + $0x30] sm:$0xff] %vm244, %v236
    %252 = vst.msk [vmem:[#allocation2 + $0x38] sm:$0xff] %vm244, %v241
    %v253 = vld [vmem:[%s4] sm:$0xff]
    %v254 = vld [vmem:[%s4 + $0x8] sm:$0xff]
    %v255 = vld [vmem:[%s4 + $0x10] sm:$0xff]
    %v256 = vld [vmem:[#allocation10] sm:$0x1]
    %v258 = vlaneseq
    %v259 = vshrl.u32 %v258, 7
    %v260 = vsub.s32 0, %v259
    %v261 = vrot.slane %v256, %v260
    %263 = vmatprep.subr.mxu0 0.0
    %264 = vmatpush1.msra.mxu0 0.0
    %265 = vmatprep.subr.mxu0 0.0
    %266 = vmatpush1.msra.mxu0 0.0
    %267 = vmatprep.subr.mxu0 0.0
    %268 = vmatpush1.msra.mxu0 0.0
    %269 = vmatprep.subr.mxu0 0.0
    %270 = vmatpush1.msra.mxu0 0.0
    %271 = vmatprep.subr.mxu0 0.0
    %272 = vmatpush1.msra.mxu0 0.0
    %273 = vmatprep.subr.mxu0 0.0
    %274 = vmatpush1.msra.mxu0 0.0
    %275 = vmatprep.subr.mxu0 0.0
    %276 = vmatpush1.msra.mxu0 0.0
    %277 = vmatprep.subr.mxu0 0.0
    %278 = vmatpush1.msra.mxu0 0.0
    %279 = vmatprep.subr.mxu0 0.0
    %280 = vmatpush1.msra.mxu0 0.0
    %281 = vmatprep.subr.mxu0 0.0
    %282 = vmatpush1.msra.mxu0 0.0
    %283 = vmatprep.subr.mxu0 0.0
    %284 = vmatpush1.msra.mxu0 0.0
    %285 = vmatprep.subr.mxu0 0.0
    %286 = vmatpush1.msra.mxu0 0.0
    %287 = vmatprep.subr.mxu0 0.0
    %288 = vmatpush1.msra.mxu0 0.0
    %289 = vmatprep.subr.mxu0 0.0
    %290 = vmatpush1.msra.mxu0 %v255
    %291 = vmatprep.subr.mxu0 0.0
    %292 = vmatpush1.msra.mxu0 %v254
    %293 = vmatprep.subr.mxu0 0.0
    %294 = vmatpush1.msra.mxu0 %v253
    %295 = vmatprep.subr.mxu0 0.0
    %296 = vmatpush2.msra.mxu0 0.0
    %297 = vmatprep.subr.mxu0 0.0
    %298 = vmatpush2.msra.mxu0 0.0
    %299 = vmatprep.subr.mxu0 0.0
    %300 = vmatpush2.msra.mxu0 0.0
    %301 = vmatprep.subr.mxu0 0.0
    %302 = vmatpush2.msra.mxu0 0.0
    %303 = vmatprep.subr.mxu0 0.0
    %304 = vmatpush2.msra.mxu0 0.0
    %305 = vmatprep.subr.mxu0 0.0
    %306 = vmatpush2.msra.mxu0 0.0
    %307 = vmatprep.subr.mxu0 0.0
    %308 = vmatpush2.msra.mxu0 0.0
    %309 = vmatprep.subr.mxu0 0.0
    %310 = vmatpush2.msra.mxu0 0.0
    %311 = vmatprep.subr.mxu0 0.0
    %312 = vmatpush2.msra.mxu0 0.0
    %313 = vmatprep.subr.mxu0 0.0
    %314 = vmatpush2.msra.mxu0 0.0
    %315 = vmatprep.subr.mxu0 0.0
    %316 = vmatpush2.msra.mxu0 0.0
    %317 = vmatprep.subr.mxu0 0.0
    %318 = vmatpush2.msra.mxu0 0.0
    %319 = vmatprep.subr.mxu0 0.0
    %320 = vmatpush2.msra.mxu0 0.0
    %321 = vmatprep.subr.mxu0 0.0
    %322 = vmatpush2.msra.mxu0 0.0
    %323 = vmatprep.subr.mxu0 0.0
    %324 = vmatpush2.msra.mxu0 0.0
    %325 = vmatprep.subr.mxu0 0.0
    %326 = vmatpush2.msra.mxu0 0.0
    %327 = vmatprep.mubr.f32.mxu0 0.0
    %328 = vmatmul.mubr.f32.gmra.mxu0 %v116
    %v329 = vpop.f32.mrf.mxu0
    %v330 = vadd.f32 %v261, %v329
    %v331 = vpop.f32.mrf.mxu0
    %332 = vmatprep.mubr.f32.mxu0 0.0
    %333 = vmatmul.mubr.f32.gmra.mxu0 %v119
    %v334 = vpop.f32.mrf.mxu0
    %v335 = vadd.f32 %v261, %v334
    %v336 = vpop.f32.mrf.mxu0
    %337 = vmatprep.mubr.f32.mxu0 0.0
    %338 = vmatmul.mubr.f32.gmra.mxu0 %v122
    %v339 = vpop.f32.mrf.mxu0
    %v340 = vadd.f32 %v261, %v339
    %v341 = vpop.f32.mrf.mxu0
    %342 = vmatprep.mubr.f32.mxu0 0.0
    %343 = vmatmul.mubr.f32.gmra.mxu0 %v125
    %v344 = vpop.f32.mrf.mxu0
    %v345 = vadd.f32 %v261, %v344
    %v346 = vpop.f32.mrf.mxu0
    %347 = vmatprep.mubr.f32.mxu0 0.0
    %348 = vmatmul.mubr.f32.gmra.mxu0 %v128
    %v349 = vpop.f32.mrf.mxu0
    %v350 = vadd.f32 %v261, %v349
    %v351 = vpop.f32.mrf.mxu0
    %352 = vmatprep.mubr.f32.mxu0 0.0
    %353 = vmatmul.mubr.f32.gmra.mxu0 %v131
    %v354 = vpop.f32.mrf.mxu0
    %v355 = vadd.f32 %v261, %v354
    %v356 = vpop.f32.mrf.mxu0
    %357 = vmatprep.mubr.f32.mxu0 0.0
    %358 = vmatmul.mubr.f32.gmra.mxu0 %v134
    %v359 = vpop.f32.mrf.mxu0
    %v360 = vadd.f32 %v261, %v359
    %v361 = vpop.f32.mrf.mxu0
    %362 = vmatprep.mubr.f32.mxu0 0.0
    %363 = vmatmul.mubr.f32.gmra.mxu0 %v137
    %v364 = vpop.f32.mrf.mxu0
    %v365 = vadd.f32 %v261, %v364
    %v366 = vpop.f32.mrf.mxu0
    %367 = vdwg.mxu0
    %368 = vst.msk [vmem:[#allocation3] sm:$0xff] %vm244, %v330
    %369 = vst.msk [vmem:[#allocation3 + $0x8] sm:$0xff] %vm244, %v335
    %370 = vst.msk [vmem:[#allocation3 + $0x10] sm:$0xff] %vm244, %v340
    %371 = vst.msk [vmem:[#allocation3 + $0x18] sm:$0xff] %vm244, %v345
    %372 = vst.msk [vmem:[#allocation3 + $0x20] sm:$0xff] %vm244, %v350
    %373 = vst.msk [vmem:[#allocation3 + $0x28] sm:$0xff] %vm244, %v355
    %374 = vst.msk [vmem:[#allocation3 + $0x30] sm:$0xff] %vm244, %v360
    %375 = vst.msk [vmem:[#allocation3 + $0x38] sm:$0xff] %vm244, %v365
    %v376 = vld [vmem:[%s6] sm:$0xff]
    %v377 = vld [vmem:[%s6 + $0x8] sm:$0xff]
    %v378 = vld [vmem:[#allocation12] sm:$0xff]
    %v379 = vld [vmem:[#allocation12 + $0x8] sm:$0xff]
    %v380 = vld [vmem:[#allocation2] sm:$0xff]
    %vm381 = vcmask 130048
    %v383 = vsel %vm381, 0.0, 0
    %385 = vmatprep.subr.mxu0 0.0
    %386 = vmatpush1.msra.mxu0 0.0
    %387 = vmatprep.subr.mxu0 0.0
    %388 = vmatpush1.msra.mxu0 0.0
    %389 = vmatprep.subr.mxu0 0.0
    %390 = vmatpush1.msra.mxu0 0.0
    %391 = vmatprep.subr.mxu0 0.0
    %392 = vmatpush1.msra.mxu0 0.0
    %393 = vmatprep.subr.mxu0 0.0
    %394 = vmatpush1.msra.mxu0 0.0
    %395 = vmatprep.subr.mxu0 0.0
    %396 = vmatpush1.msra.mxu0 0.0
    %397 = vmatprep.subr.mxu0 0.0
    %398 = vmatpush1.msra.mxu0 0.0
    %399 = vmatprep.subr.mxu0 0.0
    %400 = vmatpush1.msra.mxu0 0.0
    %401 = vmatprep.subr.mxu0 0.0
    %402 = vmatpush1.msra.mxu0 0.0
    %403 = vmatprep.subr.mxu0 0.0
    %404 = vmatpush1.msra.mxu0 0.0
    %405 = vmatprep.subr.mxu0 0.0
    %406 = vmatpush1.msra.mxu0 0.0
    %407 = vmatprep.subr.mxu0 0.0
    %408 = vmatpush1.msra.mxu0 0.0
    %409 = vmatprep.subr.mxu0 0.0
    %410 = vmatpush1.msra.mxu0 0.0
    %411 = vmatprep.subr.mxu0 0.0
    %412 = vmatpush1.msra.mxu0 0.0
    %413 = vmatprep.subr.mxu0 0.0
    %414 = vmatpush1.msra.mxu0 %v377
    %415 = vmatprep.subr.mxu0 0.0
    %416 = vmatpush1.msra.mxu0 %v376
    %417 = vmatprep.subr.mxu0 0.0
    %418 = vmatpush2.msra.mxu0 0.0
    %419 = vmatprep.subr.mxu0 0.0
    %420 = vmatpush2.msra.mxu0 0.0
    %421 = vmatprep.subr.mxu0 0.0
    %422 = vmatpush2.msra.mxu0 0.0
    %423 = vmatprep.subr.mxu0 0.0
    %424 = vmatpush2.msra.mxu0 0.0
    %425 = vmatprep.subr.mxu0 0.0
    %426 = vmatpush2.msra.mxu0 0.0
    %427 = vmatprep.subr.mxu0 0.0
    %428 = vmatpush2.msra.mxu0 0.0
    %429 = vmatprep.subr.mxu0 0.0
    %430 = vmatpush2.msra.mxu0 0.0
    %431 = vmatprep.subr.mxu0 0.0
    %432 = vmatpush2.msra.mxu0 0.0
    %433 = vmatprep.subr.mxu0 0.0
    %434 = vmatpush2.msra.mxu0 0.0
    %435 = vmatprep.subr.mxu0 0.0
    %436 = vmatpush2.msra.mxu0 0.0
    %437 = vmatprep.subr.mxu0 0.0
    %438 = vmatpush2.msra.mxu0 0.0
    %439 = vmatprep.subr.mxu0 0.0
    %440 = vmatpush2.msra.mxu0 0.0
    %441 = vmatprep.subr.mxu0 0.0
    %442 = vmatpush2.msra.mxu0 0.0
    %443 = vmatprep.subr.mxu0 0.0
    %444 = vmatpush2.msra.mxu0 0.0
    %445 = vmatprep.subr.mxu0 0.0
    %446 = vmatpush2.msra.mxu0 0.0
    %447 = vmatprep.subr.mxu0 0.0
    %448 = vmatpush2.msra.mxu0 0.0
    %449 = vmatprep.mubr.f32.mxu0 0.0
    %450 = vmatmul.mubr.f32.gmra.mxu0 %v383
    %v451 = vpop.f32.mrf.mxu0
    %v452 = vadd.f32 0.0, %v451
    %v453 = vpop.f32.mrf.mxu0
    %454 = vdwg.mxu0
    %v455 = vadd.f32 %v380, %v452
    %s456 = scalar_lea.vmem [#allocation3], 56
    %v457 = vld [vmem:[%s456] sm:$0xff]
    %458 = vmatprep.subr.mxu0 0.0
    %459 = vmatpush1.msra.mxu0 0.0
    %460 = vmatprep.subr.mxu0 0.0
    %461 = vmatpush1.msra.mxu0 0.0
    %462 = vmatprep.subr.mxu0 0.0
    %463 = vmatpush1.msra.mxu0 0.0
    %464 = vmatprep.subr.mxu0 0.0
    %465 = vmatpush1.msra.mxu0 0.0
    %466 = vmatprep.subr.mxu0 0.0
    %467 = vmatpush1.msra.mxu0 0.0
    %468 = vmatprep.subr.mxu0 0.0
    %469 = vmatpush1.msra.mxu0 0.0
    %470 = vmatprep.subr.mxu0 0.0
    %471 = vmatpush1.msra.mxu0 0.0
    %472 = vmatprep.subr.mxu0 0.0
    %473 = vmatpush1.msra.mxu0 0.0
    %474 = vmatprep.subr.mxu0 0.0
    %475 = vmatpush1.msra.mxu0 0.0
    %476 = vmatprep.subr.mxu0 0.0
    %477 = vmatpush1.msra.mxu0 0.0
    %478 = vmatprep.subr.mxu0 0.0
    %479 = vmatpush1.msra.mxu0 0.0
    %480 = vmatprep.subr.mxu0 0.0
    %481 = vmatpush1.msra.mxu0 0.0
    %482 = vmatprep.subr.mxu0 0.0
    %483 = vmatpush1.msra.mxu0 0.0
    %484 = vmatprep.subr.mxu0 0.0
    %485 = vmatpush1.msra.mxu0 0.0
    %486 = vmatprep.subr.mxu0 0.0
    %487 = vmatpush1.msra.mxu0 %v379
    %488 = vmatprep.subr.mxu0 0.0
    %489 = vmatpush1.msra.mxu0 %v378
    %490 = vmatprep.subr.mxu0 0.0
    %491 = vmatpush2.msra.mxu0 0.0
    %492 = vmatprep.subr.mxu0 0.0
    %493 = vmatpush2.msra.mxu0 0.0
    %494 = vmatprep.subr.mxu0 0.0
    %495 = vmatpush2.msra.mxu0 0.0
    %496 = vmatprep.subr.mxu0 0.0
    %497 = vmatpush2.msra.mxu0 0.0
    %498 = vmatprep.subr.mxu0 0.0
    %499 = vmatpush2.msra.mxu0 0.0
    %500 = vmatprep.subr.mxu0 0.0
    %501 = vmatpush2.msra.mxu0 0.0
    %502 = vmatprep.subr.mxu0 0.0
    %503 = vmatpush2.msra.mxu0 0.0
    %504 = vmatprep.subr.mxu0 0.0
    %505 = vmatpush2.msra.mxu0 0.0
    %506 = vmatprep.subr.mxu0 0.0
    %507 = vmatpush2.msra.mxu0 0.0
    %508 = vmatprep.subr.mxu0 0.0
    %509 = vmatpush2.msra.mxu0 0.0
    %510 = vmatprep.subr.mxu0 0.0
    %511 = vmatpush2.msra.mxu0 0.0
    %512 = vmatprep.subr.mxu0 0.0
    %513 = vmatpush2.msra.mxu0 0.0
    %514 = vmatprep.subr.mxu0 0.0
    %515 = vmatpush2.msra.mxu0 0.0
    %516 = vmatprep.subr.mxu0 0.0
    %517 = vmatpush2.msra.mxu0 0.0
    %518 = vmatprep.subr.mxu0 0.0
    %519 = vmatpush2.msra.mxu0 0.0
    %520 = vmatprep.subr.mxu0 0.0
    %521 = vmatpush2.msra.mxu0 0.0
    %522 = vmatprep.mubr.f32.mxu0 0.0
    %523 = vmatmul.mubr.f32.gmra.mxu0 %v383
    %v524 = vpop.f32.mrf.mxu0
    %v525 = vadd.f32 0.0, %v524
    %v526 = vpop.f32.mrf.mxu0
    %527 = vdwg.mxu0
    %v528 = vadd.f32 %v457, %v525
    %v529 = vxor.u32 %v455, 2147483648
    %v530 = vmul.f32 %v529, 1.442695
    %v531 = vpow.pop %v530
    %v532 = vadd.f32 %v531, 1.0
    %v533 = vrcp.pop %v532
    %v534 = vmul.f32 1.0, %v533
    %v535 = vtanh.pop %v455
    %v536 = vmul.f32 %v534, 0.0
    %538 = vrot.lane.b32.xlu0 %v535, 96
    %v539 = vpop.permute.xlu0 %538
    %v541 = vmul.f32 %v534, %v539
    %543 = vrot.lane.b32.xlu0 %v541, 16
    %v544 = vpop.permute.xlu0 %543
    %v546 = vadd.f32 %v536, %v544
    %v547 = vtanh.pop %v546
    %549 = vrot.lane.b32.xlu0 %v547, 32
    %v550 = vpop.permute.xlu0 %549
    %v552 = vmul.f32 %v534, %v550
    %v553 = vxor.u32 %v528, 2147483648
    %v554 = vmul.f32 %v553, 1.442695
    %v555 = vpow.pop %v554
    %v556 = vadd.f32 %v555, 1.0
    %v557 = vrcp.pop %v556
    %v558 = vmul.f32 1.0, %v557
    %v559 = vtanh.pop %v528
    %v560 = vmul.f32 %v558, 0.0
    %562 = vrot.lane.b32.xlu0 %v559, 96
    %v563 = vpop.permute.xlu0 %562
    %v565 = vmul.f32 %v558, %v563
    %567 = vrot.lane.b32.xlu0 %v565, 16
    %v568 = vpop.permute.xlu0 %567
    %v570 = vadd.f32 %v560, %v568
    %v571 = vtanh.pop %v570
    %573 = vrot.lane.b32.xlu0 %v571, 32
    %v574 = vpop.permute.xlu0 %573
    %v576 = vmul.f32 %v558, %v574
    %v577 = vld [vmem:[%s1] sm:$0xff]
    %vm578 = vcmp.gt.f32.partialorder %v577, 0.0
    %s579 = scalar_lea.vmem %s1, 56
    %v580 = vld [vmem:[%s579] sm:$0xff]
    %vm581 = vcmp.gt.f32.partialorder %v580, 0.0
    %v582 = vsel %vm578, 1, 0
    %583 = vset.pattern.permute.xlu0 0
    %584 = vperm.xlu0 %583, %v582
    %v585 = vpop.permute.xlu0 %584
    %vm586 = vcmp.eq.s32.totalorder %v585, 1
    %v587 = vsel %vm586, %v552, 0.0
    %v588 = vsel %vm586, %v546, 0.0
    %v589 = vsel %vm581, 1, 0
    %590 = vset.pattern.permute.xlu0 0
    %591 = vperm.xlu0 %590, %v589
    %v592 = vpop.permute.xlu0 %591
    %vm593 = vcmp.eq.s32.totalorder %v592, 1
    %v594 = vsel %vm593, %v576, 0.0
    %v595 = vsel %vm593, %v570, 0.0
    %597 = vrot.lane.b32.xlu0 %v587, 80
    %v598 = vpop.permute.xlu0 %597
    %600 = vst.msk [vmem:[#allocation4] sm:$0xff] %vm381, %v598
    %602 = vrot.lane.b32.xlu0 %v594, 80
    %v603 = vpop.permute.xlu0 %602
    %s605 = scalar_lea.vmem [#allocation5], 56
    %606 = vst.msk [vmem:[%s605] sm:$0xff] %vm381, %v603
    %s607 = scalar_lea.vmem [#allocation2], 8
    %v608 = vld [vmem:[%s607] sm:$0xff]
    %v609 = vsel %vm381, %v598, 0
    %611 = vmatprep.subr.mxu0 0.0
    %612 = vmatpush1.msra.mxu0 0.0
    %613 = vmatprep.subr.mxu0 0.0
    %614 = vmatpush1.msra.mxu0 0.0
    %615 = vmatprep.subr.mxu0 0.0
    %616 = vmatpush1.msra.mxu0 0.0
    %617 = vmatprep.subr.mxu0 0.0
    %618 = vmatpush1.msra.mxu0 0.0
    %619 = vmatprep.subr.mxu0 0.0
    %620 = vmatpush1.msra.mxu0 0.0
    %621 = vmatprep.subr.mxu0 0.0
    %622 = vmatpush1.msra.mxu0 0.0
    %623 = vmatprep.subr.mxu0 0.0
    %624 = vmatpush1.msra.mxu0 0.0
    %625 = vmatprep.subr.mxu0 0.0
    %626 = vmatpush1.msra.mxu0 0.0
    %627 = vmatprep.subr.mxu0 0.0
    %628 = vmatpush1.msra.mxu0 0.0
    %629 = vmatprep.subr.mxu0 0.0
    %630 = vmatpush1.msra.mxu0 0.0
    %631 = vmatprep.subr.mxu0 0.0
    %632 = vmatpush1.msra.mxu0 0.0
    %633 = vmatprep.subr.mxu0 0.0
    %634 = vmatpush1.msra.mxu0 0.0
    %635 = vmatprep.subr.mxu0 0.0
    %636 = vmatpush1.msra.mxu0 0.0
    %637 = vmatprep.subr.mxu0 0.0
    %638 = vmatpush1.msra.mxu0 0.0
    %639 = vmatprep.subr.mxu0 0.0
    %640 = vmatpush1.msra.mxu0 %v377
    %641 = vmatprep.subr.mxu0 0.0
    %642 = vmatpush1.msra.mxu0 %v376
    %643 = vmatprep.subr.mxu0 0.0
    %644 = vmatpush2.msra.mxu0 0.0
    %645 = vmatprep.subr.mxu0 0.0
    %646 = vmatpush2.msra.mxu0 0.0
    %647 = vmatprep.subr.mxu0 0.0
    %648 = vmatpush2.msra.mxu0 0.0
    %649 = vmatprep.subr.mxu0 0.0
    %650 = vmatpush2.msra.mxu0 0.0
    %651 = vmatprep.subr.mxu0 0.0
    %652 = vmatpush2.msra.mxu0 0.0
    %653 = vmatprep.subr.mxu0 0.0
    %654 = vmatpush2.msra.mxu0 0.0
    %655 = vmatprep.subr.mxu0 0.0
    %656 = vmatpush2.msra.mxu0 0.0
    %657 = vmatprep.subr.mxu0 0.0
    %658 = vmatpush2.msra.mxu0 0.0
    %659 = vmatprep.subr.mxu0 0.0
    %660 = vmatpush2.msra.mxu0 0.0
    %661 = vmatprep.subr.mxu0 0.0
    %662 = vmatpush2.msra.mxu0 0.0
    %663 = vmatprep.subr.mxu0 0.0
    %664 = vmatpush2.msra.mxu0 0.0
    %665 = vmatprep.subr.mxu0 0.0
    %666 = vmatpush2.msra.mxu0 0.0
    %667 = vmatprep.subr.mxu0 0.0
    %668 = vmatpush2.msra.mxu0 0.0
    %669 = vmatprep.subr.mxu0 0.0
    %670 = vmatpush2.msra.mxu0 0.0
    %671 = vmatprep.subr.mxu0 0.0
    %672 = vmatpush2.msra.mxu0 0.0
    %673 = vmatprep.subr.mxu0 0.0
    %674 = vmatpush2.msra.mxu0 0.0
    %675 = vmatprep.mubr.f32.mxu0 0.0
    %676 = vmatmul.mubr.f32.gmra.mxu0 %v609
    %v677 = vpop.f32.mrf.mxu0
    %v678 = vadd.f32 0.0, %v677
    %v679 = vpop.f32.mrf.mxu0
    %680 = vdwg.mxu0
    %v681 = vadd.f32 %v608, %v678
    %s682 = scalar_lea.vmem [#allocation3], 48
    %v683 = vld [vmem:[%s682] sm:$0xff]
    %v684 = vsel %vm381, %v603, 0
    %686 = vmatprep.subr.mxu0 0.0
    %687 = vmatpush1.msra.mxu0 0.0
    %688 = vmatprep.subr.mxu0 0.0
    %689 = vmatpush1.msra.mxu0 0.0
    %690 = vmatprep.subr.mxu0 0.0
    %691 = vmatpush1.msra.mxu0 0.0
    %692 = vmatprep.subr.mxu0 0.0
    %693 = vmatpush1.msra.mxu0 0.0
    %694 = vmatprep.subr.mxu0 0.0
    %695 = vmatpush1.msra.mxu0 0.0
    %696 = vmatprep.subr.mxu0 0.0
    %697 = vmatpush1.msra.mxu0 0.0
    %698 = vmatprep.subr.mxu0 0.0
    %699 = vmatpush1.msra.mxu0 0.0
    %700 = vmatprep.subr.mxu0 0.0
    %701 = vmatpush1.msra.mxu0 0.0
    %702 = vmatprep.subr.mxu0 0.0
    %703 = vmatpush1.msra.mxu0 0.0
    %704 = vmatprep.subr.mxu0 0.0
    %705 = vmatpush1.msra.mxu0 0.0
    %706 = vmatprep.subr.mxu0 0.0
    %707 = vmatpush1.msra.mxu0 0.0
    %708 = vmatprep.subr.mxu0 0.0
    %709 = vmatpush1.msra.mxu0 0.0
    %710 = vmatprep.subr.mxu0 0.0
    %711 = vmatpush1.msra.mxu0 0.0
    %712 = vmatprep.subr.mxu0 0.0
    %713 = vmatpush1.msra.mxu0 0.0
    %714 = vmatprep.subr.mxu0 0.0
    %715 = vmatpush1.msra.mxu0 %v379
    %716 = vmatprep.subr.mxu0 0.0
    %717 = vmatpush1.msra.mxu0 %v378
    %718 = vmatprep.subr.mxu0 0.0
    %719 = vmatpush2.msra.mxu0 0.0
    %720 = vmatprep.subr.mxu0 0.0
    %721 = vmatpush2.msra.mxu0 0.0
    %722 = vmatprep.subr.mxu0 0.0
    %723 = vmatpush2.msra.mxu0 0.0
    %724 = vmatprep.subr.mxu0 0.0
    %725 = vmatpush2.msra.mxu0 0.0
    %726 = vmatprep.subr.mxu0 0.0
    %727 = vmatpush2.msra.mxu0 0.0
    %728 = vmatprep.subr.mxu0 0.0
    %729 = vmatpush2.msra.mxu0 0.0
    %730 = vmatprep.subr.mxu0 0.0
    %731 = vmatpush2.msra.mxu0 0.0
    %732 = vmatprep.subr.mxu0 0.0
    %733 = vmatpush2.msra.mxu0 0.0
    %734 = vmatprep.subr.mxu0 0.0
    %735 = vmatpush2.msra.mxu0 0.0
    %736 = vmatprep.subr.mxu0 0.0
    %737 = vmatpush2.msra.mxu0 0.0
    %738 = vmatprep.subr.mxu0 0.0
    %739 = vmatpush2.msra.mxu0 0.0
    %740 = vmatprep.subr.mxu0 0.0
    %741 = vmatpush2.msra.mxu0 0.0
    %742 = vmatprep.subr.mxu0 0.0
    %743 = vmatpush2.msra.mxu0 0.0
    %744 = vmatprep.subr.mxu0 0.0
    %745 = vmatpush2.msra.mxu0 0.0
    %746 = vmatprep.subr.mxu0 0.0
    %747 = vmatpush2.msra.mxu0 0.0
    %748 = vmatprep.subr.mxu0 0.0
    %749 = vmatpush2.msra.mxu0 0.0
    %750 = vmatprep.mubr.f32.mxu0 0.0
    %751 = vmatmul.mubr.f32.gmra.mxu0 %v684
    %v752 = vpop.f32.mrf.mxu0
    %v753 = vadd.f32 0.0, %v752
    %v754 = vpop.f32.mrf.mxu0
    %755 = vdwg.mxu0
    %v756 = vadd.f32 %v683, %v753
    %v757 = vxor.u32 %v681, 2147483648
    %v758 = vmul.f32 %v757, 1.442695
    %v759 = vpow.pop %v758
    %v760 = vadd.f32 %v759, 1.0
    %v761 = vrcp.pop %v760
    %v762 = vmul.f32 1.0, %v761
    %v763 = vtanh.pop %v681
    %v764 = vmul.f32 %v762, %v588
    %766 = vrot.lane.b32.xlu0 %v763, 96
    %v767 = vpop.permute.xlu0 %766
    %v769 = vmul.f32 %v762, %v767
    %771 = vrot.lane.b32.xlu0 %v769, 16
    %v772 = vpop.permute.xlu0 %771
    %v774 = vadd.f32 %v764, %v772
    %v775 = vtanh.pop %v774
    %777 = vrot.lane.b32.xlu0 %v775, 32
    %v778 = vpop.permute.xlu0 %777
    %v780 = vmul.f32 %v762, %v778
    %v781 = vxor.u32 %v756, 2147483648
    %v782 = vmul.f32 %v781, 1.442695
    %v783 = vpow.pop %v782
    %v784 = vadd.f32 %v783, 1.0
    %v785 = vrcp.pop %v784
    %v786 = vmul.f32 1.0, %v785
    %v787 = vtanh.pop %v756
    %v788 = vmul.f32 %v786, %v595
    %790 = vrot.lane.b32.xlu0 %v787, 96
    %v791 = vpop.permute.xlu0 %790
    %v793 = vmul.f32 %v786, %v791
    %795 = vrot.lane.b32.xlu0 %v793, 16
    %v796 = vpop.permute.xlu0 %795
    %v798 = vadd.f32 %v788, %v796
    %v799 = vtanh.pop %v798
    %801 = vrot.lane.b32.xlu0 %v799, 32
    %v802 = vpop.permute.xlu0 %801
    %v804 = vmul.f32 %v786, %v802
    %s805 = scalar_lea.vmem %s1, 8
    %v806 = vld [vmem:[%s805] sm:$0xff]
    %vm807 = vcmp.gt.f32.partialorder %v806, 0.0
    %s808 = scalar_lea.vmem %s1, 48
    %v809 = vld [vmem:[%s808] sm:$0xff]
    %vm810 = vcmp.gt.f32.partialorder %v809, 0.0
    %v811 = vsel %vm807, 1, 0
    %812 = vset.pattern.permute.xlu0 0
    %813 = vperm.xlu0 %812, %v811
    %v814 = vpop.permute.xlu0 %813
    %vm815 = vcmp.eq.s32.totalorder %v814, 1
    %v816 = vsel %vm815, %v780, %v587
    %v817 = vsel %vm815, %v774, %v588
    %v818 = vsel %vm810, 1, 0
    %819 = vset.pattern.permute.xlu0 0
    %820 = vperm.xlu0 %819, %v818
    %v821 = vpop.permute.xlu0 %820
    %vm822 = vcmp.eq.s32.totalorder %v821, 1
    %v823 = vsel %vm822, %v804, %v594
    %v824 = vsel %vm822, %v798, %v595
    %v825 = vsel %vm815, %v780, 0.0
    %827 = vrot.lane.b32.xlu0 %v825, 80
    %v828 = vpop.permute.xlu0 %827
    %s830 = scalar_lea.vmem [#allocation4], 8
    %831 = vst.msk [vmem:[%s830] sm:$0xff] %vm381, %v828
    %v832 = vsel %vm822, %v804, 0.0
    %834 = vrot.lane.b32.xlu0 %v832, 80
    %v835 = vpop.permute.xlu0 %834
    %s837 = scalar_lea.vmem [#allocation5], 48
    %838 = vst.msk [vmem:[%s837] sm:$0xff] %vm381, %v835
    %s839 = scalar_lea.vmem [#allocation2], 16
    %v840 = vld [vmem:[%s839] sm:$0xff]
    %842 = vrot.lane.b32.xlu0 %v816, 80
    %v843 = vpop.permute.xlu0 %842
    %v844 = vsel %vm381, %v843, 0
    %846 = vmatprep.subr.mxu0 0.0
    %847 = vmatpush1.msra.mxu0 0.0
    %848 = vmatprep.subr.mxu0 0.0
    %849 = vmatpush1.msra.mxu0 0.0
    %850 = vmatprep.subr.mxu0 0.0
    %851 = vmatpush1.msra.mxu0 0.0
    %852 = vmatprep.subr.mxu0 0.0
    %853 = vmatpush1.msra.mxu0 0.0
    %854 = vmatprep.subr.mxu0 0.0
    %855 = vmatpush1.msra.mxu0 0.0
    %856 = vmatprep.subr.mxu0 0.0
    %857 = vmatpush1.msra.mxu0 0.0
    %858 = vmatprep.subr.mxu0 0.0
    %859 = vmatpush1.msra.mxu0 0.0
    %860 = vmatprep.subr.mxu0 0.0
    %861 = vmatpush1.msra.mxu0 0.0
    %862 = vmatprep.subr.mxu0 0.0
    %863 = vmatpush1.msra.mxu0 0.0
    %864 = vmatprep.subr.mxu0 0.0
    %865 = vmatpush1.msra.mxu0 0.0
    %866 = vmatprep.subr.mxu0 0.0
    %867 = vmatpush1.msra.mxu0 0.0
    %868 = vmatprep.subr.mxu0 0.0
    %869 = vmatpush1.msra.mxu0 0.0
    %870 = vmatprep.subr.mxu0 0.0
    %871 = vmatpush1.msra.mxu0 0.0
    %872 = vmatprep.subr.mxu0 0.0
    %873 = vmatpush1.msra.mxu0 0.0
    %874 = vmatprep.subr.mxu0 0.0
    %875 = vmatpush1.msra.mxu0 %v377
    %876 = vmatprep.subr.mxu0 0.0
    %877 = vmatpush1.msra.mxu0 %v376
    %878 = vmatprep.subr.mxu0 0.0
    %879 = vmatpush2.msra.mxu0 0.0
    %880 = vmatprep.subr.mxu0 0.0
    %881 = vmatpush2.msra.mxu0 0.0
    %882 = vmatprep.subr.mxu0 0.0
    %883 = vmatpush2.msra.mxu0 0.0
    %884 = vmatprep.subr.mxu0 0.0
    %885 = vmatpush2.msra.mxu0 0.0
    %886 = vmatprep.subr.mxu0 0.0
    %887 = vmatpush2.msra.mxu0 0.0
    %888 = vmatprep.subr.mxu0 0.0
    %889 = vmatpush2.msra.mxu0 0.0
    %890 = vmatprep.subr.mxu0 0.0
    %891 = vmatpush2.msra.mxu0 0.0
    %892 = vmatprep.subr.mxu0 0.0
    %893 = vmatpush2.msra.mxu0 0.0
    %894 = vmatprep.subr.mxu0 0.0
    %895 = vmatpush2.msra.mxu0 0.0
    %896 = vmatprep.subr.mxu0 0.0
    %897 = vmatpush2.msra.mxu0 0.0
    %898 = vmatprep.subr.mxu0 0.0
    %899 = vmatpush2.msra.mxu0 0.0
    %900 = vmatprep.subr.mxu0 0.0
    %901 = vmatpush2.msra.mxu0 0.0
    %902 = vmatprep.subr.mxu0 0.0
    %903 = vmatpush2.msra.mxu0 0.0
    %904 = vmatprep.subr.mxu0 0.0
    %905 = vmatpush2.msra.mxu0 0.0
    %906 = vmatprep.subr.mxu0 0.0
    %907 = vmatpush2.msra.mxu0 0.0
    %908 = vmatprep.subr.mxu0 0.0
    %909 = vmatpush2.msra.mxu0 0.0
    %910 = vmatprep.mubr.f32.mxu0 0.0
    %911 = vmatmul.mubr.f32.gmra.mxu0 %v844
    %v912 = vpop.f32.mrf.mxu0
    %v913 = vadd.f32 0.0, %v912
    %v914 = vpop.f32.mrf.mxu0
    %915 = vdwg.mxu0
    %v916 = vadd.f32 %v840, %v913
    %s917 = scalar_lea.vmem [#allocation3], 40
    %v918 = vld [vmem:[%s917] sm:$0xff]
    %920 = vrot.lane.b32.xlu0 %v823, 80
    %v921 = vpop.permute.xlu0 %920
    %v922 = vsel %vm381, %v921, 0
    %924 = vmatprep.subr.mxu0 0.0
    %925 = vmatpush1.msra.mxu0 0.0
    %926 = vmatprep.subr.mxu0 0.0
    %927 = vmatpush1.msra.mxu0 0.0
    %928 = vmatprep.subr.mxu0 0.0
    %929 = vmatpush1.msra.mxu0 0.0
    %930 = vmatprep.subr.mxu0 0.0
    %931 = vmatpush1.msra.mxu0 0.0
    %932 = vmatprep.subr.mxu0 0.0
    %933 = vmatpush1.msra.mxu0 0.0
    %934 = vmatprep.subr.mxu0 0.0
    %935 = vmatpush1.msra.mxu0 0.0
    %936 = vmatprep.subr.mxu0 0.0
    %937 = vmatpush1.msra.mxu0 0.0
    %938 = vmatprep.subr.mxu0 0.0
    %939 = vmatpush1.msra.mxu0 0.0
    %940 = vmatprep.subr.mxu0 0.0
    %941 = vmatpush1.msra.mxu0 0.0
    %942 = vmatprep.subr.mxu0 0.0
    %943 = vmatpush1.msra.mxu0 0.0
    %944 = vmatprep.subr.mxu0 0.0
    %945 = vmatpush1.msra.mxu0 0.0
    %946 = vmatprep.subr.mxu0 0.0
    %947 = vmatpush1.msra.mxu0 0.0
    %948 = vmatprep.subr.mxu0 0.0
    %949 = vmatpush1.msra.mxu0 0.0
    %950 = vmatprep.subr.mxu0 0.0
    %951 = vmatpush1.msra.mxu0 0.0
    %952 = vmatprep.subr.mxu0 0.0
    %953 = vmatpush1.msra.mxu0 %v379
    %954 = vmatprep.subr.mxu0 0.0
    %955 = vmatpush1.msra.mxu0 %v378
    %956 = vmatprep.subr.mxu0 0.0
    %957 = vmatpush2.msra.mxu0 0.0
    %958 = vmatprep.subr.mxu0 0.0
    %959 = vmatpush2.msra.mxu0 0.0
    %960 = vmatprep.subr.mxu0 0.0
    %961 = vmatpush2.msra.mxu0 0.0
    %962 = vmatprep.subr.mxu0 0.0
    %963 = vmatpush2.msra.mxu0 0.0
    %964 = vmatprep.subr.mxu0 0.0
    %965 = vmatpush2.msra.mxu0 0.0
    %966 = vmatprep.subr.mxu0 0.0
    %967 = vmatpush2.msra.mxu0 0.0
    %968 = vmatprep.subr.mxu0 0.0
    %969 = vmatpush2.msra.mxu0 0.0
    %970 = vmatprep.subr.mxu0 0.0
    %971 = vmatpush2.msra.mxu0 0.0
    %972 = vmatprep.subr.mxu0 0.0
    %973 = vmatpush2.msra.mxu0 0.0
    %974 = vmatprep.subr.mxu0 0.0
    %975 = vmatpush2.msra.mxu0 0.0
    %976 = vmatprep.subr.mxu0 0.0
    %977 = vmatpush2.msra.mxu0 0.0
    %978 = vmatprep.subr.mxu0 0.0
    %979 = vmatpush2.msra.mxu0 0.0
    %980 = vmatprep.subr.mxu0 0.0
    %981 = vmatpush2.msra.mxu0 0.0
    %982 = vmatprep.subr.mxu0 0.0
    %983 = vmatpush2.msra.mxu0 0.0
    %984 = vmatprep.subr.mxu0 0.0
    %985 = vmatpush2.msra.mxu0 0.0
    %986 = vmatprep.subr.mxu0 0.0
    %987 = vmatpush2.msra.mxu0 0.0
    %988 = vmatprep.mubr.f32.mxu0 0.0
    %989 = vmatmul.mubr.f32.gmra.mxu0 %v922
    %v990 = vpop.f32.mrf.mxu0
    %v991 = vadd.f32 0.0, %v990
    %v992 = vpop.f32.mrf.mxu0
    %993 = vdwg.mxu0
    %v994 = vadd.f32 %v918, %v991
    %v995 = vxor.u32 %v916, 2147483648
    %v996 = vmul.f32 %v995, 1.442695
    %v997 = vpow.pop %v996
    %v998 = vadd.f32 %v997, 1.0
    %v999 = vrcp.pop %v998
    %v1000 = vmul.f32 1.0, %v999
    %v1001 = vtanh.pop %v916
    %v1002 = vmul.f32 %v1000, %v817
    %1004 = vrot.lane.b32.xlu0 %v1001, 96
    %v1005 = vpop.permute.xlu0 %1004
    %v1007 = vmul.f32 %v1000, %v1005
    %1009 = vrot.lane.b32.xlu0 %v1007, 16
    %v1010 = vpop.permute.xlu0 %1009
    %v1012 = vadd.f32 %v1002, %v1010
    %v1013 = vtanh.pop %v1012
    %1015 = vrot.lane.b32.xlu0 %v1013, 32
    %v1016 = vpop.permute.xlu0 %1015
    %v1018 = vmul.f32 %v1000, %v1016
    %v1019 = vxor.u32 %v994, 2147483648
    %v1020 = vmul.f32 %v1019, 1.442695
    %v1021 = vpow.pop %v1020
    %v1022 = vadd.f32 %v1021, 1.0
    %v1023 = vrcp.pop %v1022
    %v1024 = vmul.f32 1.0, %v1023
    %v1025 = vtanh.pop %v994
    %v1026 = vmul.f32 %v1024, %v824
    %1028 = vrot.lane.b32.xlu0 %v1025, 96
    %v1029 = vpop.permute.xlu0 %1028
    %v1031 = vmul.f32 %v1024, %v1029
    %1033 = vrot.lane.b32.xlu0 %v1031, 16
    %v1034 = vpop.permute.xlu0 %1033
    %v1036 = vadd.f32 %v1026, %v1034
    %v1037 = vtanh.pop %v1036
    %1039 = vrot.lane.b32.xlu0 %v1037, 32
    %v1040 = vpop.permute.xlu0 %1039
    %v1042 = vmul.f32 %v1024, %v1040
    %s1043 = scalar_lea.vmem %s1, 16
    %v1044 = vld [vmem:[%s1043] sm:$0xff]
    %vm1045 = vcmp.gt.f32.partialorder %v1044, 0.0
    %s1046 = scalar_lea.vmem %s1, 40
    %v1047 = vld [vmem:[%s1046] sm:$0xff]
    %vm1048 = vcmp.gt.f32.partialorder %v1047, 0.0
    %v1049 = vsel %vm1045, 1, 0
    %1050 = vset.pattern.permute.xlu0 0
    %1051 = vperm.xlu0 %1050, %v1049
    %v1052 = vpop.permute.xlu0 %1051
    %vm1053 = vcmp.eq.s32.totalorder %v1052, 1
    %v1054 = vsel %vm1053, %v1018, %v816
    %v1055 = vsel %vm1053, %v1012, %v817
    %v1056 = vsel %vm1048, 1, 0
    %1057 = vset.pattern.permute.xlu0 0
    %1058 = vperm.xlu0 %1057, %v1056
    %v1059 = vpop.permute.xlu0 %1058
    %vm1060 = vcmp.eq.s32.totalorder %v1059, 1
    %v1061 = vsel %vm1060, %v1042, %v823
    %v1062 = vsel %vm1060, %v1036, %v824
    %v1063 = vsel %vm1053, %v1018, 0.0
    %1065 = vrot.lane.b32.xlu0 %v1063, 80
    %v1066 = vpop.permute.xlu0 %1065
    %s1068 = scalar_lea.vmem [#allocation4], 16
    %1069 = vst.msk [vmem:[%s1068] sm:$0xff] %vm381, %v1066
    %v1070 = vsel %vm1060, %v1042, 0.0
    %1072 = vrot.lane.b32.xlu0 %v1070, 80
    %v1073 = vpop.permute.xlu0 %1072
    %s1075 = scalar_lea.vmem [#allocation5], 40
    %1076 = vst.msk [vmem:[%s1075] sm:$0xff] %vm381, %v1073
    %s1077 = scalar_lea.vmem [#allocation2], 24
    %v1078 = vld [vmem:[%s1077] sm:$0xff]
    %1080 = vrot.lane.b32.xlu0 %v1054, 80
    %v1081 = vpop.permute.xlu0 %1080
    %v1082 = vsel %vm381, %v1081, 0
    %1084 = vmatprep.subr.mxu0 0.0
    %1085 = vmatpush1.msra.mxu0 0.0
    %1086 = vmatprep.subr.mxu0 0.0
    %1087 = vmatpush1.msra.mxu0 0.0
    %1088 = vmatprep.subr.mxu0 0.0
    %1089 = vmatpush1.msra.mxu0 0.0
    %1090 = vmatprep.subr.mxu0 0.0
    %1091 = vmatpush1.msra.mxu0 0.0
    %1092 = vmatprep.subr.mxu0 0.0
    %1093 = vmatpush1.msra.mxu0 0.0
    %1094 = vmatprep.subr.mxu0 0.0
    %1095 = vmatpush1.msra.mxu0 0.0
    %1096 = vmatprep.subr.mxu0 0.0
    %1097 = vmatpush1.msra.mxu0 0.0
    %1098 = vmatprep.subr.mxu0 0.0
    %1099 = vmatpush1.msra.mxu0 0.0
    %1100 = vmatprep.subr.mxu0 0.0
    %1101 = vmatpush1.msra.mxu0 0.0
    %1102 = vmatprep.subr.mxu0 0.0
    %1103 = vmatpush1.msra.mxu0 0.0
    %1104 = vmatprep.subr.mxu0 0.0
    %1105 = vmatpush1.msra.mxu0 0.0
    %1106 = vmatprep.subr.mxu0 0.0
    %1107 = vmatpush1.msra.mxu0 0.0
    %1108 = vmatprep.subr.mxu0 0.0
    %1109 = vmatpush1.msra.mxu0 0.0
    %1110 = vmatprep.subr.mxu0 0.0
    %1111 = vmatpush1.msra.mxu0 0.0
    %1112 = vmatprep.subr.mxu0 0.0
    %1113 = vmatpush1.msra.mxu0 %v377
    %1114 = vmatprep.subr.mxu0 0.0
    %1115 = vmatpush1.msra.mxu0 %v376
    %1116 = vmatprep.subr.mxu0 0.0
    %1117 = vmatpush2.msra.mxu0 0.0
    %1118 = vmatprep.subr.mxu0 0.0
    %1119 = vmatpush2.msra.mxu0 0.0
    %1120 = vmatprep.subr.mxu0 0.0
    %1121 = vmatpush2.msra.mxu0 0.0
    %1122 = vmatprep.subr.mxu0 0.0
    %1123 = vmatpush2.msra.mxu0 0.0
    %1124 = vmatprep.subr.mxu0 0.0
    %1125 = vmatpush2.msra.mxu0 0.0
    %1126 = vmatprep.subr.mxu0 0.0
    %1127 = vmatpush2.msra.mxu0 0.0
    %1128 = vmatprep.subr.mxu0 0.0
    %1129 = vmatpush2.msra.mxu0 0.0
    %1130 = vmatprep.subr.mxu0 0.0
    %1131 = vmatpush2.msra.mxu0 0.0
    %1132 = vmatprep.subr.mxu0 0.0
    %1133 = vmatpush2.msra.mxu0 0.0
    %1134 = vmatprep.subr.mxu0 0.0
    %1135 = vmatpush2.msra.mxu0 0.0
    %1136 = vmatprep.subr.mxu0 0.0
    %1137 = vmatpush2.msra.mxu0 0.0
    %1138 = vmatprep.subr.mxu0 0.0
    %1139 = vmatpush2.msra.mxu0 0.0
    %1140 = vmatprep.subr.mxu0 0.0
    %1141 = vmatpush2.msra.mxu0 0.0
    %1142 = vmatprep.subr.mxu0 0.0
    %1143 = vmatpush2.msra.mxu0 0.0
    %1144 = vmatprep.subr.mxu0 0.0
    %1145 = vmatpush2.msra.mxu0 0.0
    %1146 = vmatprep.subr.mxu0 0.0
    %1147 = vmatpush2.msra.mxu0 0.0
    %1148 = vmatprep.mubr.f32.mxu0 0.0
    %1149 = vmatmul.mubr.f32.gmra.mxu0 %v1082
    %v1150 = vpop.f32.mrf.mxu0
    %v1151 = vadd.f32 0.0, %v1150
    %v1152 = vpop.f32.mrf.mxu0
    %1153 = vdwg.mxu0
    %v1154 = vadd.f32 %v1078, %v1151
    %s1155 = scalar_lea.vmem [#allocation3], 32
    %v1156 = vld [vmem:[%s1155] sm:$0xff]
    %1158 = vrot.lane.b32.xlu0 %v1061, 80
    %v1159 = vpop.permute.xlu0 %1158
    %v1160 = vsel %vm381, %v1159, 0
    %1162 = vmatprep.subr.mxu0 0.0
    %1163 = vmatpush1.msra.mxu0 0.0
    %1164 = vmatprep.subr.mxu0 0.0
    %1165 = vmatpush1.msra.mxu0 0.0
    %1166 = vmatprep.subr.mxu0 0.0
    %1167 = vmatpush1.msra.mxu0 0.0
    %1168 = vmatprep.subr.mxu0 0.0
    %1169 = vmatpush1.msra.mxu0 0.0
    %1170 = vmatprep.subr.mxu0 0.0
    %1171 = vmatpush1.msra.mxu0 0.0
    %1172 = vmatprep.subr.mxu0 0.0
    %1173 = vmatpush1.msra.mxu0 0.0
    %1174 = vmatprep.subr.mxu0 0.0
    %1175 = vmatpush1.msra.mxu0 0.0
    %1176 = vmatprep.subr.mxu0 0.0
    %1177 = vmatpush1.msra.mxu0 0.0
    %1178 = vmatprep.subr.mxu0 0.0
    %1179 = vmatpush1.msra.mxu0 0.0
    %1180 = vmatprep.subr.mxu0 0.0
    %1181 = vmatpush1.msra.mxu0 0.0
    %1182 = vmatprep.subr.mxu0 0.0
    %1183 = vmatpush1.msra.mxu0 0.0
    %1184 = vmatprep.subr.mxu0 0.0
    %1185 = vmatpush1.msra.mxu0 0.0
    %1186 = vmatprep.subr.mxu0 0.0
    %1187 = vmatpush1.msra.mxu0 0.0
    %1188 = vmatprep.subr.mxu0 0.0
    %1189 = vmatpush1.msra.mxu0 0.0
    %1190 = vmatprep.subr.mxu0 0.0
    %1191 = vmatpush1.msra.mxu0 %v379
    %1192 = vmatprep.subr.mxu0 0.0
    %1193 = vmatpush1.msra.mxu0 %v378
    %1194 = vmatprep.subr.mxu0 0.0
    %1195 = vmatpush2.msra.mxu0 0.0
    %1196 = vmatprep.subr.mxu0 0.0
    %1197 = vmatpush2.msra.mxu0 0.0
    %1198 = vmatprep.subr.mxu0 0.0
    %1199 = vmatpush2.msra.mxu0 0.0
    %1200 = vmatprep.subr.mxu0 0.0
    %1201 = vmatpush2.msra.mxu0 0.0
    %1202 = vmatprep.subr.mxu0 0.0
    %1203 = vmatpush2.msra.mxu0 0.0
    %1204 = vmatprep.subr.mxu0 0.0
    %1205 = vmatpush2.msra.mxu0 0.0
    %1206 = vmatprep.subr.mxu0 0.0
    %1207 = vmatpush2.msra.mxu0 0.0
    %1208 = vmatprep.subr.mxu0 0.0
    %1209 = vmatpush2.msra.mxu0 0.0
    %1210 = vmatprep.subr.mxu0 0.0
    %1211 = vmatpush2.msra.mxu0 0.0
    %1212 = vmatprep.subr.mxu0 0.0
    %1213 = vmatpush2.msra.mxu0 0.0
    %1214 = vmatprep.subr.mxu0 0.0
    %1215 = vmatpush2.msra.mxu0 0.0
    %1216 = vmatprep.subr.mxu0 0.0
    %1217 = vmatpush2.msra.mxu0 0.0
    %1218 = vmatprep.subr.mxu0 0.0
    %1219 = vmatpush2.msra.mxu0 0.0
    %1220 = vmatprep.subr.mxu0 0.0
    %1221 = vmatpush2.msra.mxu0 0.0
    %1222 = vmatprep.subr.mxu0 0.0
    %1223 = vmatpush2.msra.mxu0 0.0
    %1224 = vmatprep.subr.mxu0 0.0
    %1225 = vmatpush2.msra.mxu0 0.0
    %1226 = vmatprep.mubr.f32.mxu0 0.0
    %1227 = vmatmul.mubr.f32.gmra.mxu0 %v1160
    %v1228 = vpop.f32.mrf.mxu0
    %v1229 = vadd.f32 0.0, %v1228
    %v1230 = vpop.f32.mrf.mxu0
    %1231 = vdwg.mxu0
    %v1232 = vadd.f32 %v1156, %v1229
    %v1233 = vxor.u32 %v1154, 2147483648
    %v1234 = vmul.f32 %v1233, 1.442695
    %v1235 = vpow.pop %v1234
    %v1236 = vadd.f32 %v1235, 1.0
    %v1237 = vrcp.pop %v1236
    %v1238 = vmul.f32 1.0, %v1237
    %v1239 = vtanh.pop %v1154
    %v1240 = vmul.f32 %v1238, %v1055
    %1242 = vrot.lane.b32.xlu0 %v1239, 96
    %v1243 = vpop.permute.xlu0 %1242
    %v1245 = vmul.f32 %v1238, %v1243
    %1247 = vrot.lane.b32.xlu0 %v1245, 16
    %v1248 = vpop.permute.xlu0 %1247
    %v1250 = vadd.f32 %v1240, %v1248
    %v1251 = vtanh.pop %v1250
    %1253 = vrot.lane.b32.xlu0 %v1251, 32
    %v1254 = vpop.permute.xlu0 %1253
    %v1256 = vmul.f32 %v1238, %v1254
    %v1257 = vxor.u32 %v1232, 2147483648
    %v1258 = vmul.f32 %v1257, 1.442695
    %v1259 = vpow.pop %v1258
    %v1260 = vadd.f32 %v1259, 1.0
    %v1261 = vrcp.pop %v1260
    %v1262 = vmul.f32 1.0, %v1261
    %v1263 = vtanh.pop %v1232
    %v1264 = vmul.f32 %v1262, %v1062
    %1266 = vrot.lane.b32.xlu0 %v1263, 96
    %v1267 = vpop.permute.xlu0 %1266
    %v1269 = vmul.f32 %v1262, %v1267
    %1271 = vrot.lane.b32.xlu0 %v1269, 16
    %v1272 = vpop.permute.xlu0 %1271
    %v1274 = vadd.f32 %v1264, %v1272
    %v1275 = vtanh.pop %v1274
    %1277 = vrot.lane.b32.xlu0 %v1275, 32
    %v1278 = vpop.permute.xlu0 %1277
    %v1280 = vmul.f32 %v1262, %v1278
    %s1281 = scalar_lea.vmem %s1, 24
    %v1282 = vld [vmem:[%s1281] sm:$0xff]
    %vm1283 = vcmp.gt.f32.partialorder %v1282, 0.0
    %s1284 = scalar_lea.vmem %s1, 32
    %v1285 = vld [vmem:[%s1284] sm:$0xff]
    %vm1286 = vcmp.gt.f32.partialorder %v1285, 0.0
    %v1287 = vsel %vm1283, 1, 0
    %1288 = vset.pattern.permute.xlu0 0
    %1289 = vperm.xlu0 %1288, %v1287
    %v1290 = vpop.permute.xlu0 %1289
    %vm1291 = vcmp.eq.s32.totalorder %v1290, 1
    %v1292 = vsel %vm1291, %v1256, %v1054
    %v1293 = vsel %vm1291, %v1250, %v1055
    %v1294 = vsel %vm1286, 1, 0
    %1295 = vset.pattern.permute.xlu0 0
    %1296 = vperm.xlu0 %1295, %v1294
    %v1297 = vpop.permute.xlu0 %1296
    %vm1298 = vcmp.eq.s32.totalorder %v1297, 1
    %v1299 = vsel %vm1298, %v1280, %v1061
    %v1300 = vsel %vm1298, %v1274, %v1062
    %v1301 = vsel %vm1291, %v1256, 0.0
    %1303 = vrot.lane.b32.xlu0 %v1301, 80
    %v1304 = vpop.permute.xlu0 %1303
    %s1306 = scalar_lea.vmem [#allocation4], 24
    %1307 = vst.msk [vmem:[%s1306] sm:$0xff] %vm381, %v1304
    %v1308 = vsel %vm1298, %v1280, 0.0
    %1310 = vrot.lane.b32.xlu0 %v1308, 80
    %v1311 = vpop.permute.xlu0 %1310
    %s1313 = scalar_lea.vmem [#allocation5], 32
    %1314 = vst.msk [vmem:[%s1313] sm:$0xff] %vm381, %v1311
    %s1315 = scalar_lea.vmem [#allocation2], 32
    %v1316 = vld [vmem:[%s1315] sm:$0xff]
    %1318 = vrot.lane.b32.xlu0 %v1292, 80
    %v1319 = vpop.permute.xlu0 %1318
    %v1320 = vsel %vm381, %v1319, 0
    %1322 = vmatprep.subr.mxu0 0.0
    %1323 = vmatpush1.msra.mxu0 0.0
    %1324 = vmatprep.subr.mxu0 0.0
    %1325 = vmatpush1.msra.mxu0 0.0
    %1326 = vmatprep.subr.mxu0 0.0
    %1327 = vmatpush1.msra.mxu0 0.0
    %1328 = vmatprep.subr.mxu0 0.0
    %1329 = vmatpush1.msra.mxu0 0.0
    %1330 = vmatprep.subr.mxu0 0.0
    %1331 = vmatpush1.msra.mxu0 0.0
    %1332 = vmatprep.subr.mxu0 0.0
    %1333 = vmatpush1.msra.mxu0 0.0
    %1334 = vmatprep.subr.mxu0 0.0
    %1335 = vmatpush1.msra.mxu0 0.0
    %1336 = vmatprep.subr.mxu0 0.0
    %1337 = vmatpush1.msra.mxu0 0.0
    %1338 = vmatprep.subr.mxu0 0.0
    %1339 = vmatpush1.msra.mxu0 0.0
    %1340 = vmatprep.subr.mxu0 0.0
    %1341 = vmatpush1.msra.mxu0 0.0
    %1342 = vmatprep.subr.mxu0 0.0
    %1343 = vmatpush1.msra.mxu0 0.0
    %1344 = vmatprep.subr.mxu0 0.0
    %1345 = vmatpush1.msra.mxu0 0.0
    %1346 = vmatprep.subr.mxu0 0.0
    %1347 = vmatpush1.msra.mxu0 0.0
    %1348 = vmatprep.subr.mxu0 0.0
    %1349 = vmatpush1.msra.mxu0 0.0
    %1350 = vmatprep.subr.mxu0 0.0
    %1351 = vmatpush1.msra.mxu0 %v377
    %1352 = vmatprep.subr.mxu0 0.0
    %1353 = vmatpush1.msra.mxu0 %v376
    %1354 = vmatprep.subr.mxu0 0.0
    %1355 = vmatpush2.msra.mxu0 0.0
    %1356 = vmatprep.subr.mxu0 0.0
    %1357 = vmatpush2.msra.mxu0 0.0
    %1358 = vmatprep.subr.mxu0 0.0
    %1359 = vmatpush2.msra.mxu0 0.0
    %1360 = vmatprep.subr.mxu0 0.0
    %1361 = vmatpush2.msra.mxu0 0.0
    %1362 = vmatprep.subr.mxu0 0.0
    %1363 = vmatpush2.msra.mxu0 0.0
    %1364 = vmatprep.subr.mxu0 0.0
    %1365 = vmatpush2.msra.mxu0 0.0
    %1366 = vmatprep.subr.mxu0 0.0
    %1367 = vmatpush2.msra.mxu0 0.0
    %1368 = vmatprep.subr.mxu0 0.0
    %1369 = vmatpush2.msra.mxu0 0.0
    %1370 = vmatprep.subr.mxu0 0.0
    %1371 = vmatpush2.msra.mxu0 0.0
    %1372 = vmatprep.subr.mxu0 0.0
    %1373 = vmatpush2.msra.mxu0 0.0
    %1374 = vmatprep.subr.mxu0 0.0
    %1375 = vmatpush2.msra.mxu0 0.0
    %1376 = vmatprep.subr.mxu0 0.0
    %1377 = vmatpush2.msra.mxu0 0.0
    %1378 = vmatprep.subr.mxu0 0.0
    %1379 = vmatpush2.msra.mxu0 0.0
    %1380 = vmatprep.subr.mxu0 0.0
    %1381 = vmatpush2.msra.mxu0 0.0
    %1382 = vmatprep.subr.mxu0 0.0
    %1383 = vmatpush2.msra.mxu0 0.0
    %1384 = vmatprep.subr.mxu0 0.0
    %1385 = vmatpush2.msra.mxu0 0.0
    %1386 = vmatprep.mubr.f32.mxu0 0.0
    %1387 = vmatmul.mubr.f32.gmra.mxu0 %v1320
    %v1388 = vpop.f32.mrf.mxu0
    %v1389 = vadd.f32 0.0, %v1388
    %v1390 = vpop.f32.mrf.mxu0
    %1391 = vdwg.mxu0
    %v1392 = vadd.f32 %v1316, %v1389
    %s1393 = scalar_lea.vmem [#allocation3], 24
    %v1394 = vld [vmem:[%s1393] sm:$0xff]
    %1396 = vrot.lane.b32.xlu0 %v1299, 80
    %v1397 = vpop.permute.xlu0 %1396
    %v1398 = vsel %vm381, %v1397, 0
    %1400 = vmatprep.subr.mxu0 0.0
    %1401 = vmatpush1.msra.mxu0 0.0
    %1402 = vmatprep.subr.mxu0 0.0
    %1403 = vmatpush1.msra.mxu0 0.0
    %1404 = vmatprep.subr.mxu0 0.0
    %1405 = vmatpush1.msra.mxu0 0.0
    %1406 = vmatprep.subr.mxu0 0.0
    %1407 = vmatpush1.msra.mxu0 0.0
    %1408 = vmatprep.subr.mxu0 0.0
    %1409 = vmatpush1.msra.mxu0 0.0
    %1410 = vmatprep.subr.mxu0 0.0
    %1411 = vmatpush1.msra.mxu0 0.0
    %1412 = vmatprep.subr.mxu0 0.0
    %1413 = vmatpush1.msra.mxu0 0.0
    %1414 = vmatprep.subr.mxu0 0.0
    %1415 = vmatpush1.msra.mxu0 0.0
    %1416 = vmatprep.subr.mxu0 0.0
    %1417 = vmatpush1.msra.mxu0 0.0
    %1418 = vmatprep.subr.mxu0 0.0
    %1419 = vmatpush1.msra.mxu0 0.0
    %1420 = vmatprep.subr.mxu0 0.0
    %1421 = vmatpush1.msra.mxu0 0.0
    %1422 = vmatprep.subr.mxu0 0.0
    %1423 = vmatpush1.msra.mxu0 0.0
    %1424 = vmatprep.subr.mxu0 0.0
    %1425 = vmatpush1.msra.mxu0 0.0
    %1426 = vmatprep.subr.mxu0 0.0
    %1427 = vmatpush1.msra.mxu0 0.0
    %1428 = vmatprep.subr.mxu0 0.0
    %1429 = vmatpush1.msra.mxu0 %v379
    %1430 = vmatprep.subr.mxu0 0.0
    %1431 = vmatpush1.msra.mxu0 %v378
    %1432 = vmatprep.subr.mxu0 0.0
    %1433 = vmatpush2.msra.mxu0 0.0
    %1434 = vmatprep.subr.mxu0 0.0
    %1435 = vmatpush2.msra.mxu0 0.0
    %1436 = vmatprep.subr.mxu0 0.0
    %1437 = vmatpush2.msra.mxu0 0.0
    %1438 = vmatprep.subr.mxu0 0.0
    %1439 = vmatpush2.msra.mxu0 0.0
    %1440 = vmatprep.subr.mxu0 0.0
    %1441 = vmatpush2.msra.mxu0 0.0
    %1442 = vmatprep.subr.mxu0 0.0
    %1443 = vmatpush2.msra.mxu0 0.0
    %1444 = vmatprep.subr.mxu0 0.0
    %1445 = vmatpush2.msra.mxu0 0.0
    %1446 = vmatprep.subr.mxu0 0.0
    %1447 = vmatpush2.msra.mxu0 0.0
    %1448 = vmatprep.subr.mxu0 0.0
    %1449 = vmatpush2.msra.mxu0 0.0
    %1450 = vmatprep.subr.mxu0 0.0
    %1451 = vmatpush2.msra.mxu0 0.0
    %1452 = vmatprep.subr.mxu0 0.0
    %1453 = vmatpush2.msra.mxu0 0.0
    %1454 = vmatprep.subr.mxu0 0.0
    %1455 = vmatpush2.msra.mxu0 0.0
    %1456 = vmatprep.subr.mxu0 0.0
    %1457 = vmatpush2.msra.mxu0 0.0
    %1458 = vmatprep.subr.mxu0 0.0
    %1459 = vmatpush2.msra.mxu0 0.0
    %1460 = vmatprep.subr.mxu0 0.0
    %1461 = vmatpush2.msra.mxu0 0.0
    %1462 = vmatprep.subr.mxu0 0.0
    %1463 = vmatpush2.msra.mxu0 0.0
    %1464 = vmatprep.mubr.f32.mxu0 0.0
    %1465 = vmatmul.mubr.f32.gmra.mxu0 %v1398
    %v1466 = vpop.f32.mrf.mxu0
    %v1467 = vadd.f32 0.0, %v1466
    %v1468 = vpop.f32.mrf.mxu0
    %1469 = vdwg.mxu0
    %v1470 = vadd.f32 %v1394, %v1467
    %v1471 = vxor.u32 %v1392, 2147483648
    %v1472 = vmul.f32 %v1471, 1.442695
    %v1473 = vpow.pop %v1472
    %v1474 = vadd.f32 %v1473, 1.0
    %v1475 = vrcp.pop %v1474
    %v1476 = vmul.f32 1.0, %v1475
    %v1477 = vtanh.pop %v1392
    %v1478 = vmul.f32 %v1476, %v1293
    %1480 = vrot.lane.b32.xlu0 %v1477, 96
    %v1481 = vpop.permute.xlu0 %1480
    %v1483 = vmul.f32 %v1476, %v1481
    %1485 = vrot.lane.b32.xlu0 %v1483, 16
    %v1486 = vpop.permute.xlu0 %1485
    %v1488 = vadd.f32 %v1478, %v1486
    %v1489 = vtanh.pop %v1488
    %1491 = vrot.lane.b32.xlu0 %v1489, 32
    %v1492 = vpop.permute.xlu0 %1491
    %v1494 = vmul.f32 %v1476, %v1492
    %v1495 = vxor.u32 %v1470, 2147483648
    %v1496 = vmul.f32 %v1495, 1.442695
    %v1497 = vpow.pop %v1496
    %v1498 = vadd.f32 %v1497, 1.0
    %v1499 = vrcp.pop %v1498
    %v1500 = vmul.f32 1.0, %v1499
    %v1501 = vtanh.pop %v1470
    %v1502 = vmul.f32 %v1500, %v1300
    %1504 = vrot.lane.b32.xlu0 %v1501, 96
    %v1505 = vpop.permute.xlu0 %1504
    %v1507 = vmul.f32 %v1500, %v1505
    %1509 = vrot.lane.b32.xlu0 %v1507, 16
    %v1510 = vpop.permute.xlu0 %1509
    %v1512 = vadd.f32 %v1502, %v1510
    %v1513 = vtanh.pop %v1512
    %1515 = vrot.lane.b32.xlu0 %v1513, 32
    %v1516 = vpop.permute.xlu0 %1515
    %v1518 = vmul.f32 %v1500, %v1516
    %v1519 = vld [vmem:[%s1284] sm:$0xff]
    %vm1520 = vcmp.gt.f32.partialorder %v1519, 0.0
    %v1521 = vld [vmem:[%s1281] sm:$0xff]
    %vm1522 = vcmp.gt.f32.partialorder %v1521, 0.0
    %v1523 = vsel %vm1520, 1, 0
    %1524 = vset.pattern.permute.xlu0 0
    %1525 = vperm.xlu0 %1524, %v1523
    %v1526 = vpop.permute.xlu0 %1525
    %vm1527 = vcmp.eq.s32.totalorder %v1526, 1
    %v1528 = vsel %vm1527, %v1494, %v1292
    %v1529 = vsel %vm1527, %v1488, %v1293
    %v1530 = vsel %vm1522, 1, 0
    %1531 = vset.pattern.permute.xlu0 0
    %1532 = vperm.xlu0 %1531, %v1530
    %v1533 = vpop.permute.xlu0 %1532
    %vm1534 = vcmp.eq.s32.totalorder %v1533, 1
    %v1535 = vsel %vm1534, %v1518, %v1299
    %v1536 = vsel %vm1534, %v1512, %v1300
    %v1537 = vsel %vm1527, %v1494, 0.0
    %1539 = vrot.lane.b32.xlu0 %v1537, 80
    %v1540 = vpop.permute.xlu0 %1539
    %s1542 = scalar_lea.vmem [#allocation4], 32
    %1543 = vst.msk [vmem:[%s1542] sm:$0xff] %vm381, %v1540
    %v1544 = vsel %vm1534, %v1518, 0.0
    %1546 = vrot.lane.b32.xlu0 %v1544, 80
    %v1547 = vpop.permute.xlu0 %1546
    %s1549 = scalar_lea.vmem [#allocation5], 24
    %1550 = vst.msk [vmem:[%s1549] sm:$0xff] %vm381, %v1547
    %s1551 = scalar_lea.vmem [#allocation2], 40
    %v1552 = vld [vmem:[%s1551] sm:$0xff]
    %1554 = vrot.lane.b32.xlu0 %v1528, 80
    %v1555 = vpop.permute.xlu0 %1554
    %v1556 = vsel %vm381, %v1555, 0
    %1558 = vmatprep.subr.mxu0 0.0
    %1559 = vmatpush1.msra.mxu0 0.0
    %1560 = vmatprep.subr.mxu0 0.0
    %1561 = vmatpush1.msra.mxu0 0.0
    %1562 = vmatprep.subr.mxu0 0.0
    %1563 = vmatpush1.msra.mxu0 0.0
    %1564 = vmatprep.subr.mxu0 0.0
    %1565 = vmatpush1.msra.mxu0 0.0
    %1566 = vmatprep.subr.mxu0 0.0
    %1567 = vmatpush1.msra.mxu0 0.0
    %1568 = vmatprep.subr.mxu0 0.0
    %1569 = vmatpush1.msra.mxu0 0.0
    %1570 = vmatprep.subr.mxu0 0.0
    %1571 = vmatpush1.msra.mxu0 0.0
    %1572 = vmatprep.subr.mxu0 0.0
    %1573 = vmatpush1.msra.mxu0 0.0
    %1574 = vmatprep.subr.mxu0 0.0
    %1575 = vmatpush1.msra.mxu0 0.0
    %1576 = vmatprep.subr.mxu0 0.0
    %1577 = vmatpush1.msra.mxu0 0.0
    %1578 = vmatprep.subr.mxu0 0.0
    %1579 = vmatpush1.msra.mxu0 0.0
    %1580 = vmatprep.subr.mxu0 0.0
    %1581 = vmatpush1.msra.mxu0 0.0
    %1582 = vmatprep.subr.mxu0 0.0
    %1583 = vmatpush1.msra.mxu0 0.0
    %1584 = vmatprep.subr.mxu0 0.0
    %1585 = vmatpush1.msra.mxu0 0.0
    %1586 = vmatprep.subr.mxu0 0.0
    %1587 = vmatpush1.msra.mxu0 %v377
    %1588 = vmatprep.subr.mxu0 0.0
    %1589 = vmatpush1.msra.mxu0 %v376
    %1590 = vmatprep.subr.mxu0 0.0
    %1591 = vmatpush2.msra.mxu0 0.0
    %1592 = vmatprep.subr.mxu0 0.0
    %1593 = vmatpush2.msra.mxu0 0.0
    %1594 = vmatprep.subr.mxu0 0.0
    %1595 = vmatpush2.msra.mxu0 0.0
    %1596 = vmatprep.subr.mxu0 0.0
    %1597 = vmatpush2.msra.mxu0 0.0
    %1598 = vmatprep.subr.mxu0 0.0
    %1599 = vmatpush2.msra.mxu0 0.0
    %1600 = vmatprep.subr.mxu0 0.0
    %1601 = vmatpush2.msra.mxu0 0.0
    %1602 = vmatprep.subr.mxu0 0.0
    %1603 = vmatpush2.msra.mxu0 0.0
    %1604 = vmatprep.subr.mxu0 0.0
    %1605 = vmatpush2.msra.mxu0 0.0
    %1606 = vmatprep.subr.mxu0 0.0
    %1607 = vmatpush2.msra.mxu0 0.0
    %1608 = vmatprep.subr.mxu0 0.0
    %1609 = vmatpush2.msra.mxu0 0.0
    %1610 = vmatprep.subr.mxu0 0.0
    %1611 = vmatpush2.msra.mxu0 0.0
    %1612 = vmatprep.subr.mxu0 0.0
    %1613 = vmatpush2.msra.mxu0 0.0
    %1614 = vmatprep.subr.mxu0 0.0
    %1615 = vmatpush2.msra.mxu0 0.0
    %1616 = vmatprep.subr.mxu0 0.0
    %1617 = vmatpush2.msra.mxu0 0.0
    %1618 = vmatprep.subr.mxu0 0.0
    %1619 = vmatpush2.msra.mxu0 0.0
    %1620 = vmatprep.subr.mxu0 0.0
    %1621 = vmatpush2.msra.mxu0 0.0
    %1622 = vmatprep.mubr.f32.mxu0 0.0
    %1623 = vmatmul.mubr.f32.gmra.mxu0 %v1556
    %v1624 = vpop.f32.mrf.mxu0
    %v1625 = vadd.f32 0.0, %v1624
    %v1626 = vpop.f32.mrf.mxu0
    %1627 = vdwg.mxu0
    %v1628 = vadd.f32 %v1552, %v1625
    %s1629 = scalar_lea.vmem [#allocation3], 16
    %v1630 = vld [vmem:[%s1629] sm:$0xff]
    %1632 = vrot.lane.b32.xlu0 %v1535, 80
    %v1633 = vpop.permute.xlu0 %1632
    %v1634 = vsel %vm381, %v1633, 0
    %1636 = vmatprep.subr.mxu0 0.0
    %1637 = vmatpush1.msra.mxu0 0.0
    %1638 = vmatprep.subr.mxu0 0.0
    %1639 = vmatpush1.msra.mxu0 0.0
    %1640 = vmatprep.subr.mxu0 0.0
    %1641 = vmatpush1.msra.mxu0 0.0
    %1642 = vmatprep.subr.mxu0 0.0
    %1643 = vmatpush1.msra.mxu0 0.0
    %1644 = vmatprep.subr.mxu0 0.0
    %1645 = vmatpush1.msra.mxu0 0.0
    %1646 = vmatprep.subr.mxu0 0.0
    %1647 = vmatpush1.msra.mxu0 0.0
    %1648 = vmatprep.subr.mxu0 0.0
    %1649 = vmatpush1.msra.mxu0 0.0
    %1650 = vmatprep.subr.mxu0 0.0
    %1651 = vmatpush1.msra.mxu0 0.0
    %1652 = vmatprep.subr.mxu0 0.0
    %1653 = vmatpush1.msra.mxu0 0.0
    %1654 = vmatprep.subr.mxu0 0.0
    %1655 = vmatpush1.msra.mxu0 0.0
    %1656 = vmatprep.subr.mxu0 0.0
    %1657 = vmatpush1.msra.mxu0 0.0
    %1658 = vmatprep.subr.mxu0 0.0
    %1659 = vmatpush1.msra.mxu0 0.0
    %1660 = vmatprep.subr.mxu0 0.0
    %1661 = vmatpush1.msra.mxu0 0.0
    %1662 = vmatprep.subr.mxu0 0.0
    %1663 = vmatpush1.msra.mxu0 0.0
    %1664 = vmatprep.subr.mxu0 0.0
    %1665 = vmatpush1.msra.mxu0 %v379
    %1666 = vmatprep.subr.mxu0 0.0
    %1667 = vmatpush1.msra.mxu0 %v378
    %1668 = vmatprep.subr.mxu0 0.0
    %1669 = vmatpush2.msra.mxu0 0.0
    %1670 = vmatprep.subr.mxu0 0.0
    %1671 = vmatpush2.msra.mxu0 0.0
    %1672 = vmatprep.subr.mxu0 0.0
    %1673 = vmatpush2.msra.mxu0 0.0
    %1674 = vmatprep.subr.mxu0 0.0
    %1675 = vmatpush2.msra.mxu0 0.0
    %1676 = vmatprep.subr.mxu0 0.0
    %1677 = vmatpush2.msra.mxu0 0.0
    %1678 = vmatprep.subr.mxu0 0.0
    %1679 = vmatpush2.msra.mxu0 0.0
    %1680 = vmatprep.subr.mxu0 0.0
    %1681 = vmatpush2.msra.mxu0 0.0
    %1682 = vmatprep.subr.mxu0 0.0
    %1683 = vmatpush2.msra.mxu0 0.0
    %1684 = vmatprep.subr.mxu0 0.0
    %1685 = vmatpush2.msra.mxu0 0.0
    %1686 = vmatprep.subr.mxu0 0.0
    %1687 = vmatpush2.msra.mxu0 0.0
    %1688 = vmatprep.subr.mxu0 0.0
    %1689 = vmatpush2.msra.mxu0 0.0
    %1690 = vmatprep.subr.mxu0 0.0
    %1691 = vmatpush2.msra.mxu0 0.0
    %1692 = vmatprep.subr.mxu0 0.0
    %1693 = vmatpush2.msra.mxu0 0.0
    %1694 = vmatprep.subr.mxu0 0.0
    %1695 = vmatpush2.msra.mxu0 0.0
    %1696 = vmatprep.subr.mxu0 0.0
    %1697 = vmatpush2.msra.mxu0 0.0
    %1698 = vmatprep.subr.mxu0 0.0
    %1699 = vmatpush2.msra.mxu0 0.0
    %1700 = vmatprep.mubr.f32.mxu0 0.0
    %1701 = vmatmul.mubr.f32.gmra.mxu0 %v1634
    %v1702 = vpop.f32.mrf.mxu0
    %v1703 = vadd.f32 0.0, %v1702
    %v1704 = vpop.f32.mrf.mxu0
    %1705 = vdwg.mxu0
    %v1706 = vadd.f32 %v1630, %v1703
    %v1707 = vxor.u32 %v1628, 2147483648
    %v1708 = vmul.f32 %v1707, 1.442695
    %v1709 = vpow.pop %v1708
    %v1710 = vadd.f32 %v1709, 1.0
    %v1711 = vrcp.pop %v1710
    %v1712 = vmul.f32 1.0, %v1711
    %v1713 = vtanh.pop %v1628
    %v1714 = vmul.f32 %v1712, %v1529
    %1716 = vrot.lane.b32.xlu0 %v1713, 96
    %v1717 = vpop.permute.xlu0 %1716
    %v1719 = vmul.f32 %v1712, %v1717
    %1721 = vrot.lane.b32.xlu0 %v1719, 16
    %v1722 = vpop.permute.xlu0 %1721
    %v1724 = vadd.f32 %v1714, %v1722
    %v1725 = vtanh.pop %v1724
    %1727 = vrot.lane.b32.xlu0 %v1725, 32
    %v1728 = vpop.permute.xlu0 %1727
    %v1730 = vmul.f32 %v1712, %v1728
    %v1731 = vxor.u32 %v1706, 2147483648
    %v1732 = vmul.f32 %v1731, 1.442695
    %v1733 = vpow.pop %v1732
    %v1734 = vadd.f32 %v1733, 1.0
    %v1735 = vrcp.pop %v1734
    %v1736 = vmul.f32 1.0, %v1735
    %v1737 = vtanh.pop %v1706
    %v1738 = vmul.f32 %v1736, %v1536
    %1740 = vrot.lane.b32.xlu0 %v1737, 96
    %v1741 = vpop.permute.xlu0 %1740
    %v1743 = vmul.f32 %v1736, %v1741
    %1745 = vrot.lane.b32.xlu0 %v1743, 16
    %v1746 = vpop.permute.xlu0 %1745
    %v1748 = vadd.f32 %v1738, %v1746
    %v1749 = vtanh.pop %v1748
    %1751 = vrot.lane.b32.xlu0 %v1749, 32
    %v1752 = vpop.permute.xlu0 %1751
    %v1754 = vmul.f32 %v1736, %v1752
    %v1755 = vld [vmem:[%s1046] sm:$0xff]
    %vm1756 = vcmp.gt.f32.partialorder %v1755, 0.0
    %v1757 = vld [vmem:[%s1043] sm:$0xff]
    %vm1758 = vcmp.gt.f32.partialorder %v1757, 0.0
    %v1759 = vsel %vm1756, 1, 0
    %1760 = vset.pattern.permute.xlu0 0
    %1761 = vperm.xlu0 %1760, %v1759
    %v1762 = vpop.permute.xlu0 %1761
    %vm1763 = vcmp.eq.s32.totalorder %v1762, 1
    %v1764 = vsel %vm1763, %v1730, %v1528
    %v1765 = vsel %vm1763, %v1724, %v1529
    %v1766 = vsel %vm1758, 1, 0
    %1767 = vset.pattern.permute.xlu0 0
    %1768 = vperm.xlu0 %1767, %v1766
    %v1769 = vpop.permute.xlu0 %1768
    %vm1770 = vcmp.eq.s32.totalorder %v1769, 1
    %v1771 = vsel %vm1770, %v1754, %v1535
    %v1772 = vsel %vm1770, %v1748, %v1536
    %v1773 = vsel %vm1763, %v1730, 0.0
    %1775 = vrot.lane.b32.xlu0 %v1773, 80
    %v1776 = vpop.permute.xlu0 %1775
    %s1778 = scalar_lea.vmem [#allocation4], 40
    %1779 = vst.msk [vmem:[%s1778] sm:$0xff] %vm381, %v1776
    %v1780 = vsel %vm1770, %v1754, 0.0
    %1782 = vrot.lane.b32.xlu0 %v1780, 80
    %v1783 = vpop.permute.xlu0 %1782
    %s1785 = scalar_lea.vmem [#allocation5], 16
    %1786 = vst.msk [vmem:[%s1785] sm:$0xff] %vm381, %v1783
    %s1787 = scalar_lea.vmem [#allocation2], 48
    %v1788 = vld [vmem:[%s1787] sm:$0xff]
    %1790 = vrot.lane.b32.xlu0 %v1764, 80
    %v1791 = vpop.permute.xlu0 %1790
    %v1792 = vsel %vm381, %v1791, 0
    %1794 = vmatprep.subr.mxu0 0.0
    %1795 = vmatpush1.msra.mxu0 0.0
    %1796 = vmatprep.subr.mxu0 0.0
    %1797 = vmatpush1.msra.mxu0 0.0
    %1798 = vmatprep.subr.mxu0 0.0
    %1799 = vmatpush1.msra.mxu0 0.0
    %1800 = vmatprep.subr.mxu0 0.0
    %1801 = vmatpush1.msra.mxu0 0.0
    %1802 = vmatprep.subr.mxu0 0.0
    %1803 = vmatpush1.msra.mxu0 0.0
    %1804 = vmatprep.subr.mxu0 0.0
    %1805 = vmatpush1.msra.mxu0 0.0
    %1806 = vmatprep.subr.mxu0 0.0
    %1807 = vmatpush1.msra.mxu0 0.0
    %1808 = vmatprep.subr.mxu0 0.0
    %1809 = vmatpush1.msra.mxu0 0.0
    %1810 = vmatprep.subr.mxu0 0.0
    %1811 = vmatpush1.msra.mxu0 0.0
    %1812 = vmatprep.subr.mxu0 0.0
    %1813 = vmatpush1.msra.mxu0 0.0
    %1814 = vmatprep.subr.mxu0 0.0
    %1815 = vmatpush1.msra.mxu0 0.0
    %1816 = vmatprep.subr.mxu0 0.0
    %1817 = vmatpush1.msra.mxu0 0.0
    %1818 = vmatprep.subr.mxu0 0.0
    %1819 = vmatpush1.msra.mxu0 0.0
    %1820 = vmatprep.subr.mxu0 0.0
    %1821 = vmatpush1.msra.mxu0 0.0
    %1822 = vmatprep.subr.mxu0 0.0
    %1823 = vmatpush1.msra.mxu0 %v377
    %1824 = vmatprep.subr.mxu0 0.0
    %1825 = vmatpush1.msra.mxu0 %v376
    %1826 = vmatprep.subr.mxu0 0.0
    %1827 = vmatpush2.msra.mxu0 0.0
    %1828 = vmatprep.subr.mxu0 0.0
    %1829 = vmatpush2.msra.mxu0 0.0
    %1830 = vmatprep.subr.mxu0 0.0
    %1831 = vmatpush2.msra.mxu0 0.0
    %1832 = vmatprep.subr.mxu0 0.0
    %1833 = vmatpush2.msra.mxu0 0.0
    %1834 = vmatprep.subr.mxu0 0.0
    %1835 = vmatpush2.msra.mxu0 0.0
    %1836 = vmatprep.subr.mxu0 0.0
    %1837 = vmatpush2.msra.mxu0 0.0
    %1838 = vmatprep.subr.mxu0 0.0
    %1839 = vmatpush2.msra.mxu0 0.0
    %1840 = vmatprep.subr.mxu0 0.0
    %1841 = vmatpush2.msra.mxu0 0.0
    %1842 = vmatprep.subr.mxu0 0.0
    %1843 = vmatpush2.msra.mxu0 0.0
    %1844 = vmatprep.subr.mxu0 0.0
    %1845 = vmatpush2.msra.mxu0 0.0
    %1846 = vmatprep.subr.mxu0 0.0
    %1847 = vmatpush2.msra.mxu0 0.0
    %1848 = vmatprep.subr.mxu0 0.0
    %1849 = vmatpush2.msra.mxu0 0.0
    %1850 = vmatprep.subr.mxu0 0.0
    %1851 = vmatpush2.msra.mxu0 0.0
    %1852 = vmatprep.subr.mxu0 0.0
    %1853 = vmatpush2.msra.mxu0 0.0
    %1854 = vmatprep.subr.mxu0 0.0
    %1855 = vmatpush2.msra.mxu0 0.0
    %1856 = vmatprep.subr.mxu0 0.0
    %1857 = vmatpush2.msra.mxu0 0.0
    %1858 = vmatprep.mubr.f32.mxu0 0.0
    %1859 = vmatmul.mubr.f32.gmra.mxu0 %v1792
    %v1860 = vpop.f32.mrf.mxu0
    %v1861 = vadd.f32 0.0, %v1860
    %v1862 = vpop.f32.mrf.mxu0
    %1863 = vdwg.mxu0
    %v1864 = vadd.f32 %v1788, %v1861
    %s1865 = scalar_lea.vmem [#allocation3], 8
    %v1866 = vld [vmem:[%s1865] sm:$0xff]
    %1868 = vrot.lane.b32.xlu0 %v1771, 80
    %v1869 = vpop.permute.xlu0 %1868
    %v1870 = vsel %vm381, %v1869, 0
    %1872 = vmatprep.subr.mxu0 0.0
    %1873 = vmatpush1.msra.mxu0 0.0
    %1874 = vmatprep.subr.mxu0 0.0
    %1875 = vmatpush1.msra.mxu0 0.0
    %1876 = vmatprep.subr.mxu0 0.0
    %1877 = vmatpush1.msra.mxu0 0.0
    %1878 = vmatprep.subr.mxu0 0.0
    %1879 = vmatpush1.msra.mxu0 0.0
    %1880 = vmatprep.subr.mxu0 0.0
    %1881 = vmatpush1.msra.mxu0 0.0
    %1882 = vmatprep.subr.mxu0 0.0
    %1883 = vmatpush1.msra.mxu0 0.0
    %1884 = vmatprep.subr.mxu0 0.0
    %1885 = vmatpush1.msra.mxu0 0.0
    %1886 = vmatprep.subr.mxu0 0.0
    %1887 = vmatpush1.msra.mxu0 0.0
    %1888 = vmatprep.subr.mxu0 0.0
    %1889 = vmatpush1.msra.mxu0 0.0
    %1890 = vmatprep.subr.mxu0 0.0
    %1891 = vmatpush1.msra.mxu0 0.0
    %1892 = vmatprep.subr.mxu0 0.0
    %1893 = vmatpush1.msra.mxu0 0.0
    %1894 = vmatprep.subr.mxu0 0.0
    %1895 = vmatpush1.msra.mxu0 0.0
    %1896 = vmatprep.subr.mxu0 0.0
    %1897 = vmatpush1.msra.mxu0 0.0
    %1898 = vmatprep.subr.mxu0 0.0
    %1899 = vmatpush1.msra.mxu0 0.0
    %1900 = vmatprep.subr.mxu0 0.0
    %1901 = vmatpush1.msra.mxu0 %v379
    %1902 = vmatprep.subr.mxu0 0.0
    %1903 = vmatpush1.msra.mxu0 %v378
    %1904 = vmatprep.subr.mxu0 0.0
    %1905 = vmatpush2.msra.mxu0 0.0
    %1906 = vmatprep.subr.mxu0 0.0
    %1907 = vmatpush2.msra.mxu0 0.0
    %1908 = vmatprep.subr.mxu0 0.0
    %1909 = vmatpush2.msra.mxu0 0.0
    %1910 = vmatprep.subr.mxu0 0.0
    %1911 = vmatpush2.msra.mxu0 0.0
    %1912 = vmatprep.subr.mxu0 0.0
    %1913 = vmatpush2.msra.mxu0 0.0
    %1914 = vmatprep.subr.mxu0 0.0
    %1915 = vmatpush2.msra.mxu0 0.0
    %1916 = vmatprep.subr.mxu0 0.0
    %1917 = vmatpush2.msra.mxu0 0.0
    %1918 = vmatprep.subr.mxu0 0.0
    %1919 = vmatpush2.msra.mxu0 0.0
    %1920 = vmatprep.subr.mxu0 0.0
    %1921 = vmatpush2.msra.mxu0 0.0
    %1922 = vmatprep.subr.mxu0 0.0
    %1923 = vmatpush2.msra.mxu0 0.0
    %1924 = vmatprep.subr.mxu0 0.0
    %1925 = vmatpush2.msra.mxu0 0.0
    %1926 = vmatprep.subr.mxu0 0.0
    %1927 = vmatpush2.msra.mxu0 0.0
    %1928 = vmatprep.subr.mxu0 0.0
    %1929 = vmatpush2.msra.mxu0 0.0
    %1930 = vmatprep.subr.mxu0 0.0
    %1931 = vmatpush2.msra.mxu0 0.0
    %1932 = vmatprep.subr.mxu0 0.0
    %1933 = vmatpush2.msra.mxu0 0.0
    %1934 = vmatprep.subr.mxu0 0.0
    %1935 = vmatpush2.msra.mxu0 0.0
    %1936 = vmatprep.mubr.f32.mxu0 0.0
    %1937 = vmatmul.mubr.f32.gmra.mxu0 %v1870
    %v1938 = vpop.f32.mrf.mxu0
    %v1939 = vadd.f32 0.0, %v1938
    %v1940 = vpop.f32.mrf.mxu0
    %1941 = vdwg.mxu0
    %v1942 = vadd.f32 %v1866, %v1939
    %v1943 = vxor.u32 %v1864, 2147483648
    %v1944 = vmul.f32 %v1943, 1.442695
    %v1945 = vpow.pop %v1944
    %v1946 = vadd.f32 %v1945, 1.0
    %v1947 = vrcp.pop %v1946
    %v1948 = vmul.f32 1.0, %v1947
    %v1949 = vtanh.pop %v1864
    %v1950 = vmul.f32 %v1948, %v1765
    %1952 = vrot.lane.b32.xlu0 %v1949, 96
    %v1953 = vpop.permute.xlu0 %1952
    %v1955 = vmul.f32 %v1948, %v1953
    %1957 = vrot.lane.b32.xlu0 %v1955, 16
    %v1958 = vpop.permute.xlu0 %1957
    %v1960 = vadd.f32 %v1950, %v1958
    %v1961 = vtanh.pop %v1960
    %1963 = vrot.lane.b32.xlu0 %v1961, 32
    %v1964 = vpop.permute.xlu0 %1963
    %v1966 = vmul.f32 %v1948, %v1964
    %v1967 = vxor.u32 %v1942, 2147483648
    %v1968 = vmul.f32 %v1967, 1.442695
    %v1969 = vpow.pop %v1968
    %v1970 = vadd.f32 %v1969, 1.0
    %v1971 = vrcp.pop %v1970
    %v1972 = vmul.f32 1.0, %v1971
    %v1973 = vtanh.pop %v1942
    %v1974 = vmul.f32 %v1972, %v1772
    %1976 = vrot.lane.b32.xlu0 %v1973, 96
    %v1977 = vpop.permute.xlu0 %1976
    %v1979 = vmul.f32 %v1972, %v1977
    %1981 = vrot.lane.b32.xlu0 %v1979, 16
    %v1982 = vpop.permute.xlu0 %1981
    %v1984 = vadd.f32 %v1974, %v1982
    %v1985 = vtanh.pop %v1984
    %1987 = vrot.lane.b32.xlu0 %v1985, 32
    %v1988 = vpop.permute.xlu0 %1987
    %v1990 = vmul.f32 %v1972, %v1988
    %v1991 = vld [vmem:[%s808] sm:$0xff]
    %vm1992 = vcmp.gt.f32.partialorder %v1991, 0.0
    %v1993 = vld [vmem:[%s805] sm:$0xff]
    %vm1994 = vcmp.gt.f32.partialorder %v1993, 0.0
    %v1995 = vsel %vm1992, 1, 0
    %1996 = vset.pattern.permute.xlu0 0
    %1997 = vperm.xlu0 %1996, %v1995
    %v1998 = vpop.permute.xlu0 %1997
    %vm1999 = vcmp.eq.s32.totalorder %v1998, 1
    %v2000 = vsel %vm1999, %v1966, %v1764
    %v2001 = vsel %vm1999, %v1960, %v1765
    %v2002 = vsel %vm1994, 1, 0
    %2003 = vset.pattern.permute.xlu0 0
    %2004 = vperm.xlu0 %2003, %v2002
    %v2005 = vpop.permute.xlu0 %2004
    %vm2006 = vcmp.eq.s32.totalorder %v2005, 1
    %v2007 = vsel %vm2006, %v1990, %v1771
    %v2008 = vsel %vm2006, %v1984, %v1772
    %v2009 = vsel %vm1999, %v1966, 0.0
    %2011 = vrot.lane.b32.xlu0 %v2009, 80
    %v2012 = vpop.permute.xlu0 %2011
    %s2014 = scalar_lea.vmem [#allocation4], 48
    %2015 = vst.msk [vmem:[%s2014] sm:$0xff] %vm381, %v2012
    %v2016 = vsel %vm2006, %v1990, 0.0
    %2018 = vrot.lane.b32.xlu0 %v2016, 80
    %v2019 = vpop.permute.xlu0 %2018
    %s2021 = scalar_lea.vmem [#allocation5], 8
    %2022 = vst.msk [vmem:[%s2021] sm:$0xff] %vm381, %v2019
    %s2023 = scalar_lea.vmem [#allocation2], 56
    %v2024 = vld [vmem:[%s2023] sm:$0xff]
    %2026 = vrot.lane.b32.xlu0 %v2000, 80
    %v2027 = vpop.permute.xlu0 %2026
    %v2028 = vsel %vm381, %v2027, 0
    %2030 = vmatprep.subr.mxu0 0.0
    %2031 = vmatpush1.msra.mxu0 0.0
    %2032 = vmatprep.subr.mxu0 0.0
    %2033 = vmatpush1.msra.mxu0 0.0
    %2034 = vmatprep.subr.mxu0 0.0
    %2035 = vmatpush1.msra.mxu0 0.0
    %2036 = vmatprep.subr.mxu0 0.0
    %2037 = vmatpush1.msra.mxu0 0.0
    %2038 = vmatprep.subr.mxu0 0.0
    %2039 = vmatpush1.msra.mxu0 0.0
    %2040 = vmatprep.subr.mxu0 0.0
    %2041 = vmatpush1.msra.mxu0 0.0
    %2042 = vmatprep.subr.mxu0 0.0
    %2043 = vmatpush1.msra.mxu0 0.0
    %2044 = vmatprep.subr.mxu0 0.0
    %2045 = vmatpush1.msra.mxu0 0.0
    %2046 = vmatprep.subr.mxu0 0.0
    %2047 = vmatpush1.msra.mxu0 0.0
    %2048 = vmatprep.subr.mxu0 0.0
    %2049 = vmatpush1.msra.mxu0 0.0
    %2050 = vmatprep.subr.mxu0 0.0
    %2051 = vmatpush1.msra.mxu0 0.0
    %2052 = vmatprep.subr.mxu0 0.0
    %2053 = vmatpush1.msra.mxu0 0.0
    %2054 = vmatprep.subr.mxu0 0.0
    %2055 = vmatpush1.msra.mxu0 0.0
    %2056 = vmatprep.subr.mxu0 0.0
    %2057 = vmatpush1.msra.mxu0 0.0
    %2058 = vmatprep.subr.mxu0 0.0
    %2059 = vmatpush1.msra.mxu0 %v377
    %2060 = vmatprep.subr.mxu0 0.0
    %2061 = vmatpush1.msra.mxu0 %v376
    %2062 = vmatprep.subr.mxu0 0.0
    %2063 = vmatpush2.msra.mxu0 0.0
    %2064 = vmatprep.subr.mxu0 0.0
    %2065 = vmatpush2.msra.mxu0 0.0
    %2066 = vmatprep.subr.mxu0 0.0
    %2067 = vmatpush2.msra.mxu0 0.0
    %2068 = vmatprep.subr.mxu0 0.0
    %2069 = vmatpush2.msra.mxu0 0.0
    %2070 = vmatprep.subr.mxu0 0.0
    %2071 = vmatpush2.msra.mxu0 0.0
    %2072 = vmatprep.subr.mxu0 0.0
    %2073 = vmatpush2.msra.mxu0 0.0
    %2074 = vmatprep.subr.mxu0 0.0
    %2075 = vmatpush2.msra.mxu0 0.0
    %2076 = vmatprep.subr.mxu0 0.0
    %2077 = vmatpush2.msra.mxu0 0.0
    %2078 = vmatprep.subr.mxu0 0.0
    %2079 = vmatpush2.msra.mxu0 0.0
    %2080 = vmatprep.subr.mxu0 0.0
    %2081 = vmatpush2.msra.mxu0 0.0
    %2082 = vmatprep.subr.mxu0 0.0
    %2083 = vmatpush2.msra.mxu0 0.0
    %2084 = vmatprep.subr.mxu0 0.0
    %2085 = vmatpush2.msra.mxu0 0.0
    %2086 = vmatprep.subr.mxu0 0.0
    %2087 = vmatpush2.msra.mxu0 0.0
    %2088 = vmatprep.subr.mxu0 0.0
    %2089 = vmatpush2.msra.mxu0 0.0
    %2090 = vmatprep.subr.mxu0 0.0
    %2091 = vmatpush2.msra.mxu0 0.0
    %2092 = vmatprep.subr.mxu0 0.0
    %2093 = vmatpush2.msra.mxu0 0.0
    %2094 = vmatprep.mubr.f32.mxu0 0.0
    %2095 = vmatmul.mubr.f32.gmra.mxu0 %v2028
    %v2096 = vpop.f32.mrf.mxu0
    %v2097 = vadd.f32 0.0, %v2096
    %v2098 = vpop.f32.mrf.mxu0
    %2099 = vdwg.mxu0
    %v2100 = vadd.f32 %v2024, %v2097
    %v2101 = vld [vmem:[#allocation3] sm:$0xff]
    %2103 = vrot.lane.b32.xlu0 %v2007, 80
    %v2104 = vpop.permute.xlu0 %2103
    %v2105 = vsel %vm381, %v2104, 0
    %2107 = vmatprep.subr.mxu0 0.0
    %2108 = vmatpush1.msra.mxu0 0.0
    %2109 = vmatprep.subr.mxu0 0.0
    %2110 = vmatpush1.msra.mxu0 0.0
    %2111 = vmatprep.subr.mxu0 0.0
    %2112 = vmatpush1.msra.mxu0 0.0
    %2113 = vmatprep.subr.mxu0 0.0
    %2114 = vmatpush1.msra.mxu0 0.0
    %2115 = vmatprep.subr.mxu0 0.0
    %2116 = vmatpush1.msra.mxu0 0.0
    %2117 = vmatprep.subr.mxu0 0.0
    %2118 = vmatpush1.msra.mxu0 0.0
    %2119 = vmatprep.subr.mxu0 0.0
    %2120 = vmatpush1.msra.mxu0 0.0
    %2121 = vmatprep.subr.mxu0 0.0
    %2122 = vmatpush1.msra.mxu0 0.0
    %2123 = vmatprep.subr.mxu0 0.0
    %2124 = vmatpush1.msra.mxu0 0.0
    %2125 = vmatprep.subr.mxu0 0.0
    %2126 = vmatpush1.msra.mxu0 0.0
    %2127 = vmatprep.subr.mxu0 0.0
    %2128 = vmatpush1.msra.mxu0 0.0
    %2129 = vmatprep.subr.mxu0 0.0
    %2130 = vmatpush1.msra.mxu0 0.0
    %2131 = vmatprep.subr.mxu0 0.0
    %2132 = vmatpush1.msra.mxu0 0.0
    %2133 = vmatprep.subr.mxu0 0.0
    %2134 = vmatpush1.msra.mxu0 0.0
    %2135 = vmatprep.subr.mxu0 0.0
    %2136 = vmatpush1.msra.mxu0 %v379
    %2137 = vmatprep.subr.mxu0 0.0
    %2138 = vmatpush1.msra.mxu0 %v378
    %2139 = vmatprep.subr.mxu0 0.0
    %2140 = vmatpush2.msra.mxu0 0.0
    %2141 = vmatprep.subr.mxu0 0.0
    %2142 = vmatpush2.msra.mxu0 0.0
    %2143 = vmatprep.subr.mxu0 0.0
    %2144 = vmatpush2.msra.mxu0 0.0
    %2145 = vmatprep.subr.mxu0 0.0
    %2146 = vmatpush2.msra.mxu0 0.0
    %2147 = vmatprep.subr.mxu0 0.0
    %2148 = vmatpush2.msra.mxu0 0.0
    %2149 = vmatprep.subr.mxu0 0.0
    %2150 = vmatpush2.msra.mxu0 0.0
    %2151 = vmatprep.subr.mxu0 0.0
    %2152 = vmatpush2.msra.mxu0 0.0
    %2153 = vmatprep.subr.mxu0 0.0
    %2154 = vmatpush2.msra.mxu0 0.0
    %2155 = vmatprep.subr.mxu0 0.0
    %2156 = vmatpush2.msra.mxu0 0.0
    %2157 = vmatprep.subr.mxu0 0.0
    %2158 = vmatpush2.msra.mxu0 0.0
    %2159 = vmatprep.subr.mxu0 0.0
    %2160 = vmatpush2.msra.mxu0 0.0
    %2161 = vmatprep.subr.mxu0 0.0
    %2162 = vmatpush2.msra.mxu0 0.0
    %2163 = vmatprep.subr.mxu0 0.0
    %2164 = vmatpush2.msra.mxu0 0.0
    %2165 = vmatprep.subr.mxu0 0.0
    %2166 = vmatpush2.msra.mxu0 0.0
    %2167 = vmatprep.subr.mxu0 0.0
    %2168 = vmatpush2.msra.mxu0 0.0
    %2169 = vmatprep.subr.mxu0 0.0
    %2170 = vmatpush2.msra.mxu0 0.0
    %2171 = vmatprep.mubr.f32.mxu0 0.0
    %2172 = vmatmul.mubr.f32.gmra.mxu0 %v2105
    %v2173 = vpop.f32.mrf.mxu0
    %v2174 = vadd.f32 0.0, %v2173
    %v2175 = vpop.f32.mrf.mxu0
    %2176 = vdwg.mxu0
    %v2177 = vadd.f32 %v2101, %v2174
    %v2178 = vxor.u32 %v2100, 2147483648
    %v2179 = vmul.f32 %v2178, 1.442695
    %v2180 = vpow.pop %v2179
    %v2181 = vadd.f32 %v2180, 1.0
    %v2182 = vrcp.pop %v2181
    %v2183 = vmul.f32 1.0, %v2182
    %v2184 = vtanh.pop %v2100
    %v2185 = vmul.f32 %v2183, %v2001
    %2187 = vrot.lane.b32.xlu0 %v2184, 96
    %v2188 = vpop.permute.xlu0 %2187
    %v2190 = vmul.f32 %v2183, %v2188
    %2192 = vrot.lane.b32.xlu0 %v2190, 16
    %v2193 = vpop.permute.xlu0 %2192
    %v2195 = vadd.f32 %v2185, %v2193
    %v2196 = vtanh.pop %v2195
    %2198 = vrot.lane.b32.xlu0 %v2196, 32
    %v2199 = vpop.permute.xlu0 %2198
    %v2201 = vmul.f32 %v2183, %v2199
    %v2202 = vxor.u32 %v2177, 2147483648
    %v2203 = vmul.f32 %v2202, 1.442695
    %v2204 = vpow.pop %v2203
    %v2205 = vadd.f32 %v2204, 1.0
    %v2206 = vrcp.pop %v2205
    %v2207 = vmul.f32 1.0, %v2206
    %v2208 = vtanh.pop %v2177
    %v2209 = vmul.f32 %v2207, %v2008
    %2211 = vrot.lane.b32.xlu0 %v2208, 96
    %v2212 = vpop.permute.xlu0 %2211
    %v2214 = vmul.f32 %v2207, %v2212
    %2216 = vrot.lane.b32.xlu0 %v2214, 16
    %v2217 = vpop.permute.xlu0 %2216
    %v2219 = vadd.f32 %v2209, %v2217
    %v2220 = vtanh.pop %v2219
    %2222 = vrot.lane.b32.xlu0 %v2220, 32
    %v2223 = vpop.permute.xlu0 %2222
    %v2225 = vmul.f32 %v2207, %v2223
    %v2226 = vld [vmem:[%s579] sm:$0xff]
    %vm2227 = vcmp.gt.f32.partialorder %v2226, 0.0
    %v2228 = vld [vmem:[%s1] sm:$0xff]
    %vm2229 = vcmp.gt.f32.partialorder %v2228, 0.0
    %v2230 = vsel %vm2227, 1, 0
    %2231 = vset.pattern.permute.xlu0 0
    %2232 = vperm.xlu0 %2231, %v2230
    %v2233 = vpop.permute.xlu0 %2232
    %vm2234 = vcmp.eq.s32.totalorder %v2233, 1
    %v2235 = vsel %vm2234, %v2201, 0.0
    %2237 = vrot.lane.b32.xlu0 %v2235, 80
    %v2238 = vpop.permute.xlu0 %2237
    %s2240 = scalar_lea.vmem [#allocation4], 56
    %2241 = vst.msk [vmem:[%s2240] sm:$0xff] %vm381, %v2238
    %v2242 = vsel %vm2229, 1, 0
    %2243 = vset.pattern.permute.xlu0 0
    %2244 = vperm.xlu0 %2243, %v2242
    %v2245 = vpop.permute.xlu0 %2244
    %vm2246 = vcmp.eq.s32.totalorder %v2245, 1
    %v2247 = vsel %vm2246, %v2225, 0.0
    %2249 = vrot.lane.b32.xlu0 %v2247, 80
    %v2250 = vpop.permute.xlu0 %2249
    %2252 = vst.msk [vmem:[#allocation5] sm:$0xff] %vm381, %v2250
    %v2253 = vld [vmem:[#allocation4] sm:$0xff]
    %v2254 = vld [vmem:[#allocation4 + $0x8] sm:$0xff]
    %v2255 = vld [vmem:[#allocation4 + $0x10] sm:$0xff]
    %v2256 = vld [vmem:[#allocation4 + $0x18] sm:$0xff]
    %v2257 = vld [vmem:[#allocation4 + $0x20] sm:$0xff]
    %v2258 = vld [vmem:[#allocation4 + $0x28] sm:$0xff]
    %v2259 = vld [vmem:[#allocation4 + $0x30] sm:$0xff]
    %v2260 = vld [vmem:[#allocation4 + $0x38] sm:$0xff]
    %v2261 = vld [vmem:[#allocation5] sm:$0xff]
    %v2262 = vld [vmem:[#allocation5 + $0x8] sm:$0xff]
    %v2263 = vld [vmem:[#allocation5 + $0x10] sm:$0xff]
    %v2264 = vld [vmem:[#allocation5 + $0x18] sm:$0xff]
    %v2265 = vld [vmem:[#allocation5 + $0x20] sm:$0xff]
    %v2266 = vld [vmem:[#allocation5 + $0x28] sm:$0xff]
    %v2267 = vld [vmem:[#allocation5 + $0x30] sm:$0xff]
    %v2268 = vld [vmem:[#allocation5 + $0x38] sm:$0xff]
    %v2269 = vld [vmem:[%s8] sm:$0xff]
    %v2270 = vld [vmem:[%s8 + $0x8] sm:$0xff]
    %v2271 = vld [vmem:[%s9] sm:$0xff]
    %v2272 = vld [vmem:[%s9 + $0x8] sm:$0xff]
    %v2274 = vsel %vm381, %v2261, 0
    %v2277 = vsel %vm381, %v2262, 0
    %v2280 = vsel %vm381, %v2263, 0
    %v2283 = vsel %vm381, %v2264, 0
    %v2286 = vsel %vm381, %v2265, 0
    %v2289 = vsel %vm381, %v2266, 0
    %v2292 = vsel %vm381, %v2267, 0
    %v2295 = vsel %vm381, %v2268, 0
    %2297 = vmatprep.subr.mxu0 0.0
    %2298 = vmatpush1.msra.mxu0 0.0
    %2299 = vmatprep.subr.mxu0 0.0
    %2300 = vmatpush1.msra.mxu0 0.0
    %2301 = vmatprep.subr.mxu0 0.0
    %2302 = vmatpush1.msra.mxu0 0.0
    %2303 = vmatprep.subr.mxu0 0.0
    %2304 = vmatpush1.msra.mxu0 0.0
    %2305 = vmatprep.subr.mxu0 0.0
    %2306 = vmatpush1.msra.mxu0 0.0
    %2307 = vmatprep.subr.mxu0 0.0
    %2308 = vmatpush1.msra.mxu0 0.0
    %2309 = vmatprep.subr.mxu0 0.0
    %2310 = vmatpush1.msra.mxu0 0.0
    %2311 = vmatprep.subr.mxu0 0.0
    %2312 = vmatpush1.msra.mxu0 0.0
    %2313 = vmatprep.subr.mxu0 0.0
    %2314 = vmatpush1.msra.mxu0 0.0
    %2315 = vmatprep.subr.mxu0 0.0
    %2316 = vmatpush1.msra.mxu0 0.0
    %2317 = vmatprep.subr.mxu0 0.0
    %2318 = vmatpush1.msra.mxu0 0.0
    %2319 = vmatprep.subr.mxu0 0.0
    %2320 = vmatpush1.msra.mxu0 0.0
    %2321 = vmatprep.subr.mxu0 0.0
    %2322 = vmatpush1.msra.mxu0 0.0
    %2323 = vmatprep.subr.mxu0 0.0
    %2324 = vmatpush1.msra.mxu0 0.0
    %2325 = vmatprep.subr.mxu0 0.0
    %2326 = vmatpush1.msra.mxu0 %v2272
    %2327 = vmatprep.subr.mxu0 0.0
    %2328 = vmatpush1.msra.mxu0 %v2271
    %2329 = vmatprep.subr.mxu0 0.0
    %2330 = vmatpush2.msra.mxu0 0.0
    %2331 = vmatprep.subr.mxu0 0.0
    %2332 = vmatpush2.msra.mxu0 0.0
    %2333 = vmatprep.subr.mxu0 0.0
    %2334 = vmatpush2.msra.mxu0 0.0
    %2335 = vmatprep.subr.mxu0 0.0
    %2336 = vmatpush2.msra.mxu0 0.0
    %2337 = vmatprep.subr.mxu0 0.0
    %2338 = vmatpush2.msra.mxu0 0.0
    %2339 = vmatprep.subr.mxu0 0.0
    %2340 = vmatpush2.msra.mxu0 0.0
    %2341 = vmatprep.subr.mxu0 0.0
    %2342 = vmatpush2.msra.mxu0 0.0
    %2343 = vmatprep.subr.mxu0 0.0
    %2344 = vmatpush2.msra.mxu0 0.0
    %2345 = vmatprep.subr.mxu0 0.0
    %2346 = vmatpush2.msra.mxu0 0.0
    %2347 = vmatprep.subr.mxu0 0.0
    %2348 = vmatpush2.msra.mxu0 0.0
    %2349 = vmatprep.subr.mxu0 0.0
    %2350 = vmatpush2.msra.mxu0 0.0
    %2351 = vmatprep.subr.mxu0 0.0
    %2352 = vmatpush2.msra.mxu0 0.0
    %2353 = vmatprep.subr.mxu0 0.0
    %2354 = vmatpush2.msra.mxu0 0.0
    %2355 = vmatprep.subr.mxu0 0.0
    %2356 = vmatpush2.msra.mxu0 0.0
    %2357 = vmatprep.subr.mxu0 0.0
    %2358 = vmatpush2.msra.mxu0 0.0
    %2359 = vmatprep.subr.mxu0 0.0
    %2360 = vmatpush2.msra.mxu0 0.0
    %2361 = vmatprep.mubr.f32.mxu0 0.0
    %2362 = vmatmul.mubr.f32.gmra.mxu0 %v2274
    %v2363 = vpop.f32.mrf.mxu0
    %v2364 = vadd.f32 0.0, %v2363
    %v2365 = vpop.f32.mrf.mxu0
    %2366 = vmatprep.mubr.f32.mxu0 0.0
    %2367 = vmatmul.mubr.f32.gmra.mxu0 %v2277
    %v2368 = vpop.f32.mrf.mxu0
    %v2369 = vadd.f32 0.0, %v2368
    %v2370 = vpop.f32.mrf.mxu0
    %2371 = vmatprep.mubr.f32.mxu0 0.0
    %2372 = vmatmul.mubr.f32.gmra.mxu0 %v2280
    %v2373 = vpop.f32.mrf.mxu0
    %v2374 = vadd.f32 0.0, %v2373
    %v2375 = vpop.f32.mrf.mxu0
    %2376 = vmatprep.mubr.f32.mxu0 0.0
    %2377 = vmatmul.mubr.f32.gmra.mxu0 %v2283
    %v2378 = vpop.f32.mrf.mxu0
    %v2379 = vadd.f32 0.0, %v2378
    %v2380 = vpop.f32.mrf.mxu0
    %2381 = vmatprep.mubr.f32.mxu0 0.0
    %2382 = vmatmul.mubr.f32.gmra.mxu0 %v2286
    %v2383 = vpop.f32.mrf.mxu0
    %v2384 = vadd.f32 0.0, %v2383
    %v2385 = vpop.f32.mrf.mxu0
    %2386 = vmatprep.mubr.f32.mxu0 0.0
    %2387 = vmatmul.mubr.f32.gmra.mxu0 %v2289
    %v2388 = vpop.f32.mrf.mxu0
    %v2389 = vadd.f32 0.0, %v2388
    %v2390 = vpop.f32.mrf.mxu0
    %2391 = vmatprep.mubr.f32.mxu0 0.0
    %2392 = vmatmul.mubr.f32.gmra.mxu0 %v2292
    %v2393 = vpop.f32.mrf.mxu0
    %v2394 = vadd.f32 0.0, %v2393
    %v2395 = vpop.f32.mrf.mxu0
    %2396 = vmatprep.mubr.f32.mxu0 0.0
    %2397 = vmatmul.mubr.f32.gmra.mxu0 %v2295
    %v2398 = vpop.f32.mrf.mxu0
    %v2399 = vadd.f32 0.0, %v2398
    %v2400 = vpop.f32.mrf.mxu0
    %2401 = vdwg.mxu0
    %v2403 = vsel %vm381, %v2253, 0
    %v2406 = vsel %vm381, %v2254, 0
    %v2409 = vsel %vm381, %v2255, 0
    %v2412 = vsel %vm381, %v2256, 0
    %v2415 = vsel %vm381, %v2257, 0
    %v2418 = vsel %vm381, %v2258, 0
    %v2421 = vsel %vm381, %v2259, 0
    %v2424 = vsel %vm381, %v2260, 0
    %2426 = vmatprep.subr.mxu0 0.0
    %2427 = vmatpush1.msra.mxu0 0.0
    %2428 = vmatprep.subr.mxu0 0.0
    %2429 = vmatpush1.msra.mxu0 0.0
    %2430 = vmatprep.subr.mxu0 0.0
    %2431 = vmatpush1.msra.mxu0 0.0
    %2432 = vmatprep.subr.mxu0 0.0
    %2433 = vmatpush1.msra.mxu0 0.0
    %2434 = vmatprep.subr.mxu0 0.0
    %2435 = vmatpush1.msra.mxu0 0.0
    %2436 = vmatprep.subr.mxu0 0.0
    %2437 = vmatpush1.msra.mxu0 0.0
    %2438 = vmatprep.subr.mxu0 0.0
    %2439 = vmatpush1.msra.mxu0 0.0
    %2440 = vmatprep.subr.mxu0 0.0
    %2441 = vmatpush1.msra.mxu0 0.0
    %2442 = vmatprep.subr.mxu0 0.0
    %2443 = vmatpush1.msra.mxu0 0.0
    %2444 = vmatprep.subr.mxu0 0.0
    %2445 = vmatpush1.msra.mxu0 0.0
    %2446 = vmatprep.subr.mxu0 0.0
    %2447 = vmatpush1.msra.mxu0 0.0
    %2448 = vmatprep.subr.mxu0 0.0
    %2449 = vmatpush1.msra.mxu0 0.0
    %2450 = vmatprep.subr.mxu0 0.0
    %2451 = vmatpush1.msra.mxu0 0.0
    %2452 = vmatprep.subr.mxu0 0.0
    %2453 = vmatpush1.msra.mxu0 0.0
    %2454 = vmatprep.subr.mxu0 0.0
    %2455 = vmatpush1.msra.mxu0 %v2270
    %2456 = vmatprep.subr.mxu0 0.0
    %2457 = vmatpush1.msra.mxu0 %v2269
    %2458 = vmatprep.subr.mxu0 0.0
    %2459 = vmatpush2.msra.mxu0 0.0
    %2460 = vmatprep.subr.mxu0 0.0
    %2461 = vmatpush2.msra.mxu0 0.0
    %2462 = vmatprep.subr.mxu0 0.0
    %2463 = vmatpush2.msra.mxu0 0.0
    %2464 = vmatprep.subr.mxu0 0.0
    %2465 = vmatpush2.msra.mxu0 0.0
    %2466 = vmatprep.subr.mxu0 0.0
    %2467 = vmatpush2.msra.mxu0 0.0
    %2468 = vmatprep.subr.mxu0 0.0
    %2469 = vmatpush2.msra.mxu0 0.0
    %2470 = vmatprep.subr.mxu0 0.0
    %2471 = vmatpush2.msra.mxu0 0.0
    %2472 = vmatprep.subr.mxu0 0.0
    %2473 = vmatpush2.msra.mxu0 0.0
    %2474 = vmatprep.subr.mxu0 0.0
    %2475 = vmatpush2.msra.mxu0 0.0
    %2476 = vmatprep.subr.mxu0 0.0
    %2477 = vmatpush2.msra.mxu0 0.0
    %2478 = vmatprep.subr.mxu0 0.0
    %2479 = vmatpush2.msra.mxu0 0.0
    %2480 = vmatprep.subr.mxu0 0.0
    %2481 = vmatpush2.msra.mxu0 0.0
    %2482 = vmatprep.subr.mxu0 0.0
    %2483 = vmatpush2.msra.mxu0 0.0
    %2484 = vmatprep.subr.mxu0 0.0
    %2485 = vmatpush2.msra.mxu0 0.0
    %2486 = vmatprep.subr.mxu0 0.0
    %2487 = vmatpush2.msra.mxu0 0.0
    %2488 = vmatprep.subr.mxu0 0.0
    %2489 = vmatpush2.msra.mxu0 0.0
    %2490 = vmatprep.mubr.f32.mxu0 0.0
    %2491 = vmatmul.mubr.f32.gmra.mxu0 %v2403
    %v2492 = vpop.f32.mrf.mxu0
    %v2493 = vadd.f32 %v2364, %v2492
    %v2494 = vpop.f32.mrf.mxu0
    %2495 = vmatprep.mubr.f32.mxu0 0.0
    %2496 = vmatmul.mubr.f32.gmra.mxu0 %v2406
    %v2497 = vpop.f32.mrf.mxu0
    %v2498 = vadd.f32 %v2369, %v2497
    %v2499 = vpop.f32.mrf.mxu0
    %2500 = vmatprep.mubr.f32.mxu0 0.0
    %2501 = vmatmul.mubr.f32.gmra.mxu0 %v2409
    %v2502 = vpop.f32.mrf.mxu0
    %v2503 = vadd.f32 %v2374, %v2502
    %v2504 = vpop.f32.mrf.mxu0
    %2505 = vmatprep.mubr.f32.mxu0 0.0
    %2506 = vmatmul.mubr.f32.gmra.mxu0 %v2412
    %v2507 = vpop.f32.mrf.mxu0
    %v2508 = vadd.f32 %v2379, %v2507
    %v2509 = vpop.f32.mrf.mxu0
    %2510 = vmatprep.mubr.f32.mxu0 0.0
    %2511 = vmatmul.mubr.f32.gmra.mxu0 %v2415
    %v2512 = vpop.f32.mrf.mxu0
    %v2513 = vadd.f32 %v2384, %v2512
    %v2514 = vpop.f32.mrf.mxu0
    %2515 = vmatprep.mubr.f32.mxu0 0.0
    %2516 = vmatmul.mubr.f32.gmra.mxu0 %v2418
    %v2517 = vpop.f32.mrf.mxu0
    %v2518 = vadd.f32 %v2389, %v2517
    %v2519 = vpop.f32.mrf.mxu0
    %2520 = vmatprep.mubr.f32.mxu0 0.0
    %2521 = vmatmul.mubr.f32.gmra.mxu0 %v2421
    %v2522 = vpop.f32.mrf.mxu0
    %v2523 = vadd.f32 %v2394, %v2522
    %v2524 = vpop.f32.mrf.mxu0
    %2525 = vmatprep.mubr.f32.mxu0 0.0
    %2526 = vmatmul.mubr.f32.gmra.mxu0 %v2424
    %v2527 = vpop.f32.mrf.mxu0
    %v2528 = vadd.f32 %v2399, %v2527
    %v2529 = vpop.f32.mrf.mxu0
    %2530 = vdwg.mxu0
    %v2531 = vld [vmem:[%s10] sm:$0x1]
    %v2533 = vlaneseq
    %v2534 = vshrl.u32 %v2533, 7
    %v2535 = vsub.s32 0, %v2534
    %v2536 = vrot.slane %v2531, %v2535
    %v2538 = vadd.f32 %v2493, %v2536
    %v2539 = vadd.f32 %v2498, %v2536
    %v2540 = vadd.f32 %v2503, %v2536
    %v2541 = vadd.f32 %v2508, %v2536
    %v2542 = vadd.f32 %v2513, %v2536
    %v2543 = vadd.f32 %v2518, %v2536
    %v2544 = vadd.f32 %v2523, %v2536
    %v2545 = vadd.f32 %v2528, %v2536
    %vm2546 = vcmask 64512
    %2547 = vst.msk [vmem:[#allocation6] sm:$0xff] %vm2546, %v2538
    %2548 = vst.msk [vmem:[#allocation6 + $0x8] sm:$0xff] %vm2546, %v2539
    %2549 = vst.msk [vmem:[#allocation6 + $0x10] sm:$0xff] %vm2546, %v2540
    %2550 = vst.msk [vmem:[#allocation6 + $0x18] sm:$0xff] %vm2546, %v2541
    %2551 = vst.msk [vmem:[#allocation6 + $0x20] sm:$0xff] %vm2546, %v2542
    %2552 = vst.msk [vmem:[#allocation6 + $0x28] sm:$0xff] %vm2546, %v2543
    %2553 = vst.msk [vmem:[#allocation6 + $0x30] sm:$0xff] %vm2546, %v2544
    %2554 = vst.msk [vmem:[#allocation6 + $0x38] sm:$0xff] %vm2546, %v2545
    %v2555 = vld [vmem:[#allocation13] sm:$0xff]
    %v2556 = vlaneseq
    %v2557 = vand.u32 %v2556, 127
    %2558 = vst.msk [vmem:[#allocation7] sm:$0xff] %vm2546, 0
    %v2559 = vld [vmem:[%s12] sm:$0x1]
    %v2560 = vld [vmem:[#allocation6] sm:$0xff]
    %v2562 = vlaneseq
    %v2563 = vshrl.u32 %v2562, 7
    %v2564 = vsub.s32 0, %v2563
    %v2565 = vrot.slane %v2559, %v2564
    %v2567 = vadd.f32 %v2565, %v2560
    %v2569 = vcombine.high %v2567, %v2567
    %v2571 = vunpack.c.l.s4 1966171168
    %v2572 = vunpack.c.0.s8 %v2571
    %v2573 = vlaneseq
    %v2574 = vshrl.u32 %v2573, 7
    %v2575 = vsub.s32 %v2572, %v2574
    %v2576 = vrot.slane %v2567, %v2575
    %v2578 = vunpack.c.l.s4 1966171168
    %v2579 = vunpack.c.0.s8 %v2578
    %v2580 = vlaneseq
    %v2581 = vshrl.u32 %v2580, 7
    %v2582 = vsub.s32 %v2579, %v2581
    %v2583 = vrot.slane %v2569, %v2582
    %v2584 = vcombine.high %v2576, %v2576
    %v2585 = vcombine.high %v2583, %v2583
    %v2587 = vunpack.c.l.s4 1966171168
    %v2588 = vunpack.c.0.s8 %v2587
    %v2589 = vlaneseq
    %v2590 = vshrl.u32 %v2589, 7
    %v2591 = vsub.s32 %v2588, %v2590
    %v2592 = vrot.slane %v2576, %v2591
    %v2594 = vunpack.c.l.s4 1966171168
    %v2595 = vunpack.c.0.s8 %v2594
    %v2596 = vlaneseq
    %v2597 = vshrl.u32 %v2596, 7
    %v2598 = vsub.s32 %v2595, %v2597
    %v2599 = vrot.slane %v2583, %v2598
    %v2601 = vunpack.c.l.s4 1966171168
    %v2602 = vunpack.c.0.s8 %v2601
    %v2603 = vlaneseq
    %v2604 = vshrl.u32 %v2603, 7
    %v2605 = vsub.s32 %v2602, %v2604
    %v2606 = vrot.slane %v2584, %v2605
    %v2608 = vunpack.c.l.s4 1966171168
    %v2609 = vunpack.c.0.s8 %v2608
    %v2610 = vlaneseq
    %v2611 = vshrl.u32 %v2610, 7
    %v2612 = vsub.s32 %v2609, %v2611
    %v2613 = vrot.slane %v2585, %v2612
    %v2614 = vcombine.high %v2592, %v2592
    %v2615 = vcombine.high %v2599, %v2599
    %v2616 = vcombine.high %v2606, %v2606
    %v2617 = vcombine.high %v2613, %v2613
    %v2618 = vlaneseq
    %v2619 = vshrl.u32 %v2618, 7
    %v2620 = vsub.s32 0, %v2619
    %v2621 = vrot.slane %v2592, %v2620
    %v2622 = vlaneseq
    %v2623 = vshrl.u32 %v2622, 7
    %v2624 = vsub.s32 0, %v2623
    %v2625 = vrot.slane %v2606, %v2624
    %v2626 = vlaneseq
    %v2627 = vshrl.u32 %v2626, 7
    %v2628 = vsub.s32 0, %v2627
    %v2629 = vrot.slane %v2614, %v2628
    %v2630 = vlaneseq
    %v2631 = vshrl.u32 %v2630, 7
    %v2632 = vsub.s32 0, %v2631
    %v2633 = vrot.slane %v2616, %v2632
    %v2634 = vlaneseq
    %v2635 = vshrl.u32 %v2634, 7
    %v2636 = vsub.s32 0, %v2635
    %v2637 = vrot.slane %v2599, %v2636
    %v2638 = vlaneseq
    %v2639 = vshrl.u32 %v2638, 7
    %v2640 = vsub.s32 0, %v2639
    %v2641 = vrot.slane %v2613, %v2640
    %v2642 = vlaneseq
    %v2643 = vshrl.u32 %v2642, 7
    %v2644 = vsub.s32 0, %v2643
    %v2645 = vrot.slane %v2615, %v2644
    %v2646 = vlaneseq
    %v2647 = vshrl.u32 %v2646, 7
    %v2648 = vsub.s32 0, %v2647
    %v2649 = vrot.slane %v2617, %v2648
    %v2658 = vadd.f32 %v2621, %v2555
    %v2659 = vadd.f32 %v2625, %v2555
    %v2660 = vadd.f32 %v2629, %v2555
    %v2661 = vadd.f32 %v2633, %v2555
    %v2662 = vadd.f32 %v2637, %v2555
    %v2663 = vadd.f32 %v2641, %v2555
    %v2664 = vadd.f32 %v2645, %v2555
    %v2665 = vadd.f32 %v2649, %v2555
    %v2666 = vsel %vm2546, %v2658, -inf
    %2667 = vmax.xlane.f32.xlu0 %v2666
    %v2668 = vpop.xlane.xlu0 %2667
    %v2669 = vsel %vm2546, %v2659, -inf
    %2670 = vmax.xlane.f32.xlu0 %v2669
    %v2671 = vpop.xlane.xlu0 %2670
    %v2672 = vsel %vm2546, %v2660, -inf
    %2673 = vmax.xlane.f32.xlu0 %v2672
    %v2674 = vpop.xlane.xlu0 %2673
    %v2675 = vsel %vm2546, %v2661, -inf
    %2676 = vmax.xlane.f32.xlu0 %v2675
    %v2677 = vpop.xlane.xlu0 %2676
    %v2678 = vsel %vm2546, %v2662, -inf
    %2679 = vmax.xlane.f32.xlu0 %v2678
    %v2680 = vpop.xlane.xlu0 %2679
    %v2681 = vsel %vm2546, %v2663, -inf
    %2682 = vmax.xlane.f32.xlu0 %v2681
    %v2683 = vpop.xlane.xlu0 %2682
    %v2684 = vsel %vm2546, %v2664, -inf
    %2685 = vmax.xlane.f32.xlu0 %v2684
    %v2686 = vpop.xlane.xlu0 %2685
    %v2687 = vsel %vm2546, %v2665, -inf
    %2688 = vmax.xlane.f32.xlu0 %v2687
    %v2689 = vpop.xlane.xlu0 %2688
    %vm2690 = vcmp.ge.f32.partialorder %v2658, %v2668
    %vm2691 = vcmp.ge.f32.partialorder %v2659, %v2671
    %vm2692 = vcmp.ge.f32.partialorder %v2660, %v2674
    %vm2693 = vcmp.ge.f32.partialorder %v2661, %v2677
    %vm2694 = vcmp.ge.f32.partialorder %v2662, %v2680
    %vm2695 = vcmp.ge.f32.partialorder %v2663, %v2683
    %vm2696 = vcmp.ge.f32.partialorder %v2664, %v2686
    %vm2697 = vcmp.ge.f32.partialorder %v2665, %v2689
    %v2698 = vsel %vm2690, %v2557, 8
    %v2699 = vsel %vm2691, %v2557, 8
    %v2700 = vsel %vm2692, %v2557, 8
    %v2701 = vsel %vm2693, %v2557, 8
    %v2702 = vsel %vm2694, %v2557, 8
    %v2703 = vsel %vm2695, %v2557, 8
    %v2704 = vsel %vm2696, %v2557, 8
    %v2705 = vsel %vm2697, %v2557, 8
    %v2706 = vsel %vm2546, %v2698, 2147483647
    %v2707 = vand.u32 %v2706, 65535
    %v2708 = vshra.s32 %v2706, 16
    %v2709 = vcvt.s32.f32 %v2707
    %v2710 = vcvt.s32.f32 %v2708
    %2711 = vmin.xlane.f32.xlu0 %v2710
    %v2712 = vpop.xlane.xlu0 %2711
    %vm2713 = vcmp.eq.f32.partialorder %v2710, %v2712
    %v2714 = vsel %vm2713, %v2709, inf
    %2715 = vmin.xlane.f32.xlu0 %v2714
    %v2716 = vpop.xlane.xlu0 %2715
    %v2717 = vcvt.f32.s32 %v2716
    %v2718 = vcvt.f32.s32 %v2712
    %v2719 = vshll.u32 %v2718, 16
    %v2720 = vadd.s32 %v2719, %v2717
    %v2721 = vsel %vm2546, %v2699, 2147483647
    %v2722 = vand.u32 %v2721, 65535
    %v2723 = vshra.s32 %v2721, 16
    %v2724 = vcvt.s32.f32 %v2722
    %v2725 = vcvt.s32.f32 %v2723
    %2726 = vmin.xlane.f32.xlu0 %v2725
    %v2727 = vpop.xlane.xlu0 %2726
    %vm2728 = vcmp.eq.f32.partialorder %v2725, %v2727
    %v2729 = vsel %vm2728, %v2724, inf
    %2730 = vmin.xlane.f32.xlu0 %v2729
    %v2731 = vpop.xlane.xlu0 %2730
    %v2732 = vcvt.f32.s32 %v2731
    %v2733 = vcvt.f32.s32 %v2727
    %v2734 = vshll.u32 %v2733, 16
    %v2735 = vadd.s32 %v2734, %v2732
    %v2736 = vsel %vm2546, %v2700, 2147483647
    %v2737 = vand.u32 %v2736, 65535
    %v2738 = vshra.s32 %v2736, 16
    %v2739 = vcvt.s32.f32 %v2737
    %v2740 = vcvt.s32.f32 %v2738
    %2741 = vmin.xlane.f32.xlu0 %v2740
    %v2742 = vpop.xlane.xlu0 %2741
    %vm2743 = vcmp.eq.f32.partialorder %v2740, %v2742
    %v2744 = vsel %vm2743, %v2739, inf
    %2745 = vmin.xlane.f32.xlu0 %v2744
    %v2746 = vpop.xlane.xlu0 %2745
    %v2747 = vcvt.f32.s32 %v2746
    %v2748 = vcvt.f32.s32 %v2742
    %v2749 = vshll.u32 %v2748, 16
    %v2750 = vadd.s32 %v2749, %v2747
    %v2751 = vsel %vm2546, %v2701, 2147483647
    %v2752 = vand.u32 %v2751, 65535
    %v2753 = vshra.s32 %v2751, 16
    %v2754 = vcvt.s32.f32 %v2752
    %v2755 = vcvt.s32.f32 %v2753
    %2756 = vmin.xlane.f32.xlu0 %v2755
    %v2757 = vpop.xlane.xlu0 %2756
    %vm2758 = vcmp.eq.f32.partialorder %v2755, %v2757
    %v2759 = vsel %vm2758, %v2754, inf
    %2760 = vmin.xlane.f32.xlu0 %v2759
    %v2761 = vpop.xlane.xlu0 %2760
    %v2762 = vcvt.f32.s32 %v2761
    %v2763 = vcvt.f32.s32 %v2757
    %v2764 = vshll.u32 %v2763, 16
    %v2765 = vadd.s32 %v2764, %v2762
    %v2766 = vsel %vm2546, %v2702, 2147483647
    %v2767 = vand.u32 %v2766, 65535
    %v2768 = vshra.s32 %v2766, 16
    %v2769 = vcvt.s32.f32 %v2767
    %v2770 = vcvt.s32.f32 %v2768
    %2771 = vmin.xlane.f32.xlu0 %v2770
    %v2772 = vpop.xlane.xlu0 %2771
    %vm2773 = vcmp.eq.f32.partialorder %v2770, %v2772
    %v2774 = vsel %vm2773, %v2769, inf
    %2775 = vmin.xlane.f32.xlu0 %v2774
    %v2776 = vpop.xlane.xlu0 %2775
    %v2777 = vcvt.f32.s32 %v2776
    %v2778 = vcvt.f32.s32 %v2772
    %v2779 = vshll.u32 %v2778, 16
    %v2780 = vadd.s32 %v2779, %v2777
    %v2781 = vsel %vm2546, %v2703, 2147483647
    %v2782 = vand.u32 %v2781, 65535
    %v2783 = vshra.s32 %v2781, 16
    %v2784 = vcvt.s32.f32 %v2782
    %v2785 = vcvt.s32.f32 %v2783
    %2786 = vmin.xlane.f32.xlu0 %v2785
    %v2787 = vpop.xlane.xlu0 %2786
    %vm2788 = vcmp.eq.f32.partialorder %v2785, %v2787
    %v2789 = vsel %vm2788, %v2784, inf
    %2790 = vmin.xlane.f32.xlu0 %v2789
    %v2791 = vpop.xlane.xlu0 %2790
    %v2792 = vcvt.f32.s32 %v2791
    %v2793 = vcvt.f32.s32 %v2787
    %v2794 = vshll.u32 %v2793, 16
    %v2795 = vadd.s32 %v2794, %v2792
    %v2796 = vsel %vm2546, %v2704, 2147483647
    %v2797 = vand.u32 %v2796, 65535
    %v2798 = vshra.s32 %v2796, 16
    %v2799 = vcvt.s32.f32 %v2797
    %v2800 = vcvt.s32.f32 %v2798
    %2801 = vmin.xlane.f32.xlu0 %v2800
    %v2802 = vpop.xlane.xlu0 %2801
    %vm2803 = vcmp.eq.f32.partialorder %v2800, %v2802
    %v2804 = vsel %vm2803, %v2799, inf
    %2805 = vmin.xlane.f32.xlu0 %v2804
    %v2806 = vpop.xlane.xlu0 %2805
    %v2807 = vcvt.f32.s32 %v2806
    %v2808 = vcvt.f32.s32 %v2802
    %v2809 = vshll.u32 %v2808, 16
    %v2810 = vadd.s32 %v2809, %v2807
    %v2811 = vsel %vm2546, %v2705, 2147483647
    %v2812 = vand.u32 %v2811, 65535
    %v2813 = vshra.s32 %v2811, 16
    %v2814 = vcvt.s32.f32 %v2812
    %v2815 = vcvt.s32.f32 %v2813
    %2816 = vmin.xlane.f32.xlu0 %v2815
    %v2817 = vpop.xlane.xlu0 %2816
    %vm2818 = vcmp.eq.f32.partialorder %v2815, %v2817
    %v2819 = vsel %vm2818, %v2814, inf
    %2820 = vmin.xlane.f32.xlu0 %v2819
    %v2821 = vpop.xlane.xlu0 %2820
    %v2822 = vcvt.f32.s32 %v2821
    %v2823 = vcvt.f32.s32 %v2817
    %v2824 = vshll.u32 %v2823, 16
    %v2825 = vadd.s32 %v2824, %v2822
    %s2826 = scalar_lea.vmem [#allocation6], 8
    %v2827 = vld [vmem:[%s2826] sm:$0xff]
    %v2829 = vlaneseq
    %v2830 = vshrl.u32 %v2829, 7
    %v2831 = vsub.s32 0, %v2830
    %v2832 = vrot.slane %v2827, %v2831
    %2834 = vbcast.lane.b32.xlu0 %v2832, 256
    %v2835 = vpop.permute.xlu0 %2834
    %v2836 = vlaneseq
    %v2837 = vshrl.u32 %v2836, 7
    %v2838 = vsub.s32 1, %v2837
    %v2839 = vrot.slane %v2827, %v2838
    %2841 = vbcast.lane.b32.xlu0 %v2839, 256
    %v2842 = vpop.permute.xlu0 %2841
    %v2843 = vlaneseq
    %v2844 = vshrl.u32 %v2843, 7
    %v2845 = vsub.s32 2, %v2844
    %v2846 = vrot.slane %v2827, %v2845
    %2848 = vbcast.lane.b32.xlu0 %v2846, 256
    %v2849 = vpop.permute.xlu0 %2848
    %v2850 = vlaneseq
    %v2851 = vshrl.u32 %v2850, 7
    %v2852 = vsub.s32 3, %v2851
    %v2853 = vrot.slane %v2827, %v2852
    %2855 = vbcast.lane.b32.xlu0 %v2853, 256
    %v2856 = vpop.permute.xlu0 %2855
    %v2857 = vlaneseq
    %v2858 = vshrl.u32 %v2857, 7
    %v2859 = vsub.s32 4, %v2858
    %v2860 = vrot.slane %v2827, %v2859
    %2862 = vbcast.lane.b32.xlu0 %v2860, 256
    %v2863 = vpop.permute.xlu0 %2862
    %v2864 = vlaneseq
    %v2865 = vshrl.u32 %v2864, 7
    %v2866 = vsub.s32 5, %v2865
    %v2867 = vrot.slane %v2827, %v2866
    %2869 = vbcast.lane.b32.xlu0 %v2867, 256
    %v2870 = vpop.permute.xlu0 %2869
    %v2871 = vlaneseq
    %v2872 = vshrl.u32 %v2871, 7
    %v2873 = vsub.s32 6, %v2872
    %v2874 = vrot.slane %v2827, %v2873
    %2876 = vbcast.lane.b32.xlu0 %v2874, 256
    %v2877 = vpop.permute.xlu0 %2876
    %v2878 = vlaneseq
    %v2879 = vshrl.u32 %v2878, 7
    %v2880 = vsub.s32 7, %v2879
    %v2881 = vrot.slane %v2827, %v2880
    %2883 = vbcast.lane.b32.xlu0 %v2881, 256
    %v2884 = vpop.permute.xlu0 %2883
    %v2893 = vadd.f32 %v2668, %v2835
    %v2894 = vadd.f32 %v2671, %v2842
    %v2895 = vadd.f32 %v2674, %v2849
    %v2896 = vadd.f32 %v2677, %v2856
    %v2897 = vadd.f32 %v2680, %v2863
    %v2898 = vadd.f32 %v2683, %v2870
    %v2899 = vadd.f32 %v2686, %v2877
    %v2900 = vadd.f32 %v2689, %v2884
    %v2901 = vld [vmem:[%s805] sm:$0xff]
    %vm2902 = vcmp.gt.f32.partialorder %v2901, 0.0
    %v2903 = vsel %vm2902, 1, 0
    %2904 = vset.pattern.permute.xlu0 0
    %2905 = vperm.xlu0 %2904, %v2903
    %v2906 = vpop.permute.xlu0 %2905
    %vm2907 = vcmp.eq.s32.totalorder %v2906, 1
    %v2908 = vlaneseq
    %v2909 = vshrl.u32 %v2908, 7
    %v2910 = vsub.s32 %v2557, %v2909
    %v2911 = vrot.slane %v2720, %v2910
    %v2912 = vlaneseq
    %v2913 = vshrl.u32 %v2912, 7
    %v2914 = vsub.s32 %v2557, %v2913
    %v2915 = vrot.slane %v2735, %v2914
    %v2916 = vlaneseq
    %v2917 = vshrl.u32 %v2916, 7
    %v2918 = vsub.s32 %v2557, %v2917
    %v2919 = vrot.slane %v2750, %v2918
    %v2920 = vlaneseq
    %v2921 = vshrl.u32 %v2920, 7
    %v2922 = vsub.s32 %v2557, %v2921
    %v2923 = vrot.slane %v2765, %v2922
    %v2924 = vlaneseq
    %v2925 = vshrl.u32 %v2924, 7
    %v2926 = vsub.s32 %v2557, %v2925
    %v2927 = vrot.slane %v2780, %v2926
    %v2928 = vlaneseq
    %v2929 = vshrl.u32 %v2928, 7
    %v2930 = vsub.s32 %v2557, %v2929
    %v2931 = vrot.slane %v2795, %v2930
    %v2932 = vlaneseq
    %v2933 = vshrl.u32 %v2932, 7
    %v2934 = vsub.s32 %v2557, %v2933
    %v2935 = vrot.slane %v2810, %v2934
    %v2936 = vlaneseq
    %v2937 = vshrl.u32 %v2936, 7
    %v2938 = vsub.s32 %v2557, %v2937
    %v2939 = vrot.slane %v2825, %v2938
    %vm2940 = vcmask 1041409
    %v2941 = vsel %vm2940, %v2915, %v2911
    %vm2942 = vcmask 1042434
    %v2943 = vsel %vm2942, %v2919, %v2941
    %vm2944 = vcmask 1043459
    %v2945 = vsel %vm2944, %v2923, %v2943
    %vm2946 = vcmask 1044484
    %v2947 = vsel %vm2946, %v2927, %v2945
    %vm2948 = vcmask 1045509
    %v2949 = vsel %vm2948, %v2931, %v2947
    %vm2950 = vcmask 1046534
    %v2951 = vsel %vm2950, %v2935, %v2949
    %vm2952 = vcmask 1047559
    %v2953 = vsel %vm2952, %v2939, %v2951
    %v2954 = vsel %vm2907, %v2953, %v2557
    %s2955 = scalar_lea.vmem [#allocation7], 8
    %2956 = vst.msk [vmem:[%s2955] sm:$0xff] %vm2546, %v2954
    %2965 = vset.pattern.permute.xlu0 0
    %2966 = vperm.xlu0 %2965, %v2893
    %v2967 = vpop.permute.xlu0 %2966
    %2968 = vset.pattern.permute.xlu0 0
    %2969 = vperm.xlu0 %2968, %v2894
    %v2970 = vpop.permute.xlu0 %2969
    %2971 = vset.pattern.permute.xlu0 0
    %2972 = vperm.xlu0 %2971, %v2895
    %v2973 = vpop.permute.xlu0 %2972
    %2974 = vset.pattern.permute.xlu0 0
    %2975 = vperm.xlu0 %2974, %v2896
    %v2976 = vpop.permute.xlu0 %2975
    %2977 = vset.pattern.permute.xlu0 0
    %2978 = vperm.xlu0 %2977, %v2897
    %v2979 = vpop.permute.xlu0 %2978
    %2980 = vset.pattern.permute.xlu0 0
    %2981 = vperm.xlu0 %2980, %v2898
    %v2982 = vpop.permute.xlu0 %2981
    %2983 = vset.pattern.permute.xlu0 0
    %2984 = vperm.xlu0 %2983, %v2899
    %v2985 = vpop.permute.xlu0 %2984
    %2986 = vset.pattern.permute.xlu0 0
    %2987 = vperm.xlu0 %2986, %v2900
    %v2988 = vpop.permute.xlu0 %2987
    %v2989 = vlaneseq
    %v2990 = vshrl.u32 %v2989, 7
    %v2991 = vsub.s32 %v2557, %v2990
    %v2992 = vrot.slane %v2967, %v2991
    %v2993 = vlaneseq
    %v2994 = vshrl.u32 %v2993, 7
    %v2995 = vsub.s32 %v2557, %v2994
    %v2996 = vrot.slane %v2970, %v2995
    %v2997 = vlaneseq
    %v2998 = vshrl.u32 %v2997, 7
    %v2999 = vsub.s32 %v2557, %v2998
    %v3000 = vrot.slane %v2973, %v2999
    %v3001 = vlaneseq
    %v3002 = vshrl.u32 %v3001, 7
    %v3003 = vsub.s32 %v2557, %v3002
    %v3004 = vrot.slane %v2976, %v3003
    %v3005 = vlaneseq
    %v3006 = vshrl.u32 %v3005, 7
    %v3007 = vsub.s32 %v2557, %v3006
    %v3008 = vrot.slane %v2979, %v3007
    %v3009 = vlaneseq
    %v3010 = vshrl.u32 %v3009, 7
    %v3011 = vsub.s32 %v2557, %v3010
    %v3012 = vrot.slane %v2982, %v3011
    %v3013 = vlaneseq
    %v3014 = vshrl.u32 %v3013, 7
    %v3015 = vsub.s32 %v2557, %v3014
    %v3016 = vrot.slane %v2985, %v3015
    %v3017 = vlaneseq
    %v3018 = vshrl.u32 %v3017, 7
    %v3019 = vsub.s32 %v2557, %v3018
    %v3020 = vrot.slane %v2988, %v3019
    %v3021 = vsel %vm2940, %v2996, %v2992
    %v3022 = vsel %vm2942, %v3000, %v3021
    %v3023 = vsel %vm2944, %v3004, %v3022
    %v3024 = vsel %vm2946, %v3008, %v3023
    %v3025 = vsel %vm2948, %v3012, %v3024
    %v3026 = vsel %vm2950, %v3016, %v3025
    %v3027 = vsel %vm2952, %v3020, %v3026
    %v3029 = vsel %vm2907, %v3027, %v2567
    %v3031 = vcombine.high %v3029, %v3029
    %v3033 = vunpack.c.l.s4 1966171168
    %v3034 = vunpack.c.0.s8 %v3033
    %v3035 = vlaneseq
    %v3036 = vshrl.u32 %v3035, 7
    %v3037 = vsub.s32 %v3034, %v3036
    %v3038 = vrot.slane %v3029, %v3037
    %v3040 = vunpack.c.l.s4 1966171168
    %v3041 = vunpack.c.0.s8 %v3040
    %v3042 = vlaneseq
    %v3043 = vshrl.u32 %v3042, 7
    %v3044 = vsub.s32 %v3041, %v3043
    %v3045 = vrot.slane %v3031, %v3044
    %v3046 = vcombine.high %v3038, %v3038
    %v3047 = vcombine.high %v3045, %v3045
    %v3049 = vunpack.c.l.s4 1966171168
    %v3050 = vunpack.c.0.s8 %v3049
    %v3051 = vlaneseq
    %v3052 = vshrl.u32 %v3051, 7
    %v3053 = vsub.s32 %v3050, %v3052
    %v3054 = vrot.slane %v3038, %v3053
    %v3056 = vunpack.c.l.s4 1966171168
    %v3057 = vunpack.c.0.s8 %v3056
    %v3058 = vlaneseq
    %v3059 = vshrl.u32 %v3058, 7
    %v3060 = vsub.s32 %v3057, %v3059
    %v3061 = vrot.slane %v3045, %v3060
    %v3063 = vunpack.c.l.s4 1966171168
    %v3064 = vunpack.c.0.s8 %v3063
    %v3065 = vlaneseq
    %v3066 = vshrl.u32 %v3065, 7
    %v3067 = vsub.s32 %v3064, %v3066
    %v3068 = vrot.slane %v3046, %v3067
    %v3070 = vunpack.c.l.s4 1966171168
    %v3071 = vunpack.c.0.s8 %v3070
    %v3072 = vlaneseq
    %v3073 = vshrl.u32 %v3072, 7
    %v3074 = vsub.s32 %v3071, %v3073
    %v3075 = vrot.slane %v3047, %v3074
    %v3076 = vcombine.high %v3054, %v3054
    %v3077 = vcombine.high %v3061, %v3061
    %v3078 = vcombine.high %v3068, %v3068
    %v3079 = vcombine.high %v3075, %v3075
    %v3080 = vlaneseq
    %v3081 = vshrl.u32 %v3080, 7
    %v3082 = vsub.s32 0, %v3081
    %v3083 = vrot.slane %v3054, %v3082
    %v3084 = vlaneseq
    %v3085 = vshrl.u32 %v3084, 7
    %v3086 = vsub.s32 0, %v3085
    %v3087 = vrot.slane %v3068, %v3086
    %v3088 = vlaneseq
    %v3089 = vshrl.u32 %v3088, 7
    %v3090 = vsub.s32 0, %v3089
    %v3091 = vrot.slane %v3076, %v3090
    %v3092 = vlaneseq
    %v3093 = vshrl.u32 %v3092, 7
    %v3094 = vsub.s32 0, %v3093
    %v3095 = vrot.slane %v3078, %v3094
    %v3096 = vlaneseq
    %v3097 = vshrl.u32 %v3096, 7
    %v3098 = vsub.s32 0, %v3097
    %v3099 = vrot.slane %v3061, %v3098
    %v3100 = vlaneseq
    %v3101 = vshrl.u32 %v3100, 7
    %v3102 = vsub.s32 0, %v3101
    %v3103 = vrot.slane %v3075, %v3102
    %v3104 = vlaneseq
    %v3105 = vshrl.u32 %v3104, 7
    %v3106 = vsub.s32 0, %v3105
    %v3107 = vrot.slane %v3077, %v3106
    %v3108 = vlaneseq
    %v3109 = vshrl.u32 %v3108, 7
    %v3110 = vsub.s32 0, %v3109
    %v3111 = vrot.slane %v3079, %v3110
    %v3120 = vadd.f32 %v3083, %v2555
    %v3121 = vadd.f32 %v3087, %v2555
    %v3122 = vadd.f32 %v3091, %v2555
    %v3123 = vadd.f32 %v3095, %v2555
    %v3124 = vadd.f32 %v3099, %v2555
    %v3125 = vadd.f32 %v3103, %v2555
    %v3126 = vadd.f32 %v3107, %v2555
    %v3127 = vadd.f32 %v3111, %v2555
    %v3128 = vsel %vm2546, %v3120, -inf
    %3129 = vmax.xlane.f32.xlu0 %v3128
    %v3130 = vpop.xlane.xlu0 %3129
    %v3131 = vsel %vm2546, %v3121, -inf
    %3132 = vmax.xlane.f32.xlu0 %v3131
    %v3133 = vpop.xlane.xlu0 %3132
    %v3134 = vsel %vm2546, %v3122, -inf
    %3135 = vmax.xlane.f32.xlu0 %v3134
    %v3136 = vpop.xlane.xlu0 %3135
    %v3137 = vsel %vm2546, %v3123, -inf
    %3138 = vmax.xlane.f32.xlu0 %v3137
    %v3139 = vpop.xlane.xlu0 %3138
    %v3140 = vsel %vm2546, %v3124, -inf
    %3141 = vmax.xlane.f32.xlu0 %v3140
    %v3142 = vpop.xlane.xlu0 %3141
    %v3143 = vsel %vm2546, %v3125, -inf
    %3144 = vmax.xlane.f32.xlu0 %v3143
    %v3145 = vpop.xlane.xlu0 %3144
    %v3146 = vsel %vm2546, %v3126, -inf
    %3147 = vmax.xlane.f32.xlu0 %v3146
    %v3148 = vpop.xlane.xlu0 %3147
    %v3149 = vsel %vm2546, %v3127, -inf
    %3150 = vmax.xlane.f32.xlu0 %v3149
    %v3151 = vpop.xlane.xlu0 %3150
    %vm3152 = vcmp.ge.f32.partialorder %v3120, %v3130
    %vm3153 = vcmp.ge.f32.partialorder %v3121, %v3133
    %vm3154 = vcmp.ge.f32.partialorder %v3122, %v3136
    %vm3155 = vcmp.ge.f32.partialorder %v3123, %v3139
    %vm3156 = vcmp.ge.f32.partialorder %v3124, %v3142
    %vm3157 = vcmp.ge.f32.partialorder %v3125, %v3145
    %vm3158 = vcmp.ge.f32.partialorder %v3126, %v3148
    %vm3159 = vcmp.ge.f32.partialorder %v3127, %v3151
    %v3160 = vsel %vm3152, %v2557, 8
    %v3161 = vsel %vm3153, %v2557, 8
    %v3162 = vsel %vm3154, %v2557, 8
    %v3163 = vsel %vm3155, %v2557, 8
    %v3164 = vsel %vm3156, %v2557, 8
    %v3165 = vsel %vm3157, %v2557, 8
    %v3166 = vsel %vm3158, %v2557, 8
    %v3167 = vsel %vm3159, %v2557, 8
    %v3168 = vsel %vm2546, %v3160, 2147483647
    %v3169 = vand.u32 %v3168, 65535
    %v3170 = vshra.s32 %v3168, 16
    %v3171 = vcvt.s32.f32 %v3169
    %v3172 = vcvt.s32.f32 %v3170
    %3173 = vmin.xlane.f32.xlu0 %v3172
    %v3174 = vpop.xlane.xlu0 %3173
    %vm3175 = vcmp.eq.f32.partialorder %v3172, %v3174
    %v3176 = vsel %vm3175, %v3171, inf
    %3177 = vmin.xlane.f32.xlu0 %v3176
    %v3178 = vpop.xlane.xlu0 %3177
    %v3179 = vcvt.f32.s32 %v3178
    %v3180 = vcvt.f32.s32 %v3174
    %v3181 = vshll.u32 %v3180, 16
    %v3182 = vadd.s32 %v3181, %v3179
    %v3183 = vsel %vm2546, %v3161, 2147483647
    %v3184 = vand.u32 %v3183, 65535
    %v3185 = vshra.s32 %v3183, 16
    %v3186 = vcvt.s32.f32 %v3184
    %v3187 = vcvt.s32.f32 %v3185
    %3188 = vmin.xlane.f32.xlu0 %v3187
    %v3189 = vpop.xlane.xlu0 %3188
    %vm3190 = vcmp.eq.f32.partialorder %v3187, %v3189
    %v3191 = vsel %vm3190, %v3186, inf
    %3192 = vmin.xlane.f32.xlu0 %v3191
    %v3193 = vpop.xlane.xlu0 %3192
    %v3194 = vcvt.f32.s32 %v3193
    %v3195 = vcvt.f32.s32 %v3189
    %v3196 = vshll.u32 %v3195, 16
    %v3197 = vadd.s32 %v3196, %v3194
    %v3198 = vsel %vm2546, %v3162, 2147483647
    %v3199 = vand.u32 %v3198, 65535
    %v3200 = vshra.s32 %v3198, 16
    %v3201 = vcvt.s32.f32 %v3199
    %v3202 = vcvt.s32.f32 %v3200
    %3203 = vmin.xlane.f32.xlu0 %v3202
    %v3204 = vpop.xlane.xlu0 %3203
    %vm3205 = vcmp.eq.f32.partialorder %v3202, %v3204
    %v3206 = vsel %vm3205, %v3201, inf
    %3207 = vmin.xlane.f32.xlu0 %v3206
    %v3208 = vpop.xlane.xlu0 %3207
    %v3209 = vcvt.f32.s32 %v3208
    %v3210 = vcvt.f32.s32 %v3204
    %v3211 = vshll.u32 %v3210, 16
    %v3212 = vadd.s32 %v3211, %v3209
    %v3213 = vsel %vm2546, %v3163, 2147483647
    %v3214 = vand.u32 %v3213, 65535
    %v3215 = vshra.s32 %v3213, 16
    %v3216 = vcvt.s32.f32 %v3214
    %v3217 = vcvt.s32.f32 %v3215
    %3218 = vmin.xlane.f32.xlu0 %v3217
    %v3219 = vpop.xlane.xlu0 %3218
    %vm3220 = vcmp.eq.f32.partialorder %v3217, %v3219
    %v3221 = vsel %vm3220, %v3216, inf
    %3222 = vmin.xlane.f32.xlu0 %v3221
    %v3223 = vpop.xlane.xlu0 %3222
    %v3224 = vcvt.f32.s32 %v3223
    %v3225 = vcvt.f32.s32 %v3219
    %v3226 = vshll.u32 %v3225, 16
    %v3227 = vadd.s32 %v3226, %v3224
    %v3228 = vsel %vm2546, %v3164, 2147483647
    %v3229 = vand.u32 %v3228, 65535
    %v3230 = vshra.s32 %v3228, 16
    %v3231 = vcvt.s32.f32 %v3229
    %v3232 = vcvt.s32.f32 %v3230
    %3233 = vmin.xlane.f32.xlu0 %v3232
    %v3234 = vpop.xlane.xlu0 %3233
    %vm3235 = vcmp.eq.f32.partialorder %v3232, %v3234
    %v3236 = vsel %vm3235, %v3231, inf
    %3237 = vmin.xlane.f32.xlu0 %v3236
    %v3238 = vpop.xlane.xlu0 %3237
    %v3239 = vcvt.f32.s32 %v3238
    %v3240 = vcvt.f32.s32 %v3234
    %v3241 = vshll.u32 %v3240, 16
    %v3242 = vadd.s32 %v3241, %v3239
    %v3243 = vsel %vm2546, %v3165, 2147483647
    %v3244 = vand.u32 %v3243, 65535
    %v3245 = vshra.s32 %v3243, 16
    %v3246 = vcvt.s32.f32 %v3244
    %v3247 = vcvt.s32.f32 %v3245
    %3248 = vmin.xlane.f32.xlu0 %v3247
    %v3249 = vpop.xlane.xlu0 %3248
    %vm3250 = vcmp.eq.f32.partialorder %v3247, %v3249
    %v3251 = vsel %vm3250, %v3246, inf
    %3252 = vmin.xlane.f32.xlu0 %v3251
    %v3253 = vpop.xlane.xlu0 %3252
    %v3254 = vcvt.f32.s32 %v3253
    %v3255 = vcvt.f32.s32 %v3249
    %v3256 = vshll.u32 %v3255, 16
    %v3257 = vadd.s32 %v3256, %v3254
    %v3258 = vsel %vm2546, %v3166, 2147483647
    %v3259 = vand.u32 %v3258, 65535
    %v3260 = vshra.s32 %v3258, 16
    %v3261 = vcvt.s32.f32 %v3259
    %v3262 = vcvt.s32.f32 %v3260
    %3263 = vmin.xlane.f32.xlu0 %v3262
    %v3264 = vpop.xlane.xlu0 %3263
    %vm3265 = vcmp.eq.f32.partialorder %v3262, %v3264
    %v3266 = vsel %vm3265, %v3261, inf
    %3267 = vmin.xlane.f32.xlu0 %v3266
    %v3268 = vpop.xlane.xlu0 %3267
    %v3269 = vcvt.f32.s32 %v3268
    %v3270 = vcvt.f32.s32 %v3264
    %v3271 = vshll.u32 %v3270, 16
    %v3272 = vadd.s32 %v3271, %v3269
    %v3273 = vsel %vm2546, %v3167, 2147483647
    %v3274 = vand.u32 %v3273, 65535
    %v3275 = vshra.s32 %v3273, 16
    %v3276 = vcvt.s32.f32 %v3274
    %v3277 = vcvt.s32.f32 %v3275
    %3278 = vmin.xlane.f32.xlu0 %v3277
    %v3279 = vpop.xlane.xlu0 %3278
    %vm3280 = vcmp.eq.f32.partialorder %v3277, %v3279
    %v3281 = vsel %vm3280, %v3276, inf
    %3282 = vmin.xlane.f32.xlu0 %v3281
    %v3283 = vpop.xlane.xlu0 %3282
    %v3284 = vcvt.f32.s32 %v3283
    %v3285 = vcvt.f32.s32 %v3279
    %v3286 = vshll.u32 %v3285, 16
    %v3287 = vadd.s32 %v3286, %v3284
    %s3288 = scalar_lea.vmem [#allocation6], 16
    %v3289 = vld [vmem:[%s3288] sm:$0xff]
    %v3291 = vlaneseq
    %v3292 = vshrl.u32 %v3291, 7
    %v3293 = vsub.s32 0, %v3292
    %v3294 = vrot.slane %v3289, %v3293
    %3296 = vbcast.lane.b32.xlu0 %v3294, 256
    %v3297 = vpop.permute.xlu0 %3296
    %v3298 = vlaneseq
    %v3299 = vshrl.u32 %v3298, 7
    %v3300 = vsub.s32 1, %v3299
    %v3301 = vrot.slane %v3289, %v3300
    %3303 = vbcast.lane.b32.xlu0 %v3301, 256
    %v3304 = vpop.permute.xlu0 %3303
    %v3305 = vlaneseq
    %v3306 = vshrl.u32 %v3305, 7
    %v3307 = vsub.s32 2, %v3306
    %v3308 = vrot.slane %v3289, %v3307
    %3310 = vbcast.lane.b32.xlu0 %v3308, 256
    %v3311 = vpop.permute.xlu0 %3310
    %v3312 = vlaneseq
    %v3313 = vshrl.u32 %v3312, 7
    %v3314 = vsub.s32 3, %v3313
    %v3315 = vrot.slane %v3289, %v3314
    %3317 = vbcast.lane.b32.xlu0 %v3315, 256
    %v3318 = vpop.permute.xlu0 %3317
    %v3319 = vlaneseq
    %v3320 = vshrl.u32 %v3319, 7
    %v3321 = vsub.s32 4, %v3320
    %v3322 = vrot.slane %v3289, %v3321
    %3324 = vbcast.lane.b32.xlu0 %v3322, 256
    %v3325 = vpop.permute.xlu0 %3324
    %v3326 = vlaneseq
    %v3327 = vshrl.u32 %v3326, 7
    %v3328 = vsub.s32 5, %v3327
    %v3329 = vrot.slane %v3289, %v3328
    %3331 = vbcast.lane.b32.xlu0 %v3329, 256
    %v3332 = vpop.permute.xlu0 %3331
    %v3333 = vlaneseq
    %v3334 = vshrl.u32 %v3333, 7
    %v3335 = vsub.s32 6, %v3334
    %v3336 = vrot.slane %v3289, %v3335
    %3338 = vbcast.lane.b32.xlu0 %v3336, 256
    %v3339 = vpop.permute.xlu0 %3338
    %v3340 = vlaneseq
    %v3341 = vshrl.u32 %v3340, 7
    %v3342 = vsub.s32 7, %v3341
    %v3343 = vrot.slane %v3289, %v3342
    %3345 = vbcast.lane.b32.xlu0 %v3343, 256
    %v3346 = vpop.permute.xlu0 %3345
    %v3355 = vadd.f32 %v3130, %v3297
    %v3356 = vadd.f32 %v3133, %v3304
    %v3357 = vadd.f32 %v3136, %v3311
    %v3358 = vadd.f32 %v3139, %v3318
    %v3359 = vadd.f32 %v3142, %v3325
    %v3360 = vadd.f32 %v3145, %v3332
    %v3361 = vadd.f32 %v3148, %v3339
    %v3362 = vadd.f32 %v3151, %v3346
    %v3363 = vld [vmem:[%s1043] sm:$0xff]
    %vm3364 = vcmp.gt.f32.partialorder %v3363, 0.0
    %v3365 = vsel %vm3364, 1, 0
    %3366 = vset.pattern.permute.xlu0 0
    %3367 = vperm.xlu0 %3366, %v3365
    %v3368 = vpop.permute.xlu0 %3367
    %vm3369 = vcmp.eq.s32.totalorder %v3368, 1
    %v3370 = vlaneseq
    %v3371 = vshrl.u32 %v3370, 7
    %v3372 = vsub.s32 %v2557, %v3371
    %v3373 = vrot.slane %v3182, %v3372
    %v3374 = vlaneseq
    %v3375 = vshrl.u32 %v3374, 7
    %v3376 = vsub.s32 %v2557, %v3375
    %v3377 = vrot.slane %v3197, %v3376
    %v3378 = vlaneseq
    %v3379 = vshrl.u32 %v3378, 7
    %v3380 = vsub.s32 %v2557, %v3379
    %v3381 = vrot.slane %v3212, %v3380
    %v3382 = vlaneseq
    %v3383 = vshrl.u32 %v3382, 7
    %v3384 = vsub.s32 %v2557, %v3383
    %v3385 = vrot.slane %v3227, %v3384
    %v3386 = vlaneseq
    %v3387 = vshrl.u32 %v3386, 7
    %v3388 = vsub.s32 %v2557, %v3387
    %v3389 = vrot.slane %v3242, %v3388
    %v3390 = vlaneseq
    %v3391 = vshrl.u32 %v3390, 7
    %v3392 = vsub.s32 %v2557, %v3391
    %v3393 = vrot.slane %v3257, %v3392
    %v3394 = vlaneseq
    %v3395 = vshrl.u32 %v3394, 7
    %v3396 = vsub.s32 %v2557, %v3395
    %v3397 = vrot.slane %v3272, %v3396
    %v3398 = vlaneseq
    %v3399 = vshrl.u32 %v3398, 7
    %v3400 = vsub.s32 %v2557, %v3399
    %v3401 = vrot.slane %v3287, %v3400
    %v3402 = vsel %vm2940, %v3377, %v3373
    %v3403 = vsel %vm2942, %v3381, %v3402
    %v3404 = vsel %vm2944, %v3385, %v3403
    %v3405 = vsel %vm2946, %v3389, %v3404
    %v3406 = vsel %vm2948, %v3393, %v3405
    %v3407 = vsel %vm2950, %v3397, %v3406
    %v3408 = vsel %vm2952, %v3401, %v3407
    %v3409 = vsel %vm3369, %v3408, %v2557
    %s3410 = scalar_lea.vmem [#allocation7], 16
    %3411 = vst.msk [vmem:[%s3410] sm:$0xff] %vm2546, %v3409
    %3420 = vset.pattern.permute.xlu0 0
    %3421 = vperm.xlu0 %3420, %v3355
    %v3422 = vpop.permute.xlu0 %3421
    %3423 = vset.pattern.permute.xlu0 0
    %3424 = vperm.xlu0 %3423, %v3356
    %v3425 = vpop.permute.xlu0 %3424
    %3426 = vset.pattern.permute.xlu0 0
    %3427 = vperm.xlu0 %3426, %v3357
    %v3428 = vpop.permute.xlu0 %3427
    %3429 = vset.pattern.permute.xlu0 0
    %3430 = vperm.xlu0 %3429, %v3358
    %v3431 = vpop.permute.xlu0 %3430
    %3432 = vset.pattern.permute.xlu0 0
    %3433 = vperm.xlu0 %3432, %v3359
    %v3434 = vpop.permute.xlu0 %3433
    %3435 = vset.pattern.permute.xlu0 0
    %3436 = vperm.xlu0 %3435, %v3360
    %v3437 = vpop.permute.xlu0 %3436
    %3438 = vset.pattern.permute.xlu0 0
    %3439 = vperm.xlu0 %3438, %v3361
    %v3440 = vpop.permute.xlu0 %3439
    %3441 = vset.pattern.permute.xlu0 0
    %3442 = vperm.xlu0 %3441, %v3362
    %v3443 = vpop.permute.xlu0 %3442
    %v3444 = vlaneseq
    %v3445 = vshrl.u32 %v3444, 7
    %v3446 = vsub.s32 %v2557, %v3445
    %v3447 = vrot.slane %v3422, %v3446
    %v3448 = vlaneseq
    %v3449 = vshrl.u32 %v3448, 7
    %v3450 = vsub.s32 %v2557, %v3449
    %v3451 = vrot.slane %v3425, %v3450
    %v3452 = vlaneseq
    %v3453 = vshrl.u32 %v3452, 7
    %v3454 = vsub.s32 %v2557, %v3453
    %v3455 = vrot.slane %v3428, %v3454
    %v3456 = vlaneseq
    %v3457 = vshrl.u32 %v3456, 7
    %v3458 = vsub.s32 %v2557, %v3457
    %v3459 = vrot.slane %v3431, %v3458
    %v3460 = vlaneseq
    %v3461 = vshrl.u32 %v3460, 7
    %v3462 = vsub.s32 %v2557, %v3461
    %v3463 = vrot.slane %v3434, %v3462
    %v3464 = vlaneseq
    %v3465 = vshrl.u32 %v3464, 7
    %v3466 = vsub.s32 %v2557, %v3465
    %v3467 = vrot.slane %v3437, %v3466
    %v3468 = vlaneseq
    %v3469 = vshrl.u32 %v3468, 7
    %v3470 = vsub.s32 %v2557, %v3469
    %v3471 = vrot.slane %v3440, %v3470
    %v3472 = vlaneseq
    %v3473 = vshrl.u32 %v3472, 7
    %v3474 = vsub.s32 %v2557, %v3473
    %v3475 = vrot.slane %v3443, %v3474
    %v3476 = vsel %vm2940, %v3451, %v3447
    %v3477 = vsel %vm2942, %v3455, %v3476
    %v3478 = vsel %vm2944, %v3459, %v3477
    %v3479 = vsel %vm2946, %v3463, %v3478
    %v3480 = vsel %vm2948, %v3467, %v3479
    %v3481 = vsel %vm2950, %v3471, %v3480
    %v3482 = vsel %vm2952, %v3475, %v3481
    %v3484 = vsel %vm3369, %v3482, %v3029
    %v3486 = vcombine.high %v3484, %v3484
    %v3488 = vunpack.c.l.s4 1966171168
    %v3489 = vunpack.c.0.s8 %v3488
    %v3490 = vlaneseq
    %v3491 = vshrl.u32 %v3490, 7
    %v3492 = vsub.s32 %v3489, %v3491
    %v3493 = vrot.slane %v3484, %v3492
    %v3495 = vunpack.c.l.s4 1966171168
    %v3496 = vunpack.c.0.s8 %v3495
    %v3497 = vlaneseq
    %v3498 = vshrl.u32 %v3497, 7
    %v3499 = vsub.s32 %v3496, %v3498
    %v3500 = vrot.slane %v3486, %v3499
    %v3501 = vcombine.high %v3493, %v3493
    %v3502 = vcombine.high %v3500, %v3500
    %v3504 = vunpack.c.l.s4 1966171168
    %v3505 = vunpack.c.0.s8 %v3504
    %v3506 = vlaneseq
    %v3507 = vshrl.u32 %v3506, 7
    %v3508 = vsub.s32 %v3505, %v3507
    %v3509 = vrot.slane %v3493, %v3508
    %v3511 = vunpack.c.l.s4 1966171168
    %v3512 = vunpack.c.0.s8 %v3511
    %v3513 = vlaneseq
    %v3514 = vshrl.u32 %v3513, 7
    %v3515 = vsub.s32 %v3512, %v3514
    %v3516 = vrot.slane %v3500, %v3515
    %v3518 = vunpack.c.l.s4 1966171168
    %v3519 = vunpack.c.0.s8 %v3518
    %v3520 = vlaneseq
    %v3521 = vshrl.u32 %v3520, 7
    %v3522 = vsub.s32 %v3519, %v3521
    %v3523 = vrot.slane %v3501, %v3522
    %v3525 = vunpack.c.l.s4 1966171168
    %v3526 = vunpack.c.0.s8 %v3525
    %v3527 = vlaneseq
    %v3528 = vshrl.u32 %v3527, 7
    %v3529 = vsub.s32 %v3526, %v3528
    %v3530 = vrot.slane %v3502, %v3529
    %v3531 = vcombine.high %v3509, %v3509
    %v3532 = vcombine.high %v3516, %v3516
    %v3533 = vcombine.high %v3523, %v3523
    %v3534 = vcombine.high %v3530, %v3530
    %v3535 = vlaneseq
    %v3536 = vshrl.u32 %v3535, 7
    %v3537 = vsub.s32 0, %v3536
    %v3538 = vrot.slane %v3509, %v3537
    %v3539 = vlaneseq
    %v3540 = vshrl.u32 %v3539, 7
    %v3541 = vsub.s32 0, %v3540
    %v3542 = vrot.slane %v3523, %v3541
    %v3543 = vlaneseq
    %v3544 = vshrl.u32 %v3543, 7
    %v3545 = vsub.s32 0, %v3544
    %v3546 = vrot.slane %v3531, %v3545
    %v3547 = vlaneseq
    %v3548 = vshrl.u32 %v3547, 7
    %v3549 = vsub.s32 0, %v3548
    %v3550 = vrot.slane %v3533, %v3549
    %v3551 = vlaneseq
    %v3552 = vshrl.u32 %v3551, 7
    %v3553 = vsub.s32 0, %v3552
    %v3554 = vrot.slane %v3516, %v3553
    %v3555 = vlaneseq
    %v3556 = vshrl.u32 %v3555, 7
    %v3557 = vsub.s32 0, %v3556
    %v3558 = vrot.slane %v3530, %v3557
    %v3559 = vlaneseq
    %v3560 = vshrl.u32 %v3559, 7
    %v3561 = vsub.s32 0, %v3560
    %v3562 = vrot.slane %v3532, %v3561
    %v3563 = vlaneseq
    %v3564 = vshrl.u32 %v3563, 7
    %v3565 = vsub.s32 0, %v3564
    %v3566 = vrot.slane %v3534, %v3565
    %v3575 = vadd.f32 %v3538, %v2555
    %v3576 = vadd.f32 %v3542, %v2555
    %v3577 = vadd.f32 %v3546, %v2555
    %v3578 = vadd.f32 %v3550, %v2555
    %v3579 = vadd.f32 %v3554, %v2555
    %v3580 = vadd.f32 %v3558, %v2555
    %v3581 = vadd.f32 %v3562, %v2555
    %v3582 = vadd.f32 %v3566, %v2555
    %v3583 = vsel %vm2546, %v3575, -inf
    %3584 = vmax.xlane.f32.xlu0 %v3583
    %v3585 = vpop.xlane.xlu0 %3584
    %v3586 = vsel %vm2546, %v3576, -inf
    %3587 = vmax.xlane.f32.xlu0 %v3586
    %v3588 = vpop.xlane.xlu0 %3587
    %v3589 = vsel %vm2546, %v3577, -inf
    %3590 = vmax.xlane.f32.xlu0 %v3589
    %v3591 = vpop.xlane.xlu0 %3590
    %v3592 = vsel %vm2546, %v3578, -inf
    %3593 = vmax.xlane.f32.xlu0 %v3592
    %v3594 = vpop.xlane.xlu0 %3593
    %v3595 = vsel %vm2546, %v3579, -inf
    %3596 = vmax.xlane.f32.xlu0 %v3595
    %v3597 = vpop.xlane.xlu0 %3596
    %v3598 = vsel %vm2546, %v3580, -inf
    %3599 = vmax.xlane.f32.xlu0 %v3598
    %v3600 = vpop.xlane.xlu0 %3599
    %v3601 = vsel %vm2546, %v3581, -inf
    %3602 = vmax.xlane.f32.xlu0 %v3601
    %v3603 = vpop.xlane.xlu0 %3602
    %v3604 = vsel %vm2546, %v3582, -inf
    %3605 = vmax.xlane.f32.xlu0 %v3604
    %v3606 = vpop.xlane.xlu0 %3605
    %vm3607 = vcmp.ge.f32.partialorder %v3575, %v3585
    %vm3608 = vcmp.ge.f32.partialorder %v3576, %v3588
    %vm3609 = vcmp.ge.f32.partialorder %v3577, %v3591
    %vm3610 = vcmp.ge.f32.partialorder %v3578, %v3594
    %vm3611 = vcmp.ge.f32.partialorder %v3579, %v3597
    %vm3612 = vcmp.ge.f32.partialorder %v3580, %v3600
    %vm3613 = vcmp.ge.f32.partialorder %v3581, %v3603
    %vm3614 = vcmp.ge.f32.partialorder %v3582, %v3606
    %v3615 = vsel %vm3607, %v2557, 8
    %v3616 = vsel %vm3608, %v2557, 8
    %v3617 = vsel %vm3609, %v2557, 8
    %v3618 = vsel %vm3610, %v2557, 8
    %v3619 = vsel %vm3611, %v2557, 8
    %v3620 = vsel %vm3612, %v2557, 8
    %v3621 = vsel %vm3613, %v2557, 8
    %v3622 = vsel %vm3614, %v2557, 8
    %v3623 = vsel %vm2546, %v3615, 2147483647
    %v3624 = vand.u32 %v3623, 65535
    %v3625 = vshra.s32 %v3623, 16
    %v3626 = vcvt.s32.f32 %v3624
    %v3627 = vcvt.s32.f32 %v3625
    %3628 = vmin.xlane.f32.xlu0 %v3627
    %v3629 = vpop.xlane.xlu0 %3628
    %vm3630 = vcmp.eq.f32.partialorder %v3627, %v3629
    %v3631 = vsel %vm3630, %v3626, inf
    %3632 = vmin.xlane.f32.xlu0 %v3631
    %v3633 = vpop.xlane.xlu0 %3632
    %v3634 = vcvt.f32.s32 %v3633
    %v3635 = vcvt.f32.s32 %v3629
    %v3636 = vshll.u32 %v3635, 16
    %v3637 = vadd.s32 %v3636, %v3634
    %v3638 = vsel %vm2546, %v3616, 2147483647
    %v3639 = vand.u32 %v3638, 65535
    %v3640 = vshra.s32 %v3638, 16
    %v3641 = vcvt.s32.f32 %v3639
    %v3642 = vcvt.s32.f32 %v3640
    %3643 = vmin.xlane.f32.xlu0 %v3642
    %v3644 = vpop.xlane.xlu0 %3643
    %vm3645 = vcmp.eq.f32.partialorder %v3642, %v3644
    %v3646 = vsel %vm3645, %v3641, inf
    %3647 = vmin.xlane.f32.xlu0 %v3646
    %v3648 = vpop.xlane.xlu0 %3647
    %v3649 = vcvt.f32.s32 %v3648
    %v3650 = vcvt.f32.s32 %v3644
    %v3651 = vshll.u32 %v3650, 16
    %v3652 = vadd.s32 %v3651, %v3649
    %v3653 = vsel %vm2546, %v3617, 2147483647
    %v3654 = vand.u32 %v3653, 65535
    %v3655 = vshra.s32 %v3653, 16
    %v3656 = vcvt.s32.f32 %v3654
    %v3657 = vcvt.s32.f32 %v3655
    %3658 = vmin.xlane.f32.xlu0 %v3657
    %v3659 = vpop.xlane.xlu0 %3658
    %vm3660 = vcmp.eq.f32.partialorder %v3657, %v3659
    %v3661 = vsel %vm3660, %v3656, inf
    %3662 = vmin.xlane.f32.xlu0 %v3661
    %v3663 = vpop.xlane.xlu0 %3662
    %v3664 = vcvt.f32.s32 %v3663
    %v3665 = vcvt.f32.s32 %v3659
    %v3666 = vshll.u32 %v3665, 16
    %v3667 = vadd.s32 %v3666, %v3664
    %v3668 = vsel %vm2546, %v3618, 2147483647
    %v3669 = vand.u32 %v3668, 65535
    %v3670 = vshra.s32 %v3668, 16
    %v3671 = vcvt.s32.f32 %v3669
    %v3672 = vcvt.s32.f32 %v3670
    %3673 = vmin.xlane.f32.xlu0 %v3672
    %v3674 = vpop.xlane.xlu0 %3673
    %vm3675 = vcmp.eq.f32.partialorder %v3672, %v3674
    %v3676 = vsel %vm3675, %v3671, inf
    %3677 = vmin.xlane.f32.xlu0 %v3676
    %v3678 = vpop.xlane.xlu0 %3677
    %v3679 = vcvt.f32.s32 %v3678
    %v3680 = vcvt.f32.s32 %v3674
    %v3681 = vshll.u32 %v3680, 16
    %v3682 = vadd.s32 %v3681, %v3679
    %v3683 = vsel %vm2546, %v3619, 2147483647
    %v3684 = vand.u32 %v3683, 65535
    %v3685 = vshra.s32 %v3683, 16
    %v3686 = vcvt.s32.f32 %v3684
    %v3687 = vcvt.s32.f32 %v3685
    %3688 = vmin.xlane.f32.xlu0 %v3687
    %v3689 = vpop.xlane.xlu0 %3688
    %vm3690 = vcmp.eq.f32.partialorder %v3687, %v3689
    %v3691 = vsel %vm3690, %v3686, inf
    %3692 = vmin.xlane.f32.xlu0 %v3691
    %v3693 = vpop.xlane.xlu0 %3692
    %v3694 = vcvt.f32.s32 %v3693
    %v3695 = vcvt.f32.s32 %v3689
    %v3696 = vshll.u32 %v3695, 16
    %v3697 = vadd.s32 %v3696, %v3694
    %v3698 = vsel %vm2546, %v3620, 2147483647
    %v3699 = vand.u32 %v3698, 65535
    %v3700 = vshra.s32 %v3698, 16
    %v3701 = vcvt.s32.f32 %v3699
    %v3702 = vcvt.s32.f32 %v3700
    %3703 = vmin.xlane.f32.xlu0 %v3702
    %v3704 = vpop.xlane.xlu0 %3703
    %vm3705 = vcmp.eq.f32.partialorder %v3702, %v3704
    %v3706 = vsel %vm3705, %v3701, inf
    %3707 = vmin.xlane.f32.xlu0 %v3706
    %v3708 = vpop.xlane.xlu0 %3707
    %v3709 = vcvt.f32.s32 %v3708
    %v3710 = vcvt.f32.s32 %v3704
    %v3711 = vshll.u32 %v3710, 16
    %v3712 = vadd.s32 %v3711, %v3709
    %v3713 = vsel %vm2546, %v3621, 2147483647
    %v3714 = vand.u32 %v3713, 65535
    %v3715 = vshra.s32 %v3713, 16
    %v3716 = vcvt.s32.f32 %v3714
    %v3717 = vcvt.s32.f32 %v3715
    %3718 = vmin.xlane.f32.xlu0 %v3717
    %v3719 = vpop.xlane.xlu0 %3718
    %vm3720 = vcmp.eq.f32.partialorder %v3717, %v3719
    %v3721 = vsel %vm3720, %v3716, inf
    %3722 = vmin.xlane.f32.xlu0 %v3721
    %v3723 = vpop.xlane.xlu0 %3722
    %v3724 = vcvt.f32.s32 %v3723
    %v3725 = vcvt.f32.s32 %v3719
    %v3726 = vshll.u32 %v3725, 16
    %v3727 = vadd.s32 %v3726, %v3724
    %v3728 = vsel %vm2546, %v3622, 2147483647
    %v3729 = vand.u32 %v3728, 65535
    %v3730 = vshra.s32 %v3728, 16
    %v3731 = vcvt.s32.f32 %v3729
    %v3732 = vcvt.s32.f32 %v3730
    %3733 = vmin.xlane.f32.xlu0 %v3732
    %v3734 = vpop.xlane.xlu0 %3733
    %vm3735 = vcmp.eq.f32.partialorder %v3732, %v3734
    %v3736 = vsel %vm3735, %v3731, inf
    %3737 = vmin.xlane.f32.xlu0 %v3736
    %v3738 = vpop.xlane.xlu0 %3737
    %v3739 = vcvt.f32.s32 %v3738
    %v3740 = vcvt.f32.s32 %v3734
    %v3741 = vshll.u32 %v3740, 16
    %v3742 = vadd.s32 %v3741, %v3739
    %s3743 = scalar_lea.vmem [#allocation6], 24
    %v3744 = vld [vmem:[%s3743] sm:$0xff]
    %v3746 = vlaneseq
    %v3747 = vshrl.u32 %v3746, 7
    %v3748 = vsub.s32 0, %v3747
    %v3749 = vrot.slane %v3744, %v3748
    %3751 = vbcast.lane.b32.xlu0 %v3749, 256
    %v3752 = vpop.permute.xlu0 %3751
    %v3753 = vlaneseq
    %v3754 = vshrl.u32 %v3753, 7
    %v3755 = vsub.s32 1, %v3754
    %v3756 = vrot.slane %v3744, %v3755
    %3758 = vbcast.lane.b32.xlu0 %v3756, 256
    %v3759 = vpop.permute.xlu0 %3758
    %v3760 = vlaneseq
    %v3761 = vshrl.u32 %v3760, 7
    %v3762 = vsub.s32 2, %v3761
    %v3763 = vrot.slane %v3744, %v3762
    %3765 = vbcast.lane.b32.xlu0 %v3763, 256
    %v3766 = vpop.permute.xlu0 %3765
    %v3767 = vlaneseq
    %v3768 = vshrl.u32 %v3767, 7
    %v3769 = vsub.s32 3, %v3768
    %v3770 = vrot.slane %v3744, %v3769
    %3772 = vbcast.lane.b32.xlu0 %v3770, 256
    %v3773 = vpop.permute.xlu0 %3772
    %v3774 = vlaneseq
    %v3775 = vshrl.u32 %v3774, 7
    %v3776 = vsub.s32 4, %v3775
    %v3777 = vrot.slane %v3744, %v3776
    %3779 = vbcast.lane.b32.xlu0 %v3777, 256
    %v3780 = vpop.permute.xlu0 %3779
    %v3781 = vlaneseq
    %v3782 = vshrl.u32 %v3781, 7
    %v3783 = vsub.s32 5, %v3782
    %v3784 = vrot.slane %v3744, %v3783
    %3786 = vbcast.lane.b32.xlu0 %v3784, 256
    %v3787 = vpop.permute.xlu0 %3786
    %v3788 = vlaneseq
    %v3789 = vshrl.u32 %v3788, 7
    %v3790 = vsub.s32 6, %v3789
    %v3791 = vrot.slane %v3744, %v3790
    %3793 = vbcast.lane.b32.xlu0 %v3791, 256
    %v3794 = vpop.permute.xlu0 %3793
    %v3795 = vlaneseq
    %v3796 = vshrl.u32 %v3795, 7
    %v3797 = vsub.s32 7, %v3796
    %v3798 = vrot.slane %v3744, %v3797
    %3800 = vbcast.lane.b32.xlu0 %v3798, 256
    %v3801 = vpop.permute.xlu0 %3800
    %v3810 = vadd.f32 %v3585, %v3752
    %v3811 = vadd.f32 %v3588, %v3759
    %v3812 = vadd.f32 %v3591, %v3766
    %v3813 = vadd.f32 %v3594, %v3773
    %v3814 = vadd.f32 %v3597, %v3780
    %v3815 = vadd.f32 %v3600, %v3787
    %v3816 = vadd.f32 %v3603, %v3794
    %v3817 = vadd.f32 %v3606, %v3801
    %v3818 = vld [vmem:[%s1281] sm:$0xff]
    %vm3819 = vcmp.gt.f32.partialorder %v3818, 0.0
    %v3820 = vsel %vm3819, 1, 0
    %3821 = vset.pattern.permute.xlu0 0
    %3822 = vperm.xlu0 %3821, %v3820
    %v3823 = vpop.permute.xlu0 %3822
    %vm3824 = vcmp.eq.s32.totalorder %v3823, 1
    %v3825 = vlaneseq
    %v3826 = vshrl.u32 %v3825, 7
    %v3827 = vsub.s32 %v2557, %v3826
    %v3828 = vrot.slane %v3637, %v3827
    %v3829 = vlaneseq
    %v3830 = vshrl.u32 %v3829, 7
    %v3831 = vsub.s32 %v2557, %v3830
    %v3832 = vrot.slane %v3652, %v3831
    %v3833 = vlaneseq
    %v3834 = vshrl.u32 %v3833, 7
    %v3835 = vsub.s32 %v2557, %v3834
    %v3836 = vrot.slane %v3667, %v3835
    %v3837 = vlaneseq
    %v3838 = vshrl.u32 %v3837, 7
    %v3839 = vsub.s32 %v2557, %v3838
    %v3840 = vrot.slane %v3682, %v3839
    %v3841 = vlaneseq
    %v3842 = vshrl.u32 %v3841, 7
    %v3843 = vsub.s32 %v2557, %v3842
    %v3844 = vrot.slane %v3697, %v3843
    %v3845 = vlaneseq
    %v3846 = vshrl.u32 %v3845, 7
    %v3847 = vsub.s32 %v2557, %v3846
    %v3848 = vrot.slane %v3712, %v3847
    %v3849 = vlaneseq
    %v3850 = vshrl.u32 %v3849, 7
    %v3851 = vsub.s32 %v2557, %v3850
    %v3852 = vrot.slane %v3727, %v3851
    %v3853 = vlaneseq
    %v3854 = vshrl.u32 %v3853, 7
    %v3855 = vsub.s32 %v2557, %v3854
    %v3856 = vrot.slane %v3742, %v3855
    %v3857 = vsel %vm2940, %v3832, %v3828
    %v3858 = vsel %vm2942, %v3836, %v3857
    %v3859 = vsel %vm2944, %v3840, %v3858
    %v3860 = vsel %vm2946, %v3844, %v3859
    %v3861 = vsel %vm2948, %v3848, %v3860
    %v3862 = vsel %vm2950, %v3852, %v3861
    %v3863 = vsel %vm2952, %v3856, %v3862
    %v3864 = vsel %vm3824, %v3863, %v2557
    %s3865 = scalar_lea.vmem [#allocation7], 24
    %3866 = vst.msk [vmem:[%s3865] sm:$0xff] %vm2546, %v3864
    %3875 = vset.pattern.permute.xlu0 0
    %3876 = vperm.xlu0 %3875, %v3810
    %v3877 = vpop.permute.xlu0 %3876
    %3878 = vset.pattern.permute.xlu0 0
    %3879 = vperm.xlu0 %3878, %v3811
    %v3880 = vpop.permute.xlu0 %3879
    %3881 = vset.pattern.permute.xlu0 0
    %3882 = vperm.xlu0 %3881, %v3812
    %v3883 = vpop.permute.xlu0 %3882
    %3884 = vset.pattern.permute.xlu0 0
    %3885 = vperm.xlu0 %3884, %v3813
    %v3886 = vpop.permute.xlu0 %3885
    %3887 = vset.pattern.permute.xlu0 0
    %3888 = vperm.xlu0 %3887, %v3814
    %v3889 = vpop.permute.xlu0 %3888
    %3890 = vset.pattern.permute.xlu0 0
    %3891 = vperm.xlu0 %3890, %v3815
    %v3892 = vpop.permute.xlu0 %3891
    %3893 = vset.pattern.permute.xlu0 0
    %3894 = vperm.xlu0 %3893, %v3816
    %v3895 = vpop.permute.xlu0 %3894
    %3896 = vset.pattern.permute.xlu0 0
    %3897 = vperm.xlu0 %3896, %v3817
    %v3898 = vpop.permute.xlu0 %3897
    %v3899 = vlaneseq
    %v3900 = vshrl.u32 %v3899, 7
    %v3901 = vsub.s32 %v2557, %v3900
    %v3902 = vrot.slane %v3877, %v3901
    %v3903 = vlaneseq
    %v3904 = vshrl.u32 %v3903, 7
    %v3905 = vsub.s32 %v2557, %v3904
    %v3906 = vrot.slane %v3880, %v3905
    %v3907 = vlaneseq
    %v3908 = vshrl.u32 %v3907, 7
    %v3909 = vsub.s32 %v2557, %v3908
    %v3910 = vrot.slane %v3883, %v3909
    %v3911 = vlaneseq
    %v3912 = vshrl.u32 %v3911, 7
    %v3913 = vsub.s32 %v2557, %v3912
    %v3914 = vrot.slane %v3886, %v3913
    %v3915 = vlaneseq
    %v3916 = vshrl.u32 %v3915, 7
    %v3917 = vsub.s32 %v2557, %v3916
    %v3918 = vrot.slane %v3889, %v3917
    %v3919 = vlaneseq
    %v3920 = vshrl.u32 %v3919, 7
    %v3921 = vsub.s32 %v2557, %v3920
    %v3922 = vrot.slane %v3892, %v3921
    %v3923 = vlaneseq
    %v3924 = vshrl.u32 %v3923, 7
    %v3925 = vsub.s32 %v2557, %v3924
    %v3926 = vrot.slane %v3895, %v3925
    %v3927 = vlaneseq
    %v3928 = vshrl.u32 %v3927, 7
    %v3929 = vsub.s32 %v2557, %v3928
    %v3930 = vrot.slane %v3898, %v3929
    %v3931 = vsel %vm2940, %v3906, %v3902
    %v3932 = vsel %vm2942, %v3910, %v3931
    %v3933 = vsel %vm2944, %v3914, %v3932
    %v3934 = vsel %vm2946, %v3918, %v3933
    %v3935 = vsel %vm2948, %v3922, %v3934
    %v3936 = vsel %vm2950, %v3926, %v3935
    %v3937 = vsel %vm2952, %v3930, %v3936
    %v3939 = vsel %vm3824, %v3937, %v3484
    %v3941 = vcombine.high %v3939, %v3939
    %v3943 = vunpack.c.l.s4 1966171168
    %v3944 = vunpack.c.0.s8 %v3943
    %v3945 = vlaneseq
    %v3946 = vshrl.u32 %v3945, 7
    %v3947 = vsub.s32 %v3944, %v3946
    %v3948 = vrot.slane %v3939, %v3947
    %v3950 = vunpack.c.l.s4 1966171168
    %v3951 = vunpack.c.0.s8 %v3950
    %v3952 = vlaneseq
    %v3953 = vshrl.u32 %v3952, 7
    %v3954 = vsub.s32 %v3951, %v3953
    %v3955 = vrot.slane %v3941, %v3954
    %v3956 = vcombine.high %v3948, %v3948
    %v3957 = vcombine.high %v3955, %v3955
    %v3959 = vunpack.c.l.s4 1966171168
    %v3960 = vunpack.c.0.s8 %v3959
    %v3961 = vlaneseq
    %v3962 = vshrl.u32 %v3961, 7
    %v3963 = vsub.s32 %v3960, %v3962
    %v3964 = vrot.slane %v3948, %v3963
    %v3966 = vunpack.c.l.s4 1966171168
    %v3967 = vunpack.c.0.s8 %v3966
    %v3968 = vlaneseq
    %v3969 = vshrl.u32 %v3968, 7
    %v3970 = vsub.s32 %v3967, %v3969
    %v3971 = vrot.slane %v3955, %v3970
    %v3973 = vunpack.c.l.s4 1966171168
    %v3974 = vunpack.c.0.s8 %v3973
    %v3975 = vlaneseq
    %v3976 = vshrl.u32 %v3975, 7
    %v3977 = vsub.s32 %v3974, %v3976
    %v3978 = vrot.slane %v3956, %v3977
    %v3980 = vunpack.c.l.s4 1966171168
    %v3981 = vunpack.c.0.s8 %v3980
    %v3982 = vlaneseq
    %v3983 = vshrl.u32 %v3982, 7
    %v3984 = vsub.s32 %v3981, %v3983
    %v3985 = vrot.slane %v3957, %v3984
    %v3986 = vcombine.high %v3964, %v3964
    %v3987 = vcombine.high %v3971, %v3971
    %v3988 = vcombine.high %v3978, %v3978
    %v3989 = vcombine.high %v3985, %v3985
    %v3990 = vlaneseq
    %v3991 = vshrl.u32 %v3990, 7
    %v3992 = vsub.s32 0, %v3991
    %v3993 = vrot.slane %v3964, %v3992
    %v3994 = vlaneseq
    %v3995 = vshrl.u32 %v3994, 7
    %v3996 = vsub.s32 0, %v3995
    %v3997 = vrot.slane %v3978, %v3996
    %v3998 = vlaneseq
    %v3999 = vshrl.u32 %v3998, 7
    %v4000 = vsub.s32 0, %v3999
    %v4001 = vrot.slane %v3986, %v4000
    %v4002 = vlaneseq
    %v4003 = vshrl.u32 %v4002, 7
    %v4004 = vsub.s32 0, %v4003
    %v4005 = vrot.slane %v3988, %v4004
    %v4006 = vlaneseq
    %v4007 = vshrl.u32 %v4006, 7
    %v4008 = vsub.s32 0, %v4007
    %v4009 = vrot.slane %v3971, %v4008
    %v4010 = vlaneseq
    %v4011 = vshrl.u32 %v4010, 7
    %v4012 = vsub.s32 0, %v4011
    %v4013 = vrot.slane %v3985, %v4012
    %v4014 = vlaneseq
    %v4015 = vshrl.u32 %v4014, 7
    %v4016 = vsub.s32 0, %v4015
    %v4017 = vrot.slane %v3987, %v4016
    %v4018 = vlaneseq
    %v4019 = vshrl.u32 %v4018, 7
    %v4020 = vsub.s32 0, %v4019
    %v4021 = vrot.slane %v3989, %v4020
    %v4030 = vadd.f32 %v3993, %v2555
    %v4031 = vadd.f32 %v3997, %v2555
    %v4032 = vadd.f32 %v4001, %v2555
    %v4033 = vadd.f32 %v4005, %v2555
    %v4034 = vadd.f32 %v4009, %v2555
    %v4035 = vadd.f32 %v4013, %v2555
    %v4036 = vadd.f32 %v4017, %v2555
    %v4037 = vadd.f32 %v4021, %v2555
    %v4038 = vsel %vm2546, %v4030, -inf
    %4039 = vmax.xlane.f32.xlu0 %v4038
    %v4040 = vpop.xlane.xlu0 %4039
    %v4041 = vsel %vm2546, %v4031, -inf
    %4042 = vmax.xlane.f32.xlu0 %v4041
    %v4043 = vpop.xlane.xlu0 %4042
    %v4044 = vsel %vm2546, %v4032, -inf
    %4045 = vmax.xlane.f32.xlu0 %v4044
    %v4046 = vpop.xlane.xlu0 %4045
    %v4047 = vsel %vm2546, %v4033, -inf
    %4048 = vmax.xlane.f32.xlu0 %v4047
    %v4049 = vpop.xlane.xlu0 %4048
    %v4050 = vsel %vm2546, %v4034, -inf
    %4051 = vmax.xlane.f32.xlu0 %v4050
    %v4052 = vpop.xlane.xlu0 %4051
    %v4053 = vsel %vm2546, %v4035, -inf
    %4054 = vmax.xlane.f32.xlu0 %v4053
    %v4055 = vpop.xlane.xlu0 %4054
    %v4056 = vsel %vm2546, %v4036, -inf
    %4057 = vmax.xlane.f32.xlu0 %v4056
    %v4058 = vpop.xlane.xlu0 %4057
    %v4059 = vsel %vm2546, %v4037, -inf
    %4060 = vmax.xlane.f32.xlu0 %v4059
    %v4061 = vpop.xlane.xlu0 %4060
    %vm4062 = vcmp.ge.f32.partialorder %v4030, %v4040
    %vm4063 = vcmp.ge.f32.partialorder %v4031, %v4043
    %vm4064 = vcmp.ge.f32.partialorder %v4032, %v4046
    %vm4065 = vcmp.ge.f32.partialorder %v4033, %v4049
    %vm4066 = vcmp.ge.f32.partialorder %v4034, %v4052
    %vm4067 = vcmp.ge.f32.partialorder %v4035, %v4055
    %vm4068 = vcmp.ge.f32.partialorder %v4036, %v4058
    %vm4069 = vcmp.ge.f32.partialorder %v4037, %v4061
    %v4070 = vsel %vm4062, %v2557, 8
    %v4071 = vsel %vm4063, %v2557, 8
    %v4072 = vsel %vm4064, %v2557, 8
    %v4073 = vsel %vm4065, %v2557, 8
    %v4074 = vsel %vm4066, %v2557, 8
    %v4075 = vsel %vm4067, %v2557, 8
    %v4076 = vsel %vm4068, %v2557, 8
    %v4077 = vsel %vm4069, %v2557, 8
    %v4078 = vsel %vm2546, %v4070, 2147483647
    %v4079 = vand.u32 %v4078, 65535
    %v4080 = vshra.s32 %v4078, 16
    %v4081 = vcvt.s32.f32 %v4079
    %v4082 = vcvt.s32.f32 %v4080
    %4083 = vmin.xlane.f32.xlu0 %v4082
    %v4084 = vpop.xlane.xlu0 %4083
    %vm4085 = vcmp.eq.f32.partialorder %v4082, %v4084
    %v4086 = vsel %vm4085, %v4081, inf
    %4087 = vmin.xlane.f32.xlu0 %v4086
    %v4088 = vpop.xlane.xlu0 %4087
    %v4089 = vcvt.f32.s32 %v4088
    %v4090 = vcvt.f32.s32 %v4084
    %v4091 = vshll.u32 %v4090, 16
    %v4092 = vadd.s32 %v4091, %v4089
    %v4093 = vsel %vm2546, %v4071, 2147483647
    %v4094 = vand.u32 %v4093, 65535
    %v4095 = vshra.s32 %v4093, 16
    %v4096 = vcvt.s32.f32 %v4094
    %v4097 = vcvt.s32.f32 %v4095
    %4098 = vmin.xlane.f32.xlu0 %v4097
    %v4099 = vpop.xlane.xlu0 %4098
    %vm4100 = vcmp.eq.f32.partialorder %v4097, %v4099
    %v4101 = vsel %vm4100, %v4096, inf
    %4102 = vmin.xlane.f32.xlu0 %v4101
    %v4103 = vpop.xlane.xlu0 %4102
    %v4104 = vcvt.f32.s32 %v4103
    %v4105 = vcvt.f32.s32 %v4099
    %v4106 = vshll.u32 %v4105, 16
    %v4107 = vadd.s32 %v4106, %v4104
    %v4108 = vsel %vm2546, %v4072, 2147483647
    %v4109 = vand.u32 %v4108, 65535
    %v4110 = vshra.s32 %v4108, 16
    %v4111 = vcvt.s32.f32 %v4109
    %v4112 = vcvt.s32.f32 %v4110
    %4113 = vmin.xlane.f32.xlu0 %v4112
    %v4114 = vpop.xlane.xlu0 %4113
    %vm4115 = vcmp.eq.f32.partialorder %v4112, %v4114
    %v4116 = vsel %vm4115, %v4111, inf
    %4117 = vmin.xlane.f32.xlu0 %v4116
    %v4118 = vpop.xlane.xlu0 %4117
    %v4119 = vcvt.f32.s32 %v4118
    %v4120 = vcvt.f32.s32 %v4114
    %v4121 = vshll.u32 %v4120, 16
    %v4122 = vadd.s32 %v4121, %v4119
    %v4123 = vsel %vm2546, %v4073, 2147483647
    %v4124 = vand.u32 %v4123, 65535
    %v4125 = vshra.s32 %v4123, 16
    %v4126 = vcvt.s32.f32 %v4124
    %v4127 = vcvt.s32.f32 %v4125
    %4128 = vmin.xlane.f32.xlu0 %v4127
    %v4129 = vpop.xlane.xlu0 %4128
    %vm4130 = vcmp.eq.f32.partialorder %v4127, %v4129
    %v4131 = vsel %vm4130, %v4126, inf
    %4132 = vmin.xlane.f32.xlu0 %v4131
    %v4133 = vpop.xlane.xlu0 %4132
    %v4134 = vcvt.f32.s32 %v4133
    %v4135 = vcvt.f32.s32 %v4129
    %v4136 = vshll.u32 %v4135, 16
    %v4137 = vadd.s32 %v4136, %v4134
    %v4138 = vsel %vm2546, %v4074, 2147483647
    %v4139 = vand.u32 %v4138, 65535
    %v4140 = vshra.s32 %v4138, 16
    %v4141 = vcvt.s32.f32 %v4139
    %v4142 = vcvt.s32.f32 %v4140
    %4143 = vmin.xlane.f32.xlu0 %v4142
    %v4144 = vpop.xlane.xlu0 %4143
    %vm4145 = vcmp.eq.f32.partialorder %v4142, %v4144
    %v4146 = vsel %vm4145, %v4141, inf
    %4147 = vmin.xlane.f32.xlu0 %v4146
    %v4148 = vpop.xlane.xlu0 %4147
    %v4149 = vcvt.f32.s32 %v4148
    %v4150 = vcvt.f32.s32 %v4144
    %v4151 = vshll.u32 %v4150, 16
    %v4152 = vadd.s32 %v4151, %v4149
    %v4153 = vsel %vm2546, %v4075, 2147483647
    %v4154 = vand.u32 %v4153, 65535
    %v4155 = vshra.s32 %v4153, 16
    %v4156 = vcvt.s32.f32 %v4154
    %v4157 = vcvt.s32.f32 %v4155
    %4158 = vmin.xlane.f32.xlu0 %v4157
    %v4159 = vpop.xlane.xlu0 %4158
    %vm4160 = vcmp.eq.f32.partialorder %v4157, %v4159
    %v4161 = vsel %vm4160, %v4156, inf
    %4162 = vmin.xlane.f32.xlu0 %v4161
    %v4163 = vpop.xlane.xlu0 %4162
    %v4164 = vcvt.f32.s32 %v4163
    %v4165 = vcvt.f32.s32 %v4159
    %v4166 = vshll.u32 %v4165, 16
    %v4167 = vadd.s32 %v4166, %v4164
    %v4168 = vsel %vm2546, %v4076, 2147483647
    %v4169 = vand.u32 %v4168, 65535
    %v4170 = vshra.s32 %v4168, 16
    %v4171 = vcvt.s32.f32 %v4169
    %v4172 = vcvt.s32.f32 %v4170
    %4173 = vmin.xlane.f32.xlu0 %v4172
    %v4174 = vpop.xlane.xlu0 %4173
    %vm4175 = vcmp.eq.f32.partialorder %v4172, %v4174
    %v4176 = vsel %vm4175, %v4171, inf
    %4177 = vmin.xlane.f32.xlu0 %v4176
    %v4178 = vpop.xlane.xlu0 %4177
    %v4179 = vcvt.f32.s32 %v4178
    %v4180 = vcvt.f32.s32 %v4174
    %v4181 = vshll.u32 %v4180, 16
    %v4182 = vadd.s32 %v4181, %v4179
    %v4183 = vsel %vm2546, %v4077, 2147483647
    %v4184 = vand.u32 %v4183, 65535
    %v4185 = vshra.s32 %v4183, 16
    %v4186 = vcvt.s32.f32 %v4184
    %v4187 = vcvt.s32.f32 %v4185
    %4188 = vmin.xlane.f32.xlu0 %v4187
    %v4189 = vpop.xlane.xlu0 %4188
    %vm4190 = vcmp.eq.f32.partialorder %v4187, %v4189
    %v4191 = vsel %vm4190, %v4186, inf
    %4192 = vmin.xlane.f32.xlu0 %v4191
    %v4193 = vpop.xlane.xlu0 %4192
    %v4194 = vcvt.f32.s32 %v4193
    %v4195 = vcvt.f32.s32 %v4189
    %v4196 = vshll.u32 %v4195, 16
    %v4197 = vadd.s32 %v4196, %v4194
    %s4198 = scalar_lea.vmem [#allocation6], 32
    %v4199 = vld [vmem:[%s4198] sm:$0xff]
    %v4201 = vlaneseq
    %v4202 = vshrl.u32 %v4201, 7
    %v4203 = vsub.s32 0, %v4202
    %v4204 = vrot.slane %v4199, %v4203
    %4206 = vbcast.lane.b32.xlu0 %v4204, 256
    %v4207 = vpop.permute.xlu0 %4206
    %v4208 = vlaneseq
    %v4209 = vshrl.u32 %v4208, 7
    %v4210 = vsub.s32 1, %v4209
    %v4211 = vrot.slane %v4199, %v4210
    %4213 = vbcast.lane.b32.xlu0 %v4211, 256
    %v4214 = vpop.permute.xlu0 %4213
    %v4215 = vlaneseq
    %v4216 = vshrl.u32 %v4215, 7
    %v4217 = vsub.s32 2, %v4216
    %v4218 = vrot.slane %v4199, %v4217
    %4220 = vbcast.lane.b32.xlu0 %v4218, 256
    %v4221 = vpop.permute.xlu0 %4220
    %v4222 = vlaneseq
    %v4223 = vshrl.u32 %v4222, 7
    %v4224 = vsub.s32 3, %v4223
    %v4225 = vrot.slane %v4199, %v4224
    %4227 = vbcast.lane.b32.xlu0 %v4225, 256
    %v4228 = vpop.permute.xlu0 %4227
    %v4229 = vlaneseq
    %v4230 = vshrl.u32 %v4229, 7
    %v4231 = vsub.s32 4, %v4230
    %v4232 = vrot.slane %v4199, %v4231
    %4234 = vbcast.lane.b32.xlu0 %v4232, 256
    %v4235 = vpop.permute.xlu0 %4234
    %v4236 = vlaneseq
    %v4237 = vshrl.u32 %v4236, 7
    %v4238 = vsub.s32 5, %v4237
    %v4239 = vrot.slane %v4199, %v4238
    %4241 = vbcast.lane.b32.xlu0 %v4239, 256
    %v4242 = vpop.permute.xlu0 %4241
    %v4243 = vlaneseq
    %v4244 = vshrl.u32 %v4243, 7
    %v4245 = vsub.s32 6, %v4244
    %v4246 = vrot.slane %v4199, %v4245
    %4248 = vbcast.lane.b32.xlu0 %v4246, 256
    %v4249 = vpop.permute.xlu0 %4248
    %v4250 = vlaneseq
    %v4251 = vshrl.u32 %v4250, 7
    %v4252 = vsub.s32 7, %v4251
    %v4253 = vrot.slane %v4199, %v4252
    %4255 = vbcast.lane.b32.xlu0 %v4253, 256
    %v4256 = vpop.permute.xlu0 %4255
    %v4265 = vadd.f32 %v4040, %v4207
    %v4266 = vadd.f32 %v4043, %v4214
    %v4267 = vadd.f32 %v4046, %v4221
    %v4268 = vadd.f32 %v4049, %v4228
    %v4269 = vadd.f32 %v4052, %v4235
    %v4270 = vadd.f32 %v4055, %v4242
    %v4271 = vadd.f32 %v4058, %v4249
    %v4272 = vadd.f32 %v4061, %v4256
    %v4273 = vld [vmem:[%s1284] sm:$0xff]
    %vm4274 = vcmp.gt.f32.partialorder %v4273, 0.0
    %v4275 = vsel %vm4274, 1, 0
    %4276 = vset.pattern.permute.xlu0 0
    %4277 = vperm.xlu0 %4276, %v4275
    %v4278 = vpop.permute.xlu0 %4277
    %vm4279 = vcmp.eq.s32.totalorder %v4278, 1
    %v4280 = vlaneseq
    %v4281 = vshrl.u32 %v4280, 7
    %v4282 = vsub.s32 %v2557, %v4281
    %v4283 = vrot.slane %v4092, %v4282
    %v4284 = vlaneseq
    %v4285 = vshrl.u32 %v4284, 7
    %v4286 = vsub.s32 %v2557, %v4285
    %v4287 = vrot.slane %v4107, %v4286
    %v4288 = vlaneseq
    %v4289 = vshrl.u32 %v4288, 7
    %v4290 = vsub.s32 %v2557, %v4289
    %v4291 = vrot.slane %v4122, %v4290
    %v4292 = vlaneseq
    %v4293 = vshrl.u32 %v4292, 7
    %v4294 = vsub.s32 %v2557, %v4293
    %v4295 = vrot.slane %v4137, %v4294
    %v4296 = vlaneseq
    %v4297 = vshrl.u32 %v4296, 7
    %v4298 = vsub.s32 %v2557, %v4297
    %v4299 = vrot.slane %v4152, %v4298
    %v4300 = vlaneseq
    %v4301 = vshrl.u32 %v4300, 7
    %v4302 = vsub.s32 %v2557, %v4301
    %v4303 = vrot.slane %v4167, %v4302
    %v4304 = vlaneseq
    %v4305 = vshrl.u32 %v4304, 7
    %v4306 = vsub.s32 %v2557, %v4305
    %v4307 = vrot.slane %v4182, %v4306
    %v4308 = vlaneseq
    %v4309 = vshrl.u32 %v4308, 7
    %v4310 = vsub.s32 %v2557, %v4309
    %v4311 = vrot.slane %v4197, %v4310
    %v4312 = vsel %vm2940, %v4287, %v4283
    %v4313 = vsel %vm2942, %v4291, %v4312
    %v4314 = vsel %vm2944, %v4295, %v4313
    %v4315 = vsel %vm2946, %v4299, %v4314
    %v4316 = vsel %vm2948, %v4303, %v4315
    %v4317 = vsel %vm2950, %v4307, %v4316
    %v4318 = vsel %vm2952, %v4311, %v4317
    %v4319 = vsel %vm4279, %v4318, %v2557
    %s4320 = scalar_lea.vmem [#allocation7], 32
    %4321 = vst.msk [vmem:[%s4320] sm:$0xff] %vm2546, %v4319
    %4330 = vset.pattern.permute.xlu0 0
    %4331 = vperm.xlu0 %4330, %v4265
    %v4332 = vpop.permute.xlu0 %4331
    %4333 = vset.pattern.permute.xlu0 0
    %4334 = vperm.xlu0 %4333, %v4266
    %v4335 = vpop.permute.xlu0 %4334
    %4336 = vset.pattern.permute.xlu0 0
    %4337 = vperm.xlu0 %4336, %v4267
    %v4338 = vpop.permute.xlu0 %4337
    %4339 = vset.pattern.permute.xlu0 0
    %4340 = vperm.xlu0 %4339, %v4268
    %v4341 = vpop.permute.xlu0 %4340
    %4342 = vset.pattern.permute.xlu0 0
    %4343 = vperm.xlu0 %4342, %v4269
    %v4344 = vpop.permute.xlu0 %4343
    %4345 = vset.pattern.permute.xlu0 0
    %4346 = vperm.xlu0 %4345, %v4270
    %v4347 = vpop.permute.xlu0 %4346
    %4348 = vset.pattern.permute.xlu0 0
    %4349 = vperm.xlu0 %4348, %v4271
    %v4350 = vpop.permute.xlu0 %4349
    %4351 = vset.pattern.permute.xlu0 0
    %4352 = vperm.xlu0 %4351, %v4272
    %v4353 = vpop.permute.xlu0 %4352
    %v4354 = vlaneseq
    %v4355 = vshrl.u32 %v4354, 7
    %v4356 = vsub.s32 %v2557, %v4355
    %v4357 = vrot.slane %v4332, %v4356
    %v4358 = vlaneseq
    %v4359 = vshrl.u32 %v4358, 7
    %v4360 = vsub.s32 %v2557, %v4359
    %v4361 = vrot.slane %v4335, %v4360
    %v4362 = vlaneseq
    %v4363 = vshrl.u32 %v4362, 7
    %v4364 = vsub.s32 %v2557, %v4363
    %v4365 = vrot.slane %v4338, %v4364
    %v4366 = vlaneseq
    %v4367 = vshrl.u32 %v4366, 7
    %v4368 = vsub.s32 %v2557, %v4367
    %v4369 = vrot.slane %v4341, %v4368
    %v4370 = vlaneseq
    %v4371 = vshrl.u32 %v4370, 7
    %v4372 = vsub.s32 %v2557, %v4371
    %v4373 = vrot.slane %v4344, %v4372
    %v4374 = vlaneseq
    %v4375 = vshrl.u32 %v4374, 7
    %v4376 = vsub.s32 %v2557, %v4375
    %v4377 = vrot.slane %v4347, %v4376
    %v4378 = vlaneseq
    %v4379 = vshrl.u32 %v4378, 7
    %v4380 = vsub.s32 %v2557, %v4379
    %v4381 = vrot.slane %v4350, %v4380
    %v4382 = vlaneseq
    %v4383 = vshrl.u32 %v4382, 7
    %v4384 = vsub.s32 %v2557, %v4383
    %v4385 = vrot.slane %v4353, %v4384
    %v4386 = vsel %vm2940, %v4361, %v4357
    %v4387 = vsel %vm2942, %v4365, %v4386
    %v4388 = vsel %vm2944, %v4369, %v4387
    %v4389 = vsel %vm2946, %v4373, %v4388
    %v4390 = vsel %vm2948, %v4377, %v4389
    %v4391 = vsel %vm2950, %v4381, %v4390
    %v4392 = vsel %vm2952, %v4385, %v4391
    %v4394 = vsel %vm4279, %v4392, %v3939
    %v4396 = vcombine.high %v4394, %v4394
    %v4398 = vunpack.c.l.s4 1966171168
    %v4399 = vunpack.c.0.s8 %v4398
    %v4400 = vlaneseq
    %v4401 = vshrl.u32 %v4400, 7
    %v4402 = vsub.s32 %v4399, %v4401
    %v4403 = vrot.slane %v4394, %v4402
    %v4405 = vunpack.c.l.s4 1966171168
    %v4406 = vunpack.c.0.s8 %v4405
    %v4407 = vlaneseq
    %v4408 = vshrl.u32 %v4407, 7
    %v4409 = vsub.s32 %v4406, %v4408
    %v4410 = vrot.slane %v4396, %v4409
    %v4411 = vcombine.high %v4403, %v4403
    %v4412 = vcombine.high %v4410, %v4410
    %v4414 = vunpack.c.l.s4 1966171168
    %v4415 = vunpack.c.0.s8 %v4414
    %v4416 = vlaneseq
    %v4417 = vshrl.u32 %v4416, 7
    %v4418 = vsub.s32 %v4415, %v4417
    %v4419 = vrot.slane %v4403, %v4418
    %v4421 = vunpack.c.l.s4 1966171168
    %v4422 = vunpack.c.0.s8 %v4421
    %v4423 = vlaneseq
    %v4424 = vshrl.u32 %v4423, 7
    %v4425 = vsub.s32 %v4422, %v4424
    %v4426 = vrot.slane %v4410, %v4425
    %v4428 = vunpack.c.l.s4 1966171168
    %v4429 = vunpack.c.0.s8 %v4428
    %v4430 = vlaneseq
    %v4431 = vshrl.u32 %v4430, 7
    %v4432 = vsub.s32 %v4429, %v4431
    %v4433 = vrot.slane %v4411, %v4432
    %v4435 = vunpack.c.l.s4 1966171168
    %v4436 = vunpack.c.0.s8 %v4435
    %v4437 = vlaneseq
    %v4438 = vshrl.u32 %v4437, 7
    %v4439 = vsub.s32 %v4436, %v4438
    %v4440 = vrot.slane %v4412, %v4439
    %v4441 = vcombine.high %v4419, %v4419
    %v4442 = vcombine.high %v4426, %v4426
    %v4443 = vcombine.high %v4433, %v4433
    %v4444 = vcombine.high %v4440, %v4440
    %v4445 = vlaneseq
    %v4446 = vshrl.u32 %v4445, 7
    %v4447 = vsub.s32 0, %v4446
    %v4448 = vrot.slane %v4419, %v4447
    %v4449 = vlaneseq
    %v4450 = vshrl.u32 %v4449, 7
    %v4451 = vsub.s32 0, %v4450
    %v4452 = vrot.slane %v4433, %v4451
    %v4453 = vlaneseq
    %v4454 = vshrl.u32 %v4453, 7
    %v4455 = vsub.s32 0, %v4454
    %v4456 = vrot.slane %v4441, %v4455
    %v4457 = vlaneseq
    %v4458 = vshrl.u32 %v4457, 7
    %v4459 = vsub.s32 0, %v4458
    %v4460 = vrot.slane %v4443, %v4459
    %v4461 = vlaneseq
    %v4462 = vshrl.u32 %v4461, 7
    %v4463 = vsub.s32 0, %v4462
    %v4464 = vrot.slane %v4426, %v4463
    %v4465 = vlaneseq
    %v4466 = vshrl.u32 %v4465, 7
    %v4467 = vsub.s32 0, %v4466
    %v4468 = vrot.slane %v4440, %v4467
    %v4469 = vlaneseq
    %v4470 = vshrl.u32 %v4469, 7
    %v4471 = vsub.s32 0, %v4470
    %v4472 = vrot.slane %v4442, %v4471
    %v4473 = vlaneseq
    %v4474 = vshrl.u32 %v4473, 7
    %v4475 = vsub.s32 0, %v4474
    %v4476 = vrot.slane %v4444, %v4475
    %v4485 = vadd.f32 %v4448, %v2555
    %v4486 = vadd.f32 %v4452, %v2555
    %v4487 = vadd.f32 %v4456, %v2555
    %v4488 = vadd.f32 %v4460, %v2555
    %v4489 = vadd.f32 %v4464, %v2555
    %v4490 = vadd.f32 %v4468, %v2555
    %v4491 = vadd.f32 %v4472, %v2555
    %v4492 = vadd.f32 %v4476, %v2555
    %v4493 = vsel %vm2546, %v4485, -inf
    %4494 = vmax.xlane.f32.xlu0 %v4493
    %v4495 = vpop.xlane.xlu0 %4494
    %v4496 = vsel %vm2546, %v4486, -inf
    %4497 = vmax.xlane.f32.xlu0 %v4496
    %v4498 = vpop.xlane.xlu0 %4497
    %v4499 = vsel %vm2546, %v4487, -inf
    %4500 = vmax.xlane.f32.xlu0 %v4499
    %v4501 = vpop.xlane.xlu0 %4500
    %v4502 = vsel %vm2546, %v4488, -inf
    %4503 = vmax.xlane.f32.xlu0 %v4502
    %v4504 = vpop.xlane.xlu0 %4503
    %v4505 = vsel %vm2546, %v4489, -inf
    %4506 = vmax.xlane.f32.xlu0 %v4505
    %v4507 = vpop.xlane.xlu0 %4506
    %v4508 = vsel %vm2546, %v4490, -inf
    %4509 = vmax.xlane.f32.xlu0 %v4508
    %v4510 = vpop.xlane.xlu0 %4509
    %v4511 = vsel %vm2546, %v4491, -inf
    %4512 = vmax.xlane.f32.xlu0 %v4511
    %v4513 = vpop.xlane.xlu0 %4512
    %v4514 = vsel %vm2546, %v4492, -inf
    %4515 = vmax.xlane.f32.xlu0 %v4514
    %v4516 = vpop.xlane.xlu0 %4515
    %vm4517 = vcmp.ge.f32.partialorder %v4485, %v4495
    %vm4518 = vcmp.ge.f32.partialorder %v4486, %v4498
    %vm4519 = vcmp.ge.f32.partialorder %v4487, %v4501
    %vm4520 = vcmp.ge.f32.partialorder %v4488, %v4504
    %vm4521 = vcmp.ge.f32.partialorder %v4489, %v4507
    %vm4522 = vcmp.ge.f32.partialorder %v4490, %v4510
    %vm4523 = vcmp.ge.f32.partialorder %v4491, %v4513
    %vm4524 = vcmp.ge.f32.partialorder %v4492, %v4516
    %v4525 = vsel %vm4517, %v2557, 8
    %v4526 = vsel %vm4518, %v2557, 8
    %v4527 = vsel %vm4519, %v2557, 8
    %v4528 = vsel %vm4520, %v2557, 8
    %v4529 = vsel %vm4521, %v2557, 8
    %v4530 = vsel %vm4522, %v2557, 8
    %v4531 = vsel %vm4523, %v2557, 8
    %v4532 = vsel %vm4524, %v2557, 8
    %v4533 = vsel %vm2546, %v4525, 2147483647
    %v4534 = vand.u32 %v4533, 65535
    %v4535 = vshra.s32 %v4533, 16
    %v4536 = vcvt.s32.f32 %v4534
    %v4537 = vcvt.s32.f32 %v4535
    %4538 = vmin.xlane.f32.xlu0 %v4537
    %v4539 = vpop.xlane.xlu0 %4538
    %vm4540 = vcmp.eq.f32.partialorder %v4537, %v4539
    %v4541 = vsel %vm4540, %v4536, inf
    %4542 = vmin.xlane.f32.xlu0 %v4541
    %v4543 = vpop.xlane.xlu0 %4542
    %v4544 = vcvt.f32.s32 %v4543
    %v4545 = vcvt.f32.s32 %v4539
    %v4546 = vshll.u32 %v4545, 16
    %v4547 = vadd.s32 %v4546, %v4544
    %v4548 = vsel %vm2546, %v4526, 2147483647
    %v4549 = vand.u32 %v4548, 65535
    %v4550 = vshra.s32 %v4548, 16
    %v4551 = vcvt.s32.f32 %v4549
    %v4552 = vcvt.s32.f32 %v4550
    %4553 = vmin.xlane.f32.xlu0 %v4552
    %v4554 = vpop.xlane.xlu0 %4553
    %vm4555 = vcmp.eq.f32.partialorder %v4552, %v4554
    %v4556 = vsel %vm4555, %v4551, inf
    %4557 = vmin.xlane.f32.xlu0 %v4556
    %v4558 = vpop.xlane.xlu0 %4557
    %v4559 = vcvt.f32.s32 %v4558
    %v4560 = vcvt.f32.s32 %v4554
    %v4561 = vshll.u32 %v4560, 16
    %v4562 = vadd.s32 %v4561, %v4559
    %v4563 = vsel %vm2546, %v4527, 2147483647
    %v4564 = vand.u32 %v4563, 65535
    %v4565 = vshra.s32 %v4563, 16
    %v4566 = vcvt.s32.f32 %v4564
    %v4567 = vcvt.s32.f32 %v4565
    %4568 = vmin.xlane.f32.xlu0 %v4567
    %v4569 = vpop.xlane.xlu0 %4568
    %vm4570 = vcmp.eq.f32.partialorder %v4567, %v4569
    %v4571 = vsel %vm4570, %v4566, inf
    %4572 = vmin.xlane.f32.xlu0 %v4571
    %v4573 = vpop.xlane.xlu0 %4572
    %v4574 = vcvt.f32.s32 %v4573
    %v4575 = vcvt.f32.s32 %v4569
    %v4576 = vshll.u32 %v4575, 16
    %v4577 = vadd.s32 %v4576, %v4574
    %v4578 = vsel %vm2546, %v4528, 2147483647
    %v4579 = vand.u32 %v4578, 65535
    %v4580 = vshra.s32 %v4578, 16
    %v4581 = vcvt.s32.f32 %v4579
    %v4582 = vcvt.s32.f32 %v4580
    %4583 = vmin.xlane.f32.xlu0 %v4582
    %v4584 = vpop.xlane.xlu0 %4583
    %vm4585 = vcmp.eq.f32.partialorder %v4582, %v4584
    %v4586 = vsel %vm4585, %v4581, inf
    %4587 = vmin.xlane.f32.xlu0 %v4586
    %v4588 = vpop.xlane.xlu0 %4587
    %v4589 = vcvt.f32.s32 %v4588
    %v4590 = vcvt.f32.s32 %v4584
    %v4591 = vshll.u32 %v4590, 16
    %v4592 = vadd.s32 %v4591, %v4589
    %v4593 = vsel %vm2546, %v4529, 2147483647
    %v4594 = vand.u32 %v4593, 65535
    %v4595 = vshra.s32 %v4593, 16
    %v4596 = vcvt.s32.f32 %v4594
    %v4597 = vcvt.s32.f32 %v4595
    %4598 = vmin.xlane.f32.xlu0 %v4597
    %v4599 = vpop.xlane.xlu0 %4598
    %vm4600 = vcmp.eq.f32.partialorder %v4597, %v4599
    %v4601 = vsel %vm4600, %v4596, inf
    %4602 = vmin.xlane.f32.xlu0 %v4601
    %v4603 = vpop.xlane.xlu0 %4602
    %v4604 = vcvt.f32.s32 %v4603
    %v4605 = vcvt.f32.s32 %v4599
    %v4606 = vshll.u32 %v4605, 16
    %v4607 = vadd.s32 %v4606, %v4604
    %v4608 = vsel %vm2546, %v4530, 2147483647
    %v4609 = vand.u32 %v4608, 65535
    %v4610 = vshra.s32 %v4608, 16
    %v4611 = vcvt.s32.f32 %v4609
    %v4612 = vcvt.s32.f32 %v4610
    %4613 = vmin.xlane.f32.xlu0 %v4612
    %v4614 = vpop.xlane.xlu0 %4613
    %vm4615 = vcmp.eq.f32.partialorder %v4612, %v4614
    %v4616 = vsel %vm4615, %v4611, inf
    %4617 = vmin.xlane.f32.xlu0 %v4616
    %v4618 = vpop.xlane.xlu0 %4617
    %v4619 = vcvt.f32.s32 %v4618
    %v4620 = vcvt.f32.s32 %v4614
    %v4621 = vshll.u32 %v4620, 16
    %v4622 = vadd.s32 %v4621, %v4619
    %v4623 = vsel %vm2546, %v4531, 2147483647
    %v4624 = vand.u32 %v4623, 65535
    %v4625 = vshra.s32 %v4623, 16
    %v4626 = vcvt.s32.f32 %v4624
    %v4627 = vcvt.s32.f32 %v4625
    %4628 = vmin.xlane.f32.xlu0 %v4627
    %v4629 = vpop.xlane.xlu0 %4628
    %vm4630 = vcmp.eq.f32.partialorder %v4627, %v4629
    %v4631 = vsel %vm4630, %v4626, inf
    %4632 = vmin.xlane.f32.xlu0 %v4631
    %v4633 = vpop.xlane.xlu0 %4632
    %v4634 = vcvt.f32.s32 %v4633
    %v4635 = vcvt.f32.s32 %v4629
    %v4636 = vshll.u32 %v4635, 16
    %v4637 = vadd.s32 %v4636, %v4634
    %v4638 = vsel %vm2546, %v4532, 2147483647
    %v4639 = vand.u32 %v4638, 65535
    %v4640 = vshra.s32 %v4638, 16
    %v4641 = vcvt.s32.f32 %v4639
    %v4642 = vcvt.s32.f32 %v4640
    %4643 = vmin.xlane.f32.xlu0 %v4642
    %v4644 = vpop.xlane.xlu0 %4643
    %vm4645 = vcmp.eq.f32.partialorder %v4642, %v4644
    %v4646 = vsel %vm4645, %v4641, inf
    %4647 = vmin.xlane.f32.xlu0 %v4646
    %v4648 = vpop.xlane.xlu0 %4647
    %v4649 = vcvt.f32.s32 %v4648
    %v4650 = vcvt.f32.s32 %v4644
    %v4651 = vshll.u32 %v4650, 16
    %v4652 = vadd.s32 %v4651, %v4649
    %s4653 = scalar_lea.vmem [#allocation6], 40
    %v4654 = vld [vmem:[%s4653] sm:$0xff]
    %v4656 = vlaneseq
    %v4657 = vshrl.u32 %v4656, 7
    %v4658 = vsub.s32 0, %v4657
    %v4659 = vrot.slane %v4654, %v4658
    %4661 = vbcast.lane.b32.xlu0 %v4659, 256
    %v4662 = vpop.permute.xlu0 %4661
    %v4663 = vlaneseq
    %v4664 = vshrl.u32 %v4663, 7
    %v4665 = vsub.s32 1, %v4664
    %v4666 = vrot.slane %v4654, %v4665
    %4668 = vbcast.lane.b32.xlu0 %v4666, 256
    %v4669 = vpop.permute.xlu0 %4668
    %v4670 = vlaneseq
    %v4671 = vshrl.u32 %v4670, 7
    %v4672 = vsub.s32 2, %v4671
    %v4673 = vrot.slane %v4654, %v4672
    %4675 = vbcast.lane.b32.xlu0 %v4673, 256
    %v4676 = vpop.permute.xlu0 %4675
    %v4677 = vlaneseq
    %v4678 = vshrl.u32 %v4677, 7
    %v4679 = vsub.s32 3, %v4678
    %v4680 = vrot.slane %v4654, %v4679
    %4682 = vbcast.lane.b32.xlu0 %v4680, 256
    %v4683 = vpop.permute.xlu0 %4682
    %v4684 = vlaneseq
    %v4685 = vshrl.u32 %v4684, 7
    %v4686 = vsub.s32 4, %v4685
    %v4687 = vrot.slane %v4654, %v4686
    %4689 = vbcast.lane.b32.xlu0 %v4687, 256
    %v4690 = vpop.permute.xlu0 %4689
    %v4691 = vlaneseq
    %v4692 = vshrl.u32 %v4691, 7
    %v4693 = vsub.s32 5, %v4692
    %v4694 = vrot.slane %v4654, %v4693
    %4696 = vbcast.lane.b32.xlu0 %v4694, 256
    %v4697 = vpop.permute.xlu0 %4696
    %v4698 = vlaneseq
    %v4699 = vshrl.u32 %v4698, 7
    %v4700 = vsub.s32 6, %v4699
    %v4701 = vrot.slane %v4654, %v4700
    %4703 = vbcast.lane.b32.xlu0 %v4701, 256
    %v4704 = vpop.permute.xlu0 %4703
    %v4705 = vlaneseq
    %v4706 = vshrl.u32 %v4705, 7
    %v4707 = vsub.s32 7, %v4706
    %v4708 = vrot.slane %v4654, %v4707
    %4710 = vbcast.lane.b32.xlu0 %v4708, 256
    %v4711 = vpop.permute.xlu0 %4710
    %v4720 = vadd.f32 %v4495, %v4662
    %v4721 = vadd.f32 %v4498, %v4669
    %v4722 = vadd.f32 %v4501, %v4676
    %v4723 = vadd.f32 %v4504, %v4683
    %v4724 = vadd.f32 %v4507, %v4690
    %v4725 = vadd.f32 %v4510, %v4697
    %v4726 = vadd.f32 %v4513, %v4704
    %v4727 = vadd.f32 %v4516, %v4711
    %v4728 = vld [vmem:[%s1046] sm:$0xff]
    %vm4729 = vcmp.gt.f32.partialorder %v4728, 0.0
    %v4730 = vsel %vm4729, 1, 0
    %4731 = vset.pattern.permute.xlu0 0
    %4732 = vperm.xlu0 %4731, %v4730
    %v4733 = vpop.permute.xlu0 %4732
    %vm4734 = vcmp.eq.s32.totalorder %v4733, 1
    %v4735 = vlaneseq
    %v4736 = vshrl.u32 %v4735, 7
    %v4737 = vsub.s32 %v2557, %v4736
    %v4738 = vrot.slane %v4547, %v4737
    %v4739 = vlaneseq
    %v4740 = vshrl.u32 %v4739, 7
    %v4741 = vsub.s32 %v2557, %v4740
    %v4742 = vrot.slane %v4562, %v4741
    %v4743 = vlaneseq
    %v4744 = vshrl.u32 %v4743, 7
    %v4745 = vsub.s32 %v2557, %v4744
    %v4746 = vrot.slane %v4577, %v4745
    %v4747 = vlaneseq
    %v4748 = vshrl.u32 %v4747, 7
    %v4749 = vsub.s32 %v2557, %v4748
    %v4750 = vrot.slane %v4592, %v4749
    %v4751 = vlaneseq
    %v4752 = vshrl.u32 %v4751, 7
    %v4753 = vsub.s32 %v2557, %v4752
    %v4754 = vrot.slane %v4607, %v4753
    %v4755 = vlaneseq
    %v4756 = vshrl.u32 %v4755, 7
    %v4757 = vsub.s32 %v2557, %v4756
    %v4758 = vrot.slane %v4622, %v4757
    %v4759 = vlaneseq
    %v4760 = vshrl.u32 %v4759, 7
    %v4761 = vsub.s32 %v2557, %v4760
    %v4762 = vrot.slane %v4637, %v4761
    %v4763 = vlaneseq
    %v4764 = vshrl.u32 %v4763, 7
    %v4765 = vsub.s32 %v2557, %v4764
    %v4766 = vrot.slane %v4652, %v4765
    %v4767 = vsel %vm2940, %v4742, %v4738
    %v4768 = vsel %vm2942, %v4746, %v4767
    %v4769 = vsel %vm2944, %v4750, %v4768
    %v4770 = vsel %vm2946, %v4754, %v4769
    %v4771 = vsel %vm2948, %v4758, %v4770
    %v4772 = vsel %vm2950, %v4762, %v4771
    %v4773 = vsel %vm2952, %v4766, %v4772
    %v4774 = vsel %vm4734, %v4773, %v2557
    %s4775 = scalar_lea.vmem [#allocation7], 40
    %4776 = vst.msk [vmem:[%s4775] sm:$0xff] %vm2546, %v4774
    %4785 = vset.pattern.permute.xlu0 0
    %4786 = vperm.xlu0 %4785, %v4720
    %v4787 = vpop.permute.xlu0 %4786
    %4788 = vset.pattern.permute.xlu0 0
    %4789 = vperm.xlu0 %4788, %v4721
    %v4790 = vpop.permute.xlu0 %4789
    %4791 = vset.pattern.permute.xlu0 0
    %4792 = vperm.xlu0 %4791, %v4722
    %v4793 = vpop.permute.xlu0 %4792
    %4794 = vset.pattern.permute.xlu0 0
    %4795 = vperm.xlu0 %4794, %v4723
    %v4796 = vpop.permute.xlu0 %4795
    %4797 = vset.pattern.permute.xlu0 0
    %4798 = vperm.xlu0 %4797, %v4724
    %v4799 = vpop.permute.xlu0 %4798
    %4800 = vset.pattern.permute.xlu0 0
    %4801 = vperm.xlu0 %4800, %v4725
    %v4802 = vpop.permute.xlu0 %4801
    %4803 = vset.pattern.permute.xlu0 0
    %4804 = vperm.xlu0 %4803, %v4726
    %v4805 = vpop.permute.xlu0 %4804
    %4806 = vset.pattern.permute.xlu0 0
    %4807 = vperm.xlu0 %4806, %v4727
    %v4808 = vpop.permute.xlu0 %4807
    %v4809 = vlaneseq
    %v4810 = vshrl.u32 %v4809, 7
    %v4811 = vsub.s32 %v2557, %v4810
    %v4812 = vrot.slane %v4787, %v4811
    %v4813 = vlaneseq
    %v4814 = vshrl.u32 %v4813, 7
    %v4815 = vsub.s32 %v2557, %v4814
    %v4816 = vrot.slane %v4790, %v4815
    %v4817 = vlaneseq
    %v4818 = vshrl.u32 %v4817, 7
    %v4819 = vsub.s32 %v2557, %v4818
    %v4820 = vrot.slane %v4793, %v4819
    %v4821 = vlaneseq
    %v4822 = vshrl.u32 %v4821, 7
    %v4823 = vsub.s32 %v2557, %v4822
    %v4824 = vrot.slane %v4796, %v4823
    %v4825 = vlaneseq
    %v4826 = vshrl.u32 %v4825, 7
    %v4827 = vsub.s32 %v2557, %v4826
    %v4828 = vrot.slane %v4799, %v4827
    %v4829 = vlaneseq
    %v4830 = vshrl.u32 %v4829, 7
    %v4831 = vsub.s32 %v2557, %v4830
    %v4832 = vrot.slane %v4802, %v4831
    %v4833 = vlaneseq
    %v4834 = vshrl.u32 %v4833, 7
    %v4835 = vsub.s32 %v2557, %v4834
    %v4836 = vrot.slane %v4805, %v4835
    %v4837 = vlaneseq
    %v4838 = vshrl.u32 %v4837, 7
    %v4839 = vsub.s32 %v2557, %v4838
    %v4840 = vrot.slane %v4808, %v4839
    %v4841 = vsel %vm2940, %v4816, %v4812
    %v4842 = vsel %vm2942, %v4820, %v4841
    %v4843 = vsel %vm2944, %v4824, %v4842
    %v4844 = vsel %vm2946, %v4828, %v4843
    %v4845 = vsel %vm2948, %v4832, %v4844
    %v4846 = vsel %vm2950, %v4836, %v4845
    %v4847 = vsel %vm2952, %v4840, %v4846
    %v4849 = vsel %vm4734, %v4847, %v4394
    %v4851 = vcombine.high %v4849, %v4849
    %v4853 = vunpack.c.l.s4 1966171168
    %v4854 = vunpack.c.0.s8 %v4853
    %v4855 = vlaneseq
    %v4856 = vshrl.u32 %v4855, 7
    %v4857 = vsub.s32 %v4854, %v4856
    %v4858 = vrot.slane %v4849, %v4857
    %v4860 = vunpack.c.l.s4 1966171168
    %v4861 = vunpack.c.0.s8 %v4860
    %v4862 = vlaneseq
    %v4863 = vshrl.u32 %v4862, 7
    %v4864 = vsub.s32 %v4861, %v4863
    %v4865 = vrot.slane %v4851, %v4864
    %v4866 = vcombine.high %v4858, %v4858
    %v4867 = vcombine.high %v4865, %v4865
    %v4869 = vunpack.c.l.s4 1966171168
    %v4870 = vunpack.c.0.s8 %v4869
    %v4871 = vlaneseq
    %v4872 = vshrl.u32 %v4871, 7
    %v4873 = vsub.s32 %v4870, %v4872
    %v4874 = vrot.slane %v4858, %v4873
    %v4876 = vunpack.c.l.s4 1966171168
    %v4877 = vunpack.c.0.s8 %v4876
    %v4878 = vlaneseq
    %v4879 = vshrl.u32 %v4878, 7
    %v4880 = vsub.s32 %v4877, %v4879
    %v4881 = vrot.slane %v4865, %v4880
    %v4883 = vunpack.c.l.s4 1966171168
    %v4884 = vunpack.c.0.s8 %v4883
    %v4885 = vlaneseq
    %v4886 = vshrl.u32 %v4885, 7
    %v4887 = vsub.s32 %v4884, %v4886
    %v4888 = vrot.slane %v4866, %v4887
    %v4890 = vunpack.c.l.s4 1966171168
    %v4891 = vunpack.c.0.s8 %v4890
    %v4892 = vlaneseq
    %v4893 = vshrl.u32 %v4892, 7
    %v4894 = vsub.s32 %v4891, %v4893
    %v4895 = vrot.slane %v4867, %v4894
    %v4896 = vcombine.high %v4874, %v4874
    %v4897 = vcombine.high %v4881, %v4881
    %v4898 = vcombine.high %v4888, %v4888
    %v4899 = vcombine.high %v4895, %v4895
    %v4900 = vlaneseq
    %v4901 = vshrl.u32 %v4900, 7
    %v4902 = vsub.s32 0, %v4901
    %v4903 = vrot.slane %v4874, %v4902
    %v4904 = vlaneseq
    %v4905 = vshrl.u32 %v4904, 7
    %v4906 = vsub.s32 0, %v4905
    %v4907 = vrot.slane %v4888, %v4906
    %v4908 = vlaneseq
    %v4909 = vshrl.u32 %v4908, 7
    %v4910 = vsub.s32 0, %v4909
    %v4911 = vrot.slane %v4896, %v4910
    %v4912 = vlaneseq
    %v4913 = vshrl.u32 %v4912, 7
    %v4914 = vsub.s32 0, %v4913
    %v4915 = vrot.slane %v4898, %v4914
    %v4916 = vlaneseq
    %v4917 = vshrl.u32 %v4916, 7
    %v4918 = vsub.s32 0, %v4917
    %v4919 = vrot.slane %v4881, %v4918
    %v4920 = vlaneseq
    %v4921 = vshrl.u32 %v4920, 7
    %v4922 = vsub.s32 0, %v4921
    %v4923 = vrot.slane %v4895, %v4922
    %v4924 = vlaneseq
    %v4925 = vshrl.u32 %v4924, 7
    %v4926 = vsub.s32 0, %v4925
    %v4927 = vrot.slane %v4897, %v4926
    %v4928 = vlaneseq
    %v4929 = vshrl.u32 %v4928, 7
    %v4930 = vsub.s32 0, %v4929
    %v4931 = vrot.slane %v4899, %v4930
    %v4940 = vadd.f32 %v4903, %v2555
    %v4941 = vadd.f32 %v4907, %v2555
    %v4942 = vadd.f32 %v4911, %v2555
    %v4943 = vadd.f32 %v4915, %v2555
    %v4944 = vadd.f32 %v4919, %v2555
    %v4945 = vadd.f32 %v4923, %v2555
    %v4946 = vadd.f32 %v4927, %v2555
    %v4947 = vadd.f32 %v4931, %v2555
    %v4948 = vsel %vm2546, %v4940, -inf
    %4949 = vmax.xlane.f32.xlu0 %v4948
    %v4950 = vpop.xlane.xlu0 %4949
    %v4951 = vsel %vm2546, %v4941, -inf
    %4952 = vmax.xlane.f32.xlu0 %v4951
    %v4953 = vpop.xlane.xlu0 %4952
    %v4954 = vsel %vm2546, %v4942, -inf
    %4955 = vmax.xlane.f32.xlu0 %v4954
    %v4956 = vpop.xlane.xlu0 %4955
    %v4957 = vsel %vm2546, %v4943, -inf
    %4958 = vmax.xlane.f32.xlu0 %v4957
    %v4959 = vpop.xlane.xlu0 %4958
    %v4960 = vsel %vm2546, %v4944, -inf
    %4961 = vmax.xlane.f32.xlu0 %v4960
    %v4962 = vpop.xlane.xlu0 %4961
    %v4963 = vsel %vm2546, %v4945, -inf
    %4964 = vmax.xlane.f32.xlu0 %v4963
    %v4965 = vpop.xlane.xlu0 %4964
    %v4966 = vsel %vm2546, %v4946, -inf
    %4967 = vmax.xlane.f32.xlu0 %v4966
    %v4968 = vpop.xlane.xlu0 %4967
    %v4969 = vsel %vm2546, %v4947, -inf
    %4970 = vmax.xlane.f32.xlu0 %v4969
    %v4971 = vpop.xlane.xlu0 %4970
    %vm4972 = vcmp.ge.f32.partialorder %v4940, %v4950
    %vm4973 = vcmp.ge.f32.partialorder %v4941, %v4953
    %vm4974 = vcmp.ge.f32.partialorder %v4942, %v4956
    %vm4975 = vcmp.ge.f32.partialorder %v4943, %v4959
    %vm4976 = vcmp.ge.f32.partialorder %v4944, %v4962
    %vm4977 = vcmp.ge.f32.partialorder %v4945, %v4965
    %vm4978 = vcmp.ge.f32.partialorder %v4946, %v4968
    %vm4979 = vcmp.ge.f32.partialorder %v4947, %v4971
    %v4980 = vsel %vm4972, %v2557, 8
    %v4981 = vsel %vm4973, %v2557, 8
    %v4982 = vsel %vm4974, %v2557, 8
    %v4983 = vsel %vm4975, %v2557, 8
    %v4984 = vsel %vm4976, %v2557, 8
    %v4985 = vsel %vm4977, %v2557, 8
    %v4986 = vsel %vm4978, %v2557, 8
    %v4987 = vsel %vm4979, %v2557, 8
    %v4988 = vsel %vm2546, %v4980, 2147483647
    %v4989 = vand.u32 %v4988, 65535
    %v4990 = vshra.s32 %v4988, 16
    %v4991 = vcvt.s32.f32 %v4989
    %v4992 = vcvt.s32.f32 %v4990
    %4993 = vmin.xlane.f32.xlu0 %v4992
    %v4994 = vpop.xlane.xlu0 %4993
    %vm4995 = vcmp.eq.f32.partialorder %v4992, %v4994
    %v4996 = vsel %vm4995, %v4991, inf
    %4997 = vmin.xlane.f32.xlu0 %v4996
    %v4998 = vpop.xlane.xlu0 %4997
    %v4999 = vcvt.f32.s32 %v4998
    %v5000 = vcvt.f32.s32 %v4994
    %v5001 = vshll.u32 %v5000, 16
    %v5002 = vadd.s32 %v5001, %v4999
    %v5003 = vsel %vm2546, %v4981, 2147483647
    %v5004 = vand.u32 %v5003, 65535
    %v5005 = vshra.s32 %v5003, 16
    %v5006 = vcvt.s32.f32 %v5004
    %v5007 = vcvt.s32.f32 %v5005
    %5008 = vmin.xlane.f32.xlu0 %v5007
    %v5009 = vpop.xlane.xlu0 %5008
    %vm5010 = vcmp.eq.f32.partialorder %v5007, %v5009
    %v5011 = vsel %vm5010, %v5006, inf
    %5012 = vmin.xlane.f32.xlu0 %v5011
    %v5013 = vpop.xlane.xlu0 %5012
    %v5014 = vcvt.f32.s32 %v5013
    %v5015 = vcvt.f32.s32 %v5009
    %v5016 = vshll.u32 %v5015, 16
    %v5017 = vadd.s32 %v5016, %v5014
    %v5018 = vsel %vm2546, %v4982, 2147483647
    %v5019 = vand.u32 %v5018, 65535
    %v5020 = vshra.s32 %v5018, 16
    %v5021 = vcvt.s32.f32 %v5019
    %v5022 = vcvt.s32.f32 %v5020
    %5023 = vmin.xlane.f32.xlu0 %v5022
    %v5024 = vpop.xlane.xlu0 %5023
    %vm5025 = vcmp.eq.f32.partialorder %v5022, %v5024
    %v5026 = vsel %vm5025, %v5021, inf
    %5027 = vmin.xlane.f32.xlu0 %v5026
    %v5028 = vpop.xlane.xlu0 %5027
    %v5029 = vcvt.f32.s32 %v5028
    %v5030 = vcvt.f32.s32 %v5024
    %v5031 = vshll.u32 %v5030, 16
    %v5032 = vadd.s32 %v5031, %v5029
    %v5033 = vsel %vm2546, %v4983, 2147483647
    %v5034 = vand.u32 %v5033, 65535
    %v5035 = vshra.s32 %v5033, 16
    %v5036 = vcvt.s32.f32 %v5034
    %v5037 = vcvt.s32.f32 %v5035
    %5038 = vmin.xlane.f32.xlu0 %v5037
    %v5039 = vpop.xlane.xlu0 %5038
    %vm5040 = vcmp.eq.f32.partialorder %v5037, %v5039
    %v5041 = vsel %vm5040, %v5036, inf
    %5042 = vmin.xlane.f32.xlu0 %v5041
    %v5043 = vpop.xlane.xlu0 %5042
    %v5044 = vcvt.f32.s32 %v5043
    %v5045 = vcvt.f32.s32 %v5039
    %v5046 = vshll.u32 %v5045, 16
    %v5047 = vadd.s32 %v5046, %v5044
    %v5048 = vsel %vm2546, %v4984, 2147483647
    %v5049 = vand.u32 %v5048, 65535
    %v5050 = vshra.s32 %v5048, 16
    %v5051 = vcvt.s32.f32 %v5049
    %v5052 = vcvt.s32.f32 %v5050
    %5053 = vmin.xlane.f32.xlu0 %v5052
    %v5054 = vpop.xlane.xlu0 %5053
    %vm5055 = vcmp.eq.f32.partialorder %v5052, %v5054
    %v5056 = vsel %vm5055, %v5051, inf
    %5057 = vmin.xlane.f32.xlu0 %v5056
    %v5058 = vpop.xlane.xlu0 %5057
    %v5059 = vcvt.f32.s32 %v5058
    %v5060 = vcvt.f32.s32 %v5054
    %v5061 = vshll.u32 %v5060, 16
    %v5062 = vadd.s32 %v5061, %v5059
    %v5063 = vsel %vm2546, %v4985, 2147483647
    %v5064 = vand.u32 %v5063, 65535
    %v5065 = vshra.s32 %v5063, 16
    %v5066 = vcvt.s32.f32 %v5064
    %v5067 = vcvt.s32.f32 %v5065
    %5068 = vmin.xlane.f32.xlu0 %v5067
    %v5069 = vpop.xlane.xlu0 %5068
    %vm5070 = vcmp.eq.f32.partialorder %v5067, %v5069
    %v5071 = vsel %vm5070, %v5066, inf
    %5072 = vmin.xlane.f32.xlu0 %v5071
    %v5073 = vpop.xlane.xlu0 %5072
    %v5074 = vcvt.f32.s32 %v5073
    %v5075 = vcvt.f32.s32 %v5069
    %v5076 = vshll.u32 %v5075, 16
    %v5077 = vadd.s32 %v5076, %v5074
    %v5078 = vsel %vm2546, %v4986, 2147483647
    %v5079 = vand.u32 %v5078, 65535
    %v5080 = vshra.s32 %v5078, 16
    %v5081 = vcvt.s32.f32 %v5079
    %v5082 = vcvt.s32.f32 %v5080
    %5083 = vmin.xlane.f32.xlu0 %v5082
    %v5084 = vpop.xlane.xlu0 %5083
    %vm5085 = vcmp.eq.f32.partialorder %v5082, %v5084
    %v5086 = vsel %vm5085, %v5081, inf
    %5087 = vmin.xlane.f32.xlu0 %v5086
    %v5088 = vpop.xlane.xlu0 %5087
    %v5089 = vcvt.f32.s32 %v5088
    %v5090 = vcvt.f32.s32 %v5084
    %v5091 = vshll.u32 %v5090, 16
    %v5092 = vadd.s32 %v5091, %v5089
    %v5093 = vsel %vm2546, %v4987, 2147483647
    %v5094 = vand.u32 %v5093, 65535
    %v5095 = vshra.s32 %v5093, 16
    %v5096 = vcvt.s32.f32 %v5094
    %v5097 = vcvt.s32.f32 %v5095
    %5098 = vmin.xlane.f32.xlu0 %v5097
    %v5099 = vpop.xlane.xlu0 %5098
    %vm5100 = vcmp.eq.f32.partialorder %v5097, %v5099
    %v5101 = vsel %vm5100, %v5096, inf
    %5102 = vmin.xlane.f32.xlu0 %v5101
    %v5103 = vpop.xlane.xlu0 %5102
    %v5104 = vcvt.f32.s32 %v5103
    %v5105 = vcvt.f32.s32 %v5099
    %v5106 = vshll.u32 %v5105, 16
    %v5107 = vadd.s32 %v5106, %v5104
    %s5108 = scalar_lea.vmem [#allocation6], 48
    %v5109 = vld [vmem:[%s5108] sm:$0xff]
    %v5111 = vlaneseq
    %v5112 = vshrl.u32 %v5111, 7
    %v5113 = vsub.s32 0, %v5112
    %v5114 = vrot.slane %v5109, %v5113
    %5116 = vbcast.lane.b32.xlu0 %v5114, 256
    %v5117 = vpop.permute.xlu0 %5116
    %v5118 = vlaneseq
    %v5119 = vshrl.u32 %v5118, 7
    %v5120 = vsub.s32 1, %v5119
    %v5121 = vrot.slane %v5109, %v5120
    %5123 = vbcast.lane.b32.xlu0 %v5121, 256
    %v5124 = vpop.permute.xlu0 %5123
    %v5125 = vlaneseq
    %v5126 = vshrl.u32 %v5125, 7
    %v5127 = vsub.s32 2, %v5126
    %v5128 = vrot.slane %v5109, %v5127
    %5130 = vbcast.lane.b32.xlu0 %v5128, 256
    %v5131 = vpop.permute.xlu0 %5130
    %v5132 = vlaneseq
    %v5133 = vshrl.u32 %v5132, 7
    %v5134 = vsub.s32 3, %v5133
    %v5135 = vrot.slane %v5109, %v5134
    %5137 = vbcast.lane.b32.xlu0 %v5135, 256
    %v5138 = vpop.permute.xlu0 %5137
    %v5139 = vlaneseq
    %v5140 = vshrl.u32 %v5139, 7
    %v5141 = vsub.s32 4, %v5140
    %v5142 = vrot.slane %v5109, %v5141
    %5144 = vbcast.lane.b32.xlu0 %v5142, 256
    %v5145 = vpop.permute.xlu0 %5144
    %v5146 = vlaneseq
    %v5147 = vshrl.u32 %v5146, 7
    %v5148 = vsub.s32 5, %v5147
    %v5149 = vrot.slane %v5109, %v5148
    %5151 = vbcast.lane.b32.xlu0 %v5149, 256
    %v5152 = vpop.permute.xlu0 %5151
    %v5153 = vlaneseq
    %v5154 = vshrl.u32 %v5153, 7
    %v5155 = vsub.s32 6, %v5154
    %v5156 = vrot.slane %v5109, %v5155
    %5158 = vbcast.lane.b32.xlu0 %v5156, 256
    %v5159 = vpop.permute.xlu0 %5158
    %v5160 = vlaneseq
    %v5161 = vshrl.u32 %v5160, 7
    %v5162 = vsub.s32 7, %v5161
    %v5163 = vrot.slane %v5109, %v5162
    %5165 = vbcast.lane.b32.xlu0 %v5163, 256
    %v5166 = vpop.permute.xlu0 %5165
    %v5175 = vadd.f32 %v4950, %v5117
    %v5176 = vadd.f32 %v4953, %v5124
    %v5177 = vadd.f32 %v4956, %v5131
    %v5178 = vadd.f32 %v4959, %v5138
    %v5179 = vadd.f32 %v4962, %v5145
    %v5180 = vadd.f32 %v4965, %v5152
    %v5181 = vadd.f32 %v4968, %v5159
    %v5182 = vadd.f32 %v4971, %v5166
    %v5183 = vld [vmem:[%s808] sm:$0xff]
    %vm5184 = vcmp.gt.f32.partialorder %v5183, 0.0
    %v5185 = vsel %vm5184, 1, 0
    %5186 = vset.pattern.permute.xlu0 0
    %5187 = vperm.xlu0 %5186, %v5185
    %v5188 = vpop.permute.xlu0 %5187
    %vm5189 = vcmp.eq.s32.totalorder %v5188, 1
    %v5190 = vlaneseq
    %v5191 = vshrl.u32 %v5190, 7
    %v5192 = vsub.s32 %v2557, %v5191
    %v5193 = vrot.slane %v5002, %v5192
    %v5194 = vlaneseq
    %v5195 = vshrl.u32 %v5194, 7
    %v5196 = vsub.s32 %v2557, %v5195
    %v5197 = vrot.slane %v5017, %v5196
    %v5198 = vlaneseq
    %v5199 = vshrl.u32 %v5198, 7
    %v5200 = vsub.s32 %v2557, %v5199
    %v5201 = vrot.slane %v5032, %v5200
    %v5202 = vlaneseq
    %v5203 = vshrl.u32 %v5202, 7
    %v5204 = vsub.s32 %v2557, %v5203
    %v5205 = vrot.slane %v5047, %v5204
    %v5206 = vlaneseq
    %v5207 = vshrl.u32 %v5206, 7
    %v5208 = vsub.s32 %v2557, %v5207
    %v5209 = vrot.slane %v5062, %v5208
    %v5210 = vlaneseq
    %v5211 = vshrl.u32 %v5210, 7
    %v5212 = vsub.s32 %v2557, %v5211
    %v5213 = vrot.slane %v5077, %v5212
    %v5214 = vlaneseq
    %v5215 = vshrl.u32 %v5214, 7
    %v5216 = vsub.s32 %v2557, %v5215
    %v5217 = vrot.slane %v5092, %v5216
    %v5218 = vlaneseq
    %v5219 = vshrl.u32 %v5218, 7
    %v5220 = vsub.s32 %v2557, %v5219
    %v5221 = vrot.slane %v5107, %v5220
    %v5222 = vsel %vm2940, %v5197, %v5193
    %v5223 = vsel %vm2942, %v5201, %v5222
    %v5224 = vsel %vm2944, %v5205, %v5223
    %v5225 = vsel %vm2946, %v5209, %v5224
    %v5226 = vsel %vm2948, %v5213, %v5225
    %v5227 = vsel %vm2950, %v5217, %v5226
    %v5228 = vsel %vm2952, %v5221, %v5227
    %v5229 = vsel %vm5189, %v5228, %v2557
    %s5230 = scalar_lea.vmem [#allocation7], 48
    %5231 = vst.msk [vmem:[%s5230] sm:$0xff] %vm2546, %v5229
    %5240 = vset.pattern.permute.xlu0 0
    %5241 = vperm.xlu0 %5240, %v5175
    %v5242 = vpop.permute.xlu0 %5241
    %5243 = vset.pattern.permute.xlu0 0
    %5244 = vperm.xlu0 %5243, %v5176
    %v5245 = vpop.permute.xlu0 %5244
    %5246 = vset.pattern.permute.xlu0 0
    %5247 = vperm.xlu0 %5246, %v5177
    %v5248 = vpop.permute.xlu0 %5247
    %5249 = vset.pattern.permute.xlu0 0
    %5250 = vperm.xlu0 %5249, %v5178
    %v5251 = vpop.permute.xlu0 %5250
    %5252 = vset.pattern.permute.xlu0 0
    %5253 = vperm.xlu0 %5252, %v5179
    %v5254 = vpop.permute.xlu0 %5253
    %5255 = vset.pattern.permute.xlu0 0
    %5256 = vperm.xlu0 %5255, %v5180
    %v5257 = vpop.permute.xlu0 %5256
    %5258 = vset.pattern.permute.xlu0 0
    %5259 = vperm.xlu0 %5258, %v5181
    %v5260 = vpop.permute.xlu0 %5259
    %5261 = vset.pattern.permute.xlu0 0
    %5262 = vperm.xlu0 %5261, %v5182
    %v5263 = vpop.permute.xlu0 %5262
    %v5264 = vlaneseq
    %v5265 = vshrl.u32 %v5264, 7
    %v5266 = vsub.s32 %v2557, %v5265
    %v5267 = vrot.slane %v5242, %v5266
    %v5268 = vlaneseq
    %v5269 = vshrl.u32 %v5268, 7
    %v5270 = vsub.s32 %v2557, %v5269
    %v5271 = vrot.slane %v5245, %v5270
    %v5272 = vlaneseq
    %v5273 = vshrl.u32 %v5272, 7
    %v5274 = vsub.s32 %v2557, %v5273
    %v5275 = vrot.slane %v5248, %v5274
    %v5276 = vlaneseq
    %v5277 = vshrl.u32 %v5276, 7
    %v5278 = vsub.s32 %v2557, %v5277
    %v5279 = vrot.slane %v5251, %v5278
    %v5280 = vlaneseq
    %v5281 = vshrl.u32 %v5280, 7
    %v5282 = vsub.s32 %v2557, %v5281
    %v5283 = vrot.slane %v5254, %v5282
    %v5284 = vlaneseq
    %v5285 = vshrl.u32 %v5284, 7
    %v5286 = vsub.s32 %v2557, %v5285
    %v5287 = vrot.slane %v5257, %v5286
    %v5288 = vlaneseq
    %v5289 = vshrl.u32 %v5288, 7
    %v5290 = vsub.s32 %v2557, %v5289
    %v5291 = vrot.slane %v5260, %v5290
    %v5292 = vlaneseq
    %v5293 = vshrl.u32 %v5292, 7
    %v5294 = vsub.s32 %v2557, %v5293
    %v5295 = vrot.slane %v5263, %v5294
    %v5296 = vsel %vm2940, %v5271, %v5267
    %v5297 = vsel %vm2942, %v5275, %v5296
    %v5298 = vsel %vm2944, %v5279, %v5297
    %v5299 = vsel %vm2946, %v5283, %v5298
    %v5300 = vsel %vm2948, %v5287, %v5299
    %v5301 = vsel %vm2950, %v5291, %v5300
    %v5302 = vsel %vm2952, %v5295, %v5301
    %v5304 = vsel %vm5189, %v5302, %v4849
    %v5306 = vcombine.high %v5304, %v5304
    %v5308 = vunpack.c.l.s4 1966171168
    %v5309 = vunpack.c.0.s8 %v5308
    %v5310 = vlaneseq
    %v5311 = vshrl.u32 %v5310, 7
    %v5312 = vsub.s32 %v5309, %v5311
    %v5313 = vrot.slane %v5304, %v5312
    %v5315 = vunpack.c.l.s4 1966171168
    %v5316 = vunpack.c.0.s8 %v5315
    %v5317 = vlaneseq
    %v5318 = vshrl.u32 %v5317, 7
    %v5319 = vsub.s32 %v5316, %v5318
    %v5320 = vrot.slane %v5306, %v5319
    %v5321 = vcombine.high %v5313, %v5313
    %v5322 = vcombine.high %v5320, %v5320
    %v5324 = vunpack.c.l.s4 1966171168
    %v5325 = vunpack.c.0.s8 %v5324
    %v5326 = vlaneseq
    %v5327 = vshrl.u32 %v5326, 7
    %v5328 = vsub.s32 %v5325, %v5327
    %v5329 = vrot.slane %v5313, %v5328
    %v5331 = vunpack.c.l.s4 1966171168
    %v5332 = vunpack.c.0.s8 %v5331
    %v5333 = vlaneseq
    %v5334 = vshrl.u32 %v5333, 7
    %v5335 = vsub.s32 %v5332, %v5334
    %v5336 = vrot.slane %v5320, %v5335
    %v5338 = vunpack.c.l.s4 1966171168
    %v5339 = vunpack.c.0.s8 %v5338
    %v5340 = vlaneseq
    %v5341 = vshrl.u32 %v5340, 7
    %v5342 = vsub.s32 %v5339, %v5341
    %v5343 = vrot.slane %v5321, %v5342
    %v5345 = vunpack.c.l.s4 1966171168
    %v5346 = vunpack.c.0.s8 %v5345
    %v5347 = vlaneseq
    %v5348 = vshrl.u32 %v5347, 7
    %v5349 = vsub.s32 %v5346, %v5348
    %v5350 = vrot.slane %v5322, %v5349
    %v5351 = vcombine.high %v5329, %v5329
    %v5352 = vcombine.high %v5336, %v5336
    %v5353 = vcombine.high %v5343, %v5343
    %v5354 = vcombine.high %v5350, %v5350
    %v5355 = vlaneseq
    %v5356 = vshrl.u32 %v5355, 7
    %v5357 = vsub.s32 0, %v5356
    %v5358 = vrot.slane %v5329, %v5357
    %v5359 = vlaneseq
    %v5360 = vshrl.u32 %v5359, 7
    %v5361 = vsub.s32 0, %v5360
    %v5362 = vrot.slane %v5343, %v5361
    %v5363 = vlaneseq
    %v5364 = vshrl.u32 %v5363, 7
    %v5365 = vsub.s32 0, %v5364
    %v5366 = vrot.slane %v5351, %v5365
    %v5367 = vlaneseq
    %v5368 = vshrl.u32 %v5367, 7
    %v5369 = vsub.s32 0, %v5368
    %v5370 = vrot.slane %v5353, %v5369
    %v5371 = vlaneseq
    %v5372 = vshrl.u32 %v5371, 7
    %v5373 = vsub.s32 0, %v5372
    %v5374 = vrot.slane %v5336, %v5373
    %v5375 = vlaneseq
    %v5376 = vshrl.u32 %v5375, 7
    %v5377 = vsub.s32 0, %v5376
    %v5378 = vrot.slane %v5350, %v5377
    %v5379 = vlaneseq
    %v5380 = vshrl.u32 %v5379, 7
    %v5381 = vsub.s32 0, %v5380
    %v5382 = vrot.slane %v5352, %v5381
    %v5383 = vlaneseq
    %v5384 = vshrl.u32 %v5383, 7
    %v5385 = vsub.s32 0, %v5384
    %v5386 = vrot.slane %v5354, %v5385
    %v5395 = vadd.f32 %v5358, %v2555
    %v5396 = vadd.f32 %v5362, %v2555
    %v5397 = vadd.f32 %v5366, %v2555
    %v5398 = vadd.f32 %v5370, %v2555
    %v5399 = vadd.f32 %v5374, %v2555
    %v5400 = vadd.f32 %v5378, %v2555
    %v5401 = vadd.f32 %v5382, %v2555
    %v5402 = vadd.f32 %v5386, %v2555
    %v5403 = vsel %vm2546, %v5395, -inf
    %5404 = vmax.xlane.f32.xlu0 %v5403
    %v5405 = vpop.xlane.xlu0 %5404
    %v5406 = vsel %vm2546, %v5396, -inf
    %5407 = vmax.xlane.f32.xlu0 %v5406
    %v5408 = vpop.xlane.xlu0 %5407
    %v5409 = vsel %vm2546, %v5397, -inf
    %5410 = vmax.xlane.f32.xlu0 %v5409
    %v5411 = vpop.xlane.xlu0 %5410
    %v5412 = vsel %vm2546, %v5398, -inf
    %5413 = vmax.xlane.f32.xlu0 %v5412
    %v5414 = vpop.xlane.xlu0 %5413
    %v5415 = vsel %vm2546, %v5399, -inf
    %5416 = vmax.xlane.f32.xlu0 %v5415
    %v5417 = vpop.xlane.xlu0 %5416
    %v5418 = vsel %vm2546, %v5400, -inf
    %5419 = vmax.xlane.f32.xlu0 %v5418
    %v5420 = vpop.xlane.xlu0 %5419
    %v5421 = vsel %vm2546, %v5401, -inf
    %5422 = vmax.xlane.f32.xlu0 %v5421
    %v5423 = vpop.xlane.xlu0 %5422
    %v5424 = vsel %vm2546, %v5402, -inf
    %5425 = vmax.xlane.f32.xlu0 %v5424
    %v5426 = vpop.xlane.xlu0 %5425
    %vm5427 = vcmp.ge.f32.partialorder %v5395, %v5405
    %vm5428 = vcmp.ge.f32.partialorder %v5396, %v5408
    %vm5429 = vcmp.ge.f32.partialorder %v5397, %v5411
    %vm5430 = vcmp.ge.f32.partialorder %v5398, %v5414
    %vm5431 = vcmp.ge.f32.partialorder %v5399, %v5417
    %vm5432 = vcmp.ge.f32.partialorder %v5400, %v5420
    %vm5433 = vcmp.ge.f32.partialorder %v5401, %v5423
    %vm5434 = vcmp.ge.f32.partialorder %v5402, %v5426
    %v5435 = vsel %vm5427, %v2557, 8
    %v5436 = vsel %vm5428, %v2557, 8
    %v5437 = vsel %vm5429, %v2557, 8
    %v5438 = vsel %vm5430, %v2557, 8
    %v5439 = vsel %vm5431, %v2557, 8
    %v5440 = vsel %vm5432, %v2557, 8
    %v5441 = vsel %vm5433, %v2557, 8
    %v5442 = vsel %vm5434, %v2557, 8
    %v5443 = vsel %vm2546, %v5435, 2147483647
    %v5444 = vand.u32 %v5443, 65535
    %v5445 = vshra.s32 %v5443, 16
    %v5446 = vcvt.s32.f32 %v5444
    %v5447 = vcvt.s32.f32 %v5445
    %5448 = vmin.xlane.f32.xlu0 %v5447
    %v5449 = vpop.xlane.xlu0 %5448
    %vm5450 = vcmp.eq.f32.partialorder %v5447, %v5449
    %v5451 = vsel %vm5450, %v5446, inf
    %5452 = vmin.xlane.f32.xlu0 %v5451
    %v5453 = vpop.xlane.xlu0 %5452
    %v5454 = vcvt.f32.s32 %v5453
    %v5455 = vcvt.f32.s32 %v5449
    %v5456 = vshll.u32 %v5455, 16
    %v5457 = vadd.s32 %v5456, %v5454
    %v5458 = vsel %vm2546, %v5436, 2147483647
    %v5459 = vand.u32 %v5458, 65535
    %v5460 = vshra.s32 %v5458, 16
    %v5461 = vcvt.s32.f32 %v5459
    %v5462 = vcvt.s32.f32 %v5460
    %5463 = vmin.xlane.f32.xlu0 %v5462
    %v5464 = vpop.xlane.xlu0 %5463
    %vm5465 = vcmp.eq.f32.partialorder %v5462, %v5464
    %v5466 = vsel %vm5465, %v5461, inf
    %5467 = vmin.xlane.f32.xlu0 %v5466
    %v5468 = vpop.xlane.xlu0 %5467
    %v5469 = vcvt.f32.s32 %v5468
    %v5470 = vcvt.f32.s32 %v5464
    %v5471 = vshll.u32 %v5470, 16
    %v5472 = vadd.s32 %v5471, %v5469
    %v5473 = vsel %vm2546, %v5437, 2147483647
    %v5474 = vand.u32 %v5473, 65535
    %v5475 = vshra.s32 %v5473, 16
    %v5476 = vcvt.s32.f32 %v5474
    %v5477 = vcvt.s32.f32 %v5475
    %5478 = vmin.xlane.f32.xlu0 %v5477
    %v5479 = vpop.xlane.xlu0 %5478
    %vm5480 = vcmp.eq.f32.partialorder %v5477, %v5479
    %v5481 = vsel %vm5480, %v5476, inf
    %5482 = vmin.xlane.f32.xlu0 %v5481
    %v5483 = vpop.xlane.xlu0 %5482
    %v5484 = vcvt.f32.s32 %v5483
    %v5485 = vcvt.f32.s32 %v5479
    %v5486 = vshll.u32 %v5485, 16
    %v5487 = vadd.s32 %v5486, %v5484
    %v5488 = vsel %vm2546, %v5438, 2147483647
    %v5489 = vand.u32 %v5488, 65535
    %v5490 = vshra.s32 %v5488, 16
    %v5491 = vcvt.s32.f32 %v5489
    %v5492 = vcvt.s32.f32 %v5490
    %5493 = vmin.xlane.f32.xlu0 %v5492
    %v5494 = vpop.xlane.xlu0 %5493
    %vm5495 = vcmp.eq.f32.partialorder %v5492, %v5494
    %v5496 = vsel %vm5495, %v5491, inf
    %5497 = vmin.xlane.f32.xlu0 %v5496
    %v5498 = vpop.xlane.xlu0 %5497
    %v5499 = vcvt.f32.s32 %v5498
    %v5500 = vcvt.f32.s32 %v5494
    %v5501 = vshll.u32 %v5500, 16
    %v5502 = vadd.s32 %v5501, %v5499
    %v5503 = vsel %vm2546, %v5439, 2147483647
    %v5504 = vand.u32 %v5503, 65535
    %v5505 = vshra.s32 %v5503, 16
    %v5506 = vcvt.s32.f32 %v5504
    %v5507 = vcvt.s32.f32 %v5505
    %5508 = vmin.xlane.f32.xlu0 %v5507
    %v5509 = vpop.xlane.xlu0 %5508
    %vm5510 = vcmp.eq.f32.partialorder %v5507, %v5509
    %v5511 = vsel %vm5510, %v5506, inf
    %5512 = vmin.xlane.f32.xlu0 %v5511
    %v5513 = vpop.xlane.xlu0 %5512
    %v5514 = vcvt.f32.s32 %v5513
    %v5515 = vcvt.f32.s32 %v5509
    %v5516 = vshll.u32 %v5515, 16
    %v5517 = vadd.s32 %v5516, %v5514
    %v5518 = vsel %vm2546, %v5440, 2147483647
    %v5519 = vand.u32 %v5518, 65535
    %v5520 = vshra.s32 %v5518, 16
    %v5521 = vcvt.s32.f32 %v5519
    %v5522 = vcvt.s32.f32 %v5520
    %5523 = vmin.xlane.f32.xlu0 %v5522
    %v5524 = vpop.xlane.xlu0 %5523
    %vm5525 = vcmp.eq.f32.partialorder %v5522, %v5524
    %v5526 = vsel %vm5525, %v5521, inf
    %5527 = vmin.xlane.f32.xlu0 %v5526
    %v5528 = vpop.xlane.xlu0 %5527
    %v5529 = vcvt.f32.s32 %v5528
    %v5530 = vcvt.f32.s32 %v5524
    %v5531 = vshll.u32 %v5530, 16
    %v5532 = vadd.s32 %v5531, %v5529
    %v5533 = vsel %vm2546, %v5441, 2147483647
    %v5534 = vand.u32 %v5533, 65535
    %v5535 = vshra.s32 %v5533, 16
    %v5536 = vcvt.s32.f32 %v5534
    %v5537 = vcvt.s32.f32 %v5535
    %5538 = vmin.xlane.f32.xlu0 %v5537
    %v5539 = vpop.xlane.xlu0 %5538
    %vm5540 = vcmp.eq.f32.partialorder %v5537, %v5539
    %v5541 = vsel %vm5540, %v5536, inf
    %5542 = vmin.xlane.f32.xlu0 %v5541
    %v5543 = vpop.xlane.xlu0 %5542
    %v5544 = vcvt.f32.s32 %v5543
    %v5545 = vcvt.f32.s32 %v5539
    %v5546 = vshll.u32 %v5545, 16
    %v5547 = vadd.s32 %v5546, %v5544
    %v5548 = vsel %vm2546, %v5442, 2147483647
    %v5549 = vand.u32 %v5548, 65535
    %v5550 = vshra.s32 %v5548, 16
    %v5551 = vcvt.s32.f32 %v5549
    %v5552 = vcvt.s32.f32 %v5550
    %5553 = vmin.xlane.f32.xlu0 %v5552
    %v5554 = vpop.xlane.xlu0 %5553
    %vm5555 = vcmp.eq.f32.partialorder %v5552, %v5554
    %v5556 = vsel %vm5555, %v5551, inf
    %5557 = vmin.xlane.f32.xlu0 %v5556
    %v5558 = vpop.xlane.xlu0 %5557
    %v5559 = vcvt.f32.s32 %v5558
    %v5560 = vcvt.f32.s32 %v5554
    %v5561 = vshll.u32 %v5560, 16
    %v5562 = vadd.s32 %v5561, %v5559
    %s5563 = scalar_lea.vmem [#allocation6], 56
    %v5564 = vld [vmem:[%s5563] sm:$0xff]
    %v5566 = vlaneseq
    %v5567 = vshrl.u32 %v5566, 7
    %v5568 = vsub.s32 0, %v5567
    %v5569 = vrot.slane %v5564, %v5568
    %5571 = vbcast.lane.b32.xlu0 %v5569, 256
    %v5572 = vpop.permute.xlu0 %5571
    %v5573 = vlaneseq
    %v5574 = vshrl.u32 %v5573, 7
    %v5575 = vsub.s32 1, %v5574
    %v5576 = vrot.slane %v5564, %v5575
    %5578 = vbcast.lane.b32.xlu0 %v5576, 256
    %v5579 = vpop.permute.xlu0 %5578
    %v5580 = vlaneseq
    %v5581 = vshrl.u32 %v5580, 7
    %v5582 = vsub.s32 2, %v5581
    %v5583 = vrot.slane %v5564, %v5582
    %5585 = vbcast.lane.b32.xlu0 %v5583, 256
    %v5586 = vpop.permute.xlu0 %5585
    %v5587 = vlaneseq
    %v5588 = vshrl.u32 %v5587, 7
    %v5589 = vsub.s32 3, %v5588
    %v5590 = vrot.slane %v5564, %v5589
    %5592 = vbcast.lane.b32.xlu0 %v5590, 256
    %v5593 = vpop.permute.xlu0 %5592
    %v5594 = vlaneseq
    %v5595 = vshrl.u32 %v5594, 7
    %v5596 = vsub.s32 4, %v5595
    %v5597 = vrot.slane %v5564, %v5596
    %5599 = vbcast.lane.b32.xlu0 %v5597, 256
    %v5600 = vpop.permute.xlu0 %5599
    %v5601 = vlaneseq
    %v5602 = vshrl.u32 %v5601, 7
    %v5603 = vsub.s32 5, %v5602
    %v5604 = vrot.slane %v5564, %v5603
    %5606 = vbcast.lane.b32.xlu0 %v5604, 256
    %v5607 = vpop.permute.xlu0 %5606
    %v5608 = vlaneseq
    %v5609 = vshrl.u32 %v5608, 7
    %v5610 = vsub.s32 6, %v5609
    %v5611 = vrot.slane %v5564, %v5610
    %5613 = vbcast.lane.b32.xlu0 %v5611, 256
    %v5614 = vpop.permute.xlu0 %5613
    %v5615 = vlaneseq
    %v5616 = vshrl.u32 %v5615, 7
    %v5617 = vsub.s32 7, %v5616
    %v5618 = vrot.slane %v5564, %v5617
    %5620 = vbcast.lane.b32.xlu0 %v5618, 256
    %v5621 = vpop.permute.xlu0 %5620
    %v5630 = vadd.f32 %v5405, %v5572
    %v5631 = vadd.f32 %v5408, %v5579
    %v5632 = vadd.f32 %v5411, %v5586
    %v5633 = vadd.f32 %v5414, %v5593
    %v5634 = vadd.f32 %v5417, %v5600
    %v5635 = vadd.f32 %v5420, %v5607
    %v5636 = vadd.f32 %v5423, %v5614
    %v5637 = vadd.f32 %v5426, %v5621
    %v5638 = vld [vmem:[%s579] sm:$0xff]
    %vm5639 = vcmp.gt.f32.partialorder %v5638, 0.0
    %v5640 = vsel %vm5639, 1, 0
    %5641 = vset.pattern.permute.xlu0 0
    %5642 = vperm.xlu0 %5641, %v5640
    %v5643 = vpop.permute.xlu0 %5642
    %vm5644 = vcmp.eq.s32.totalorder %v5643, 1
    %v5645 = vlaneseq
    %v5646 = vshrl.u32 %v5645, 7
    %v5647 = vsub.s32 %v2557, %v5646
    %v5648 = vrot.slane %v5457, %v5647
    %v5649 = vlaneseq
    %v5650 = vshrl.u32 %v5649, 7
    %v5651 = vsub.s32 %v2557, %v5650
    %v5652 = vrot.slane %v5472, %v5651
    %v5653 = vlaneseq
    %v5654 = vshrl.u32 %v5653, 7
    %v5655 = vsub.s32 %v2557, %v5654
    %v5656 = vrot.slane %v5487, %v5655
    %v5657 = vlaneseq
    %v5658 = vshrl.u32 %v5657, 7
    %v5659 = vsub.s32 %v2557, %v5658
    %v5660 = vrot.slane %v5502, %v5659
    %v5661 = vlaneseq
    %v5662 = vshrl.u32 %v5661, 7
    %v5663 = vsub.s32 %v2557, %v5662
    %v5664 = vrot.slane %v5517, %v5663
    %v5665 = vlaneseq
    %v5666 = vshrl.u32 %v5665, 7
    %v5667 = vsub.s32 %v2557, %v5666
    %v5668 = vrot.slane %v5532, %v5667
    %v5669 = vlaneseq
    %v5670 = vshrl.u32 %v5669, 7
    %v5671 = vsub.s32 %v2557, %v5670
    %v5672 = vrot.slane %v5547, %v5671
    %v5673 = vlaneseq
    %v5674 = vshrl.u32 %v5673, 7
    %v5675 = vsub.s32 %v2557, %v5674
    %v5676 = vrot.slane %v5562, %v5675
    %v5677 = vsel %vm2940, %v5652, %v5648
    %v5678 = vsel %vm2942, %v5656, %v5677
    %v5679 = vsel %vm2944, %v5660, %v5678
    %v5680 = vsel %vm2946, %v5664, %v5679
    %v5681 = vsel %vm2948, %v5668, %v5680
    %v5682 = vsel %vm2950, %v5672, %v5681
    %v5683 = vsel %vm2952, %v5676, %v5682
    %v5684 = vsel %vm5644, %v5683, %v2557
    %s5685 = scalar_lea.vmem [#allocation7], 56
    %5686 = vst.msk [vmem:[%s5685] sm:$0xff] %vm2546, %v5684
    %5695 = vset.pattern.permute.xlu0 0
    %5696 = vperm.xlu0 %5695, %v5630
    %v5697 = vpop.permute.xlu0 %5696
    %5698 = vset.pattern.permute.xlu0 0
    %5699 = vperm.xlu0 %5698, %v5631
    %v5700 = vpop.permute.xlu0 %5699
    %5701 = vset.pattern.permute.xlu0 0
    %5702 = vperm.xlu0 %5701, %v5632
    %v5703 = vpop.permute.xlu0 %5702
    %5704 = vset.pattern.permute.xlu0 0
    %5705 = vperm.xlu0 %5704, %v5633
    %v5706 = vpop.permute.xlu0 %5705
    %5707 = vset.pattern.permute.xlu0 0
    %5708 = vperm.xlu0 %5707, %v5634
    %v5709 = vpop.permute.xlu0 %5708
    %5710 = vset.pattern.permute.xlu0 0
    %5711 = vperm.xlu0 %5710, %v5635
    %v5712 = vpop.permute.xlu0 %5711
    %5713 = vset.pattern.permute.xlu0 0
    %5714 = vperm.xlu0 %5713, %v5636
    %v5715 = vpop.permute.xlu0 %5714
    %5716 = vset.pattern.permute.xlu0 0
    %5717 = vperm.xlu0 %5716, %v5637
    %v5718 = vpop.permute.xlu0 %5717
    %v5719 = vlaneseq
    %v5720 = vshrl.u32 %v5719, 7
    %v5721 = vsub.s32 %v2557, %v5720
    %v5722 = vrot.slane %v5697, %v5721
    %v5723 = vlaneseq
    %v5724 = vshrl.u32 %v5723, 7
    %v5725 = vsub.s32 %v2557, %v5724
    %v5726 = vrot.slane %v5700, %v5725
    %v5727 = vlaneseq
    %v5728 = vshrl.u32 %v5727, 7
    %v5729 = vsub.s32 %v2557, %v5728
    %v5730 = vrot.slane %v5703, %v5729
    %v5731 = vlaneseq
    %v5732 = vshrl.u32 %v5731, 7
    %v5733 = vsub.s32 %v2557, %v5732
    %v5734 = vrot.slane %v5706, %v5733
    %v5735 = vlaneseq
    %v5736 = vshrl.u32 %v5735, 7
    %v5737 = vsub.s32 %v2557, %v5736
    %v5738 = vrot.slane %v5709, %v5737
    %v5739 = vlaneseq
    %v5740 = vshrl.u32 %v5739, 7
    %v5741 = vsub.s32 %v2557, %v5740
    %v5742 = vrot.slane %v5712, %v5741
    %v5743 = vlaneseq
    %v5744 = vshrl.u32 %v5743, 7
    %v5745 = vsub.s32 %v2557, %v5744
    %v5746 = vrot.slane %v5715, %v5745
    %v5747 = vlaneseq
    %v5748 = vshrl.u32 %v5747, 7
    %v5749 = vsub.s32 %v2557, %v5748
    %v5750 = vrot.slane %v5718, %v5749
    %v5751 = vsel %vm2940, %v5726, %v5722
    %v5752 = vsel %vm2942, %v5730, %v5751
    %v5753 = vsel %vm2944, %v5734, %v5752
    %v5754 = vsel %vm2946, %v5738, %v5753
    %v5755 = vsel %vm2948, %v5742, %v5754
    %v5756 = vsel %vm2950, %v5746, %v5755
    %v5757 = vsel %vm2952, %v5750, %v5756
    %v5759 = vsel %vm5644, %v5757, %v5304
    %v5760 = vld [vmem:[%s13] sm:$0x1]
    %v5762 = vlaneseq
    %v5763 = vshrl.u32 %v5762, 7
    %v5764 = vsub.s32 0, %v5763
    %v5765 = vrot.slane %v5760, %v5764
    %v5767 = vadd.f32 %v5759, %v5765
    %v5768 = vsel %vm2546, %v5767, -inf
    %5769 = vmax.xlane.f32.xlu0 %v5768
    %v5770 = vpop.xlane.xlu0 %5769
    %vm5771 = vcmp.ge.f32.partialorder %v5767, %v5770
    %v5772 = vsel %vm5771, %v2557, 8
    %v5773 = vsel %vm2546, %v5772, 2147483647
    %v5774 = vand.u32 %v5773, 65535
    %v5775 = vshra.s32 %v5773, 16
    %v5776 = vcvt.s32.f32 %v5774
    %v5777 = vcvt.s32.f32 %v5775
    %5778 = vmin.xlane.f32.xlu0 %v5777
    %v5779 = vpop.xlane.xlu0 %5778
    %vm5780 = vcmp.eq.f32.partialorder %v5777, %v5779
    %v5781 = vsel %vm5780, %v5776, inf
    %5782 = vmin.xlane.f32.xlu0 %v5781
    %v5783 = vpop.xlane.xlu0 %5782
    %v5784 = vcvt.f32.s32 %v5783
    %v5785 = vcvt.f32.s32 %v5779
    %v5786 = vshll.u32 %v5785, 16
    %v5787 = vadd.s32 %v5786, %v5784
    %v5788 = vld [vmem:[%s579] sm:$0xff]
    %vm5789 = vcmp.gt.f32.partialorder %v5788, 0.0
    %v5790 = vsel %vm5789, %v5787, 0
    %s5791 = scalar_lea.vmem %s14, 56
    %vm5792 = vcmask 7168
    %5793 = vst.msk [vmem:[%s5791] sm:$0xff] %vm5792, %v5790
    %vm5794 = vcmp.eq.s32.totalorder %v2557, %v5787
    %v5795 = vld [vmem:[%s5685] sm:$0xff]
    %v5796 = vsel %vm5794, %v5795, 0
    %v5797 = vsel %vm2546, %v5796, 2147483648
    %v5798 = vand.u32 %v5797, 65535
    %v5799 = vshra.s32 %v5797, 16
    %v5800 = vcvt.s32.f32 %v5798
    %v5801 = vcvt.s32.f32 %v5799
    %5802 = vmax.xlane.f32.xlu0 %v5801
    %v5803 = vpop.xlane.xlu0 %5802
    %vm5804 = vcmp.eq.f32.partialorder %v5801, %v5803
    %v5805 = vsel %vm5804, %v5800, -inf
    %5806 = vmax.xlane.f32.xlu0 %v5805
    %v5807 = vpop.xlane.xlu0 %5806
    %v5808 = vcvt.f32.s32 %v5807
    %v5809 = vcvt.f32.s32 %v5803
    %v5810 = vshll.u32 %v5809, 16
    %v5811 = vadd.s32 %v5810, %v5808
    %v5812 = vld [vmem:[%s808] sm:$0xff]
    %vm5813 = vcmp.gt.f32.partialorder %v5812, 0.0
    %v5814 = vsel %vm5813, %v5811, 0
    %s5815 = scalar_lea.vmem %s14, 48
    %5816 = vst.msk [vmem:[%s5815] sm:$0xff] %vm5792, %v5814
    %vm5817 = vcmp.eq.s32.totalorder %v2557, %v5811
    %v5818 = vld [vmem:[%s5230] sm:$0xff]
    %v5819 = vsel %vm5817, %v5818, 0
    %v5820 = vsel %vm2546, %v5819, 2147483648
    %v5821 = vand.u32 %v5820, 65535
    %v5822 = vshra.s32 %v5820, 16
    %v5823 = vcvt.s32.f32 %v5821
    %v5824 = vcvt.s32.f32 %v5822
    %5825 = vmax.xlane.f32.xlu0 %v5824
    %v5826 = vpop.xlane.xlu0 %5825
    %vm5827 = vcmp.eq.f32.partialorder %v5824, %v5826
    %v5828 = vsel %vm5827, %v5823, -inf
    %5829 = vmax.xlane.f32.xlu0 %v5828
    %v5830 = vpop.xlane.xlu0 %5829
    %v5831 = vcvt.f32.s32 %v5830
    %v5832 = vcvt.f32.s32 %v5826
    %v5833 = vshll.u32 %v5832, 16
    %v5834 = vadd.s32 %v5833, %v5831
    %v5835 = vld [vmem:[%s1046] sm:$0xff]
    %vm5836 = vcmp.gt.f32.partialorder %v5835, 0.0
    %v5837 = vsel %vm5836, %v5834, 0
    %s5838 = scalar_lea.vmem %s14, 40
    %5839 = vst.msk [vmem:[%s5838] sm:$0xff] %vm5792, %v5837
    %vm5840 = vcmp.eq.s32.totalorder %v2557, %v5834
    %v5841 = vld [vmem:[%s4775] sm:$0xff]
    %v5842 = vsel %vm5840, %v5841, 0
    %v5843 = vsel %vm2546, %v5842, 2147483648
    %v5844 = vand.u32 %v5843, 65535
    %v5845 = vshra.s32 %v5843, 16
    %v5846 = vcvt.s32.f32 %v5844
    %v5847 = vcvt.s32.f32 %v5845
    %5848 = vmax.xlane.f32.xlu0 %v5847
    %v5849 = vpop.xlane.xlu0 %5848
    %vm5850 = vcmp.eq.f32.partialorder %v5847, %v5849
    %v5851 = vsel %vm5850, %v5846, -inf
    %5852 = vmax.xlane.f32.xlu0 %v5851
    %v5853 = vpop.xlane.xlu0 %5852
    %v5854 = vcvt.f32.s32 %v5853
    %v5855 = vcvt.f32.s32 %v5849
    %v5856 = vshll.u32 %v5855, 16
    %v5857 = vadd.s32 %v5856, %v5854
    %v5858 = vld [vmem:[%s1284] sm:$0xff]
    %vm5859 = vcmp.gt.f32.partialorder %v5858, 0.0
    %v5860 = vsel %vm5859, %v5857, 0
    %s5861 = scalar_lea.vmem %s14, 32
    %5862 = vst.msk [vmem:[%s5861] sm:$0xff] %vm5792, %v5860
    %vm5863 = vcmp.eq.s32.totalorder %v2557, %v5857
    %v5864 = vld [vmem:[%s4320] sm:$0xff]
    %v5865 = vsel %vm5863, %v5864, 0
    %v5866 = vsel %vm2546, %v5865, 2147483648
    %v5867 = vand.u32 %v5866, 65535
    %v5868 = vshra.s32 %v5866, 16
    %v5869 = vcvt.s32.f32 %v5867
    %v5870 = vcvt.s32.f32 %v5868
    %5871 = vmax.xlane.f32.xlu0 %v5870
    %v5872 = vpop.xlane.xlu0 %5871
    %vm5873 = vcmp.eq.f32.partialorder %v5870, %v5872
    %v5874 = vsel %vm5873, %v5869, -inf
    %5875 = vmax.xlane.f32.xlu0 %v5874
    %v5876 = vpop.xlane.xlu0 %5875
    %v5877 = vcvt.f32.s32 %v5876
    %v5878 = vcvt.f32.s32 %v5872
    %v5879 = vshll.u32 %v5878, 16
    %v5880 = vadd.s32 %v5879, %v5877
    %v5881 = vld [vmem:[%s1281] sm:$0xff]
    %vm5882 = vcmp.gt.f32.partialorder %v5881, 0.0
    %v5883 = vsel %vm5882, %v5880, 0
    %s5884 = scalar_lea.vmem %s14, 24
    %5885 = vst.msk [vmem:[%s5884] sm:$0xff] %vm5792, %v5883
    %vm5886 = vcmp.eq.s32.totalorder %v2557, %v5880
    %v5887 = vld [vmem:[%s3865] sm:$0xff]
    %v5888 = vsel %vm5886, %v5887, 0
    %v5889 = vsel %vm2546, %v5888, 2147483648
    %v5890 = vand.u32 %v5889, 65535
    %v5891 = vshra.s32 %v5889, 16
    %v5892 = vcvt.s32.f32 %v5890
    %v5893 = vcvt.s32.f32 %v5891
    %5894 = vmax.xlane.f32.xlu0 %v5893
    %v5895 = vpop.xlane.xlu0 %5894
    %vm5896 = vcmp.eq.f32.partialorder %v5893, %v5895
    %v5897 = vsel %vm5896, %v5892, -inf
    %5898 = vmax.xlane.f32.xlu0 %v5897
    %v5899 = vpop.xlane.xlu0 %5898
    %v5900 = vcvt.f32.s32 %v5899
    %v5901 = vcvt.f32.s32 %v5895
    %v5902 = vshll.u32 %v5901, 16
    %v5903 = vadd.s32 %v5902, %v5900
    %v5904 = vld [vmem:[%s1043] sm:$0xff]
    %vm5905 = vcmp.gt.f32.partialorder %v5904, 0.0
    %v5906 = vsel %vm5905, %v5903, 0
    %s5907 = scalar_lea.vmem %s14, 16
    %5908 = vst.msk [vmem:[%s5907] sm:$0xff] %vm5792, %v5906
    %vm5909 = vcmp.eq.s32.totalorder %v2557, %v5903
    %v5910 = vld [vmem:[%s3410] sm:$0xff]
    %v5911 = vsel %vm5909, %v5910, 0
    %v5912 = vsel %vm2546, %v5911, 2147483648
    %v5913 = vand.u32 %v5912, 65535
    %v5914 = vshra.s32 %v5912, 16
    %v5915 = vcvt.s32.f32 %v5913
    %v5916 = vcvt.s32.f32 %v5914
    %5917 = vmax.xlane.f32.xlu0 %v5916
    %v5918 = vpop.xlane.xlu0 %5917
    %vm5919 = vcmp.eq.f32.partialorder %v5916, %v5918
    %v5920 = vsel %vm5919, %v5915, -inf
    %5921 = vmax.xlane.f32.xlu0 %v5920
    %v5922 = vpop.xlane.xlu0 %5921
    %v5923 = vcvt.f32.s32 %v5922
    %v5924 = vcvt.f32.s32 %v5918
    %v5925 = vshll.u32 %v5924, 16
    %v5926 = vadd.s32 %v5925, %v5923
    %v5927 = vld [vmem:[%s805] sm:$0xff]
    %vm5928 = vcmp.gt.f32.partialorder %v5927, 0.0
    %v5929 = vsel %vm5928, %v5926, 0
    %s5930 = scalar_lea.vmem %s14, 8
    %5931 = vst.msk [vmem:[%s5930] sm:$0xff] %vm5792, %v5929
    %vm5932 = vcmp.eq.s32.totalorder %v2557, %v5926
    %v5933 = vld [vmem:[%s2955] sm:$0xff]
    %v5934 = vsel %vm5932, %v5933, 0
    %v5935 = vsel %vm2546, %v5934, 2147483648
    %v5936 = vand.u32 %v5935, 65535
    %v5937 = vshra.s32 %v5935, 16
    %v5938 = vcvt.s32.f32 %v5936
    %v5939 = vcvt.s32.f32 %v5937
    %5940 = vmax.xlane.f32.xlu0 %v5939
    %v5941 = vpop.xlane.xlu0 %5940
    %vm5942 = vcmp.eq.f32.partialorder %v5939, %v5941
    %v5943 = vsel %vm5942, %v5938, -inf
    %5944 = vmax.xlane.f32.xlu0 %v5943
    %v5945 = vpop.xlane.xlu0 %5944
    %v5946 = vcvt.f32.s32 %v5945
    %v5947 = vcvt.f32.s32 %v5941
    %v5948 = vshll.u32 %v5947, 16
    %v5949 = vadd.s32 %v5948, %v5946
    %v5950 = vld [vmem:[%s1] sm:$0xff]
    %vm5951 = vcmp.gt.f32.partialorder %v5950, 0.0
    %v5952 = vsel %vm5951, %v5949, 0
    %5953 = vst.msk [vmem:[%s14] sm:$0xff] %vm5792, %v5952
    // Predicated region
    $region74: #{tpu_custom_call.1} parent=1 // pred_check
      _
    $region75: #{tpu_custom_call.1} parent=1 // pred_check_branch
      %5955 = sbr.rel (0) target = $region77
    $region76: #{tpu_custom_call.1} parent=1 // pred_region
      _
    $region77: #{tpu_custom_call.1} parent=1 // pred_fallthru
      _
    // Predicated region
    $region78: #{tpu_custom_call.1} parent=1 // pred_check
      _
    $region79: #{tpu_custom_call.1} parent=1 // pred_check_branch
      %5957 = sbr.rel (0) target = $region81
    $region80: #{tpu_custom_call.1} parent=1 // pred_region
      _
    $region81: #{tpu_custom_call.1} parent=1 // pred_fallthru
      _
    %5958 = vsyncpa [#allocation9], 1
    %5959 = vsyncpa [#allocation11], 1
    %5960 = vsyncpa [#allocation14], 1

</llo_original>
